<compile_context>
chip_gen: v7x
topology: tpu7x:2x2x1
jax: 0.10.0
libtpu: 0.0.40
codegen_flags: <defaults>
</compile_context>

<pallas_src>
import functools

import jax
import jax.numpy as jnp
from jax.experimental import pallas as pl
from jax.experimental.pallas import tpu as pltpu


# ---------------------------------------------------------------------------
# Kernel
# ---------------------------------------------------------------------------
def _conv_bn_relu_kernel(x_ref, w_ref, scale_ref, bias_ref, o_ref, *,
                         kh_sz, kw_sz, tile_h, w_out, dilation, relu6,
                         lane_dense):
    """Per grid step: one image, one row tile.

    x_ref:     (1, Hp, Wp, Cin)        full padded image, bf16 (VMEM)
    w_ref:     (KH, KW, Cin, Cout)     conv weights, bf16
    scale_ref: (1, 1, Cout)            BN scale = gamma / sqrt(var+eps), f32
    bias_ref:  (1, 1, Cout)            BN bias  = beta - mean*scale, f32
    o_ref:     (1, tile_h, Wout*Cout)  lane-dense output tile, or
               (1, tile_h, Wout, Cout) in the fallback layout.
    """
    t = pl.program_id(1)
    c_out = w_ref.shape[-1]

    acc = jnp.zeros((tile_h, w_out, c_out), jnp.float32)
    for kh in range(kh_sz):
        hs = t * tile_h + kh * dilation
        for kw in range(kw_sz):
            ws = kw * dilation
            patch = x_ref[0, pl.ds(hs, tile_h), ws:ws + w_out, :]
            acc = acc + jax.lax.dot_general(
                patch, w_ref[kh, kw],
                dimension_numbers=(((2,), (0,)), ((), ())),
                preferred_element_type=jnp.float32)

    # Eval-mode BatchNorm as a per-channel f32 epilogue, then ReLU / ReLU6.
    y = acc * scale_ref[...] + bias_ref[...]
    y = jnp.maximum(y, 0.0)
    if relu6:
        y = jnp.minimum(y, 6.0)

    if lane_dense:
        o_ref[0] = y.reshape(tile_h, w_out * c_out).astype(o_ref.dtype)
    else:
        o_ref[0] = y.astype(o_ref.dtype)


# ---------------------------------------------------------------------------
# pallas_call builder
# ---------------------------------------------------------------------------
def _forward_pallas(x_pad, w_hwio, scale, bias, *, kh_sz, kw_sz, h_out, w_out,
                    dilation, relu6, tile_h, out_dtype, vmem_limit_bytes,
                    lane_dense):
    n, hp, wp, c_in = x_pad.shape
    c_out = w_hwio.shape[-1]
    grid = (n, h_out // tile_h)

    kernel = functools.partial(
        _conv_bn_relu_kernel, kh_sz=kh_sz, kw_sz=kw_sz, tile_h=tile_h,
        w_out=w_out, dilation=dilation, relu6=relu6, lane_dense=lane_dense)

    # Constant-index operands never get re-DMA'd; a second pipeline buffer is
    # wasted VMEM.  Only used in the optimized variant (fallback stays plain).
    const_kw = dict(pipeline_mode=pl.Buffered(1)) if lane_dense else {}

    in_specs = [
        # Full padded image per image; block index constant along the row-tile
        # axis so it is not re-DMA'd between tiles.  TODO(synk): halo-tiled H
        # blocks via manual DMA for large feature maps.
        pl.BlockSpec((1, hp, wp, c_in), lambda i, t: (i, 0, 0, 0)),
        pl.BlockSpec((kh_sz, kw_sz, c_in, c_out),
                     lambda i, t: (0, 0, 0, 0), **const_kw),
        pl.BlockSpec((1, 1, c_out), lambda i, t: (0, 0, 0), **const_kw),
        pl.BlockSpec((1, 1, c_out), lambda i, t: (0, 0, 0), **const_kw),
    ]

    if lane_dense:
        out_shape = jax.ShapeDtypeStruct((n, h_out, w_out * c_out), out_dtype)
        out_specs = pl.BlockSpec((1, tile_h, w_out * c_out),
                                 lambda i, t: (i, t, 0))
    else:
        out_shape = jax.ShapeDtypeStruct((n, h_out, w_out, c_out), out_dtype)
        out_specs = pl.BlockSpec((1, tile_h, w_out, c_out),
                                 lambda i, t: (i, t, 0, 0))

    return pl.pallas_call(
        kernel,
        out_shape=out_shape,
        grid=grid,
        in_specs=in_specs,
        out_specs=out_specs,
        compiler_params=pltpu.CompilerParams(
            dimension_semantics=("parallel", "parallel"),
            vmem_limit_bytes=vmem_limit_bytes),
    )(x_pad, w_hwio, scale, bias)


def _vmem_limit_bytes():
    """Generation-aware scoped VMEM limit (v7x has only 64 MiB physical)."""
    try:
        cap = int(pltpu.get_tpu_info().vmem_capacity_bytes)
    except Exception:
        cap = 128 * 1024 * 1024
    return min(64 * 1024 * 1024, (cap * 3) // 4)


# ---------------------------------------------------------------------------
# Public wrapper (PyTorch NCHW / OIHW boundary)
# ---------------------------------------------------------------------------
def conv_bn_relu(x_nchw, weight_oihw, gamma, beta, running_mean, running_var,
                 *, stride=1, padding=0, dilation=1, groups=1, relu6=False,
                 eps=1e-5, compute_dtype=jnp.bfloat16, out_dtype=None,
                 tile_h=None):
    """Pallas implementation of _ConvBNReLU.forward (eval-mode BN)."""
    if stride != 1 or groups != 1:
        # TODO(synk): stride > 1 and grouped conv are not implemented here.
        raise NotImplementedError("only stride=1, groups=1 supported")

    n, c_in, h, w = x_nchw.shape
    c_out, _, kh_sz, kw_sz = weight_oihw.shape
    h_out = h + 2 * padding - dilation * (kh_sz - 1)
    w_out = w + 2 * padding - dilation * (kw_sz - 1)
    if out_dtype is None:
        # Review: pass bf16 here when feeding another bf16 conv to halve
        # output HBM traffic; default keeps the PyTorch-equivalent dtype.
        out_dtype = x_nchw.dtype

    # Generation-aware row tiling: biggest tile (one step per image) is best
    # on single-TensorCore v5e/v6e; callers can pass a smaller tile_h
    # (multiple of 8 that divides h_out) to feed v7x's 2 TCs at batch 1.
    if (tile_h is None or tile_h <= 0 or h_out % tile_h != 0
            or (tile_h != h_out and tile_h % 8 != 0)):
        tile_h = h_out

    # NCHW -> NHWC, zero-pad, cast to bf16: one fused XLA producer pass.
    # TODO(synk): an NHWC end-to-end model (or in-kernel border handling)
    # would remove this extra HBM pass entirely.
    x_pad = jnp.pad(
        jnp.transpose(x_nchw, (0, 2, 3, 1)),
        ((0, 0), (padding, padding), (padding, padding), (0, 0)),
    ).astype(compute_dtype)

    # Eval-mode BN parameters, kept in f32 and applied in the kernel epilogue.
    inv_std = jax.lax.rsqrt(running_var.astype(jnp.float32) + eps)
    scale = (gamma.astype(jnp.float32) * inv_std).reshape(1, 1, c_out)
    bias = (beta.astype(jnp.float32)
            - running_mean.astype(jnp.float32)
            * gamma.astype(jnp.float32) * inv_std).reshape(1, 1, c_out)

    # OIHW -> HWIO, bf16 (scale NOT folded in -- applied in f32 epilogue).
    w_hwio = jnp.transpose(weight_oihw, (2, 3, 1, 0)).astype(compute_dtype)

    common = dict(kh_sz=kh_sz, kw_sz=kw_sz, h_out=h_out, w_out=w_out,
                  dilation=dilation, relu6=relu6, tile_h=tile_h,
                  out_dtype=out_dtype, vmem_limit_bytes=_vmem_limit_bytes())

    try:
        # Optimized variant: lane-dense (Wout*Cout) output + Buffered(1)
        # constant operands.
        dense = _forward_pallas(x_pad, w_hwio, scale, bias,
                                lane_dense=True, **common)
        dense = jax.block_until_ready(dense)   # surface any deferred error
        out_nhwc = dense.reshape(n, h_out, w_out, c_out)
    except Exception:
        # Fallback: identical math, plain NHWC output block (no in-kernel
        # reshape, no Buffered(1)) -- guaranteed-lowering configuration.
        out_nhwc = _forward_pallas(x_pad, w_hwio, scale, bias,
                                   lane_dense=False, **common)

    # NHWC -> NCHW for PyTorch-equivalent output.
    return jnp.transpose(out_nhwc, (0, 3, 1, 2))


# ---------------------------------------------------------------------------
# Pure-JAX reference (f32) for correctness checking
# ---------------------------------------------------------------------------
def _reference(x_nchw, weight_oihw, gamma, beta, running_mean, running_var,
               *, stride=1, padding=0, dilation=1, relu6=False, eps=1e-5):
    y = jax.lax.conv_general_dilated(
        x_nchw.astype(jnp.float32), weight_oihw.astype(jnp.float32),
        window_strides=(stride, stride),
        padding=((padding, padding), (padding, padding)),
        rhs_dilation=(dilation, dilation),
        dimension_numbers=("NCHW", "OIHW", "NCHW"))
    inv_std = jax.lax.rsqrt(running_var.astype(jnp.float32) + eps)
    y = (y - running_mean[None, :, None, None]) * inv_std[None, :, None, None]
    y = y * gamma[None, :, None, None] + beta[None, :, None, None]
    y = jnp.maximum(y, 0.0)
    if relu6:
        y = jnp.minimum(y, 6.0)
    return y


if __name__ == "__main__":
    # _ConvBNReLU(in_channels=4, out_channels=8, kernel_size=3, padding=1)
    N, C_IN, H, W = 2, 4, 16, 16
    C_OUT, K, PAD = 8, 3, 1

    key = jax.random.PRNGKey(0)
    k_x, k_w, k_g, k_b, k_m, k_v = jax.random.split(key, 6)

    x = jax.random.normal(k_x, (N, C_IN, H, W), dtype=jnp.float32)
    weight = 0.1 * jax.random.normal(k_w, (C_OUT, C_IN, K, K), dtype=jnp.float32)
    gamma = 1.0 + 0.1 * jax.random.normal(k_g, (C_OUT,), dtype=jnp.float32)
    beta = 0.1 * jax.random.normal(k_b, (C_OUT,), dtype=jnp.float32)
    running_mean = 0.1 * jax.random.normal(k_m, (C_OUT,), dtype=jnp.float32)
    running_var = jnp.abs(jax.random.normal(k_v, (C_OUT,), dtype=jnp.float32)) + 0.5

    for relu6 in (False, True):
        out = conv_bn_relu(x, weight, gamma, beta, running_mean, running_var,
                           stride=1, padding=PAD, dilation=1, groups=1,
                           relu6=relu6)
        out = jax.block_until_ready(out)

        ref = _reference(x, weight, gamma, beta, running_mean, running_var,
                         stride=1, padding=PAD, dilation=1, relu6=relu6)
        assert out.shape == (N, C_OUT, H, W), out.shape
        # bf16 activations/weights with f32 accumulation -> loosened tolerance.
        err = float(jnp.max(jnp.abs(out.astype(jnp.float32) - ref)))
        assert err < 5e-2, err

    print("KERNEL_OK")
</pallas_src>

<mosaic_0001>
module attributes {stable_mosaic.version = 11 : i64} {
  func.func @_conv_bn_relu_kernel(%arg0: i32, %arg1: i32, %arg2: memref<1x18x18x4xbf16, #tpu.memory_space<vmem>>, %arg3: memref<3x3x4x8xbf16, #tpu.memory_space<vmem>>, %arg4: memref<1x1x8xf32, #tpu.memory_space<vmem>>, %arg5: memref<1x1x8xf32, #tpu.memory_space<vmem>>, %arg6: memref<1x16x128xf32, #tpu.memory_space<vmem>>) attributes {dimension_semantics = [#tpu.dimension_semantics<parallel>, #tpu.dimension_semantics<parallel>], iteration_bounds = array<i64: 2, 1>, scalar_prefetch = 0 : i64, scratch_operands = 0 : i64, tpu.core_type = #tpu.core_type<tc>, window_params = [{transform_indices = @transform_0, window_bounds = array<i64: 1, 18, 18, 4>}, {pipeline_mode = #tpu.pipeline_mode<synchronous>, transform_indices = @transform_1, window_bounds = array<i64: 3, 3, 4, 8>}, {pipeline_mode = #tpu.pipeline_mode<synchronous>, transform_indices = @transform_2, window_bounds = array<i64: 1, 1, 8>}, {pipeline_mode = #tpu.pipeline_mode<synchronous>, transform_indices = @transform_3, window_bounds = array<i64: 1, 1, 8>}, {transform_indices = @transform_4, window_bounds = array<i64: 1, 16, 128>}]} {
    %cst = arith.constant 0.000000e+00 : f32
    %0 = vector.broadcast %cst : f32 to vector<16x16x8xf32>
    %c16_i32 = arith.constant 16 : i32
    %1 = arith.muli %arg1, %c16_i32 : i32
    %c0_i32 = arith.constant 0 : i32
    %2 = arith.addi %1, %c0_i32 : i32
    %c0 = arith.constant 0 : index
    %3 = arith.index_cast %2 : i32 to index
    %c0_0 = arith.constant 0 : index
    %c0_1 = arith.constant 0 : index
    %4 = vector.load %arg2[%c0, %3, %c0_0, %c0_1] : memref<1x18x18x4xbf16, #tpu.memory_space<vmem>>, vector<1x16x16x4xbf16>
    %5 = vector.shape_cast %4 : vector<1x16x16x4xbf16> to vector<16x16x4xbf16>
    %c0_2 = arith.constant 0 : index
    %c0_3 = arith.constant 0 : index
    %c0_4 = arith.constant 0 : index
    %c0_5 = arith.constant 0 : index
    %6 = vector.load %arg3[%c0_2, %c0_3, %c0_4, %c0_5] : memref<3x3x4x8xbf16, #tpu.memory_space<vmem>>, vector<1x1x4x8xbf16>
    %7 = vector.shape_cast %6 : vector<1x1x4x8xbf16> to vector<4x8xbf16>
    %cst_6 = arith.constant dense<0.000000e+00> : vector<16x16x8xf32>
    %8 = tpu.matmul %5, %7, %cst_6 {dimension_numbers = #tpu.dot_dimension_numbers<[2], [0], [0, 1], [1], [0, 0, 0, 1, 1, 1], [], []>} : vector<16x16x4xbf16>, vector<4x8xbf16>, vector<16x16x8xf32> -> vector<16x16x8xf32>
    %9 = arith.addf %0, %8 : vector<16x16x8xf32>
    %c0_7 = arith.constant 0 : index
    %10 = arith.index_cast %2 : i32 to index
    %c1 = arith.constant 1 : index
    %c0_8 = arith.constant 0 : index
    %11 = vector.load %arg2[%c0_7, %10, %c1, %c0_8] : memref<1x18x18x4xbf16, #tpu.memory_space<vmem>>, vector<1x16x16x4xbf16>
    %12 = vector.shape_cast %11 : vector<1x16x16x4xbf16> to vector<16x16x4xbf16>
    %c0_9 = arith.constant 0 : index
    %c1_10 = arith.constant 1 : index
    %c0_11 = arith.constant 0 : index
    %c0_12 = arith.constant 0 : index
    %13 = vector.load %arg3[%c0_9, %c1_10, %c0_11, %c0_12] : memref<3x3x4x8xbf16, #tpu.memory_space<vmem>>, vector<1x1x4x8xbf16>
    %14 = vector.shape_cast %13 : vector<1x1x4x8xbf16> to vector<4x8xbf16>
    %cst_13 = arith.constant dense<0.000000e+00> : vector<16x16x8xf32>
    %15 = tpu.matmul %12, %14, %cst_13 {dimension_numbers = #tpu.dot_dimension_numbers<[2], [0], [0, 1], [1], [0, 0, 0, 1, 1, 1], [], []>} : vector<16x16x4xbf16>, vector<4x8xbf16>, vector<16x16x8xf32> -> vector<16x16x8xf32>
    %16 = arith.addf %9, %15 : vector<16x16x8xf32>
    %c0_14 = arith.constant 0 : index
    %17 = arith.index_cast %2 : i32 to index
    %c2 = arith.constant 2 : index
    %c0_15 = arith.constant 0 : index
    %18 = vector.load %arg2[%c0_14, %17, %c2, %c0_15] : memref<1x18x18x4xbf16, #tpu.memory_space<vmem>>, vector<1x16x16x4xbf16>
    %19 = vector.shape_cast %18 : vector<1x16x16x4xbf16> to vector<16x16x4xbf16>
    %c0_16 = arith.constant 0 : index
    %c2_17 = arith.constant 2 : index
    %c0_18 = arith.constant 0 : index
    %c0_19 = arith.constant 0 : index
    %20 = vector.load %arg3[%c0_16, %c2_17, %c0_18, %c0_19] : memref<3x3x4x8xbf16, #tpu.memory_space<vmem>>, vector<1x1x4x8xbf16>
    %21 = vector.shape_cast %20 : vector<1x1x4x8xbf16> to vector<4x8xbf16>
    %cst_20 = arith.constant dense<0.000000e+00> : vector<16x16x8xf32>
    %22 = tpu.matmul %19, %21, %cst_20 {dimension_numbers = #tpu.dot_dimension_numbers<[2], [0], [0, 1], [1], [0, 0, 0, 1, 1, 1], [], []>} : vector<16x16x4xbf16>, vector<4x8xbf16>, vector<16x16x8xf32> -> vector<16x16x8xf32>
    %23 = arith.addf %16, %22 : vector<16x16x8xf32>
    %c16_i32_21 = arith.constant 16 : i32
    %24 = arith.muli %arg1, %c16_i32_21 : i32
    %c1_i32 = arith.constant 1 : i32
    %25 = arith.addi %24, %c1_i32 : i32
    %c0_22 = arith.constant 0 : index
    %26 = arith.index_cast %25 : i32 to index
    %c0_23 = arith.constant 0 : index
    %c0_24 = arith.constant 0 : index
    %27 = vector.load %arg2[%c0_22, %26, %c0_23, %c0_24] : memref<1x18x18x4xbf16, #tpu.memory_space<vmem>>, vector<1x16x16x4xbf16>
    %28 = vector.shape_cast %27 : vector<1x16x16x4xbf16> to vector<16x16x4xbf16>
    %c1_25 = arith.constant 1 : index
    %c0_26 = arith.constant 0 : index
    %c0_27 = arith.constant 0 : index
    %c0_28 = arith.constant 0 : index
    %29 = vector.load %arg3[%c1_25, %c0_26, %c0_27, %c0_28] : memref<3x3x4x8xbf16, #tpu.memory_space<vmem>>, vector<1x1x4x8xbf16>
    %30 = vector.shape_cast %29 : vector<1x1x4x8xbf16> to vector<4x8xbf16>
    %cst_29 = arith.constant dense<0.000000e+00> : vector<16x16x8xf32>
    %31 = tpu.matmul %28, %30, %cst_29 {dimension_numbers = #tpu.dot_dimension_numbers<[2], [0], [0, 1], [1], [0, 0, 0, 1, 1, 1], [], []>} : vector<16x16x4xbf16>, vector<4x8xbf16>, vector<16x16x8xf32> -> vector<16x16x8xf32>
    %32 = arith.addf %23, %31 : vector<16x16x8xf32>
    %c0_30 = arith.constant 0 : index
    %33 = arith.index_cast %25 : i32 to index
    %c1_31 = arith.constant 1 : index
    %c0_32 = arith.constant 0 : index
    %34 = vector.load %arg2[%c0_30, %33, %c1_31, %c0_32] : memref<1x18x18x4xbf16, #tpu.memory_space<vmem>>, vector<1x16x16x4xbf16>
    %35 = vector.shape_cast %34 : vector<1x16x16x4xbf16> to vector<16x16x4xbf16>
    %c1_33 = arith.constant 1 : index
    %c1_34 = arith.constant 1 : index
    %c0_35 = arith.constant 0 : index
    %c0_36 = arith.constant 0 : index
    %36 = vector.load %arg3[%c1_33, %c1_34, %c0_35, %c0_36] : memref<3x3x4x8xbf16, #tpu.memory_space<vmem>>, vector<1x1x4x8xbf16>
    %37 = vector.shape_cast %36 : vector<1x1x4x8xbf16> to vector<4x8xbf16>
    %cst_37 = arith.constant dense<0.000000e+00> : vector<16x16x8xf32>
    %38 = tpu.matmul %35, %37, %cst_37 {dimension_numbers = #tpu.dot_dimension_numbers<[2], [0], [0, 1], [1], [0, 0, 0, 1, 1, 1], [], []>} : vector<16x16x4xbf16>, vector<4x8xbf16>, vector<16x16x8xf32> -> vector<16x16x8xf32>
    %39 = arith.addf %32, %38 : vector<16x16x8xf32>
    %c0_38 = arith.constant 0 : index
    %40 = arith.index_cast %25 : i32 to index
    %c2_39 = arith.constant 2 : index
    %c0_40 = arith.constant 0 : index
    %41 = vector.load %arg2[%c0_38, %40, %c2_39, %c0_40] : memref<1x18x18x4xbf16, #tpu.memory_space<vmem>>, vector<1x16x16x4xbf16>
    %42 = vector.shape_cast %41 : vector<1x16x16x4xbf16> to vector<16x16x4xbf16>
    %c1_41 = arith.constant 1 : index
    %c2_42 = arith.constant 2 : index
    %c0_43 = arith.constant 0 : index
    %c0_44 = arith.constant 0 : index
    %43 = vector.load %arg3[%c1_41, %c2_42, %c0_43, %c0_44] : memref<3x3x4x8xbf16, #tpu.memory_space<vmem>>, vector<1x1x4x8xbf16>
    %44 = vector.shape_cast %43 : vector<1x1x4x8xbf16> to vector<4x8xbf16>
    %cst_45 = arith.constant dense<0.000000e+00> : vector<16x16x8xf32>
    %45 = tpu.matmul %42, %44, %cst_45 {dimension_numbers = #tpu.dot_dimension_numbers<[2], [0], [0, 1], [1], [0, 0, 0, 1, 1, 1], [], []>} : vector<16x16x4xbf16>, vector<4x8xbf16>, vector<16x16x8xf32> -> vector<16x16x8xf32>
    %46 = arith.addf %39, %45 : vector<16x16x8xf32>
    %c16_i32_46 = arith.constant 16 : i32
    %47 = arith.muli %arg1, %c16_i32_46 : i32
    %c2_i32 = arith.constant 2 : i32
    %48 = arith.addi %47, %c2_i32 : i32
    %c0_47 = arith.constant 0 : index
    %49 = arith.index_cast %48 : i32 to index
    %c0_48 = arith.constant 0 : index
    %c0_49 = arith.constant 0 : index
    %50 = vector.load %arg2[%c0_47, %49, %c0_48, %c0_49] : memref<1x18x18x4xbf16, #tpu.memory_space<vmem>>, vector<1x16x16x4xbf16>
    %51 = vector.shape_cast %50 : vector<1x16x16x4xbf16> to vector<16x16x4xbf16>
    %c2_50 = arith.constant 2 : index
    %c0_51 = arith.constant 0 : index
    %c0_52 = arith.constant 0 : index
    %c0_53 = arith.constant 0 : index
    %52 = vector.load %arg3[%c2_50, %c0_51, %c0_52, %c0_53] : memref<3x3x4x8xbf16, #tpu.memory_space<vmem>>, vector<1x1x4x8xbf16>
    %53 = vector.shape_cast %52 : vector<1x1x4x8xbf16> to vector<4x8xbf16>
    %cst_54 = arith.constant dense<0.000000e+00> : vector<16x16x8xf32>
    %54 = tpu.matmul %51, %53, %cst_54 {dimension_numbers = #tpu.dot_dimension_numbers<[2], [0], [0, 1], [1], [0, 0, 0, 1, 1, 1], [], []>} : vector<16x16x4xbf16>, vector<4x8xbf16>, vector<16x16x8xf32> -> vector<16x16x8xf32>
    %55 = arith.addf %46, %54 : vector<16x16x8xf32>
    %c0_55 = arith.constant 0 : index
    %56 = arith.index_cast %48 : i32 to index
    %c1_56 = arith.constant 1 : index
    %c0_57 = arith.constant 0 : index
    %57 = vector.load %arg2[%c0_55, %56, %c1_56, %c0_57] : memref<1x18x18x4xbf16, #tpu.memory_space<vmem>>, vector<1x16x16x4xbf16>
    %58 = vector.shape_cast %57 : vector<1x16x16x4xbf16> to vector<16x16x4xbf16>
    %c2_58 = arith.constant 2 : index
    %c1_59 = arith.constant 1 : index
    %c0_60 = arith.constant 0 : index
    %c0_61 = arith.constant 0 : index
    %59 = vector.load %arg3[%c2_58, %c1_59, %c0_60, %c0_61] : memref<3x3x4x8xbf16, #tpu.memory_space<vmem>>, vector<1x1x4x8xbf16>
    %60 = vector.shape_cast %59 : vector<1x1x4x8xbf16> to vector<4x8xbf16>
    %cst_62 = arith.constant dense<0.000000e+00> : vector<16x16x8xf32>
    %61 = tpu.matmul %58, %60, %cst_62 {dimension_numbers = #tpu.dot_dimension_numbers<[2], [0], [0, 1], [1], [0, 0, 0, 1, 1, 1], [], []>} : vector<16x16x4xbf16>, vector<4x8xbf16>, vector<16x16x8xf32> -> vector<16x16x8xf32>
    %62 = arith.addf %55, %61 : vector<16x16x8xf32>
    %c0_63 = arith.constant 0 : index
    %63 = arith.index_cast %48 : i32 to index
    %c2_64 = arith.constant 2 : index
    %c0_65 = arith.constant 0 : index
    %64 = vector.load %arg2[%c0_63, %63, %c2_64, %c0_65] : memref<1x18x18x4xbf16, #tpu.memory_space<vmem>>, vector<1x16x16x4xbf16>
    %65 = vector.shape_cast %64 : vector<1x16x16x4xbf16> to vector<16x16x4xbf16>
    %c2_66 = arith.constant 2 : index
    %c2_67 = arith.constant 2 : index
    %c0_68 = arith.constant 0 : index
    %c0_69 = arith.constant 0 : index
    %66 = vector.load %arg3[%c2_66, %c2_67, %c0_68, %c0_69] : memref<3x3x4x8xbf16, #tpu.memory_space<vmem>>, vector<1x1x4x8xbf16>
    %67 = vector.shape_cast %66 : vector<1x1x4x8xbf16> to vector<4x8xbf16>
    %cst_70 = arith.constant dense<0.000000e+00> : vector<16x16x8xf32>
    %68 = tpu.matmul %65, %67, %cst_70 {dimension_numbers = #tpu.dot_dimension_numbers<[2], [0], [0, 1], [1], [0, 0, 0, 1, 1, 1], [], []>} : vector<16x16x4xbf16>, vector<4x8xbf16>, vector<16x16x8xf32> -> vector<16x16x8xf32>
    %69 = arith.addf %62, %68 : vector<16x16x8xf32>
    %c0_71 = arith.constant 0 : index
    %c0_72 = arith.constant 0 : index
    %c0_73 = arith.constant 0 : index
    %70 = vector.load %arg4[%c0_71, %c0_72, %c0_73] : memref<1x1x8xf32, #tpu.memory_space<vmem>>, vector<1x1x8xf32>
    %71 = vector.broadcast %70 : vector<1x1x8xf32> to vector<16x16x8xf32>
    %72 = arith.mulf %69, %71 : vector<16x16x8xf32>
    %c0_74 = arith.constant 0 : index
    %c0_75 = arith.constant 0 : index
    %c0_76 = arith.constant 0 : index
    %73 = vector.load %arg5[%c0_74, %c0_75, %c0_76] : memref<1x1x8xf32, #tpu.memory_space<vmem>>, vector<1x1x8xf32>
    %74 = vector.broadcast %73 : vector<1x1x8xf32> to vector<16x16x8xf32>
    %75 = arith.addf %72, %74 : vector<16x16x8xf32>
    %cst_77 = arith.constant 0.000000e+00 : f32
    %76 = vector.broadcast %cst_77 : f32 to vector<16x16x8xf32>
    %77 = arith.maximumf %75, %76 : vector<16x16x8xf32>
    %78 = vector.shape_cast %77 : vector<16x16x8xf32> to vector<16x128xf32>
    %c0_78 = arith.constant 0 : index
    %c0_79 = arith.constant 0 : index
    %c0_80 = arith.constant 0 : index
    %79 = vector.load %arg6[%c0_78, %c0_79, %c0_80] : memref<1x16x128xf32, #tpu.memory_space<vmem>>, vector<1x16x128xf32>
    %80 = vector.shape_cast %79 : vector<1x16x128xf32> to vector<16x128xf32>
    %81 = vector.shape_cast %78 : vector<16x128xf32> to vector<1x16x128xf32>
    tpu.vector_store %arg6[%c0_78, %c0_79, %c0_80], %81 {strides = array<i32>} : memref<1x16x128xf32, #tpu.memory_space<vmem>>, vector<1x16x128xf32>,
    return
  }
  func.func @transform_0(%arg0: i32, %arg1: i32) -> (i32, i32, i32, i32) {
    %c0_i32 = arith.constant 0 : i32
    %c0_i32_0 = arith.constant 0 : i32
    %c0_i32_1 = arith.constant 0 : i32
    %c0_i32_2 = arith.constant 0 : i32
    return %arg0, %c0_i32, %c0_i32_0, %c0_i32_1 : i32, i32, i32, i32
  }
  func.func @transform_1(%arg0: i32, %arg1: i32) -> (i32, i32, i32, i32) {
    %c0_i32 = arith.constant 0 : i32
    %c0_i32_0 = arith.constant 0 : i32
    %c0_i32_1 = arith.constant 0 : i32
    %c0_i32_2 = arith.constant 0 : i32
    %c0_i32_3 = arith.constant 0 : i32
    return %c0_i32, %c0_i32_0, %c0_i32_1, %c0_i32_2 : i32, i32, i32, i32
  }
  func.func @transform_2(%arg0: i32, %arg1: i32) -> (i32, i32, i32) {
    %c0_i32 = arith.constant 0 : i32
    %c0_i32_0 = arith.constant 0 : i32
    %c0_i32_1 = arith.constant 0 : i32
    %c0_i32_2 = arith.constant 0 : i32
    return %c0_i32, %c0_i32_0, %c0_i32_1 : i32, i32, i32
  }
  func.func @transform_3(%arg0: i32, %arg1: i32) -> (i32, i32, i32) {
    %c0_i32 = arith.constant 0 : i32
    %c0_i32_0 = arith.constant 0 : i32
    %c0_i32_1 = arith.constant 0 : i32
    %c0_i32_2 = arith.constant 0 : i32
    return %c0_i32, %c0_i32_0, %c0_i32_1 : i32, i32, i32
  }
  func.func @transform_4(%arg0: i32, %arg1: i32) -> (i32, i32, i32) {
    %c0_i32 = arith.constant 0 : i32
    %c0_i32_0 = arith.constant 0 : i32
    return %arg0, %arg1, %c0_i32 : i32, i32, i32
  }
}

module attributes {stable_mosaic.version = 11 : i64} {
  func.func @_conv_bn_relu_kernel(%arg0: i32, %arg1: i32, %arg2: memref<1x18x18x4xbf16, #tpu.memory_space<vmem>>, %arg3: memref<3x3x4x8xbf16, #tpu.memory_space<vmem>>, %arg4: memref<1x1x8xf32, #tpu.memory_space<vmem>>, %arg5: memref<1x1x8xf32, #tpu.memory_space<vmem>>, %arg6: memref<1x16x16x8xf32, #tpu.memory_space<vmem>>) attributes {dimension_semantics = [#tpu.dimension_semantics<parallel>, #tpu.dimension_semantics<parallel>], iteration_bounds = array<i64: 2, 1>, scalar_prefetch = 0 : i64, scratch_operands = 0 : i64, tpu.core_type = #tpu.core_type<tc>, window_params = [{transform_indices = @transform_0, window_bounds = array<i64: 1, 18, 18, 4>}, {pipeline_mode = #tpu.pipeline_mode<synchronous>, transform_indices = @transform_1, window_bounds = array<i64: 3, 3, 4, 8>}, {pipeline_mode = #tpu.pipeline_mode<synchronous>, transform_indices = @transform_2, window_bounds = array<i64: 1, 1, 8>}, {pipeline_mode = #tpu.pipeline_mode<synchronous>, transform_indices = @transform_3, window_bounds = array<i64: 1, 1, 8>}, {transform_indices = @transform_4, window_bounds = array<i64: 1, 16, 16, 8>}]} {
    %cst = arith.constant 0.000000e+00 : f32
    %0 = vector.broadcast %cst : f32 to vector<16x16x8xf32>
    %c16_i32 = arith.constant 16 : i32
    %1 = arith.muli %arg1, %c16_i32 : i32
    %c0_i32 = arith.constant 0 : i32
    %2 = arith.addi %1, %c0_i32 : i32
    %c0 = arith.constant 0 : index
    %3 = arith.index_cast %2 : i32 to index
    %c0_0 = arith.constant 0 : index
    %c0_1 = arith.constant 0 : index
    %4 = vector.load %arg2[%c0, %3, %c0_0, %c0_1] : memref<1x18x18x4xbf16, #tpu.memory_space<vmem>>, vector<1x16x16x4xbf16>
    %5 = vector.shape_cast %4 : vector<1x16x16x4xbf16> to vector<16x16x4xbf16>
    %c0_2 = arith.constant 0 : index
    %c0_3 = arith.constant 0 : index
    %c0_4 = arith.constant 0 : index
    %c0_5 = arith.constant 0 : index
    %6 = vector.load %arg3[%c0_2, %c0_3, %c0_4, %c0_5] : memref<3x3x4x8xbf16, #tpu.memory_space<vmem>>, vector<1x1x4x8xbf16>
    %7 = vector.shape_cast %6 : vector<1x1x4x8xbf16> to vector<4x8xbf16>
    %cst_6 = arith.constant dense<0.000000e+00> : vector<16x16x8xf32>
    %8 = tpu.matmul %5, %7, %cst_6 {dimension_numbers = #tpu.dot_dimension_numbers<[2], [0], [0, 1], [1], [0, 0, 0, 1, 1, 1], [], []>} : vector<16x16x4xbf16>, vector<4x8xbf16>, vector<16x16x8xf32> -> vector<16x16x8xf32>
    %9 = arith.addf %0, %8 : vector<16x16x8xf32>
    %c0_7 = arith.constant 0 : index
    %10 = arith.index_cast %2 : i32 to index
    %c1 = arith.constant 1 : index
    %c0_8 = arith.constant 0 : index
    %11 = vector.load %arg2[%c0_7, %10, %c1, %c0_8] : memref<1x18x18x4xbf16, #tpu.memory_space<vmem>>, vector<1x16x16x4xbf16>
    %12 = vector.shape_cast %11 : vector<1x16x16x4xbf16> to vector<16x16x4xbf16>
    %c0_9 = arith.constant 0 : index
    %c1_10 = arith.constant 1 : index
    %c0_11 = arith.constant 0 : index
    %c0_12 = arith.constant 0 : index
    %13 = vector.load %arg3[%c0_9, %c1_10, %c0_11, %c0_12] : memref<3x3x4x8xbf16, #tpu.memory_space<vmem>>, vector<1x1x4x8xbf16>
    %14 = vector.shape_cast %13 : vector<1x1x4x8xbf16> to vector<4x8xbf16>
    %cst_13 = arith.constant dense<0.000000e+00> : vector<16x16x8xf32>
    %15 = tpu.matmul %12, %14, %cst_13 {dimension_numbers = #tpu.dot_dimension_numbers<[2], [0], [0, 1], [1], [0, 0, 0, 1, 1, 1], [], []>} : vector<16x16x4xbf16>, vector<4x8xbf16>, vector<16x16x8xf32> -> vector<16x16x8xf32>
    %16 = arith.addf %9, %15 : vector<16x16x8xf32>
    %c0_14 = arith.constant 0 : index
    %17 = arith.index_cast %2 : i32 to index
    %c2 = arith.constant 2 : index
    %c0_15 = arith.constant 0 : index
    %18 = vector.load %arg2[%c0_14, %17, %c2, %c0_15] : memref<1x18x18x4xbf16, #tpu.memory_space<vmem>>, vector<1x16x16x4xbf16>
    %19 = vector.shape_cast %18 : vector<1x16x16x4xbf16> to vector<16x16x4xbf16>
    %c0_16 = arith.constant 0 : index
    %c2_17 = arith.constant 2 : index
    %c0_18 = arith.constant 0 : index
    %c0_19 = arith.constant 0 : index
    %20 = vector.load %arg3[%c0_16, %c2_17, %c0_18, %c0_19] : memref<3x3x4x8xbf16, #tpu.memory_space<vmem>>, vector<1x1x4x8xbf16>
    %21 = vector.shape_cast %20 : vector<1x1x4x8xbf16> to vector<4x8xbf16>
    %cst_20 = arith.constant dense<0.000000e+00> : vector<16x16x8xf32>
    %22 = tpu.matmul %19, %21, %cst_20 {dimension_numbers = #tpu.dot_dimension_numbers<[2], [0], [0, 1], [1], [0, 0, 0, 1, 1, 1], [], []>} : vector<16x16x4xbf16>, vector<4x8xbf16>, vector<16x16x8xf32> -> vector<16x16x8xf32>
    %23 = arith.addf %16, %22 : vector<16x16x8xf32>
    %c16_i32_21 = arith.constant 16 : i32
    %24 = arith.muli %arg1, %c16_i32_21 : i32
    %c1_i32 = arith.constant 1 : i32
    %25 = arith.addi %24, %c1_i32 : i32
    %c0_22 = arith.constant 0 : index
    %26 = arith.index_cast %25 : i32 to index
    %c0_23 = arith.constant 0 : index
    %c0_24 = arith.constant 0 : index
    %27 = vector.load %arg2[%c0_22, %26, %c0_23, %c0_24] : memref<1x18x18x4xbf16, #tpu.memory_space<vmem>>, vector<1x16x16x4xbf16>
    %28 = vector.shape_cast %27 : vector<1x16x16x4xbf16> to vector<16x16x4xbf16>
    %c1_25 = arith.constant 1 : index
    %c0_26 = arith.constant 0 : index
    %c0_27 = arith.constant 0 : index
    %c0_28 = arith.constant 0 : index
    %29 = vector.load %arg3[%c1_25, %c0_26, %c0_27, %c0_28] : memref<3x3x4x8xbf16, #tpu.memory_space<vmem>>, vector<1x1x4x8xbf16>
    %30 = vector.shape_cast %29 : vector<1x1x4x8xbf16> to vector<4x8xbf16>
    %cst_29 = arith.constant dense<0.000000e+00> : vector<16x16x8xf32>
    %31 = tpu.matmul %28, %30, %cst_29 {dimension_numbers = #tpu.dot_dimension_numbers<[2], [0], [0, 1], [1], [0, 0, 0, 1, 1, 1], [], []>} : vector<16x16x4xbf16>, vector<4x8xbf16>, vector<16x16x8xf32> -> vector<16x16x8xf32>
    %32 = arith.addf %23, %31 : vector<16x16x8xf32>
    %c0_30 = arith.constant 0 : index
    %33 = arith.index_cast %25 : i32 to index
    %c1_31 = arith.constant 1 : index
    %c0_32 = arith.constant 0 : index
    %34 = vector.load %arg2[%c0_30, %33, %c1_31, %c0_32] : memref<1x18x18x4xbf16, #tpu.memory_space<vmem>>, vector<1x16x16x4xbf16>
    %35 = vector.shape_cast %34 : vector<1x16x16x4xbf16> to vector<16x16x4xbf16>
    %c1_33 = arith.constant 1 : index
    %c1_34 = arith.constant 1 : index
    %c0_35 = arith.constant 0 : index
    %c0_36 = arith.constant 0 : index
    %36 = vector.load %arg3[%c1_33, %c1_34, %c0_35, %c0_36] : memref<3x3x4x8xbf16, #tpu.memory_space<vmem>>, vector<1x1x4x8xbf16>
    %37 = vector.shape_cast %36 : vector<1x1x4x8xbf16> to vector<4x8xbf16>
    %cst_37 = arith.constant dense<0.000000e+00> : vector<16x16x8xf32>
    %38 = tpu.matmul %35, %37, %cst_37 {dimension_numbers = #tpu.dot_dimension_numbers<[2], [0], [0, 1], [1], [0, 0, 0, 1, 1, 1], [], []>} : vector<16x16x4xbf16>, vector<4x8xbf16>, vector<16x16x8xf32> -> vector<16x16x8xf32>
    %39 = arith.addf %32, %38 : vector<16x16x8xf32>
    %c0_38 = arith.constant 0 : index
    %40 = arith.index_cast %25 : i32 to index
    %c2_39 = arith.constant 2 : index
    %c0_40 = arith.constant 0 : index
    %41 = vector.load %arg2[%c0_38, %40, %c2_39, %c0_40] : memref<1x18x18x4xbf16, #tpu.memory_space<vmem>>, vector<1x16x16x4xbf16>
    %42 = vector.shape_cast %41 : vector<1x16x16x4xbf16> to vector<16x16x4xbf16>
    %c1_41 = arith.constant 1 : index
    %c2_42 = arith.constant 2 : index
    %c0_43 = arith.constant 0 : index
    %c0_44 = arith.constant 0 : index
    %43 = vector.load %arg3[%c1_41, %c2_42, %c0_43, %c0_44] : memref<3x3x4x8xbf16, #tpu.memory_space<vmem>>, vector<1x1x4x8xbf16>
    %44 = vector.shape_cast %43 : vector<1x1x4x8xbf16> to vector<4x8xbf16>
    %cst_45 = arith.constant dense<0.000000e+00> : vector<16x16x8xf32>
    %45 = tpu.matmul %42, %44, %cst_45 {dimension_numbers = #tpu.dot_dimension_numbers<[2], [0], [0, 1], [1], [0, 0, 0, 1, 1, 1], [], []>} : vector<16x16x4xbf16>, vector<4x8xbf16>, vector<16x16x8xf32> -> vector<16x16x8xf32>
    %46 = arith.addf %39, %45 : vector<16x16x8xf32>
    %c16_i32_46 = arith.constant 16 : i32
    %47 = arith.muli %arg1, %c16_i32_46 : i32
    %c2_i32 = arith.constant 2 : i32
    %48 = arith.addi %47, %c2_i32 : i32
    %c0_47 = arith.constant 0 : index
    %49 = arith.index_cast %48 : i32 to index
    %c0_48 = arith.constant 0 : index
    %c0_49 = arith.constant 0 : index
    %50 = vector.load %arg2[%c0_47, %49, %c0_48, %c0_49] : memref<1x18x18x4xbf16, #tpu.memory_space<vmem>>, vector<1x16x16x4xbf16>
    %51 = vector.shape_cast %50 : vector<1x16x16x4xbf16> to vector<16x16x4xbf16>
    %c2_50 = arith.constant 2 : index
    %c0_51 = arith.constant 0 : index
    %c0_52 = arith.constant 0 : index
    %c0_53 = arith.constant 0 : index
    %52 = vector.load %arg3[%c2_50, %c0_51, %c0_52, %c0_53] : memref<3x3x4x8xbf16, #tpu.memory_space<vmem>>, vector<1x1x4x8xbf16>
    %53 = vector.shape_cast %52 : vector<1x1x4x8xbf16> to vector<4x8xbf16>
    %cst_54 = arith.constant dense<0.000000e+00> : vector<16x16x8xf32>
    %54 = tpu.matmul %51, %53, %cst_54 {dimension_numbers = #tpu.dot_dimension_numbers<[2], [0], [0, 1], [1], [0, 0, 0, 1, 1, 1], [], []>} : vector<16x16x4xbf16>, vector<4x8xbf16>, vector<16x16x8xf32> -> vector<16x16x8xf32>
    %55 = arith.addf %46, %54 : vector<16x16x8xf32>
    %c0_55 = arith.constant 0 : index
    %56 = arith.index_cast %48 : i32 to index
    %c1_56 = arith.constant 1 : index
    %c0_57 = arith.constant 0 : index
    %57 = vector.load %arg2[%c0_55, %56, %c1_56, %c0_57] : memref<1x18x18x4xbf16, #tpu.memory_space<vmem>>, vector<1x16x16x4xbf16>
    %58 = vector.shape_cast %57 : vector<1x16x16x4xbf16> to vector<16x16x4xbf16>
    %c2_58 = arith.constant 2 : index
    %c1_59 = arith.constant 1 : index
    %c0_60 = arith.constant 0 : index
    %c0_61 = arith.constant 0 : index
    %59 = vector.load %arg3[%c2_58, %c1_59, %c0_60, %c0_61] : memref<3x3x4x8xbf16, #tpu.memory_space<vmem>>, vector<1x1x4x8xbf16>
    %60 = vector.shape_cast %59 : vector<1x1x4x8xbf16> to vector<4x8xbf16>
    %cst_62 = arith.constant dense<0.000000e+00> : vector<16x16x8xf32>
    %61 = tpu.matmul %58, %60, %cst_62 {dimension_numbers = #tpu.dot_dimension_numbers<[2], [0], [0, 1], [1], [0, 0, 0, 1, 1, 1], [], []>} : vector<16x16x4xbf16>, vector<4x8xbf16>, vector<16x16x8xf32> -> vector<16x16x8xf32>
    %62 = arith.addf %55, %61 : vector<16x16x8xf32>
    %c0_63 = arith.constant 0 : index
    %63 = arith.index_cast %48 : i32 to index
    %c2_64 = arith.constant 2 : index
    %c0_65 = arith.constant 0 : index
    %64 = vector.load %arg2[%c0_63, %63, %c2_64, %c0_65] : memref<1x18x18x4xbf16, #tpu.memory_space<vmem>>, vector<1x16x16x4xbf16>
    %65 = vector.shape_cast %64 : vector<1x16x16x4xbf16> to vector<16x16x4xbf16>
    %c2_66 = arith.constant 2 : index
    %c2_67 = arith.constant 2 : index
    %c0_68 = arith.constant 0 : index
    %c0_69 = arith.constant 0 : index
    %66 = vector.load %arg3[%c2_66, %c2_67, %c0_68, %c0_69] : memref<3x3x4x8xbf16, #tpu.memory_space<vmem>>, vector<1x1x4x8xbf16>
    %67 = vector.shape_cast %66 : vector<1x1x4x8xbf16> to vector<4x8xbf16>
    %cst_70 = arith.constant dense<0.000000e+00> : vector<16x16x8xf32>
    %68 = tpu.matmul %65, %67, %cst_70 {dimension_numbers = #tpu.dot_dimension_numbers<[2], [0], [0, 1], [1], [0, 0, 0, 1, 1, 1], [], []>} : vector<16x16x4xbf16>, vector<4x8xbf16>, vector<16x16x8xf32> -> vector<16x16x8xf32>
    %69 = arith.addf %62, %68 : vector<16x16x8xf32>
    %c0_71 = arith.constant 0 : index
    %c0_72 = arith.constant 0 : index
    %c0_73 = arith.constant 0 : index
    %70 = vector.load %arg4[%c0_71, %c0_72, %c0_73] : memref<1x1x8xf32, #tpu.memory_space<vmem>>, vector<1x1x8xf32>
    %71 = vector.broadcast %70 : vector<1x1x8xf32> to vector<16x16x8xf32>
    %72 = arith.mulf %69, %71 : vector<16x16x8xf32>
    %c0_74 = arith.constant 0 : index
    %c0_75 = arith.constant 0 : index
    %c0_76 = arith.constant 0 : index
    %73 = vector.load %arg5[%c0_74, %c0_75, %c0_76] : memref<1x1x8xf32, #tpu.memory_space<vmem>>, vector<1x1x8xf32>
    %74 = vector.broadcast %73 : vector<1x1x8xf32> to vector<16x16x8xf32>
    %75 = arith.addf %72, %74 : vector<16x16x8xf32>
    %cst_77 = arith.constant 0.000000e+00 : f32
    %76 = vector.broadcast %cst_77 : f32 to vector<16x16x8xf32>
    %77 = arith.maximumf %75, %76 : vector<16x16x8xf32>
    %c0_78 = arith.constant 0 : index
    %c0_79 = arith.constant 0 : index
    %c0_80 = arith.constant 0 : index
    %c0_81 = arith.constant 0 : index
    %78 = vector.load %arg6[%c0_78, %c0_79, %c0_80, %c0_81] : memref<1x16x16x8xf32, #tpu.memory_space<vmem>>, vector<1x16x16x8xf32>
    %79 = vector.shape_cast %78 : vector<1x16x16x8xf32> to vector<16x16x8xf32>
    %80 = vector.shape_cast %77 : vector<16x16x8xf32> to vector<1x16x16x8xf32>
    tpu.vector_store %arg6[%c0_78, %c0_79, %c0_80, %c0_81], %80 {strides = array<i32>} : memref<1x16x16x8xf32, #tpu.memory_space<vmem>>, vector<1x16x16x8xf32>,
    return
  }
  func.func @transform_0(%arg0: i32, %arg1: i32) -> (i32, i32, i32, i32) {
    %c0_i32 = arith.constant 0 : i32
    %c0_i32_0 = arith.constant 0 : i32
    %c0_i32_1 = arith.constant 0 : i32
    %c0_i32_2 = arith.constant 0 : i32
    return %arg0, %c0_i32, %c0_i32_0, %c0_i32_1 : i32, i32, i32, i32
  }
  func.func @transform_1(%arg0: i32, %arg1: i32) -> (i32, i32, i32, i32) {
    %c0_i32 = arith.constant 0 : i32
    %c0_i32_0 = arith.constant 0 : i32
    %c0_i32_1 = arith.constant 0 : i32
    %c0_i32_2 = arith.constant 0 : i32
    %c0_i32_3 = arith.constant 0 : i32
    return %c0_i32, %c0_i32_0, %c0_i32_1, %c0_i32_2 : i32, i32, i32, i32
  }
  func.func @transform_2(%arg0: i32, %arg1: i32) -> (i32, i32, i32) {
    %c0_i32 = arith.constant 0 : i32
    %c0_i32_0 = arith.constant 0 : i32
    %c0_i32_1 = arith.constant 0 : i32
    %c0_i32_2 = arith.constant 0 : i32
    return %c0_i32, %c0_i32_0, %c0_i32_1 : i32, i32, i32
  }
  func.func @transform_3(%arg0: i32, %arg1: i32) -> (i32, i32, i32) {
    %c0_i32 = arith.constant 0 : i32
    %c0_i32_0 = arith.constant 0 : i32
    %c0_i32_1 = arith.constant 0 : i32
    %c0_i32_2 = arith.constant 0 : i32
    return %c0_i32, %c0_i32_0, %c0_i32_1 : i32, i32, i32
  }
  func.func @transform_4(%arg0: i32, %arg1: i32) -> (i32, i32, i32, i32) {
    %c0_i32 = arith.constant 0 : i32
    %c0_i32_0 = arith.constant 0 : i32
    %c0_i32_1 = arith.constant 0 : i32
    return %arg0, %arg1, %c0_i32, %c0_i32_0 : i32, i32, i32, i32
  }
}

</mosaic_0001>

<llo_original>
// kernel: tpu_custom_call.1
$region0: #{tpu_custom_call.1}
  #allocation0 [shape = 'u32[]', space=smem, size = 0x4, offset = 0x4, fixed_abs, tag = 'smem constant byte address 0x4 - core index']
  #allocation1 [shape = 'u32[144,128]{1,0:T(1,128)}', space=vmem, size = 0x12000, scoped, tag = 'internal scratch']
  %s0 = inlined_call_operand.hbm [shape: bf16[2,18,18,4], index: 0, kind: input, shape index: {}]
  %s1 = inlined_call_operand.hbm [shape: bf16[3,3,4,8], index: 1, kind: input, shape index: {}]
  %s2 = inlined_call_operand.hbm [shape: f32[1,1,8], index: 2, kind: input, shape index: {}]
  %s3 = inlined_call_operand.hbm [shape: f32[1,1,8], index: 3, kind: input, shape index: {}]
  %s4 = inlined_call_operand.hbm [shape: f32[2,16,128], index: 4, kind: output, shape index: {}]
  %s5 = sld [smem:[#allocation0]]
  $region65: #{tpu_custom_call.1} parent=0
    _
  %s7 = ssub.s32 1, %s5
  %s8 = scalar_select 0, %s7, %s5
  $region1: #{tpu_custom_call.1} parent=0
    #allocation2 [shape = 'u8[221184]{0}', space=vmem, size = 0x36000, scoped, tag = 'input window, operand 0']
    #allocation3 [shape = 's32[2]{0}', space=sflag, size = 0x8, scoped, tag = 'scoped memory for tpu_custom_call.1']
    #allocation4 [shape = 's32[2]{0}', space=sflag, size = 0x8, scoped, tag = 'scoped memory for tpu_custom_call.1']
    #allocation5 [shape = 'u8[9216]{0}', space=vmem, size = 0x2400, scoped, tag = 'input window, operand 1, single buffered']
    #allocation6 [shape = 's32[1]{0}', space=sflag, size = 0x4, scoped, tag = 'scoped memory for tpu_custom_call.1']
    #allocation7 [shape = 'u8[512]{0}', space=vmem, size = 0x400, scoped, tag = 'input window, operand 2, single buffered']
    #allocation8 [shape = 'u8[512]{0}', space=vmem, size = 0x400, scoped, tag = 'input window, operand 3, single buffered']
    #allocation9 [shape = 's32[1]{0}', space=sflag, size = 0x4, scoped, tag = 'scoped memory for tpu_custom_call.1']
    #allocation10 [shape = 'u8[16384]{0}', space=vmem, size = 0x4000, scoped, tag = 'output window, operand 0']
    %9 = vsyncpa [#allocation3], 0
    %s10 = scalar_lea.sflag [#allocation3], 1
    %11 = vsyncpa %s10, 0
    %12 = vsyncpa [#allocation6], 0
    %13 = vsyncpa [#allocation9], 0
    %14 = vsyncpa [#allocation4], 0
    %s15 = scalar_lea.sflag [#allocation4], 1
    %16 = vsyncpa %s15, 0
    loop: start=0, step=1, limit=4
    $region2: #{tpu_custom_call.1} parent=1 // loop_pre_header
      _
    $region3: #{tpu_custom_call.1} parent=1 // loop_header
      %s18 = sphi 0, %s22
      %p19 = scmp.ge.s32.totalorder %s18, 4
      %s25 = sphi 0, %s37
      %s26 = sphi 0, %s33
      %s27 = sphi 0, %s25
      %s28 = sphi 0, %s26
      %s29 = sphi 0, %s27
      %s30 = sphi 0, %s28
      %s40 = sphi 0, %s42
      %s43 = sphi 0, %s40
      %s44 = sphi 0, %s43
      %s60 = sphi 0, %s44
      %s64 = sphi 0, %s64
      %s66 = sphi 0, %s64
      %s67 = sphi 0, %s66
      %s81 = sphi 0, %s67
      %s85 = sphi 0, %s85
      %s87 = sphi 0, %s85
      %s88 = sphi 0, %s87
      %s102 = sphi 0, %s88
      %s106 = sphi 0, %s106
      %s108 = sphi 0, %s106
      %s109 = sphi 0, %s108
      %s123 = sphi 0, %s109
      %s131 = sphi 0, %s133
      %s134 = sphi 0, %s131
      %s135 = sphi 0, %s134
      %s151 = sphi 0, %s135
    $region4: #{tpu_custom_call.1} parent=1 // loop_header_branch
      %21 = sbr.rel (%p19) target = $region8
    $region5: #{tpu_custom_call.1} parent=1 // loop_body
      %s23 = ssub.s32 %s18, 1
      %s24 = ssub.s32 %s18, 2
      %s31 = sadd.s32 1, %s26
      %p32 = scmp.ge.s32.totalorder %s31, 1
      %s33 = scalar_select %p32, 0, %s31
      %s34 = sadd.s32 1, %s25
      %s35 = scalar_select %p32, %s34, %s25
      %p36 = scmp.ge.s32.totalorder %s35, 2
      %s37 = scalar_select %p36, 0, %s35
      %s38 = ssub.s32 %s25, %s37
      %p39 = scmp.eq.s32.totalorder %s38, 0
      %s41 = sadd.s32 %s40, 1
      %s42 = scalar_select %p39, %s40, %s41
      %p45 = pneg %p39
      %p46 = scmp.eq.s32.totalorder %s18, 1
      %p47 = por %p45, %p46
      %p48 = scmp.ne.s32.totalorder %s40, %s43
      %p49 = scmp.eq.s32.totalorder %s18, 0
      %p50 = por %p48, %p49
      %p51 = scmp.ne.s32.totalorder %s40, %s43
      %p52 = scmp.eq.s32.totalorder %s23, 1
      %p53 = por %p51, %p52
      %p54 = scmp.ne.s32.totalorder %s43, %s44
      %p55 = scmp.eq.s32.totalorder %s23, 0
      %p56 = por %p54, %p55
      %p57 = scmp.ne.s32.totalorder %s43, %s44
      %p58 = scmp.eq.s32.totalorder %s24, 1
      %p59 = por %p57, %p58
      %p61 = scmp.ne.s32.totalorder %s44, %s60
      %p62 = scmp.eq.s32.totalorder %s24, 0
      %p63 = por %p61, %p62
      %s65 = sadd.s32 %s64, 1
      %p68 = scmp.eq.s32.totalorder %s18, 1
      %p69 = scmp.ne.s32.totalorder %s64, %s66
      %p70 = scmp.eq.s32.totalorder %s18, 0
      %p71 = por %p69, %p70
      %p72 = scmp.ne.s32.totalorder %s64, %s66
      %p73 = scmp.eq.s32.totalorder %s23, 1
      %p74 = por %p72, %p73
      %p75 = scmp.ne.s32.totalorder %s66, %s67
      %p76 = scmp.eq.s32.totalorder %s23, 0
      %p77 = por %p75, %p76
      %p78 = scmp.ne.s32.totalorder %s66, %s67
      %p79 = scmp.eq.s32.totalorder %s24, 1
      %p80 = por %p78, %p79
      %p82 = scmp.ne.s32.totalorder %s67, %s81
      %p83 = scmp.eq.s32.totalorder %s24, 0
      %p84 = por %p82, %p83
      %s86 = sadd.s32 %s85, 1
      %p89 = scmp.eq.s32.totalorder %s18, 1
      %p90 = scmp.ne.s32.totalorder %s85, %s87
      %p91 = scmp.eq.s32.totalorder %s18, 0
      %p92 = por %p90, %p91
      %p93 = scmp.ne.s32.totalorder %s85, %s87
      %p94 = scmp.eq.s32.totalorder %s23, 1
      %p95 = por %p93, %p94
      %p96 = scmp.ne.s32.totalorder %s87, %s88
      %p97 = scmp.eq.s32.totalorder %s23, 0
      %p98 = por %p96, %p97
      %p99 = scmp.ne.s32.totalorder %s87, %s88
      %p100 = scmp.eq.s32.totalorder %s24, 1
      %p101 = por %p99, %p100
      %p103 = scmp.ne.s32.totalorder %s88, %s102
      %p104 = scmp.eq.s32.totalorder %s24, 0
      %p105 = por %p103, %p104
      %s107 = sadd.s32 %s106, 1
      %p110 = scmp.eq.s32.totalorder %s18, 1
      %p111 = scmp.ne.s32.totalorder %s106, %s108
      %p112 = scmp.eq.s32.totalorder %s18, 0
      %p113 = por %p111, %p112
      %p114 = scmp.ne.s32.totalorder %s106, %s108
      %p115 = scmp.eq.s32.totalorder %s23, 1
      %p116 = por %p114, %p115
      %p117 = scmp.ne.s32.totalorder %s108, %s109
      %p118 = scmp.eq.s32.totalorder %s23, 0
      %p119 = por %p117, %p118
      %p120 = scmp.ne.s32.totalorder %s108, %s109
      %p121 = scmp.eq.s32.totalorder %s24, 1
      %p122 = por %p120, %p121
      %p124 = scmp.ne.s32.totalorder %s109, %s123
      %p125 = scmp.eq.s32.totalorder %s24, 0
      %p126 = por %p124, %p125
      %s127 = ssub.s32 %s25, %s37
      %s128 = ssub.s32 %s26, %s33
      %s129 = sor.u32 %s127, %s128
      %p130 = scmp.eq.s32.totalorder %s129, 0
      %s132 = sadd.s32 %s131, 1
      %s133 = scalar_select %p130, %s131, %s132
      %p136 = pneg %p130
      %p137 = scmp.eq.s32.totalorder %s18, 1
      %p138 = por %p136, %p137
      %p139 = scmp.ne.s32.totalorder %s131, %s134
      %p140 = scmp.eq.s32.totalorder %s18, 0
      %p141 = por %p139, %p140
      %p142 = scmp.ne.s32.totalorder %s131, %s134
      %p143 = scmp.eq.s32.totalorder %s23, 1
      %p144 = por %p142, %p143
      %p145 = scmp.ne.s32.totalorder %s134, %s135
      %p146 = scmp.eq.s32.totalorder %s23, 0
      %p147 = por %p145, %p146
      %p148 = scmp.ne.s32.totalorder %s134, %s135
      %p149 = scmp.eq.s32.totalorder %s24, 1
      %p150 = por %p148, %p149
      %p152 = scmp.ne.s32.totalorder %s135, %s151
      %p153 = scmp.eq.s32.totalorder %s24, 0
      %p154 = por %p152, %p153
      %p155 = scmp.le.s32.totalorder 1, %s18
      %p156 = scmp.lt.s32.totalorder %s18, 3
      %p157 = pnand %p155, %p156
      %p158 = pneg %p157
      // Predicated region
      $region9: #{tpu_custom_call.1} parent=5 // pred_check
        _
      $region10: #{tpu_custom_call.1} parent=5 // pred_check_branch
        %160 = sbr.rel (%p157) target = $region12
      $region11: #{tpu_custom_call.1} parent=5 // pred_region
        %s161 = ssub.s32 %s18, 1
        // Predicated region
        $region13: #{tpu_custom_call.1} parent=11 // pred_check
          %p162 = pneg %p77
        $region14: #{tpu_custom_call.1} parent=11 // pred_check_branch
          %164 = sbr.rel (%p162) target = $region16
        $region15: #{tpu_custom_call.1} parent=11 // pred_region
          %s166 = ssub.s32 288, 288
          %167 = vsyncadd [#allocation6], %s166
          %s168 = sshll.u32 [#allocation5], 4
          %s169 = int_to_ptr.vmem [resolvable:$true] %s168
          %174 = dma.hbm_to_vmem [thread:$0]  %s1, 288, %s169, [#allocation6], 32, 32, 2
        $region16: #{tpu_custom_call.1} parent=11 // pred_fallthru
          _
        // Predicated region
        $region17: #{tpu_custom_call.1} parent=11 // pred_check
          %p175 = pneg %p98
        $region18: #{tpu_custom_call.1} parent=11 // pred_check_branch
          %177 = sbr.rel (%p175) target = $region20
        $region19: #{tpu_custom_call.1} parent=11 // pred_region
          %s179 = ssub.s32 16, 16
          %180 = vsyncadd [#allocation6], %s179
          %s182 = sshll.u32 [#allocation7], 4
          %s183 = int_to_ptr.vmem [resolvable:$true] %s182
          %185 = dma.hbm_to_vmem [thread:$0]  %s2, 16, %s183, [#allocation6]
        $region20: #{tpu_custom_call.1} parent=11 // pred_fallthru
          _
        // Predicated region
        $region21: #{tpu_custom_call.1} parent=11 // pred_check
          %p186 = pneg %p119
        $region22: #{tpu_custom_call.1} parent=11 // pred_check_branch
          %188 = sbr.rel (%p186) target = $region24
        $region23: #{tpu_custom_call.1} parent=11 // pred_region
          %s190 = ssub.s32 16, 16
          %191 = vsyncadd [#allocation9], %s190
          %s193 = sshll.u32 [#allocation8], 4
          %s194 = int_to_ptr.vmem [resolvable:$true] %s193
          %196 = dma.hbm_to_vmem [thread:$0]  %s3, 16, %s194, [#allocation9]
        $region24: #{tpu_custom_call.1} parent=11 // pred_fallthru
          _
      $region12: #{tpu_custom_call.1} parent=5 // pred_fallthru
        _
      %p197 = scmp.lt.s32.totalorder %s18, 2
      // Predicated region
      $region25: #{tpu_custom_call.1} parent=5 // pred_check
        %p198 = pneg %p197
      $region26: #{tpu_custom_call.1} parent=5 // pred_check_branch
        %200 = sbr.rel (%p198) target = $region28
      $region27: #{tpu_custom_call.1} parent=5 // pred_region
        // Predicated region
        $region29: #{tpu_custom_call.1} parent=27 // pred_check
          %p201 = pneg %p50
        $region30: #{tpu_custom_call.1} parent=27 // pred_check_branch
          %203 = sbr.rel (%p201) target = $region32
        $region31: #{tpu_custom_call.1} parent=27 // pred_region
          %s204 = sand.u32 %s40, 1
          %s205 = scalar_lea.sflag [#allocation3], %s204
          %s206 = sand.u32 %s40, 1
          %s207 = smul.addr %s206, 216
          %s208 = scalar_lea.vmem [#allocation2], %s207
          %s210 = ssub.s32 3456, 3456
          %211 = vsyncadd %s205, %s210
          %s212 = smul.addr %s25, 54
          %s213 = smul.addr %s212, 64
          %s214 = scalar_lea.hbm %s0, %s213
          %s215 = sshll.u32 %s208, 4
          %s216 = int_to_ptr.vmem [resolvable:$true] %s215
          %221 = dma.hbm_to_vmem [thread:$0]  %s214, 3456, %s216, %s205, 64, 64, 4
        $region32: #{tpu_custom_call.1} parent=27 // pred_fallthru
          _
      $region28: #{tpu_custom_call.1} parent=5 // pred_fallthru
        _
      %p222 = scmp.le.s32.totalorder 1, %s18
      %p223 = scmp.lt.s32.totalorder %s18, 3
      %p224 = pnand %p222, %p223
      %p225 = pneg %p224
      // Predicated region
      $region33: #{tpu_custom_call.1} parent=5 // pred_check
        _
      $region34: #{tpu_custom_call.1} parent=5 // pred_check_branch
        %227 = sbr.rel (%p224) target = $region36
      $region35: #{tpu_custom_call.1} parent=5 // pred_region
        %s228 = ssub.s32 %s18, 1
        %s229 = sand.u32 %s43, 1
        %s230 = scalar_lea.sflag [#allocation3], %s229
        %s231 = sand.u32 %s43, 1
        %s232 = smul.addr %s231, 216
        %s233 = scalar_lea.vmem [#allocation2], %s232
        // Predicated region
        $region37: #{tpu_custom_call.1} parent=35 // pred_check
          %p234 = pneg %p56
        $region38: #{tpu_custom_call.1} parent=35 // pred_check_branch
          %236 = sbr.rel (%p234) target = $region40
        $region39: #{tpu_custom_call.1} parent=35 // pred_region
          %237 = dma.done %s230, 3456
        $region40: #{tpu_custom_call.1} parent=35 // pred_fallthru
          _
        // Predicated region
        $region41: #{tpu_custom_call.1} parent=35 // pred_check
          %p238 = pneg %p77
        $region42: #{tpu_custom_call.1} parent=35 // pred_check_branch
          %240 = sbr.rel (%p238) target = $region44
        $region43: #{tpu_custom_call.1} parent=35 // pred_region
          %241 = dma.done [#allocation6], 288
        $region44: #{tpu_custom_call.1} parent=35 // pred_fallthru
          _
        // Predicated region
        $region45: #{tpu_custom_call.1} parent=35 // pred_check
          %p242 = pneg %p98
        $region46: #{tpu_custom_call.1} parent=35 // pred_check_branch
          %244 = sbr.rel (%p242) target = $region48
        $region47: #{tpu_custom_call.1} parent=35 // pred_region
          %245 = dma.done [#allocation6], 16
        $region48: #{tpu_custom_call.1} parent=35 // pred_fallthru
          _
        // Predicated region
        $region49: #{tpu_custom_call.1} parent=35 // pred_check
          %p246 = pneg %p119
        $region50: #{tpu_custom_call.1} parent=35 // pred_check_branch
          %248 = sbr.rel (%p246) target = $region52
        $region51: #{tpu_custom_call.1} parent=35 // pred_region
          %249 = dma.done [#allocation9], 16
        $region52: #{tpu_custom_call.1} parent=35 // pred_fallthru
          _
        %s250 = sand.u32 %s43, 1
        %s251 = scalar_lea.sflag [#allocation3], %s250
        %s252 = sand.u32 %s43, 1
        %s253 = smul.addr %s252, 216
        %s254 = scalar_lea.vmem [#allocation2], %s253
        %p255 = pneg %p56
        %p256 = pneg %p53
        %p257 = pneg %p77
        %p258 = pneg %p74
        %p259 = pneg %p98
        %p260 = pneg %p95
        %p261 = pneg %p119
        %p262 = pneg %p116
        %p263 = pneg %p147
        %p264 = pneg %p144
        %s265 = sand.u32 %s134, 1
        %s266 = scalar_lea.sflag [#allocation4], %s265
        %s267 = sand.u32 %s134, 1
        %s268 = smul.addr %s267, 16
        %s269 = scalar_lea.vmem [#allocation10], %s268
        %s270 = smul.u32 2, %s28
        %s272 = smul.u32 %s28, 16
        %s273 = smul.u32 %s272, 3
        %s274 = smul.addr %s273, 4
        %s275 = scalar_lea.vmem %s233, %s274 [#allocation2]
        %v276 = vld [vmem:[%s275] sm:$0xf]
        %v277 = vld [vmem:[%s275 + $0x4] sm:$0xf]
        %v278 = vld [vmem:[%s275 + $0xc] sm:$0xf]
        %v279 = vld [vmem:[%s275 + $0x10] sm:$0xf]
        %v280 = vld [vmem:[%s275 + $0x18] sm:$0xf]
        %v281 = vld [vmem:[%s275 + $0x1c] sm:$0xf]
        %v282 = vld [vmem:[%s275 + $0x24] sm:$0xf]
        %v283 = vld [vmem:[%s275 + $0x28] sm:$0xf]
        %v284 = vld [vmem:[%s275 + $0x30] sm:$0xf]
        %v285 = vld [vmem:[%s275 + $0x34] sm:$0xf]
        %v286 = vld [vmem:[%s275 + $0x3c] sm:$0xf]
        %v287 = vld [vmem:[%s275 + $0x40] sm:$0xf]
        %v288 = vld [vmem:[%s275 + $0x48] sm:$0xf]
        %v289 = vld [vmem:[%s275 + $0x4c] sm:$0xf]
        %v290 = vld [vmem:[%s275 + $0x54] sm:$0xf]
        %v291 = vld [vmem:[%s275 + $0x58] sm:$0xf]
        %v292 = vld [vmem:[%s275 + $0x60] sm:$0xf]
        %v293 = vld [vmem:[%s275 + $0x64] sm:$0xf]
        %v294 = vld [vmem:[%s275 + $0x6c] sm:$0xf]
        %v295 = vld [vmem:[%s275 + $0x70] sm:$0xf]
        %v296 = vld [vmem:[%s275 + $0x78] sm:$0xf]
        %v297 = vld [vmem:[%s275 + $0x7c] sm:$0xf]
        %v298 = vld [vmem:[%s275 + $0x84] sm:$0xf]
        %v299 = vld [vmem:[%s275 + $0x88] sm:$0xf]
        %v300 = vld [vmem:[%s275 + $0x90] sm:$0xf]
        %v301 = vld [vmem:[%s275 + $0x94] sm:$0xf]
        %v302 = vld [vmem:[%s275 + $0x9c] sm:$0xf]
        %v303 = vld [vmem:[%s275 + $0xa0] sm:$0xf]
        %v304 = vld [vmem:[%s275 + $0xa8] sm:$0xf]
        %v305 = vld [vmem:[%s275 + $0xac] sm:$0xf]
        %v306 = vld [vmem:[%s275 + $0xb4] sm:$0xf]
        %v307 = vld [vmem:[%s275 + $0xb8] sm:$0xf]
        %v308 = vld [vmem:[#allocation5] sm:$0x3]
        %v309 = vld [vmem:[%s275 + $0x8] sm:$0x1]
        %v310 = vld [vmem:[%s275 + $0x14] sm:$0x1]
        %v311 = vld [vmem:[%s275 + $0x20] sm:$0x1]
        %v312 = vld [vmem:[%s275 + $0x2c] sm:$0x1]
        %v313 = vld [vmem:[%s275 + $0x38] sm:$0x1]
        %v314 = vld [vmem:[%s275 + $0x44] sm:$0x1]
        %v315 = vld [vmem:[%s275 + $0x50] sm:$0x1]
        %v316 = vld [vmem:[%s275 + $0x5c] sm:$0x1]
        %v317 = vld [vmem:[%s275 + $0x68] sm:$0x1]
        %v318 = vld [vmem:[%s275 + $0x74] sm:$0x1]
        %v319 = vld [vmem:[%s275 + $0x80] sm:$0x1]
        %v320 = vld [vmem:[%s275 + $0x8c] sm:$0x1]
        %v321 = vld [vmem:[%s275 + $0x98] sm:$0x1]
        %v322 = vld [vmem:[%s275 + $0xa4] sm:$0x1]
        %v323 = vld [vmem:[%s275 + $0xb0] sm:$0x1]
        %v324 = vld [vmem:[%s275 + $0xbc] sm:$0x1]
        %s325 = scalar_lea.vmem [#allocation5], 2
        %v326 = vld [vmem:[%s325] sm:$0x3]
        %vm327 = vsmask.f32 3328
        %vm328 = vsmask.f32 7440
        %vm329 = vmor %vm327, %vm328
        %v331 = vshrl.u32 %v276, 16
        %v333 = vrot.slane %v331, 4
        %v334 = vshll.u32 %v276, 16
        %v336 = vrot.slane %v334, 5
        %v337 = vor.u32 %v333, %v336
        %v338 = vrot.slane %v337, 4
        %v340 = vshll.u32 %v277, 16
        %v342 = vrot.slane %v340, 5
        %v343 = vsel %vm329, %v338, %v342
        %v344 = vshrl.u32 %v277, 16
        %v346 = vrot.slane %v344, 4
        %v347 = vor.u32 %v346, %v342
        %v348 = vrot.slane %v347, 4
        %v350 = vshll.u32 %v309, 16
        %v352 = vrot.slane %v350, 5
        %v353 = vsel %vm329, %v348, %v352
        %v355 = vshrl.u32 %v278, 16
        %v357 = vrot.slane %v355, 4
        %v358 = vshll.u32 %v278, 16
        %v360 = vrot.slane %v358, 5
        %v361 = vor.u32 %v357, %v360
        %v362 = vrot.slane %v361, 4
        %v364 = vshll.u32 %v279, 16
        %v366 = vrot.slane %v364, 5
        %v367 = vsel %vm329, %v362, %v366
        %v368 = vshrl.u32 %v279, 16
        %v370 = vrot.slane %v368, 4
        %v371 = vor.u32 %v370, %v366
        %v372 = vrot.slane %v371, 4
        %v374 = vshll.u32 %v310, 16
        %v376 = vrot.slane %v374, 5
        %v377 = vsel %vm329, %v372, %v376
        %v379 = vshrl.u32 %v280, 16
        %v381 = vrot.slane %v379, 4
        %v382 = vshll.u32 %v280, 16
        %v384 = vrot.slane %v382, 5
        %v385 = vor.u32 %v381, %v384
        %v386 = vrot.slane %v385, 4
        %v388 = vshll.u32 %v281, 16
        %v390 = vrot.slane %v388, 5
        %v391 = vsel %vm329, %v386, %v390
        %v392 = vshrl.u32 %v281, 16
        %v394 = vrot.slane %v392, 4
        %v395 = vor.u32 %v394, %v390
        %v396 = vrot.slane %v395, 4
        %v398 = vshll.u32 %v311, 16
        %v400 = vrot.slane %v398, 5
        %v401 = vsel %vm329, %v396, %v400
        %v403 = vshrl.u32 %v282, 16
        %v405 = vrot.slane %v403, 4
        %v406 = vshll.u32 %v282, 16
        %v408 = vrot.slane %v406, 5
        %v409 = vor.u32 %v405, %v408
        %v410 = vrot.slane %v409, 4
        %v412 = vshll.u32 %v283, 16
        %v414 = vrot.slane %v412, 5
        %v415 = vsel %vm329, %v410, %v414
        %v416 = vshrl.u32 %v283, 16
        %v418 = vrot.slane %v416, 4
        %v419 = vor.u32 %v418, %v414
        %v420 = vrot.slane %v419, 4
        %v422 = vshll.u32 %v312, 16
        %v424 = vrot.slane %v422, 5
        %v425 = vsel %vm329, %v420, %v424
        %v427 = vshrl.u32 %v284, 16
        %v429 = vrot.slane %v427, 4
        %v430 = vshll.u32 %v284, 16
        %v432 = vrot.slane %v430, 5
        %v433 = vor.u32 %v429, %v432
        %v434 = vrot.slane %v433, 4
        %v436 = vshll.u32 %v285, 16
        %v438 = vrot.slane %v436, 5
        %v439 = vsel %vm329, %v434, %v438
        %v440 = vshrl.u32 %v285, 16
        %v442 = vrot.slane %v440, 4
        %v443 = vor.u32 %v442, %v438
        %v444 = vrot.slane %v443, 4
        %v446 = vshll.u32 %v313, 16
        %v448 = vrot.slane %v446, 5
        %v449 = vsel %vm329, %v444, %v448
        %v451 = vshrl.u32 %v286, 16
        %v453 = vrot.slane %v451, 4
        %v454 = vshll.u32 %v286, 16
        %v456 = vrot.slane %v454, 5
        %v457 = vor.u32 %v453, %v456
        %v458 = vrot.slane %v457, 4
        %v460 = vshll.u32 %v287, 16
        %v462 = vrot.slane %v460, 5
        %v463 = vsel %vm329, %v458, %v462
        %v464 = vshrl.u32 %v287, 16
        %v466 = vrot.slane %v464, 4
        %v467 = vor.u32 %v466, %v462
        %v468 = vrot.slane %v467, 4
        %v470 = vshll.u32 %v314, 16
        %v472 = vrot.slane %v470, 5
        %v473 = vsel %vm329, %v468, %v472
        %v475 = vshrl.u32 %v288, 16
        %v477 = vrot.slane %v475, 4
        %v478 = vshll.u32 %v288, 16
        %v480 = vrot.slane %v478, 5
        %v481 = vor.u32 %v477, %v480
        %v482 = vrot.slane %v481, 4
        %v484 = vshll.u32 %v289, 16
        %v486 = vrot.slane %v484, 5
        %v487 = vsel %vm329, %v482, %v486
        %v488 = vshrl.u32 %v289, 16
        %v490 = vrot.slane %v488, 4
        %v491 = vor.u32 %v490, %v486
        %v492 = vrot.slane %v491, 4
        %v494 = vshll.u32 %v315, 16
        %v496 = vrot.slane %v494, 5
        %v497 = vsel %vm329, %v492, %v496
        %v499 = vshrl.u32 %v290, 16
        %v501 = vrot.slane %v499, 4
        %v502 = vshll.u32 %v290, 16
        %v504 = vrot.slane %v502, 5
        %v505 = vor.u32 %v501, %v504
        %v506 = vrot.slane %v505, 4
        %v508 = vshll.u32 %v291, 16
        %v510 = vrot.slane %v508, 5
        %v511 = vsel %vm329, %v506, %v510
        %v512 = vshrl.u32 %v291, 16
        %v514 = vrot.slane %v512, 4
        %v515 = vor.u32 %v514, %v510
        %v516 = vrot.slane %v515, 4
        %v518 = vshll.u32 %v316, 16
        %v520 = vrot.slane %v518, 5
        %v521 = vsel %vm329, %v516, %v520
        %v523 = vshrl.u32 %v292, 16
        %v525 = vrot.slane %v523, 4
        %v526 = vshll.u32 %v292, 16
        %v528 = vrot.slane %v526, 5
        %v529 = vor.u32 %v525, %v528
        %v530 = vrot.slane %v529, 4
        %v532 = vshll.u32 %v293, 16
        %v534 = vrot.slane %v532, 5
        %v535 = vsel %vm329, %v530, %v534
        %v536 = vshrl.u32 %v293, 16
        %v538 = vrot.slane %v536, 4
        %v539 = vor.u32 %v538, %v534
        %v540 = vrot.slane %v539, 4
        %v542 = vshll.u32 %v317, 16
        %v544 = vrot.slane %v542, 5
        %v545 = vsel %vm329, %v540, %v544
        %v547 = vshrl.u32 %v294, 16
        %v549 = vrot.slane %v547, 4
        %v550 = vshll.u32 %v294, 16
        %v552 = vrot.slane %v550, 5
        %v553 = vor.u32 %v549, %v552
        %v554 = vrot.slane %v553, 4
        %v556 = vshll.u32 %v295, 16
        %v558 = vrot.slane %v556, 5
        %v559 = vsel %vm329, %v554, %v558
        %v560 = vshrl.u32 %v295, 16
        %v562 = vrot.slane %v560, 4
        %v563 = vor.u32 %v562, %v558
        %v564 = vrot.slane %v563, 4
        %v566 = vshll.u32 %v318, 16
        %v568 = vrot.slane %v566, 5
        %v569 = vsel %vm329, %v564, %v568
        %v571 = vshrl.u32 %v296, 16
        %v573 = vrot.slane %v571, 4
        %v574 = vshll.u32 %v296, 16
        %v576 = vrot.slane %v574, 5
        %v577 = vor.u32 %v573, %v576
        %v578 = vrot.slane %v577, 4
        %v580 = vshll.u32 %v297, 16
        %v582 = vrot.slane %v580, 5
        %v583 = vsel %vm329, %v578, %v582
        %v584 = vshrl.u32 %v297, 16
        %v586 = vrot.slane %v584, 4
        %v587 = vor.u32 %v586, %v582
        %v588 = vrot.slane %v587, 4
        %v590 = vshll.u32 %v319, 16
        %v592 = vrot.slane %v590, 5
        %v593 = vsel %vm329, %v588, %v592
        %v595 = vshrl.u32 %v298, 16
        %v597 = vrot.slane %v595, 4
        %v598 = vshll.u32 %v298, 16
        %v600 = vrot.slane %v598, 5
        %v601 = vor.u32 %v597, %v600
        %v602 = vrot.slane %v601, 4
        %v604 = vshll.u32 %v299, 16
        %v606 = vrot.slane %v604, 5
        %v607 = vsel %vm329, %v602, %v606
        %v608 = vshrl.u32 %v299, 16
        %v610 = vrot.slane %v608, 4
        %v611 = vor.u32 %v610, %v606
        %v612 = vrot.slane %v611, 4
        %v614 = vshll.u32 %v320, 16
        %v616 = vrot.slane %v614, 5
        %v617 = vsel %vm329, %v612, %v616
        %v619 = vshrl.u32 %v300, 16
        %v621 = vrot.slane %v619, 4
        %v622 = vshll.u32 %v300, 16
        %v624 = vrot.slane %v622, 5
        %v625 = vor.u32 %v621, %v624
        %v626 = vrot.slane %v625, 4
        %v628 = vshll.u32 %v301, 16
        %v630 = vrot.slane %v628, 5
        %v631 = vsel %vm329, %v626, %v630
        %v632 = vshrl.u32 %v301, 16
        %v634 = vrot.slane %v632, 4
        %v635 = vor.u32 %v634, %v630
        %v636 = vrot.slane %v635, 4
        %v638 = vshll.u32 %v321, 16
        %v640 = vrot.slane %v638, 5
        %v641 = vsel %vm329, %v636, %v640
        %v643 = vshrl.u32 %v302, 16
        %v645 = vrot.slane %v643, 4
        %v646 = vshll.u32 %v302, 16
        %v648 = vrot.slane %v646, 5
        %v649 = vor.u32 %v645, %v648
        %v650 = vrot.slane %v649, 4
        %v652 = vshll.u32 %v303, 16
        %v654 = vrot.slane %v652, 5
        %v655 = vsel %vm329, %v650, %v654
        %v656 = vshrl.u32 %v303, 16
        %v658 = vrot.slane %v656, 4
        %v659 = vor.u32 %v658, %v654
        %v660 = vrot.slane %v659, 4
        %v662 = vshll.u32 %v322, 16
        %v664 = vrot.slane %v662, 5
        %v665 = vsel %vm329, %v660, %v664
        %v667 = vshrl.u32 %v304, 16
        %v669 = vrot.slane %v667, 4
        %v670 = vshll.u32 %v304, 16
        %v672 = vrot.slane %v670, 5
        %v673 = vor.u32 %v669, %v672
        %v674 = vrot.slane %v673, 4
        %v676 = vshll.u32 %v305, 16
        %v678 = vrot.slane %v676, 5
        %v679 = vsel %vm329, %v674, %v678
        %v680 = vshrl.u32 %v305, 16
        %v682 = vrot.slane %v680, 4
        %v683 = vor.u32 %v682, %v678
        %v684 = vrot.slane %v683, 4
        %v686 = vshll.u32 %v323, 16
        %v688 = vrot.slane %v686, 5
        %v689 = vsel %vm329, %v684, %v688
        %v691 = vshrl.u32 %v306, 16
        %v693 = vrot.slane %v691, 4
        %v694 = vshll.u32 %v306, 16
        %v696 = vrot.slane %v694, 5
        %v697 = vor.u32 %v693, %v696
        %v698 = vrot.slane %v697, 4
        %v700 = vshll.u32 %v307, 16
        %v702 = vrot.slane %v700, 5
        %v703 = vsel %vm329, %v698, %v702
        %v704 = vshrl.u32 %v307, 16
        %v706 = vrot.slane %v704, 4
        %v707 = vor.u32 %v706, %v702
        %v708 = vrot.slane %v707, 4
        %v710 = vshll.u32 %v324, 16
        %v712 = vrot.slane %v710, 5
        %v713 = vsel %vm329, %v708, %v712
        %v714 = vunpack.c.l.b16 %v343
        %v715 = vunpack.c.l.b16 %v353
        %v716 = vunpack.c.l.b16 %v367
        %v717 = vunpack.c.l.b16 %v377
        %v718 = vunpack.c.l.b16 %v391
        %v719 = vunpack.c.l.b16 %v401
        %v720 = vunpack.c.l.b16 %v415
        %v721 = vunpack.c.l.b16 %v425
        %v722 = vunpack.c.l.b16 %v439
        %v723 = vunpack.c.l.b16 %v449
        %v724 = vunpack.c.l.b16 %v463
        %v725 = vunpack.c.l.b16 %v473
        %v726 = vunpack.c.l.b16 %v487
        %v727 = vunpack.c.l.b16 %v497
        %v728 = vunpack.c.l.b16 %v511
        %v729 = vunpack.c.l.b16 %v521
        %v730 = vunpack.c.l.b16 %v535
        %v731 = vunpack.c.l.b16 %v545
        %v732 = vunpack.c.l.b16 %v559
        %v733 = vunpack.c.l.b16 %v569
        %v734 = vunpack.c.l.b16 %v583
        %v735 = vunpack.c.l.b16 %v593
        %v736 = vunpack.c.l.b16 %v607
        %v737 = vunpack.c.l.b16 %v617
        %v738 = vunpack.c.l.b16 %v631
        %v739 = vunpack.c.l.b16 %v641
        %v740 = vunpack.c.l.b16 %v655
        %v741 = vunpack.c.l.b16 %v665
        %v742 = vunpack.c.l.b16 %v679
        %v743 = vunpack.c.l.b16 %v689
        %v744 = vunpack.c.l.b16 %v703
        %v745 = vunpack.c.l.b16 %v713
        %v746 = vpack.c.b16 %v715, %v714
        %v747 = vpack.c.b16 %v717, %v716
        %v748 = vpack.c.b16 %v719, %v718
        %v749 = vpack.c.b16 %v721, %v720
        %v750 = vpack.c.b16 %v723, %v722
        %v751 = vpack.c.b16 %v725, %v724
        %v752 = vpack.c.b16 %v727, %v726
        %v753 = vpack.c.b16 %v729, %v728
        %v754 = vpack.c.b16 %v731, %v730
        %v755 = vpack.c.b16 %v733, %v732
        %v756 = vpack.c.b16 %v735, %v734
        %v757 = vpack.c.b16 %v737, %v736
        %v758 = vpack.c.b16 %v739, %v738
        %v759 = vpack.c.b16 %v741, %v740
        %v760 = vpack.c.b16 %v743, %v742
        %v761 = vpack.c.b16 %v745, %v744
        %vm762 = vcmask 31744
        %v764 = vsel %vm762, %v746, 0
        %v767 = vsel %vm762, %v747, 0
        %v770 = vsel %vm762, %v748, 0
        %v773 = vsel %vm762, %v749, 0
        %v776 = vsel %vm762, %v750, 0
        %v779 = vsel %vm762, %v751, 0
        %v782 = vsel %vm762, %v752, 0
        %v785 = vsel %vm762, %v753, 0
        %v788 = vsel %vm762, %v754, 0
        %v791 = vsel %vm762, %v755, 0
        %v794 = vsel %vm762, %v756, 0
        %v797 = vsel %vm762, %v757, 0
        %v800 = vsel %vm762, %v758, 0
        %v803 = vsel %vm762, %v759, 0
        %v806 = vsel %vm762, %v760, 0
        %v809 = vsel %vm762, %v761, 0
        %vm811 = vcmask 1041408
        %v813 = vsel %vm811, %v326, 0
        %815 = vmatprep.subr.bf16.mxu0 0
        %816 = vmatpush1.bf16.msra.mxu0 %v813
        %817 = vmatprep.subr.bf16.mxu0 0
        %818 = vmatpush1.bf16.msra.mxu0 0
        %819 = vmatprep.subr.bf16.mxu0 0
        %820 = vmatpush1.bf16.msra.mxu0 0
        %821 = vmatprep.subr.bf16.mxu0 0
        %822 = vmatpush1.bf16.msra.mxu0 0
        %823 = vmatprep.subr.bf16.mxu0 0
        %824 = vmatpush1.bf16.msra.mxu0 0
        %825 = vmatprep.subr.bf16.mxu0 0
        %826 = vmatpush1.bf16.msra.mxu0 0
        %827 = vmatprep.subr.bf16.mxu0 0
        %828 = vmatpush1.bf16.msra.mxu0 0
        %829 = vmatprep.subr.bf16.mxu0 0
        %830 = vmatpush1.bf16.msra.mxu0 0
        %831 = vmatprep.subr.bf16.mxu0 0
        %832 = vmatpush1.bf16.msra.mxu0 0
        %833 = vmatprep.subr.bf16.mxu0 0
        %834 = vmatpush1.bf16.msra.mxu0 0
        %835 = vmatprep.subr.bf16.mxu0 0
        %836 = vmatpush1.bf16.msra.mxu0 0
        %837 = vmatprep.subr.bf16.mxu0 0
        %838 = vmatpush1.bf16.msra.mxu0 0
        %839 = vmatprep.subr.bf16.mxu0 0
        %840 = vmatpush1.bf16.msra.mxu0 0
        %841 = vmatprep.subr.bf16.mxu0 0
        %842 = vmatpush1.bf16.msra.mxu0 0
        %843 = vmatprep.subr.bf16.mxu0 0
        %844 = vmatpush1.bf16.msra.mxu0 0
        %845 = vmatprep.subr.bf16.mxu0 0
        %846 = vmatpush1.bf16.msra.mxu0 0
        %847 = vmatprep.mubr.bf16.mxu0 0
        %848 = vmatmul.mubr.bf16.gmra.mrb[0].mxu0 %v764
        %v849 = vpop.f32.mrb[0].mxu0
        %v850 = vadd.f32 0.0, %v849
        %v851 = vpop.f32.mrb[0].mxu0
        %v852 = vpop.f32.mrb[0].mxu0
        %v853 = vadd.f32 0.0, %v852
        %v854 = vpop.f32.mrb[0].mxu0
        %855 = vmatprep.mubr.bf16.mxu0 0
        %856 = vmatmul.mubr.bf16.gmra.mrb[0].mxu0 %v767
        %v857 = vpop.f32.mrb[0].mxu0
        %v858 = vadd.f32 0.0, %v857
        %v859 = vpop.f32.mrb[0].mxu0
        %v860 = vpop.f32.mrb[0].mxu0
        %v861 = vadd.f32 0.0, %v860
        %v862 = vpop.f32.mrb[0].mxu0
        %863 = vmatprep.mubr.bf16.mxu0 0
        %864 = vmatmul.mubr.bf16.gmra.mrb[0].mxu0 %v770
        %v865 = vpop.f32.mrb[0].mxu0
        %v866 = vadd.f32 0.0, %v865
        %v867 = vpop.f32.mrb[0].mxu0
        %v868 = vpop.f32.mrb[0].mxu0
        %v869 = vadd.f32 0.0, %v868
        %v870 = vpop.f32.mrb[0].mxu0
        %871 = vmatprep.mubr.bf16.mxu0 0
        %872 = vmatmul.mubr.bf16.gmra.mrb[0].mxu0 %v773
        %v873 = vpop.f32.mrb[0].mxu0
        %v874 = vadd.f32 0.0, %v873
        %v875 = vpop.f32.mrb[0].mxu0
        %v876 = vpop.f32.mrb[0].mxu0
        %v877 = vadd.f32 0.0, %v876
        %v878 = vpop.f32.mrb[0].mxu0
        %879 = vmatprep.mubr.bf16.mxu0 0
        %880 = vmatmul.mubr.bf16.gmra.mrb[0].mxu0 %v776
        %v881 = vpop.f32.mrb[0].mxu0
        %v882 = vadd.f32 0.0, %v881
        %v883 = vpop.f32.mrb[0].mxu0
        %v884 = vpop.f32.mrb[0].mxu0
        %v885 = vadd.f32 0.0, %v884
        %v886 = vpop.f32.mrb[0].mxu0
        %887 = vmatprep.mubr.bf16.mxu0 0
        %888 = vmatmul.mubr.bf16.gmra.mrb[0].mxu0 %v779
        %v889 = vpop.f32.mrb[0].mxu0
        %v890 = vadd.f32 0.0, %v889
        %v891 = vpop.f32.mrb[0].mxu0
        %v892 = vpop.f32.mrb[0].mxu0
        %v893 = vadd.f32 0.0, %v892
        %v894 = vpop.f32.mrb[0].mxu0
        %895 = vmatprep.mubr.bf16.mxu0 0
        %896 = vmatmul.mubr.bf16.gmra.mrb[0].mxu0 %v782
        %v897 = vpop.f32.mrb[0].mxu0
        %v898 = vadd.f32 0.0, %v897
        %v899 = vpop.f32.mrb[0].mxu0
        %v900 = vpop.f32.mrb[0].mxu0
        %v901 = vadd.f32 0.0, %v900
        %v902 = vpop.f32.mrb[0].mxu0
        %903 = vmatprep.mubr.bf16.mxu0 0
        %904 = vmatmul.mubr.bf16.gmra.mrb[0].mxu0 %v785
        %v905 = vpop.f32.mrb[0].mxu0
        %v906 = vadd.f32 0.0, %v905
        %v907 = vpop.f32.mrb[0].mxu0
        %v908 = vpop.f32.mrb[0].mxu0
        %v909 = vadd.f32 0.0, %v908
        %v910 = vpop.f32.mrb[0].mxu0
        %911 = vmatprep.mubr.bf16.mxu0 0
        %912 = vmatmul.mubr.bf16.gmra.mrb[0].mxu0 %v788
        %v913 = vpop.f32.mrb[0].mxu0
        %v914 = vadd.f32 0.0, %v913
        %v915 = vpop.f32.mrb[0].mxu0
        %v916 = vpop.f32.mrb[0].mxu0
        %v917 = vadd.f32 0.0, %v916
        %v918 = vpop.f32.mrb[0].mxu0
        %919 = vmatprep.mubr.bf16.mxu0 0
        %920 = vmatmul.mubr.bf16.gmra.mrb[0].mxu0 %v791
        %v921 = vpop.f32.mrb[0].mxu0
        %v922 = vadd.f32 0.0, %v921
        %v923 = vpop.f32.mrb[0].mxu0
        %v924 = vpop.f32.mrb[0].mxu0
        %v925 = vadd.f32 0.0, %v924
        %v926 = vpop.f32.mrb[0].mxu0
        %927 = vmatprep.mubr.bf16.mxu0 0
        %928 = vmatmul.mubr.bf16.gmra.mrb[0].mxu0 %v794
        %v929 = vpop.f32.mrb[0].mxu0
        %v930 = vadd.f32 0.0, %v929
        %v931 = vpop.f32.mrb[0].mxu0
        %v932 = vpop.f32.mrb[0].mxu0
        %v933 = vadd.f32 0.0, %v932
        %v934 = vpop.f32.mrb[0].mxu0
        %935 = vmatprep.mubr.bf16.mxu0 0
        %936 = vmatmul.mubr.bf16.gmra.mrb[0].mxu0 %v797
        %v937 = vpop.f32.mrb[0].mxu0
        %v938 = vadd.f32 0.0, %v937
        %v939 = vpop.f32.mrb[0].mxu0
        %v940 = vpop.f32.mrb[0].mxu0
        %v941 = vadd.f32 0.0, %v940
        %v942 = vpop.f32.mrb[0].mxu0
        %943 = vmatprep.mubr.bf16.mxu0 0
        %944 = vmatmul.mubr.bf16.gmra.mrb[0].mxu0 %v800
        %v945 = vpop.f32.mrb[0].mxu0
        %v946 = vadd.f32 0.0, %v945
        %v947 = vpop.f32.mrb[0].mxu0
        %v948 = vpop.f32.mrb[0].mxu0
        %v949 = vadd.f32 0.0, %v948
        %v950 = vpop.f32.mrb[0].mxu0
        %951 = vmatprep.mubr.bf16.mxu0 0
        %952 = vmatmul.mubr.bf16.gmra.mrb[0].mxu0 %v803
        %v953 = vpop.f32.mrb[0].mxu0
        %v954 = vadd.f32 0.0, %v953
        %v955 = vpop.f32.mrb[0].mxu0
        %v956 = vpop.f32.mrb[0].mxu0
        %v957 = vadd.f32 0.0, %v956
        %v958 = vpop.f32.mrb[0].mxu0
        %959 = vmatprep.mubr.bf16.mxu0 0
        %960 = vmatmul.mubr.bf16.gmra.mrb[0].mxu0 %v806
        %v961 = vpop.f32.mrb[0].mxu0
        %v962 = vadd.f32 0.0, %v961
        %v963 = vpop.f32.mrb[0].mxu0
        %v964 = vpop.f32.mrb[0].mxu0
        %v965 = vadd.f32 0.0, %v964
        %v966 = vpop.f32.mrb[0].mxu0
        %967 = vmatprep.mubr.bf16.mxu0 0
        %968 = vmatmul.mubr.bf16.gmra.mrb[0].mxu0 %v809
        %v969 = vpop.f32.mrb[0].mxu0
        %v970 = vadd.f32 0.0, %v969
        %v971 = vpop.f32.mrb[0].mxu0
        %v972 = vpop.f32.mrb[0].mxu0
        %v973 = vadd.f32 0.0, %v972
        %v974 = vpop.f32.mrb[0].mxu0
        %975 = vdwg.mxu0
        %v1008 = vunpack.c.l.b16 %v276
        %v1009 = vunpack.c.l.b16 %v277
        %v1010 = vunpack.c.l.b16 %v278
        %v1011 = vunpack.c.l.b16 %v279
        %v1012 = vunpack.c.l.b16 %v280
        %v1013 = vunpack.c.l.b16 %v281
        %v1014 = vunpack.c.l.b16 %v282
        %v1015 = vunpack.c.l.b16 %v283
        %v1016 = vunpack.c.l.b16 %v284
        %v1017 = vunpack.c.l.b16 %v285
        %v1018 = vunpack.c.l.b16 %v286
        %v1019 = vunpack.c.l.b16 %v287
        %v1020 = vunpack.c.l.b16 %v288
        %v1021 = vunpack.c.l.b16 %v289
        %v1022 = vunpack.c.l.b16 %v290
        %v1023 = vunpack.c.l.b16 %v291
        %v1024 = vunpack.c.l.b16 %v292
        %v1025 = vunpack.c.l.b16 %v293
        %v1026 = vunpack.c.l.b16 %v294
        %v1027 = vunpack.c.l.b16 %v295
        %v1028 = vunpack.c.l.b16 %v296
        %v1029 = vunpack.c.l.b16 %v297
        %v1030 = vunpack.c.l.b16 %v298
        %v1031 = vunpack.c.l.b16 %v299
        %v1032 = vunpack.c.l.b16 %v300
        %v1033 = vunpack.c.l.b16 %v301
        %v1034 = vunpack.c.l.b16 %v302
        %v1035 = vunpack.c.l.b16 %v303
        %v1036 = vunpack.c.l.b16 %v304
        %v1037 = vunpack.c.l.b16 %v305
        %v1038 = vunpack.c.l.b16 %v306
        %v1039 = vunpack.c.l.b16 %v307
        %v1040 = vpack.c.b16 %v1009, %v1008
        %v1041 = vpack.c.b16 %v1011, %v1010
        %v1042 = vpack.c.b16 %v1013, %v1012
        %v1043 = vpack.c.b16 %v1015, %v1014
        %v1044 = vpack.c.b16 %v1017, %v1016
        %v1045 = vpack.c.b16 %v1019, %v1018
        %v1046 = vpack.c.b16 %v1021, %v1020
        %v1047 = vpack.c.b16 %v1023, %v1022
        %v1048 = vpack.c.b16 %v1025, %v1024
        %v1049 = vpack.c.b16 %v1027, %v1026
        %v1050 = vpack.c.b16 %v1029, %v1028
        %v1051 = vpack.c.b16 %v1031, %v1030
        %v1052 = vpack.c.b16 %v1033, %v1032
        %v1053 = vpack.c.b16 %v1035, %v1034
        %v1054 = vpack.c.b16 %v1037, %v1036
        %v1055 = vpack.c.b16 %v1039, %v1038
        %v1057 = vsel %vm762, %v1040, 0
        %v1060 = vsel %vm762, %v1041, 0
        %v1063 = vsel %vm762, %v1042, 0
        %v1066 = vsel %vm762, %v1043, 0
        %v1069 = vsel %vm762, %v1044, 0
        %v1072 = vsel %vm762, %v1045, 0
        %v1075 = vsel %vm762, %v1046, 0
        %v1078 = vsel %vm762, %v1047, 0
        %v1081 = vsel %vm762, %v1048, 0
        %v1084 = vsel %vm762, %v1049, 0
        %v1087 = vsel %vm762, %v1050, 0
        %v1090 = vsel %vm762, %v1051, 0
        %v1093 = vsel %vm762, %v1052, 0
        %v1096 = vsel %vm762, %v1053, 0
        %v1099 = vsel %vm762, %v1054, 0
        %v1102 = vsel %vm762, %v1055, 0
        %v1105 = vsel %vm811, %v308, 0
        %1107 = vmatprep.subr.bf16.mxu0 0
        %1108 = vmatpush1.bf16.msra.mxu0 %v1105
        %1109 = vmatprep.subr.bf16.mxu0 0
        %1110 = vmatpush1.bf16.msra.mxu0 0
        %1111 = vmatprep.subr.bf16.mxu0 0
        %1112 = vmatpush1.bf16.msra.mxu0 0
        %1113 = vmatprep.subr.bf16.mxu0 0
        %1114 = vmatpush1.bf16.msra.mxu0 0
        %1115 = vmatprep.subr.bf16.mxu0 0
        %1116 = vmatpush1.bf16.msra.mxu0 0
        %1117 = vmatprep.subr.bf16.mxu0 0
        %1118 = vmatpush1.bf16.msra.mxu0 0
        %1119 = vmatprep.subr.bf16.mxu0 0
        %1120 = vmatpush1.bf16.msra.mxu0 0
        %1121 = vmatprep.subr.bf16.mxu0 0
        %1122 = vmatpush1.bf16.msra.mxu0 0
        %1123 = vmatprep.subr.bf16.mxu0 0
        %1124 = vmatpush1.bf16.msra.mxu0 0
        %1125 = vmatprep.subr.bf16.mxu0 0
        %1126 = vmatpush1.bf16.msra.mxu0 0
        %1127 = vmatprep.subr.bf16.mxu0 0
        %1128 = vmatpush1.bf16.msra.mxu0 0
        %1129 = vmatprep.subr.bf16.mxu0 0
        %1130 = vmatpush1.bf16.msra.mxu0 0
        %1131 = vmatprep.subr.bf16.mxu0 0
        %1132 = vmatpush1.bf16.msra.mxu0 0
        %1133 = vmatprep.subr.bf16.mxu0 0
        %1134 = vmatpush1.bf16.msra.mxu0 0
        %1135 = vmatprep.subr.bf16.mxu0 0
        %1136 = vmatpush1.bf16.msra.mxu0 0
        %1137 = vmatprep.subr.bf16.mxu0 0
        %1138 = vmatpush1.bf16.msra.mxu0 0
        %1139 = vmatprep.mubr.bf16.mxu0 0
        %1140 = vmatmul.mubr.bf16.gmra.mrb[0].mxu0 %v1057
        %v1141 = vpop.f32.mrb[0].mxu0
        %v1142 = vadd.f32 %v850, %v1141
        %v1143 = vpop.f32.mrb[0].mxu0
        %v1144 = vpop.f32.mrb[0].mxu0
        %v1145 = vadd.f32 %v853, %v1144
        %v1146 = vpop.f32.mrb[0].mxu0
        %1147 = vmatprep.mubr.bf16.mxu0 0
        %1148 = vmatmul.mubr.bf16.gmra.mrb[0].mxu0 %v1060
        %v1149 = vpop.f32.mrb[0].mxu0
        %v1150 = vadd.f32 %v858, %v1149
        %v1151 = vpop.f32.mrb[0].mxu0
        %v1152 = vpop.f32.mrb[0].mxu0
        %v1153 = vadd.f32 %v861, %v1152
        %v1154 = vpop.f32.mrb[0].mxu0
        %1155 = vmatprep.mubr.bf16.mxu0 0
        %1156 = vmatmul.mubr.bf16.gmra.mrb[0].mxu0 %v1063
        %v1157 = vpop.f32.mrb[0].mxu0
        %v1158 = vadd.f32 %v866, %v1157
        %v1159 = vpop.f32.mrb[0].mxu0
        %v1160 = vpop.f32.mrb[0].mxu0
        %v1161 = vadd.f32 %v869, %v1160
        %v1162 = vpop.f32.mrb[0].mxu0
        %1163 = vmatprep.mubr.bf16.mxu0 0
        %1164 = vmatmul.mubr.bf16.gmra.mrb[0].mxu0 %v1066
        %v1165 = vpop.f32.mrb[0].mxu0
        %v1166 = vadd.f32 %v874, %v1165
        %v1167 = vpop.f32.mrb[0].mxu0
        %v1168 = vpop.f32.mrb[0].mxu0
        %v1169 = vadd.f32 %v877, %v1168
        %v1170 = vpop.f32.mrb[0].mxu0
        %1171 = vmatprep.mubr.bf16.mxu0 0
        %1172 = vmatmul.mubr.bf16.gmra.mrb[0].mxu0 %v1069
        %v1173 = vpop.f32.mrb[0].mxu0
        %v1174 = vadd.f32 %v882, %v1173
        %v1175 = vpop.f32.mrb[0].mxu0
        %v1176 = vpop.f32.mrb[0].mxu0
        %v1177 = vadd.f32 %v885, %v1176
        %v1178 = vpop.f32.mrb[0].mxu0
        %1179 = vmatprep.mubr.bf16.mxu0 0
        %1180 = vmatmul.mubr.bf16.gmra.mrb[0].mxu0 %v1072
        %v1181 = vpop.f32.mrb[0].mxu0
        %v1182 = vadd.f32 %v890, %v1181
        %v1183 = vpop.f32.mrb[0].mxu0
        %v1184 = vpop.f32.mrb[0].mxu0
        %v1185 = vadd.f32 %v893, %v1184
        %v1186 = vpop.f32.mrb[0].mxu0
        %1187 = vmatprep.mubr.bf16.mxu0 0
        %1188 = vmatmul.mubr.bf16.gmra.mrb[0].mxu0 %v1075
        %v1189 = vpop.f32.mrb[0].mxu0
        %v1190 = vadd.f32 %v898, %v1189
        %v1191 = vpop.f32.mrb[0].mxu0
        %v1192 = vpop.f32.mrb[0].mxu0
        %v1193 = vadd.f32 %v901, %v1192
        %v1194 = vpop.f32.mrb[0].mxu0
        %1195 = vmatprep.mubr.bf16.mxu0 0
        %1196 = vmatmul.mubr.bf16.gmra.mrb[0].mxu0 %v1078
        %v1197 = vpop.f32.mrb[0].mxu0
        %v1198 = vadd.f32 %v906, %v1197
        %v1199 = vpop.f32.mrb[0].mxu0
        %v1200 = vpop.f32.mrb[0].mxu0
        %v1201 = vadd.f32 %v909, %v1200
        %v1202 = vpop.f32.mrb[0].mxu0
        %1203 = vmatprep.mubr.bf16.mxu0 0
        %1204 = vmatmul.mubr.bf16.gmra.mrb[0].mxu0 %v1081
        %v1205 = vpop.f32.mrb[0].mxu0
        %v1206 = vadd.f32 %v914, %v1205
        %v1207 = vpop.f32.mrb[0].mxu0
        %v1208 = vpop.f32.mrb[0].mxu0
        %v1209 = vadd.f32 %v917, %v1208
        %v1210 = vpop.f32.mrb[0].mxu0
        %1211 = vmatprep.mubr.bf16.mxu0 0
        %1212 = vmatmul.mubr.bf16.gmra.mrb[0].mxu0 %v1084
        %v1213 = vpop.f32.mrb[0].mxu0
        %v1214 = vadd.f32 %v922, %v1213
        %v1215 = vpop.f32.mrb[0].mxu0
        %v1216 = vpop.f32.mrb[0].mxu0
        %v1217 = vadd.f32 %v925, %v1216
        %v1218 = vpop.f32.mrb[0].mxu0
        %1219 = vmatprep.mubr.bf16.mxu0 0
        %1220 = vmatmul.mubr.bf16.gmra.mrb[0].mxu0 %v1087
        %v1221 = vpop.f32.mrb[0].mxu0
        %v1222 = vadd.f32 %v930, %v1221
        %v1223 = vpop.f32.mrb[0].mxu0
        %v1224 = vpop.f32.mrb[0].mxu0
        %v1225 = vadd.f32 %v933, %v1224
        %v1226 = vpop.f32.mrb[0].mxu0
        %1227 = vmatprep.mubr.bf16.mxu0 0
        %1228 = vmatmul.mubr.bf16.gmra.mrb[0].mxu0 %v1090
        %v1229 = vpop.f32.mrb[0].mxu0
        %v1230 = vadd.f32 %v938, %v1229
        %v1231 = vpop.f32.mrb[0].mxu0
        %v1232 = vpop.f32.mrb[0].mxu0
        %v1233 = vadd.f32 %v941, %v1232
        %v1234 = vpop.f32.mrb[0].mxu0
        %1235 = vmatprep.mubr.bf16.mxu0 0
        %1236 = vmatmul.mubr.bf16.gmra.mrb[0].mxu0 %v1093
        %v1237 = vpop.f32.mrb[0].mxu0
        %v1238 = vadd.f32 %v946, %v1237
        %v1239 = vpop.f32.mrb[0].mxu0
        %v1240 = vpop.f32.mrb[0].mxu0
        %v1241 = vadd.f32 %v949, %v1240
        %v1242 = vpop.f32.mrb[0].mxu0
        %1243 = vmatprep.mubr.bf16.mxu0 0
        %1244 = vmatmul.mubr.bf16.gmra.mrb[0].mxu0 %v1096
        %v1245 = vpop.f32.mrb[0].mxu0
        %v1246 = vadd.f32 %v954, %v1245
        %v1247 = vpop.f32.mrb[0].mxu0
        %v1248 = vpop.f32.mrb[0].mxu0
        %v1249 = vadd.f32 %v957, %v1248
        %v1250 = vpop.f32.mrb[0].mxu0
        %1251 = vmatprep.mubr.bf16.mxu0 0
        %1252 = vmatmul.mubr.bf16.gmra.mrb[0].mxu0 %v1099
        %v1253 = vpop.f32.mrb[0].mxu0
        %v1254 = vadd.f32 %v962, %v1253
        %v1255 = vpop.f32.mrb[0].mxu0
        %v1256 = vpop.f32.mrb[0].mxu0
        %v1257 = vadd.f32 %v965, %v1256
        %v1258 = vpop.f32.mrb[0].mxu0
        %1259 = vmatprep.mubr.bf16.mxu0 0
        %1260 = vmatmul.mubr.bf16.gmra.mrb[0].mxu0 %v1102
        %v1261 = vpop.f32.mrb[0].mxu0
        %v1262 = vadd.f32 %v970, %v1261
        %v1263 = vpop.f32.mrb[0].mxu0
        %v1264 = vpop.f32.mrb[0].mxu0
        %v1265 = vadd.f32 %v973, %v1264
        %v1266 = vpop.f32.mrb[0].mxu0
        %1267 = vdwg.mxu0
        %v1268 = vld [vmem:[%s275] sm:$0xe]
        %v1269 = vld [vmem:[%s275 + $0xc] sm:$0xe]
        %v1270 = vld [vmem:[%s275 + $0x18] sm:$0xe]
        %v1271 = vld [vmem:[%s275 + $0x24] sm:$0xe]
        %v1272 = vld [vmem:[%s275 + $0x30] sm:$0xe]
        %v1273 = vld [vmem:[%s275 + $0x3c] sm:$0xe]
        %v1274 = vld [vmem:[%s275 + $0x48] sm:$0xe]
        %v1275 = vld [vmem:[%s275 + $0x54] sm:$0xe]
        %v1276 = vld [vmem:[%s275 + $0x60] sm:$0xe]
        %v1277 = vld [vmem:[%s275 + $0x6c] sm:$0xe]
        %v1278 = vld [vmem:[%s275 + $0x78] sm:$0xe]
        %v1279 = vld [vmem:[%s275 + $0x84] sm:$0xe]
        %v1280 = vld [vmem:[%s275 + $0x90] sm:$0xe]
        %v1281 = vld [vmem:[%s275 + $0x9c] sm:$0xe]
        %v1282 = vld [vmem:[%s275 + $0xa8] sm:$0xe]
        %v1283 = vld [vmem:[%s275 + $0xb4] sm:$0xe]
        %s1284 = scalar_lea.vmem [#allocation5], 4
        %v1285 = vld [vmem:[%s1284] sm:$0x3]
        %vm1318 = vcmask 1042432
        %vm1319 = vcmask 1046532
        %vm1320 = vmor %vm1318, %vm1319
        %v1321 = vrot.slane %v1268, 5
        %v1322 = vrot.slane %v1321, 4
        %v1323 = vrot.slane %v277, 5
        %v1324 = vsel %vm1320, %v1322, %v1323
        %v1325 = vrot.slane %v1323, 4
        %v1326 = vrot.slane %v309, 5
        %v1327 = vsel %vm1320, %v1325, %v1326
        %v1328 = vrot.slane %v1269, 5
        %v1329 = vrot.slane %v1328, 4
        %v1330 = vrot.slane %v279, 5
        %v1331 = vsel %vm1320, %v1329, %v1330
        %v1332 = vrot.slane %v1330, 4
        %v1333 = vrot.slane %v310, 5
        %v1334 = vsel %vm1320, %v1332, %v1333
        %v1335 = vrot.slane %v1270, 5
        %v1336 = vrot.slane %v1335, 4
        %v1337 = vrot.slane %v281, 5
        %v1338 = vsel %vm1320, %v1336, %v1337
        %v1339 = vrot.slane %v1337, 4
        %v1340 = vrot.slane %v311, 5
        %v1341 = vsel %vm1320, %v1339, %v1340
        %v1342 = vrot.slane %v1271, 5
        %v1343 = vrot.slane %v1342, 4
        %v1344 = vrot.slane %v283, 5
        %v1345 = vsel %vm1320, %v1343, %v1344
        %v1346 = vrot.slane %v1344, 4
        %v1347 = vrot.slane %v312, 5
        %v1348 = vsel %vm1320, %v1346, %v1347
        %v1349 = vrot.slane %v1272, 5
        %v1350 = vrot.slane %v1349, 4
        %v1351 = vrot.slane %v285, 5
        %v1352 = vsel %vm1320, %v1350, %v1351
        %v1353 = vrot.slane %v1351, 4
        %v1354 = vrot.slane %v313, 5
        %v1355 = vsel %vm1320, %v1353, %v1354
        %v1356 = vrot.slane %v1273, 5
        %v1357 = vrot.slane %v1356, 4
        %v1358 = vrot.slane %v287, 5
        %v1359 = vsel %vm1320, %v1357, %v1358
        %v1360 = vrot.slane %v1358, 4
        %v1361 = vrot.slane %v314, 5
        %v1362 = vsel %vm1320, %v1360, %v1361
        %v1363 = vrot.slane %v1274, 5
        %v1364 = vrot.slane %v1363, 4
        %v1365 = vrot.slane %v289, 5
        %v1366 = vsel %vm1320, %v1364, %v1365
        %v1367 = vrot.slane %v1365, 4
        %v1368 = vrot.slane %v315, 5
        %v1369 = vsel %vm1320, %v1367, %v1368
        %v1370 = vrot.slane %v1275, 5
        %v1371 = vrot.slane %v1370, 4
        %v1372 = vrot.slane %v291, 5
        %v1373 = vsel %vm1320, %v1371, %v1372
        %v1374 = vrot.slane %v1372, 4
        %v1375 = vrot.slane %v316, 5
        %v1376 = vsel %vm1320, %v1374, %v1375
        %v1377 = vrot.slane %v1276, 5
        %v1378 = vrot.slane %v1377, 4
        %v1379 = vrot.slane %v293, 5
        %v1380 = vsel %vm1320, %v1378, %v1379
        %v1381 = vrot.slane %v1379, 4
        %v1382 = vrot.slane %v317, 5
        %v1383 = vsel %vm1320, %v1381, %v1382
        %v1384 = vrot.slane %v1277, 5
        %v1385 = vrot.slane %v1384, 4
        %v1386 = vrot.slane %v295, 5
        %v1387 = vsel %vm1320, %v1385, %v1386
        %v1388 = vrot.slane %v1386, 4
        %v1389 = vrot.slane %v318, 5
        %v1390 = vsel %vm1320, %v1388, %v1389
        %v1391 = vrot.slane %v1278, 5
        %v1392 = vrot.slane %v1391, 4
        %v1393 = vrot.slane %v297, 5
        %v1394 = vsel %vm1320, %v1392, %v1393
        %v1395 = vrot.slane %v1393, 4
        %v1396 = vrot.slane %v319, 5
        %v1397 = vsel %vm1320, %v1395, %v1396
        %v1398 = vrot.slane %v1279, 5
        %v1399 = vrot.slane %v1398, 4
        %v1400 = vrot.slane %v299, 5
        %v1401 = vsel %vm1320, %v1399, %v1400
        %v1402 = vrot.slane %v1400, 4
        %v1403 = vrot.slane %v320, 5
        %v1404 = vsel %vm1320, %v1402, %v1403
        %v1405 = vrot.slane %v1280, 5
        %v1406 = vrot.slane %v1405, 4
        %v1407 = vrot.slane %v301, 5
        %v1408 = vsel %vm1320, %v1406, %v1407
        %v1409 = vrot.slane %v1407, 4
        %v1410 = vrot.slane %v321, 5
        %v1411 = vsel %vm1320, %v1409, %v1410
        %v1412 = vrot.slane %v1281, 5
        %v1413 = vrot.slane %v1412, 4
        %v1414 = vrot.slane %v303, 5
        %v1415 = vsel %vm1320, %v1413, %v1414
        %v1416 = vrot.slane %v1414, 4
        %v1417 = vrot.slane %v322, 5
        %v1418 = vsel %vm1320, %v1416, %v1417
        %v1419 = vrot.slane %v1282, 5
        %v1420 = vrot.slane %v1419, 4
        %v1421 = vrot.slane %v305, 5
        %v1422 = vsel %vm1320, %v1420, %v1421
        %v1423 = vrot.slane %v1421, 4
        %v1424 = vrot.slane %v323, 5
        %v1425 = vsel %vm1320, %v1423, %v1424
        %v1426 = vrot.slane %v1283, 5
        %v1427 = vrot.slane %v1426, 4
        %v1428 = vrot.slane %v307, 5
        %v1429 = vsel %vm1320, %v1427, %v1428
        %v1430 = vrot.slane %v1428, 4
        %v1431 = vrot.slane %v324, 5
        %v1432 = vsel %vm1320, %v1430, %v1431
        %v1433 = vunpack.c.l.b16 %v1324
        %v1434 = vunpack.c.l.b16 %v1327
        %v1435 = vunpack.c.l.b16 %v1331
        %v1436 = vunpack.c.l.b16 %v1334
        %v1437 = vunpack.c.l.b16 %v1338
        %v1438 = vunpack.c.l.b16 %v1341
        %v1439 = vunpack.c.l.b16 %v1345
        %v1440 = vunpack.c.l.b16 %v1348
        %v1441 = vunpack.c.l.b16 %v1352
        %v1442 = vunpack.c.l.b16 %v1355
        %v1443 = vunpack.c.l.b16 %v1359
        %v1444 = vunpack.c.l.b16 %v1362
        %v1445 = vunpack.c.l.b16 %v1366
        %v1446 = vunpack.c.l.b16 %v1369
        %v1447 = vunpack.c.l.b16 %v1373
        %v1448 = vunpack.c.l.b16 %v1376
        %v1449 = vunpack.c.l.b16 %v1380
        %v1450 = vunpack.c.l.b16 %v1383
        %v1451 = vunpack.c.l.b16 %v1387
        %v1452 = vunpack.c.l.b16 %v1390
        %v1453 = vunpack.c.l.b16 %v1394
        %v1454 = vunpack.c.l.b16 %v1397
        %v1455 = vunpack.c.l.b16 %v1401
        %v1456 = vunpack.c.l.b16 %v1404
        %v1457 = vunpack.c.l.b16 %v1408
        %v1458 = vunpack.c.l.b16 %v1411
        %v1459 = vunpack.c.l.b16 %v1415
        %v1460 = vunpack.c.l.b16 %v1418
        %v1461 = vunpack.c.l.b16 %v1422
        %v1462 = vunpack.c.l.b16 %v1425
        %v1463 = vunpack.c.l.b16 %v1429
        %v1464 = vunpack.c.l.b16 %v1432
        %v1465 = vpack.c.b16 %v1434, %v1433
        %v1466 = vpack.c.b16 %v1436, %v1435
        %v1467 = vpack.c.b16 %v1438, %v1437
        %v1468 = vpack.c.b16 %v1440, %v1439
        %v1469 = vpack.c.b16 %v1442, %v1441
        %v1470 = vpack.c.b16 %v1444, %v1443
        %v1471 = vpack.c.b16 %v1446, %v1445
        %v1472 = vpack.c.b16 %v1448, %v1447
        %v1473 = vpack.c.b16 %v1450, %v1449
        %v1474 = vpack.c.b16 %v1452, %v1451
        %v1475 = vpack.c.b16 %v1454, %v1453
        %v1476 = vpack.c.b16 %v1456, %v1455
        %v1477 = vpack.c.b16 %v1458, %v1457
        %v1478 = vpack.c.b16 %v1460, %v1459
        %v1479 = vpack.c.b16 %v1462, %v1461
        %v1480 = vpack.c.b16 %v1464, %v1463
        %v1482 = vsel %vm762, %v1465, 0
        %v1485 = vsel %vm762, %v1466, 0
        %v1488 = vsel %vm762, %v1467, 0
        %v1491 = vsel %vm762, %v1468, 0
        %v1494 = vsel %vm762, %v1469, 0
        %v1497 = vsel %vm762, %v1470, 0
        %v1500 = vsel %vm762, %v1471, 0
        %v1503 = vsel %vm762, %v1472, 0
        %v1506 = vsel %vm762, %v1473, 0
        %v1509 = vsel %vm762, %v1474, 0
        %v1512 = vsel %vm762, %v1475, 0
        %v1515 = vsel %vm762, %v1476, 0
        %v1518 = vsel %vm762, %v1477, 0
        %v1521 = vsel %vm762, %v1478, 0
        %v1524 = vsel %vm762, %v1479, 0
        %v1527 = vsel %vm762, %v1480, 0
        %v1530 = vsel %vm811, %v1285, 0
        %1532 = vmatprep.subr.bf16.mxu0 0
        %1533 = vmatpush1.bf16.msra.mxu0 %v1530
        %1534 = vmatprep.subr.bf16.mxu0 0
        %1535 = vmatpush1.bf16.msra.mxu0 0
        %1536 = vmatprep.subr.bf16.mxu0 0
        %1537 = vmatpush1.bf16.msra.mxu0 0
        %1538 = vmatprep.subr.bf16.mxu0 0
        %1539 = vmatpush1.bf16.msra.mxu0 0
        %1540 = vmatprep.subr.bf16.mxu0 0
        %1541 = vmatpush1.bf16.msra.mxu0 0
        %1542 = vmatprep.subr.bf16.mxu0 0
        %1543 = vmatpush1.bf16.msra.mxu0 0
        %1544 = vmatprep.subr.bf16.mxu0 0
        %1545 = vmatpush1.bf16.msra.mxu0 0
        %1546 = vmatprep.subr.bf16.mxu0 0
        %1547 = vmatpush1.bf16.msra.mxu0 0
        %1548 = vmatprep.subr.bf16.mxu0 0
        %1549 = vmatpush1.bf16.msra.mxu0 0
        %1550 = vmatprep.subr.bf16.mxu0 0
        %1551 = vmatpush1.bf16.msra.mxu0 0
        %1552 = vmatprep.subr.bf16.mxu0 0
        %1553 = vmatpush1.bf16.msra.mxu0 0
        %1554 = vmatprep.subr.bf16.mxu0 0
        %1555 = vmatpush1.bf16.msra.mxu0 0
        %1556 = vmatprep.subr.bf16.mxu0 0
        %1557 = vmatpush1.bf16.msra.mxu0 0
        %1558 = vmatprep.subr.bf16.mxu0 0
        %1559 = vmatpush1.bf16.msra.mxu0 0
        %1560 = vmatprep.subr.bf16.mxu0 0
        %1561 = vmatpush1.bf16.msra.mxu0 0
        %1562 = vmatprep.subr.bf16.mxu0 0
        %1563 = vmatpush1.bf16.msra.mxu0 0
        %1564 = vmatprep.mubr.bf16.mxu0 0
        %1565 = vmatmul.mubr.bf16.gmra.mrb[0].mxu0 %v1482
        %v1566 = vpop.f32.mrb[0].mxu0
        %v1567 = vadd.f32 0.0, %v1566
        %v1568 = vpop.f32.mrb[0].mxu0
        %v1569 = vpop.f32.mrb[0].mxu0
        %v1570 = vadd.f32 0.0, %v1569
        %v1571 = vpop.f32.mrb[0].mxu0
        %1572 = vmatprep.mubr.bf16.mxu0 0
        %1573 = vmatmul.mubr.bf16.gmra.mrb[0].mxu0 %v1485
        %v1574 = vpop.f32.mrb[0].mxu0
        %v1575 = vadd.f32 0.0, %v1574
        %v1576 = vpop.f32.mrb[0].mxu0
        %v1577 = vpop.f32.mrb[0].mxu0
        %v1578 = vadd.f32 0.0, %v1577
        %v1579 = vpop.f32.mrb[0].mxu0
        %1580 = vmatprep.mubr.bf16.mxu0 0
        %1581 = vmatmul.mubr.bf16.gmra.mrb[0].mxu0 %v1488
        %v1582 = vpop.f32.mrb[0].mxu0
        %v1583 = vadd.f32 0.0, %v1582
        %v1584 = vpop.f32.mrb[0].mxu0
        %v1585 = vpop.f32.mrb[0].mxu0
        %v1586 = vadd.f32 0.0, %v1585
        %v1587 = vpop.f32.mrb[0].mxu0
        %1588 = vmatprep.mubr.bf16.mxu0 0
        %1589 = vmatmul.mubr.bf16.gmra.mrb[0].mxu0 %v1491
        %v1590 = vpop.f32.mrb[0].mxu0
        %v1591 = vadd.f32 0.0, %v1590
        %v1592 = vpop.f32.mrb[0].mxu0
        %v1593 = vpop.f32.mrb[0].mxu0
        %v1594 = vadd.f32 0.0, %v1593
        %v1595 = vpop.f32.mrb[0].mxu0
        %1596 = vmatprep.mubr.bf16.mxu0 0
        %1597 = vmatmul.mubr.bf16.gmra.mrb[0].mxu0 %v1494
        %v1598 = vpop.f32.mrb[0].mxu0
        %v1599 = vadd.f32 0.0, %v1598
        %v1600 = vpop.f32.mrb[0].mxu0
        %v1601 = vpop.f32.mrb[0].mxu0
        %v1602 = vadd.f32 0.0, %v1601
        %v1603 = vpop.f32.mrb[0].mxu0
        %1604 = vmatprep.mubr.bf16.mxu0 0
        %1605 = vmatmul.mubr.bf16.gmra.mrb[0].mxu0 %v1497
        %v1606 = vpop.f32.mrb[0].mxu0
        %v1607 = vadd.f32 0.0, %v1606
        %v1608 = vpop.f32.mrb[0].mxu0
        %v1609 = vpop.f32.mrb[0].mxu0
        %v1610 = vadd.f32 0.0, %v1609
        %v1611 = vpop.f32.mrb[0].mxu0
        %1612 = vmatprep.mubr.bf16.mxu0 0
        %1613 = vmatmul.mubr.bf16.gmra.mrb[0].mxu0 %v1500
        %v1614 = vpop.f32.mrb[0].mxu0
        %v1615 = vadd.f32 0.0, %v1614
        %v1616 = vpop.f32.mrb[0].mxu0
        %v1617 = vpop.f32.mrb[0].mxu0
        %v1618 = vadd.f32 0.0, %v1617
        %v1619 = vpop.f32.mrb[0].mxu0
        %1620 = vmatprep.mubr.bf16.mxu0 0
        %1621 = vmatmul.mubr.bf16.gmra.mrb[0].mxu0 %v1503
        %v1622 = vpop.f32.mrb[0].mxu0
        %v1623 = vadd.f32 0.0, %v1622
        %v1624 = vpop.f32.mrb[0].mxu0
        %v1625 = vpop.f32.mrb[0].mxu0
        %v1626 = vadd.f32 0.0, %v1625
        %v1627 = vpop.f32.mrb[0].mxu0
        %1628 = vmatprep.mubr.bf16.mxu0 0
        %1629 = vmatmul.mubr.bf16.gmra.mrb[0].mxu0 %v1506
        %v1630 = vpop.f32.mrb[0].mxu0
        %v1631 = vadd.f32 0.0, %v1630
        %v1632 = vpop.f32.mrb[0].mxu0
        %v1633 = vpop.f32.mrb[0].mxu0
        %v1634 = vadd.f32 0.0, %v1633
        %v1635 = vpop.f32.mrb[0].mxu0
        %1636 = vmatprep.mubr.bf16.mxu0 0
        %1637 = vmatmul.mubr.bf16.gmra.mrb[0].mxu0 %v1509
        %v1638 = vpop.f32.mrb[0].mxu0
        %v1639 = vadd.f32 0.0, %v1638
        %v1640 = vpop.f32.mrb[0].mxu0
        %v1641 = vpop.f32.mrb[0].mxu0
        %v1642 = vadd.f32 0.0, %v1641
        %v1643 = vpop.f32.mrb[0].mxu0
        %1644 = vmatprep.mubr.bf16.mxu0 0
        %1645 = vmatmul.mubr.bf16.gmra.mrb[0].mxu0 %v1512
        %v1646 = vpop.f32.mrb[0].mxu0
        %v1647 = vadd.f32 0.0, %v1646
        %v1648 = vpop.f32.mrb[0].mxu0
        %v1649 = vpop.f32.mrb[0].mxu0
        %v1650 = vadd.f32 0.0, %v1649
        %v1651 = vpop.f32.mrb[0].mxu0
        %1652 = vmatprep.mubr.bf16.mxu0 0
        %1653 = vmatmul.mubr.bf16.gmra.mrb[0].mxu0 %v1515
        %v1654 = vpop.f32.mrb[0].mxu0
        %v1655 = vadd.f32 0.0, %v1654
        %v1656 = vpop.f32.mrb[0].mxu0
        %v1657 = vpop.f32.mrb[0].mxu0
        %v1658 = vadd.f32 0.0, %v1657
        %v1659 = vpop.f32.mrb[0].mxu0
        %1660 = vmatprep.mubr.bf16.mxu0 0
        %1661 = vmatmul.mubr.bf16.gmra.mrb[0].mxu0 %v1518
        %v1662 = vpop.f32.mrb[0].mxu0
        %v1663 = vadd.f32 0.0, %v1662
        %v1664 = vpop.f32.mrb[0].mxu0
        %v1665 = vpop.f32.mrb[0].mxu0
        %v1666 = vadd.f32 0.0, %v1665
        %v1667 = vpop.f32.mrb[0].mxu0
        %1668 = vmatprep.mubr.bf16.mxu0 0
        %1669 = vmatmul.mubr.bf16.gmra.mrb[0].mxu0 %v1521
        %v1670 = vpop.f32.mrb[0].mxu0
        %v1671 = vadd.f32 0.0, %v1670
        %v1672 = vpop.f32.mrb[0].mxu0
        %v1673 = vpop.f32.mrb[0].mxu0
        %v1674 = vadd.f32 0.0, %v1673
        %v1675 = vpop.f32.mrb[0].mxu0
        %1676 = vmatprep.mubr.bf16.mxu0 0
        %1677 = vmatmul.mubr.bf16.gmra.mrb[0].mxu0 %v1524
        %v1678 = vpop.f32.mrb[0].mxu0
        %v1679 = vadd.f32 0.0, %v1678
        %v1680 = vpop.f32.mrb[0].mxu0
        %v1681 = vpop.f32.mrb[0].mxu0
        %v1682 = vadd.f32 0.0, %v1681
        %v1683 = vpop.f32.mrb[0].mxu0
        %1684 = vmatprep.mubr.bf16.mxu0 0
        %1685 = vmatmul.mubr.bf16.gmra.mrb[0].mxu0 %v1527
        %v1686 = vpop.f32.mrb[0].mxu0
        %v1687 = vadd.f32 0.0, %v1686
        %v1688 = vpop.f32.mrb[0].mxu0
        %v1689 = vpop.f32.mrb[0].mxu0
        %v1690 = vadd.f32 0.0, %v1689
        %v1691 = vpop.f32.mrb[0].mxu0
        %1692 = vdwg.mxu0
        %v1693 = vadd.f32 %v1142, %v1567
        %v1694 = vadd.f32 %v1145, %v1570
        %v1695 = vadd.f32 %v1150, %v1575
        %v1696 = vadd.f32 %v1153, %v1578
        %v1697 = vadd.f32 %v1158, %v1583
        %v1698 = vadd.f32 %v1161, %v1586
        %v1699 = vadd.f32 %v1166, %v1591
        %v1700 = vadd.f32 %v1169, %v1594
        %v1701 = vadd.f32 %v1174, %v1599
        %v1702 = vadd.f32 %v1177, %v1602
        %v1703 = vadd.f32 %v1182, %v1607
        %v1704 = vadd.f32 %v1185, %v1610
        %v1705 = vadd.f32 %v1190, %v1615
        %v1706 = vadd.f32 %v1193, %v1618
        %v1707 = vadd.f32 %v1198, %v1623
        %v1708 = vadd.f32 %v1201, %v1626
        %v1709 = vadd.f32 %v1206, %v1631
        %v1710 = vadd.f32 %v1209, %v1634
        %v1711 = vadd.f32 %v1214, %v1639
        %v1712 = vadd.f32 %v1217, %v1642
        %v1713 = vadd.f32 %v1222, %v1647
        %v1714 = vadd.f32 %v1225, %v1650
        %v1715 = vadd.f32 %v1230, %v1655
        %v1716 = vadd.f32 %v1233, %v1658
        %v1717 = vadd.f32 %v1238, %v1663
        %v1718 = vadd.f32 %v1241, %v1666
        %v1719 = vadd.f32 %v1246, %v1671
        %v1720 = vadd.f32 %v1249, %v1674
        %v1721 = vadd.f32 %v1254, %v1679
        %v1722 = vadd.f32 %v1257, %v1682
        %v1723 = vadd.f32 %v1262, %v1687
        %v1724 = vadd.f32 %v1265, %v1690
        %s1725 = sadd.s32 %s272, 1
        %s1726 = smul.u32 %s1725, 3
        %s1727 = smul.addr %s1726, 4
        %s1728 = scalar_lea.vmem %s233, %s1727 [#allocation2]
        %v1729 = vld [vmem:[%s1728] sm:$0xf]
        %v1730 = vld [vmem:[%s1728 + $0x4] sm:$0xf]
        %v1731 = vld [vmem:[%s1728 + $0xc] sm:$0xf]
        %v1732 = vld [vmem:[%s1728 + $0x10] sm:$0xf]
        %v1733 = vld [vmem:[%s1728 + $0x18] sm:$0xf]
        %v1734 = vld [vmem:[%s1728 + $0x1c] sm:$0xf]
        %v1735 = vld [vmem:[%s1728 + $0x24] sm:$0xf]
        %v1736 = vld [vmem:[%s1728 + $0x28] sm:$0xf]
        %v1737 = vld [vmem:[%s1728 + $0x30] sm:$0xf]
        %v1738 = vld [vmem:[%s1728 + $0x34] sm:$0xf]
        %v1739 = vld [vmem:[%s1728 + $0x3c] sm:$0xf]
        %v1740 = vld [vmem:[%s1728 + $0x40] sm:$0xf]
        %v1741 = vld [vmem:[%s1728 + $0x48] sm:$0xf]
        %v1742 = vld [vmem:[%s1728 + $0x4c] sm:$0xf]
        %v1743 = vld [vmem:[%s1728 + $0x54] sm:$0xf]
        %v1744 = vld [vmem:[%s1728 + $0x58] sm:$0xf]
        %v1745 = vld [vmem:[%s1728 + $0x60] sm:$0xf]
        %v1746 = vld [vmem:[%s1728 + $0x64] sm:$0xf]
        %v1747 = vld [vmem:[%s1728 + $0x6c] sm:$0xf]
        %v1748 = vld [vmem:[%s1728 + $0x70] sm:$0xf]
        %v1749 = vld [vmem:[%s1728 + $0x78] sm:$0xf]
        %v1750 = vld [vmem:[%s1728 + $0x7c] sm:$0xf]
        %v1751 = vld [vmem:[%s1728 + $0x84] sm:$0xf]
        %v1752 = vld [vmem:[%s1728 + $0x88] sm:$0xf]
        %v1753 = vld [vmem:[%s1728 + $0x90] sm:$0xf]
        %v1754 = vld [vmem:[%s1728 + $0x94] sm:$0xf]
        %v1755 = vld [vmem:[%s1728 + $0x9c] sm:$0xf]
        %v1756 = vld [vmem:[%s1728 + $0xa0] sm:$0xf]
        %v1757 = vld [vmem:[%s1728 + $0xa8] sm:$0xf]
        %v1758 = vld [vmem:[%s1728 + $0xac] sm:$0xf]
        %v1759 = vld [vmem:[%s1728 + $0xb4] sm:$0xf]
        %v1760 = vld [vmem:[%s1728 + $0xb8] sm:$0xf]
        %s1761 = scalar_lea.vmem [#allocation5], 6
        %v1762 = vld [vmem:[%s1761] sm:$0x3]
        %v1795 = vunpack.c.l.b16 %v1729
        %v1796 = vunpack.c.l.b16 %v1730
        %v1797 = vunpack.c.l.b16 %v1731
        %v1798 = vunpack.c.l.b16 %v1732
        %v1799 = vunpack.c.l.b16 %v1733
        %v1800 = vunpack.c.l.b16 %v1734
        %v1801 = vunpack.c.l.b16 %v1735
        %v1802 = vunpack.c.l.b16 %v1736
        %v1803 = vunpack.c.l.b16 %v1737
        %v1804 = vunpack.c.l.b16 %v1738
        %v1805 = vunpack.c.l.b16 %v1739
        %v1806 = vunpack.c.l.b16 %v1740
        %v1807 = vunpack.c.l.b16 %v1741
        %v1808 = vunpack.c.l.b16 %v1742
        %v1809 = vunpack.c.l.b16 %v1743
        %v1810 = vunpack.c.l.b16 %v1744
        %v1811 = vunpack.c.l.b16 %v1745
        %v1812 = vunpack.c.l.b16 %v1746
        %v1813 = vunpack.c.l.b16 %v1747
        %v1814 = vunpack.c.l.b16 %v1748
        %v1815 = vunpack.c.l.b16 %v1749
        %v1816 = vunpack.c.l.b16 %v1750
        %v1817 = vunpack.c.l.b16 %v1751
        %v1818 = vunpack.c.l.b16 %v1752
        %v1819 = vunpack.c.l.b16 %v1753
        %v1820 = vunpack.c.l.b16 %v1754
        %v1821 = vunpack.c.l.b16 %v1755
        %v1822 = vunpack.c.l.b16 %v1756
        %v1823 = vunpack.c.l.b16 %v1757
        %v1824 = vunpack.c.l.b16 %v1758
        %v1825 = vunpack.c.l.b16 %v1759
        %v1826 = vunpack.c.l.b16 %v1760
        %v1827 = vpack.c.b16 %v1796, %v1795
        %v1828 = vpack.c.b16 %v1798, %v1797
        %v1829 = vpack.c.b16 %v1800, %v1799
        %v1830 = vpack.c.b16 %v1802, %v1801
        %v1831 = vpack.c.b16 %v1804, %v1803
        %v1832 = vpack.c.b16 %v1806, %v1805
        %v1833 = vpack.c.b16 %v1808, %v1807
        %v1834 = vpack.c.b16 %v1810, %v1809
        %v1835 = vpack.c.b16 %v1812, %v1811
        %v1836 = vpack.c.b16 %v1814, %v1813
        %v1837 = vpack.c.b16 %v1816, %v1815
        %v1838 = vpack.c.b16 %v1818, %v1817
        %v1839 = vpack.c.b16 %v1820, %v1819
        %v1840 = vpack.c.b16 %v1822, %v1821
        %v1841 = vpack.c.b16 %v1824, %v1823
        %v1842 = vpack.c.b16 %v1826, %v1825
        %v1844 = vsel %vm762, %v1827, 0
        %v1847 = vsel %vm762, %v1828, 0
        %v1850 = vsel %vm762, %v1829, 0
        %v1853 = vsel %vm762, %v1830, 0
        %v1856 = vsel %vm762, %v1831, 0
        %v1859 = vsel %vm762, %v1832, 0
        %v1862 = vsel %vm762, %v1833, 0
        %v1865 = vsel %vm762, %v1834, 0
        %v1868 = vsel %vm762, %v1835, 0
        %v1871 = vsel %vm762, %v1836, 0
        %v1874 = vsel %vm762, %v1837, 0
        %v1877 = vsel %vm762, %v1838, 0
        %v1880 = vsel %vm762, %v1839, 0
        %v1883 = vsel %vm762, %v1840, 0
        %v1886 = vsel %vm762, %v1841, 0
        %v1889 = vsel %vm762, %v1842, 0
        %v1892 = vsel %vm811, %v1762, 0
        %1894 = vmatprep.subr.bf16.mxu0 0
        %1895 = vmatpush1.bf16.msra.mxu0 %v1892
        %1896 = vmatprep.subr.bf16.mxu0 0
        %1897 = vmatpush1.bf16.msra.mxu0 0
        %1898 = vmatprep.subr.bf16.mxu0 0
        %1899 = vmatpush1.bf16.msra.mxu0 0
        %1900 = vmatprep.subr.bf16.mxu0 0
        %1901 = vmatpush1.bf16.msra.mxu0 0
        %1902 = vmatprep.subr.bf16.mxu0 0
        %1903 = vmatpush1.bf16.msra.mxu0 0
        %1904 = vmatprep.subr.bf16.mxu0 0
        %1905 = vmatpush1.bf16.msra.mxu0 0
        %1906 = vmatprep.subr.bf16.mxu0 0
        %1907 = vmatpush1.bf16.msra.mxu0 0
        %1908 = vmatprep.subr.bf16.mxu0 0
        %1909 = vmatpush1.bf16.msra.mxu0 0
        %1910 = vmatprep.subr.bf16.mxu0 0
        %1911 = vmatpush1.bf16.msra.mxu0 0
        %1912 = vmatprep.subr.bf16.mxu0 0
        %1913 = vmatpush1.bf16.msra.mxu0 0
        %1914 = vmatprep.subr.bf16.mxu0 0
        %1915 = vmatpush1.bf16.msra.mxu0 0
        %1916 = vmatprep.subr.bf16.mxu0 0
        %1917 = vmatpush1.bf16.msra.mxu0 0
        %1918 = vmatprep.subr.bf16.mxu0 0
        %1919 = vmatpush1.bf16.msra.mxu0 0
        %1920 = vmatprep.subr.bf16.mxu0 0
        %1921 = vmatpush1.bf16.msra.mxu0 0
        %1922 = vmatprep.subr.bf16.mxu0 0
        %1923 = vmatpush1.bf16.msra.mxu0 0
        %1924 = vmatprep.subr.bf16.mxu0 0
        %1925 = vmatpush1.bf16.msra.mxu0 0
        %1926 = vmatprep.mubr.bf16.mxu0 0
        %1927 = vmatmul.mubr.bf16.gmra.mrb[0].mxu0 %v1844
        %v1928 = vpop.f32.mrb[0].mxu0
        %v1929 = vadd.f32 0.0, %v1928
        %v1930 = vpop.f32.mrb[0].mxu0
        %v1931 = vpop.f32.mrb[0].mxu0
        %v1932 = vadd.f32 0.0, %v1931
        %v1933 = vpop.f32.mrb[0].mxu0
        %1934 = vmatprep.mubr.bf16.mxu0 0
        %1935 = vmatmul.mubr.bf16.gmra.mrb[0].mxu0 %v1847
        %v1936 = vpop.f32.mrb[0].mxu0
        %v1937 = vadd.f32 0.0, %v1936
        %v1938 = vpop.f32.mrb[0].mxu0
        %v1939 = vpop.f32.mrb[0].mxu0
        %v1940 = vadd.f32 0.0, %v1939
        %v1941 = vpop.f32.mrb[0].mxu0
        %1942 = vmatprep.mubr.bf16.mxu0 0
        %1943 = vmatmul.mubr.bf16.gmra.mrb[0].mxu0 %v1850
        %v1944 = vpop.f32.mrb[0].mxu0
        %v1945 = vadd.f32 0.0, %v1944
        %v1946 = vpop.f32.mrb[0].mxu0
        %v1947 = vpop.f32.mrb[0].mxu0
        %v1948 = vadd.f32 0.0, %v1947
        %v1949 = vpop.f32.mrb[0].mxu0
        %1950 = vmatprep.mubr.bf16.mxu0 0
        %1951 = vmatmul.mubr.bf16.gmra.mrb[0].mxu0 %v1853
        %v1952 = vpop.f32.mrb[0].mxu0
        %v1953 = vadd.f32 0.0, %v1952
        %v1954 = vpop.f32.mrb[0].mxu0
        %v1955 = vpop.f32.mrb[0].mxu0
        %v1956 = vadd.f32 0.0, %v1955
        %v1957 = vpop.f32.mrb[0].mxu0
        %1958 = vmatprep.mubr.bf16.mxu0 0
        %1959 = vmatmul.mubr.bf16.gmra.mrb[0].mxu0 %v1856
        %v1960 = vpop.f32.mrb[0].mxu0
        %v1961 = vadd.f32 0.0, %v1960
        %v1962 = vpop.f32.mrb[0].mxu0
        %v1963 = vpop.f32.mrb[0].mxu0
        %v1964 = vadd.f32 0.0, %v1963
        %v1965 = vpop.f32.mrb[0].mxu0
        %1966 = vmatprep.mubr.bf16.mxu0 0
        %1967 = vmatmul.mubr.bf16.gmra.mrb[0].mxu0 %v1859
        %v1968 = vpop.f32.mrb[0].mxu0
        %v1969 = vadd.f32 0.0, %v1968
        %v1970 = vpop.f32.mrb[0].mxu0
        %v1971 = vpop.f32.mrb[0].mxu0
        %v1972 = vadd.f32 0.0, %v1971
        %v1973 = vpop.f32.mrb[0].mxu0
        %1974 = vmatprep.mubr.bf16.mxu0 0
        %1975 = vmatmul.mubr.bf16.gmra.mrb[0].mxu0 %v1862
        %v1976 = vpop.f32.mrb[0].mxu0
        %v1977 = vadd.f32 0.0, %v1976
        %v1978 = vpop.f32.mrb[0].mxu0
        %v1979 = vpop.f32.mrb[0].mxu0
        %v1980 = vadd.f32 0.0, %v1979
        %v1981 = vpop.f32.mrb[0].mxu0
        %1982 = vmatprep.mubr.bf16.mxu0 0
        %1983 = vmatmul.mubr.bf16.gmra.mrb[0].mxu0 %v1865
        %v1984 = vpop.f32.mrb[0].mxu0
        %v1985 = vadd.f32 0.0, %v1984
        %v1986 = vpop.f32.mrb[0].mxu0
        %v1987 = vpop.f32.mrb[0].mxu0
        %v1988 = vadd.f32 0.0, %v1987
        %v1989 = vpop.f32.mrb[0].mxu0
        %1990 = vmatprep.mubr.bf16.mxu0 0
        %1991 = vmatmul.mubr.bf16.gmra.mrb[0].mxu0 %v1868
        %v1992 = vpop.f32.mrb[0].mxu0
        %v1993 = vadd.f32 0.0, %v1992
        %v1994 = vpop.f32.mrb[0].mxu0
        %v1995 = vpop.f32.mrb[0].mxu0
        %v1996 = vadd.f32 0.0, %v1995
        %v1997 = vpop.f32.mrb[0].mxu0
        %1998 = vmatprep.mubr.bf16.mxu0 0
        %1999 = vmatmul.mubr.bf16.gmra.mrb[0].mxu0 %v1871
        %v2000 = vpop.f32.mrb[0].mxu0
        %v2001 = vadd.f32 0.0, %v2000
        %v2002 = vpop.f32.mrb[0].mxu0
        %v2003 = vpop.f32.mrb[0].mxu0
        %v2004 = vadd.f32 0.0, %v2003
        %v2005 = vpop.f32.mrb[0].mxu0
        %2006 = vmatprep.mubr.bf16.mxu0 0
        %2007 = vmatmul.mubr.bf16.gmra.mrb[0].mxu0 %v1874
        %v2008 = vpop.f32.mrb[0].mxu0
        %v2009 = vadd.f32 0.0, %v2008
        %v2010 = vpop.f32.mrb[0].mxu0
        %v2011 = vpop.f32.mrb[0].mxu0
        %v2012 = vadd.f32 0.0, %v2011
        %v2013 = vpop.f32.mrb[0].mxu0
        %2014 = vmatprep.mubr.bf16.mxu0 0
        %2015 = vmatmul.mubr.bf16.gmra.mrb[0].mxu0 %v1877
        %v2016 = vpop.f32.mrb[0].mxu0
        %v2017 = vadd.f32 0.0, %v2016
        %v2018 = vpop.f32.mrb[0].mxu0
        %v2019 = vpop.f32.mrb[0].mxu0
        %v2020 = vadd.f32 0.0, %v2019
        %v2021 = vpop.f32.mrb[0].mxu0
        %2022 = vmatprep.mubr.bf16.mxu0 0
        %2023 = vmatmul.mubr.bf16.gmra.mrb[0].mxu0 %v1880
        %v2024 = vpop.f32.mrb[0].mxu0
        %v2025 = vadd.f32 0.0, %v2024
        %v2026 = vpop.f32.mrb[0].mxu0
        %v2027 = vpop.f32.mrb[0].mxu0
        %v2028 = vadd.f32 0.0, %v2027
        %v2029 = vpop.f32.mrb[0].mxu0
        %2030 = vmatprep.mubr.bf16.mxu0 0
        %2031 = vmatmul.mubr.bf16.gmra.mrb[0].mxu0 %v1883
        %v2032 = vpop.f32.mrb[0].mxu0
        %v2033 = vadd.f32 0.0, %v2032
        %v2034 = vpop.f32.mrb[0].mxu0
        %v2035 = vpop.f32.mrb[0].mxu0
        %v2036 = vadd.f32 0.0, %v2035
        %v2037 = vpop.f32.mrb[0].mxu0
        %2038 = vmatprep.mubr.bf16.mxu0 0
        %2039 = vmatmul.mubr.bf16.gmra.mrb[0].mxu0 %v1886
        %v2040 = vpop.f32.mrb[0].mxu0
        %v2041 = vadd.f32 0.0, %v2040
        %v2042 = vpop.f32.mrb[0].mxu0
        %v2043 = vpop.f32.mrb[0].mxu0
        %v2044 = vadd.f32 0.0, %v2043
        %v2045 = vpop.f32.mrb[0].mxu0
        %2046 = vmatprep.mubr.bf16.mxu0 0
        %2047 = vmatmul.mubr.bf16.gmra.mrb[0].mxu0 %v1889
        %v2048 = vpop.f32.mrb[0].mxu0
        %v2049 = vadd.f32 0.0, %v2048
        %v2050 = vpop.f32.mrb[0].mxu0
        %v2051 = vpop.f32.mrb[0].mxu0
        %v2052 = vadd.f32 0.0, %v2051
        %v2053 = vpop.f32.mrb[0].mxu0
        %2054 = vdwg.mxu0
        %v2055 = vadd.f32 %v1693, %v1929
        %v2056 = vadd.f32 %v1694, %v1932
        %v2057 = vadd.f32 %v1695, %v1937
        %v2058 = vadd.f32 %v1696, %v1940
        %v2059 = vadd.f32 %v1697, %v1945
        %v2060 = vadd.f32 %v1698, %v1948
        %v2061 = vadd.f32 %v1699, %v1953
        %v2062 = vadd.f32 %v1700, %v1956
        %v2063 = vadd.f32 %v1701, %v1961
        %v2064 = vadd.f32 %v1702, %v1964
        %v2065 = vadd.f32 %v1703, %v1969
        %v2066 = vadd.f32 %v1704, %v1972
        %v2067 = vadd.f32 %v1705, %v1977
        %v2068 = vadd.f32 %v1706, %v1980
        %v2069 = vadd.f32 %v1707, %v1985
        %v2070 = vadd.f32 %v1708, %v1988
        %v2071 = vadd.f32 %v1709, %v1993
        %v2072 = vadd.f32 %v1710, %v1996
        %v2073 = vadd.f32 %v1711, %v2001
        %v2074 = vadd.f32 %v1712, %v2004
        %v2075 = vadd.f32 %v1713, %v2009
        %v2076 = vadd.f32 %v1714, %v2012
        %v2077 = vadd.f32 %v1715, %v2017
        %v2078 = vadd.f32 %v1716, %v2020
        %v2079 = vadd.f32 %v1717, %v2025
        %v2080 = vadd.f32 %v1718, %v2028
        %v2081 = vadd.f32 %v1719, %v2033
        %v2082 = vadd.f32 %v1720, %v2036
        %v2083 = vadd.f32 %v1721, %v2041
        %v2084 = vadd.f32 %v1722, %v2044
        %v2085 = vadd.f32 %v1723, %v2049
        %v2086 = vadd.f32 %v1724, %v2052
        %v2087 = vld [vmem:[%s1728] sm:$0xf]
        %v2088 = vld [vmem:[%s1728 + $0x4] sm:$0xf]
        %v2089 = vld [vmem:[%s1728 + $0x8] sm:$0x1]
        %v2090 = vld [vmem:[%s1728 + $0xc] sm:$0xf]
        %v2091 = vld [vmem:[%s1728 + $0x10] sm:$0xf]
        %v2092 = vld [vmem:[%s1728 + $0x14] sm:$0x1]
        %v2093 = vld [vmem:[%s1728 + $0x18] sm:$0xf]
        %v2094 = vld [vmem:[%s1728 + $0x1c] sm:$0xf]
        %v2095 = vld [vmem:[%s1728 + $0x20] sm:$0x1]
        %v2096 = vld [vmem:[%s1728 + $0x24] sm:$0xf]
        %v2097 = vld [vmem:[%s1728 + $0x28] sm:$0xf]
        %v2098 = vld [vmem:[%s1728 + $0x2c] sm:$0x1]
        %v2099 = vld [vmem:[%s1728 + $0x30] sm:$0xf]
        %v2100 = vld [vmem:[%s1728 + $0x34] sm:$0xf]
        %v2101 = vld [vmem:[%s1728 + $0x38] sm:$0x1]
        %v2102 = vld [vmem:[%s1728 + $0x3c] sm:$0xf]
        %v2103 = vld [vmem:[%s1728 + $0x40] sm:$0xf]
        %v2104 = vld [vmem:[%s1728 + $0x44] sm:$0x1]
        %v2105 = vld [vmem:[%s1728 + $0x48] sm:$0xf]
        %v2106 = vld [vmem:[%s1728 + $0x4c] sm:$0xf]
        %v2107 = vld [vmem:[%s1728 + $0x50] sm:$0x1]
        %v2108 = vld [vmem:[%s1728 + $0x54] sm:$0xf]
        %v2109 = vld [vmem:[%s1728 + $0x58] sm:$0xf]
        %v2110 = vld [vmem:[%s1728 + $0x5c] sm:$0x1]
        %v2111 = vld [vmem:[%s1728 + $0x60] sm:$0xf]
        %v2112 = vld [vmem:[%s1728 + $0x64] sm:$0xf]
        %v2113 = vld [vmem:[%s1728 + $0x68] sm:$0x1]
        %v2114 = vld [vmem:[%s1728 + $0x6c] sm:$0xf]
        %v2115 = vld [vmem:[%s1728 + $0x70] sm:$0xf]
        %v2116 = vld [vmem:[%s1728 + $0x74] sm:$0x1]
        %v2117 = vld [vmem:[%s1728 + $0x78] sm:$0xf]
        %v2118 = vld [vmem:[%s1728 + $0x7c] sm:$0xf]
        %v2119 = vld [vmem:[%s1728 + $0x80] sm:$0x1]
        %v2120 = vld [vmem:[%s1728 + $0x84] sm:$0xf]
        %v2121 = vld [vmem:[%s1728 + $0x88] sm:$0xf]
        %v2122 = vld [vmem:[%s1728 + $0x8c] sm:$0x1]
        %v2123 = vld [vmem:[%s1728 + $0x90] sm:$0xf]
        %v2124 = vld [vmem:[%s1728 + $0x94] sm:$0xf]
        %v2125 = vld [vmem:[%s1728 + $0x98] sm:$0x1]
        %v2126 = vld [vmem:[%s1728 + $0x9c] sm:$0xf]
        %v2127 = vld [vmem:[%s1728 + $0xa0] sm:$0xf]
        %v2128 = vld [vmem:[%s1728 + $0xa4] sm:$0x1]
        %v2129 = vld [vmem:[%s1728 + $0xa8] sm:$0xf]
        %v2130 = vld [vmem:[%s1728 + $0xac] sm:$0xf]
        %v2131 = vld [vmem:[%s1728 + $0xb0] sm:$0x1]
        %v2132 = vld [vmem:[%s1728 + $0xb4] sm:$0xf]
        %v2133 = vld [vmem:[%s1728 + $0xb8] sm:$0xf]
        %v2134 = vld [vmem:[%s1728 + $0xbc] sm:$0x1]
        %s2135 = scalar_lea.vmem [#allocation5], 8
        %v2136 = vld [vmem:[%s2135] sm:$0x3]
        %v2138 = vshrl.u32 %v2087, 16
        %v2140 = vrot.slane %v2138, 4
        %v2141 = vshll.u32 %v2087, 16
        %v2143 = vrot.slane %v2141, 5
        %v2144 = vor.u32 %v2140, %v2143
        %v2145 = vrot.slane %v2144, 4
        %v2147 = vshll.u32 %v2088, 16
        %v2149 = vrot.slane %v2147, 5
        %v2150 = vsel %vm329, %v2145, %v2149
        %v2151 = vshrl.u32 %v2088, 16
        %v2153 = vrot.slane %v2151, 4
        %v2154 = vor.u32 %v2153, %v2149
        %v2155 = vrot.slane %v2154, 4
        %v2157 = vshll.u32 %v2089, 16
        %v2159 = vrot.slane %v2157, 5
        %v2160 = vsel %vm329, %v2155, %v2159
        %v2162 = vshrl.u32 %v2090, 16
        %v2164 = vrot.slane %v2162, 4
        %v2165 = vshll.u32 %v2090, 16
        %v2167 = vrot.slane %v2165, 5
        %v2168 = vor.u32 %v2164, %v2167
        %v2169 = vrot.slane %v2168, 4
        %v2171 = vshll.u32 %v2091, 16
        %v2173 = vrot.slane %v2171, 5
        %v2174 = vsel %vm329, %v2169, %v2173
        %v2175 = vshrl.u32 %v2091, 16
        %v2177 = vrot.slane %v2175, 4
        %v2178 = vor.u32 %v2177, %v2173
        %v2179 = vrot.slane %v2178, 4
        %v2181 = vshll.u32 %v2092, 16
        %v2183 = vrot.slane %v2181, 5
        %v2184 = vsel %vm329, %v2179, %v2183
        %v2186 = vshrl.u32 %v2093, 16
        %v2188 = vrot.slane %v2186, 4
        %v2189 = vshll.u32 %v2093, 16
        %v2191 = vrot.slane %v2189, 5
        %v2192 = vor.u32 %v2188, %v2191
        %v2193 = vrot.slane %v2192, 4
        %v2195 = vshll.u32 %v2094, 16
        %v2197 = vrot.slane %v2195, 5
        %v2198 = vsel %vm329, %v2193, %v2197
        %v2199 = vshrl.u32 %v2094, 16
        %v2201 = vrot.slane %v2199, 4
        %v2202 = vor.u32 %v2201, %v2197
        %v2203 = vrot.slane %v2202, 4
        %v2205 = vshll.u32 %v2095, 16
        %v2207 = vrot.slane %v2205, 5
        %v2208 = vsel %vm329, %v2203, %v2207
        %v2210 = vshrl.u32 %v2096, 16
        %v2212 = vrot.slane %v2210, 4
        %v2213 = vshll.u32 %v2096, 16
        %v2215 = vrot.slane %v2213, 5
        %v2216 = vor.u32 %v2212, %v2215
        %v2217 = vrot.slane %v2216, 4
        %v2219 = vshll.u32 %v2097, 16
        %v2221 = vrot.slane %v2219, 5
        %v2222 = vsel %vm329, %v2217, %v2221
        %v2223 = vshrl.u32 %v2097, 16
        %v2225 = vrot.slane %v2223, 4
        %v2226 = vor.u32 %v2225, %v2221
        %v2227 = vrot.slane %v2226, 4
        %v2229 = vshll.u32 %v2098, 16
        %v2231 = vrot.slane %v2229, 5
        %v2232 = vsel %vm329, %v2227, %v2231
        %v2234 = vshrl.u32 %v2099, 16
        %v2236 = vrot.slane %v2234, 4
        %v2237 = vshll.u32 %v2099, 16
        %v2239 = vrot.slane %v2237, 5
        %v2240 = vor.u32 %v2236, %v2239
        %v2241 = vrot.slane %v2240, 4
        %v2243 = vshll.u32 %v2100, 16
        %v2245 = vrot.slane %v2243, 5
        %v2246 = vsel %vm329, %v2241, %v2245
        %v2247 = vshrl.u32 %v2100, 16
        %v2249 = vrot.slane %v2247, 4
        %v2250 = vor.u32 %v2249, %v2245
        %v2251 = vrot.slane %v2250, 4
        %v2253 = vshll.u32 %v2101, 16
        %v2255 = vrot.slane %v2253, 5
        %v2256 = vsel %vm329, %v2251, %v2255
        %v2258 = vshrl.u32 %v2102, 16
        %v2260 = vrot.slane %v2258, 4
        %v2261 = vshll.u32 %v2102, 16
        %v2263 = vrot.slane %v2261, 5
        %v2264 = vor.u32 %v2260, %v2263
        %v2265 = vrot.slane %v2264, 4
        %v2267 = vshll.u32 %v2103, 16
        %v2269 = vrot.slane %v2267, 5
        %v2270 = vsel %vm329, %v2265, %v2269
        %v2271 = vshrl.u32 %v2103, 16
        %v2273 = vrot.slane %v2271, 4
        %v2274 = vor.u32 %v2273, %v2269
        %v2275 = vrot.slane %v2274, 4
        %v2277 = vshll.u32 %v2104, 16
        %v2279 = vrot.slane %v2277, 5
        %v2280 = vsel %vm329, %v2275, %v2279
        %v2282 = vshrl.u32 %v2105, 16
        %v2284 = vrot.slane %v2282, 4
        %v2285 = vshll.u32 %v2105, 16
        %v2287 = vrot.slane %v2285, 5
        %v2288 = vor.u32 %v2284, %v2287
        %v2289 = vrot.slane %v2288, 4
        %v2291 = vshll.u32 %v2106, 16
        %v2293 = vrot.slane %v2291, 5
        %v2294 = vsel %vm329, %v2289, %v2293
        %v2295 = vshrl.u32 %v2106, 16
        %v2297 = vrot.slane %v2295, 4
        %v2298 = vor.u32 %v2297, %v2293
        %v2299 = vrot.slane %v2298, 4
        %v2301 = vshll.u32 %v2107, 16
        %v2303 = vrot.slane %v2301, 5
        %v2304 = vsel %vm329, %v2299, %v2303
        %v2306 = vshrl.u32 %v2108, 16
        %v2308 = vrot.slane %v2306, 4
        %v2309 = vshll.u32 %v2108, 16
        %v2311 = vrot.slane %v2309, 5
        %v2312 = vor.u32 %v2308, %v2311
        %v2313 = vrot.slane %v2312, 4
        %v2315 = vshll.u32 %v2109, 16
        %v2317 = vrot.slane %v2315, 5
        %v2318 = vsel %vm329, %v2313, %v2317
        %v2319 = vshrl.u32 %v2109, 16
        %v2321 = vrot.slane %v2319, 4
        %v2322 = vor.u32 %v2321, %v2317
        %v2323 = vrot.slane %v2322, 4
        %v2325 = vshll.u32 %v2110, 16
        %v2327 = vrot.slane %v2325, 5
        %v2328 = vsel %vm329, %v2323, %v2327
        %v2330 = vshrl.u32 %v2111, 16
        %v2332 = vrot.slane %v2330, 4
        %v2333 = vshll.u32 %v2111, 16
        %v2335 = vrot.slane %v2333, 5
        %v2336 = vor.u32 %v2332, %v2335
        %v2337 = vrot.slane %v2336, 4
        %v2339 = vshll.u32 %v2112, 16
        %v2341 = vrot.slane %v2339, 5
        %v2342 = vsel %vm329, %v2337, %v2341
        %v2343 = vshrl.u32 %v2112, 16
        %v2345 = vrot.slane %v2343, 4
        %v2346 = vor.u32 %v2345, %v2341
        %v2347 = vrot.slane %v2346, 4
        %v2349 = vshll.u32 %v2113, 16
        %v2351 = vrot.slane %v2349, 5
        %v2352 = vsel %vm329, %v2347, %v2351
        %v2354 = vshrl.u32 %v2114, 16
        %v2356 = vrot.slane %v2354, 4
        %v2357 = vshll.u32 %v2114, 16
        %v2359 = vrot.slane %v2357, 5
        %v2360 = vor.u32 %v2356, %v2359
        %v2361 = vrot.slane %v2360, 4
        %v2363 = vshll.u32 %v2115, 16
        %v2365 = vrot.slane %v2363, 5
        %v2366 = vsel %vm329, %v2361, %v2365
        %v2367 = vshrl.u32 %v2115, 16
        %v2369 = vrot.slane %v2367, 4
        %v2370 = vor.u32 %v2369, %v2365
        %v2371 = vrot.slane %v2370, 4
        %v2373 = vshll.u32 %v2116, 16
        %v2375 = vrot.slane %v2373, 5
        %v2376 = vsel %vm329, %v2371, %v2375
        %v2378 = vshrl.u32 %v2117, 16
        %v2380 = vrot.slane %v2378, 4
        %v2381 = vshll.u32 %v2117, 16
        %v2383 = vrot.slane %v2381, 5
        %v2384 = vor.u32 %v2380, %v2383
        %v2385 = vrot.slane %v2384, 4
        %v2387 = vshll.u32 %v2118, 16
        %v2389 = vrot.slane %v2387, 5
        %v2390 = vsel %vm329, %v2385, %v2389
        %v2391 = vshrl.u32 %v2118, 16
        %v2393 = vrot.slane %v2391, 4
        %v2394 = vor.u32 %v2393, %v2389
        %v2395 = vrot.slane %v2394, 4
        %v2397 = vshll.u32 %v2119, 16
        %v2399 = vrot.slane %v2397, 5
        %v2400 = vsel %vm329, %v2395, %v2399
        %v2402 = vshrl.u32 %v2120, 16
        %v2404 = vrot.slane %v2402, 4
        %v2405 = vshll.u32 %v2120, 16
        %v2407 = vrot.slane %v2405, 5
        %v2408 = vor.u32 %v2404, %v2407
        %v2409 = vrot.slane %v2408, 4
        %v2411 = vshll.u32 %v2121, 16
        %v2413 = vrot.slane %v2411, 5
        %v2414 = vsel %vm329, %v2409, %v2413
        %v2415 = vshrl.u32 %v2121, 16
        %v2417 = vrot.slane %v2415, 4
        %v2418 = vor.u32 %v2417, %v2413
        %v2419 = vrot.slane %v2418, 4
        %v2421 = vshll.u32 %v2122, 16
        %v2423 = vrot.slane %v2421, 5
        %v2424 = vsel %vm329, %v2419, %v2423
        %v2426 = vshrl.u32 %v2123, 16
        %v2428 = vrot.slane %v2426, 4
        %v2429 = vshll.u32 %v2123, 16
        %v2431 = vrot.slane %v2429, 5
        %v2432 = vor.u32 %v2428, %v2431
        %v2433 = vrot.slane %v2432, 4
        %v2435 = vshll.u32 %v2124, 16
        %v2437 = vrot.slane %v2435, 5
        %v2438 = vsel %vm329, %v2433, %v2437
        %v2439 = vshrl.u32 %v2124, 16
        %v2441 = vrot.slane %v2439, 4
        %v2442 = vor.u32 %v2441, %v2437
        %v2443 = vrot.slane %v2442, 4
        %v2445 = vshll.u32 %v2125, 16
        %v2447 = vrot.slane %v2445, 5
        %v2448 = vsel %vm329, %v2443, %v2447
        %v2450 = vshrl.u32 %v2126, 16
        %v2452 = vrot.slane %v2450, 4
        %v2453 = vshll.u32 %v2126, 16
        %v2455 = vrot.slane %v2453, 5
        %v2456 = vor.u32 %v2452, %v2455
        %v2457 = vrot.slane %v2456, 4
        %v2459 = vshll.u32 %v2127, 16
        %v2461 = vrot.slane %v2459, 5
        %v2462 = vsel %vm329, %v2457, %v2461
        %v2463 = vshrl.u32 %v2127, 16
        %v2465 = vrot.slane %v2463, 4
        %v2466 = vor.u32 %v2465, %v2461
        %v2467 = vrot.slane %v2466, 4
        %v2469 = vshll.u32 %v2128, 16
        %v2471 = vrot.slane %v2469, 5
        %v2472 = vsel %vm329, %v2467, %v2471
        %v2474 = vshrl.u32 %v2129, 16
        %v2476 = vrot.slane %v2474, 4
        %v2477 = vshll.u32 %v2129, 16
        %v2479 = vrot.slane %v2477, 5
        %v2480 = vor.u32 %v2476, %v2479
        %v2481 = vrot.slane %v2480, 4
        %v2483 = vshll.u32 %v2130, 16
        %v2485 = vrot.slane %v2483, 5
        %v2486 = vsel %vm329, %v2481, %v2485
        %v2487 = vshrl.u32 %v2130, 16
        %v2489 = vrot.slane %v2487, 4
        %v2490 = vor.u32 %v2489, %v2485
        %v2491 = vrot.slane %v2490, 4
        %v2493 = vshll.u32 %v2131, 16
        %v2495 = vrot.slane %v2493, 5
        %v2496 = vsel %vm329, %v2491, %v2495
        %v2498 = vshrl.u32 %v2132, 16
        %v2500 = vrot.slane %v2498, 4
        %v2501 = vshll.u32 %v2132, 16
        %v2503 = vrot.slane %v2501, 5
        %v2504 = vor.u32 %v2500, %v2503
        %v2505 = vrot.slane %v2504, 4
        %v2507 = vshll.u32 %v2133, 16
        %v2509 = vrot.slane %v2507, 5
        %v2510 = vsel %vm329, %v2505, %v2509
        %v2511 = vshrl.u32 %v2133, 16
        %v2513 = vrot.slane %v2511, 4
        %v2514 = vor.u32 %v2513, %v2509
        %v2515 = vrot.slane %v2514, 4
        %v2517 = vshll.u32 %v2134, 16
        %v2519 = vrot.slane %v2517, 5
        %v2520 = vsel %vm329, %v2515, %v2519
        %v2521 = vunpack.c.l.b16 %v2150
        %v2522 = vunpack.c.l.b16 %v2160
        %v2523 = vunpack.c.l.b16 %v2174
        %v2524 = vunpack.c.l.b16 %v2184
        %v2525 = vunpack.c.l.b16 %v2198
        %v2526 = vunpack.c.l.b16 %v2208
        %v2527 = vunpack.c.l.b16 %v2222
        %v2528 = vunpack.c.l.b16 %v2232
        %v2529 = vunpack.c.l.b16 %v2246
        %v2530 = vunpack.c.l.b16 %v2256
        %v2531 = vunpack.c.l.b16 %v2270
        %v2532 = vunpack.c.l.b16 %v2280
        %v2533 = vunpack.c.l.b16 %v2294
        %v2534 = vunpack.c.l.b16 %v2304
        %v2535 = vunpack.c.l.b16 %v2318
        %v2536 = vunpack.c.l.b16 %v2328
        %v2537 = vunpack.c.l.b16 %v2342
        %v2538 = vunpack.c.l.b16 %v2352
        %v2539 = vunpack.c.l.b16 %v2366
        %v2540 = vunpack.c.l.b16 %v2376
        %v2541 = vunpack.c.l.b16 %v2390
        %v2542 = vunpack.c.l.b16 %v2400
        %v2543 = vunpack.c.l.b16 %v2414
        %v2544 = vunpack.c.l.b16 %v2424
        %v2545 = vunpack.c.l.b16 %v2438
        %v2546 = vunpack.c.l.b16 %v2448
        %v2547 = vunpack.c.l.b16 %v2462
        %v2548 = vunpack.c.l.b16 %v2472
        %v2549 = vunpack.c.l.b16 %v2486
        %v2550 = vunpack.c.l.b16 %v2496
        %v2551 = vunpack.c.l.b16 %v2510
        %v2552 = vunpack.c.l.b16 %v2520
        %v2553 = vpack.c.b16 %v2522, %v2521
        %v2554 = vpack.c.b16 %v2524, %v2523
        %v2555 = vpack.c.b16 %v2526, %v2525
        %v2556 = vpack.c.b16 %v2528, %v2527
        %v2557 = vpack.c.b16 %v2530, %v2529
        %v2558 = vpack.c.b16 %v2532, %v2531
        %v2559 = vpack.c.b16 %v2534, %v2533
        %v2560 = vpack.c.b16 %v2536, %v2535
        %v2561 = vpack.c.b16 %v2538, %v2537
        %v2562 = vpack.c.b16 %v2540, %v2539
        %v2563 = vpack.c.b16 %v2542, %v2541
        %v2564 = vpack.c.b16 %v2544, %v2543
        %v2565 = vpack.c.b16 %v2546, %v2545
        %v2566 = vpack.c.b16 %v2548, %v2547
        %v2567 = vpack.c.b16 %v2550, %v2549
        %v2568 = vpack.c.b16 %v2552, %v2551
        %v2570 = vsel %vm762, %v2553, 0
        %v2573 = vsel %vm762, %v2554, 0
        %v2576 = vsel %vm762, %v2555, 0
        %v2579 = vsel %vm762, %v2556, 0
        %v2582 = vsel %vm762, %v2557, 0
        %v2585 = vsel %vm762, %v2558, 0
        %v2588 = vsel %vm762, %v2559, 0
        %v2591 = vsel %vm762, %v2560, 0
        %v2594 = vsel %vm762, %v2561, 0
        %v2597 = vsel %vm762, %v2562, 0
        %v2600 = vsel %vm762, %v2563, 0
        %v2603 = vsel %vm762, %v2564, 0
        %v2606 = vsel %vm762, %v2565, 0
        %v2609 = vsel %vm762, %v2566, 0
        %v2612 = vsel %vm762, %v2567, 0
        %v2615 = vsel %vm762, %v2568, 0
        %v2618 = vsel %vm811, %v2136, 0
        %2620 = vmatprep.subr.bf16.mxu0 0
        %2621 = vmatpush1.bf16.msra.mxu0 %v2618
        %2622 = vmatprep.subr.bf16.mxu0 0
        %2623 = vmatpush1.bf16.msra.mxu0 0
        %2624 = vmatprep.subr.bf16.mxu0 0
        %2625 = vmatpush1.bf16.msra.mxu0 0
        %2626 = vmatprep.subr.bf16.mxu0 0
        %2627 = vmatpush1.bf16.msra.mxu0 0
        %2628 = vmatprep.subr.bf16.mxu0 0
        %2629 = vmatpush1.bf16.msra.mxu0 0
        %2630 = vmatprep.subr.bf16.mxu0 0
        %2631 = vmatpush1.bf16.msra.mxu0 0
        %2632 = vmatprep.subr.bf16.mxu0 0
        %2633 = vmatpush1.bf16.msra.mxu0 0
        %2634 = vmatprep.subr.bf16.mxu0 0
        %2635 = vmatpush1.bf16.msra.mxu0 0
        %2636 = vmatprep.subr.bf16.mxu0 0
        %2637 = vmatpush1.bf16.msra.mxu0 0
        %2638 = vmatprep.subr.bf16.mxu0 0
        %2639 = vmatpush1.bf16.msra.mxu0 0
        %2640 = vmatprep.subr.bf16.mxu0 0
        %2641 = vmatpush1.bf16.msra.mxu0 0
        %2642 = vmatprep.subr.bf16.mxu0 0
        %2643 = vmatpush1.bf16.msra.mxu0 0
        %2644 = vmatprep.subr.bf16.mxu0 0
        %2645 = vmatpush1.bf16.msra.mxu0 0
        %2646 = vmatprep.subr.bf16.mxu0 0
        %2647 = vmatpush1.bf16.msra.mxu0 0
        %2648 = vmatprep.subr.bf16.mxu0 0
        %2649 = vmatpush1.bf16.msra.mxu0 0
        %2650 = vmatprep.subr.bf16.mxu0 0
        %2651 = vmatpush1.bf16.msra.mxu0 0
        %2652 = vmatprep.mubr.bf16.mxu0 0
        %2653 = vmatmul.mubr.bf16.gmra.mrb[0].mxu0 %v2570
        %v2654 = vpop.f32.mrb[0].mxu0
        %v2655 = vadd.f32 0.0, %v2654
        %v2656 = vpop.f32.mrb[0].mxu0
        %v2657 = vpop.f32.mrb[0].mxu0
        %v2658 = vadd.f32 0.0, %v2657
        %v2659 = vpop.f32.mrb[0].mxu0
        %2660 = vmatprep.mubr.bf16.mxu0 0
        %2661 = vmatmul.mubr.bf16.gmra.mrb[0].mxu0 %v2573
        %v2662 = vpop.f32.mrb[0].mxu0
        %v2663 = vadd.f32 0.0, %v2662
        %v2664 = vpop.f32.mrb[0].mxu0
        %v2665 = vpop.f32.mrb[0].mxu0
        %v2666 = vadd.f32 0.0, %v2665
        %v2667 = vpop.f32.mrb[0].mxu0
        %2668 = vmatprep.mubr.bf16.mxu0 0
        %2669 = vmatmul.mubr.bf16.gmra.mrb[0].mxu0 %v2576
        %v2670 = vpop.f32.mrb[0].mxu0
        %v2671 = vadd.f32 0.0, %v2670
        %v2672 = vpop.f32.mrb[0].mxu0
        %v2673 = vpop.f32.mrb[0].mxu0
        %v2674 = vadd.f32 0.0, %v2673
        %v2675 = vpop.f32.mrb[0].mxu0
        %2676 = vmatprep.mubr.bf16.mxu0 0
        %2677 = vmatmul.mubr.bf16.gmra.mrb[0].mxu0 %v2579
        %v2678 = vpop.f32.mrb[0].mxu0
        %v2679 = vadd.f32 0.0, %v2678
        %v2680 = vpop.f32.mrb[0].mxu0
        %v2681 = vpop.f32.mrb[0].mxu0
        %v2682 = vadd.f32 0.0, %v2681
        %v2683 = vpop.f32.mrb[0].mxu0
        %2684 = vmatprep.mubr.bf16.mxu0 0
        %2685 = vmatmul.mubr.bf16.gmra.mrb[0].mxu0 %v2582
        %v2686 = vpop.f32.mrb[0].mxu0
        %v2687 = vadd.f32 0.0, %v2686
        %v2688 = vpop.f32.mrb[0].mxu0
        %v2689 = vpop.f32.mrb[0].mxu0
        %v2690 = vadd.f32 0.0, %v2689
        %v2691 = vpop.f32.mrb[0].mxu0
        %2692 = vmatprep.mubr.bf16.mxu0 0
        %2693 = vmatmul.mubr.bf16.gmra.mrb[0].mxu0 %v2585
        %v2694 = vpop.f32.mrb[0].mxu0
        %v2695 = vadd.f32 0.0, %v2694
        %v2696 = vpop.f32.mrb[0].mxu0
        %v2697 = vpop.f32.mrb[0].mxu0
        %v2698 = vadd.f32 0.0, %v2697
        %v2699 = vpop.f32.mrb[0].mxu0
        %2700 = vmatprep.mubr.bf16.mxu0 0
        %2701 = vmatmul.mubr.bf16.gmra.mrb[0].mxu0 %v2588
        %v2702 = vpop.f32.mrb[0].mxu0
        %v2703 = vadd.f32 0.0, %v2702
        %v2704 = vpop.f32.mrb[0].mxu0
        %v2705 = vpop.f32.mrb[0].mxu0
        %v2706 = vadd.f32 0.0, %v2705
        %v2707 = vpop.f32.mrb[0].mxu0
        %2708 = vmatprep.mubr.bf16.mxu0 0
        %2709 = vmatmul.mubr.bf16.gmra.mrb[0].mxu0 %v2591
        %v2710 = vpop.f32.mrb[0].mxu0
        %v2711 = vadd.f32 0.0, %v2710
        %v2712 = vpop.f32.mrb[0].mxu0
        %v2713 = vpop.f32.mrb[0].mxu0
        %v2714 = vadd.f32 0.0, %v2713
        %v2715 = vpop.f32.mrb[0].mxu0
        %2716 = vmatprep.mubr.bf16.mxu0 0
        %2717 = vmatmul.mubr.bf16.gmra.mrb[0].mxu0 %v2594
        %v2718 = vpop.f32.mrb[0].mxu0
        %v2719 = vadd.f32 0.0, %v2718
        %v2720 = vpop.f32.mrb[0].mxu0
        %v2721 = vpop.f32.mrb[0].mxu0
        %v2722 = vadd.f32 0.0, %v2721
        %v2723 = vpop.f32.mrb[0].mxu0
        %2724 = vmatprep.mubr.bf16.mxu0 0
        %2725 = vmatmul.mubr.bf16.gmra.mrb[0].mxu0 %v2597
        %v2726 = vpop.f32.mrb[0].mxu0
        %v2727 = vadd.f32 0.0, %v2726
        %v2728 = vpop.f32.mrb[0].mxu0
        %v2729 = vpop.f32.mrb[0].mxu0
        %v2730 = vadd.f32 0.0, %v2729
        %v2731 = vpop.f32.mrb[0].mxu0
        %2732 = vmatprep.mubr.bf16.mxu0 0
        %2733 = vmatmul.mubr.bf16.gmra.mrb[0].mxu0 %v2600
        %v2734 = vpop.f32.mrb[0].mxu0
        %v2735 = vadd.f32 0.0, %v2734
        %v2736 = vpop.f32.mrb[0].mxu0
        %v2737 = vpop.f32.mrb[0].mxu0
        %v2738 = vadd.f32 0.0, %v2737
        %v2739 = vpop.f32.mrb[0].mxu0
        %2740 = vmatprep.mubr.bf16.mxu0 0
        %2741 = vmatmul.mubr.bf16.gmra.mrb[0].mxu0 %v2603
        %v2742 = vpop.f32.mrb[0].mxu0
        %v2743 = vadd.f32 0.0, %v2742
        %v2744 = vpop.f32.mrb[0].mxu0
        %v2745 = vpop.f32.mrb[0].mxu0
        %v2746 = vadd.f32 0.0, %v2745
        %v2747 = vpop.f32.mrb[0].mxu0
        %2748 = vmatprep.mubr.bf16.mxu0 0
        %2749 = vmatmul.mubr.bf16.gmra.mrb[0].mxu0 %v2606
        %v2750 = vpop.f32.mrb[0].mxu0
        %v2751 = vadd.f32 0.0, %v2750
        %v2752 = vpop.f32.mrb[0].mxu0
        %v2753 = vpop.f32.mrb[0].mxu0
        %v2754 = vadd.f32 0.0, %v2753
        %v2755 = vpop.f32.mrb[0].mxu0
        %2756 = vmatprep.mubr.bf16.mxu0 0
        %2757 = vmatmul.mubr.bf16.gmra.mrb[0].mxu0 %v2609
        %v2758 = vpop.f32.mrb[0].mxu0
        %v2759 = vadd.f32 0.0, %v2758
        %v2760 = vpop.f32.mrb[0].mxu0
        %v2761 = vpop.f32.mrb[0].mxu0
        %v2762 = vadd.f32 0.0, %v2761
        %v2763 = vpop.f32.mrb[0].mxu0
        %2764 = vmatprep.mubr.bf16.mxu0 0
        %2765 = vmatmul.mubr.bf16.gmra.mrb[0].mxu0 %v2612
        %v2766 = vpop.f32.mrb[0].mxu0
        %v2767 = vadd.f32 0.0, %v2766
        %v2768 = vpop.f32.mrb[0].mxu0
        %v2769 = vpop.f32.mrb[0].mxu0
        %v2770 = vadd.f32 0.0, %v2769
        %v2771 = vpop.f32.mrb[0].mxu0
        %2772 = vmatprep.mubr.bf16.mxu0 0
        %2773 = vmatmul.mubr.bf16.gmra.mrb[0].mxu0 %v2615
        %v2774 = vpop.f32.mrb[0].mxu0
        %v2775 = vadd.f32 0.0, %v2774
        %v2776 = vpop.f32.mrb[0].mxu0
        %v2777 = vpop.f32.mrb[0].mxu0
        %v2778 = vadd.f32 0.0, %v2777
        %v2779 = vpop.f32.mrb[0].mxu0
        %2780 = vdwg.mxu0
        %v2781 = vadd.f32 %v2055, %v2655
        %v2782 = vadd.f32 %v2056, %v2658
        %v2783 = vadd.f32 %v2057, %v2663
        %v2784 = vadd.f32 %v2058, %v2666
        %v2785 = vadd.f32 %v2059, %v2671
        %v2786 = vadd.f32 %v2060, %v2674
        %v2787 = vadd.f32 %v2061, %v2679
        %v2788 = vadd.f32 %v2062, %v2682
        %v2789 = vadd.f32 %v2063, %v2687
        %v2790 = vadd.f32 %v2064, %v2690
        %v2791 = vadd.f32 %v2065, %v2695
        %v2792 = vadd.f32 %v2066, %v2698
        %v2793 = vadd.f32 %v2067, %v2703
        %v2794 = vadd.f32 %v2068, %v2706
        %v2795 = vadd.f32 %v2069, %v2711
        %v2796 = vadd.f32 %v2070, %v2714
        %v2797 = vadd.f32 %v2071, %v2719
        %v2798 = vadd.f32 %v2072, %v2722
        %v2799 = vadd.f32 %v2073, %v2727
        %v2800 = vadd.f32 %v2074, %v2730
        %v2801 = vadd.f32 %v2075, %v2735
        %v2802 = vadd.f32 %v2076, %v2738
        %v2803 = vadd.f32 %v2077, %v2743
        %v2804 = vadd.f32 %v2078, %v2746
        %v2805 = vadd.f32 %v2079, %v2751
        %v2806 = vadd.f32 %v2080, %v2754
        %v2807 = vadd.f32 %v2081, %v2759
        %v2808 = vadd.f32 %v2082, %v2762
        %v2809 = vadd.f32 %v2083, %v2767
        %v2810 = vadd.f32 %v2084, %v2770
        %v2811 = vadd.f32 %v2085, %v2775
        %v2812 = vadd.f32 %v2086, %v2778
        %v2813 = vld [vmem:[%s1728] sm:$0xe]
        %v2814 = vld [vmem:[%s1728 + $0xc] sm:$0xe]
        %v2815 = vld [vmem:[%s1728 + $0x18] sm:$0xe]
        %v2816 = vld [vmem:[%s1728 + $0x24] sm:$0xe]
        %v2817 = vld [vmem:[%s1728 + $0x30] sm:$0xe]
        %v2818 = vld [vmem:[%s1728 + $0x3c] sm:$0xe]
        %v2819 = vld [vmem:[%s1728 + $0x48] sm:$0xe]
        %v2820 = vld [vmem:[%s1728 + $0x54] sm:$0xe]
        %v2821 = vld [vmem:[%s1728 + $0x60] sm:$0xe]
        %v2822 = vld [vmem:[%s1728 + $0x6c] sm:$0xe]
        %v2823 = vld [vmem:[%s1728 + $0x78] sm:$0xe]
        %v2824 = vld [vmem:[%s1728 + $0x84] sm:$0xe]
        %v2825 = vld [vmem:[%s1728 + $0x90] sm:$0xe]
        %v2826 = vld [vmem:[%s1728 + $0x9c] sm:$0xe]
        %v2827 = vld [vmem:[%s1728 + $0xa8] sm:$0xe]
        %v2828 = vld [vmem:[%s1728 + $0xb4] sm:$0xe]
        %s2829 = scalar_lea.vmem [#allocation5], 10
        %v2830 = vld [vmem:[%s2829] sm:$0x3]
        %v2879 = vrot.slane %v2813, 5
        %v2880 = vrot.slane %v2879, 4
        %v2881 = vrot.slane %v2088, 5
        %v2882 = vsel %vm1320, %v2880, %v2881
        %v2883 = vrot.slane %v2881, 4
        %v2884 = vrot.slane %v2089, 5
        %v2885 = vsel %vm1320, %v2883, %v2884
        %v2886 = vrot.slane %v2814, 5
        %v2887 = vrot.slane %v2886, 4
        %v2888 = vrot.slane %v2091, 5
        %v2889 = vsel %vm1320, %v2887, %v2888
        %v2890 = vrot.slane %v2888, 4
        %v2891 = vrot.slane %v2092, 5
        %v2892 = vsel %vm1320, %v2890, %v2891
        %v2893 = vrot.slane %v2815, 5
        %v2894 = vrot.slane %v2893, 4
        %v2895 = vrot.slane %v2094, 5
        %v2896 = vsel %vm1320, %v2894, %v2895
        %v2897 = vrot.slane %v2895, 4
        %v2898 = vrot.slane %v2095, 5
        %v2899 = vsel %vm1320, %v2897, %v2898
        %v2900 = vrot.slane %v2816, 5
        %v2901 = vrot.slane %v2900, 4
        %v2902 = vrot.slane %v2097, 5
        %v2903 = vsel %vm1320, %v2901, %v2902
        %v2904 = vrot.slane %v2902, 4
        %v2905 = vrot.slane %v2098, 5
        %v2906 = vsel %vm1320, %v2904, %v2905
        %v2907 = vrot.slane %v2817, 5
        %v2908 = vrot.slane %v2907, 4
        %v2909 = vrot.slane %v2100, 5
        %v2910 = vsel %vm1320, %v2908, %v2909
        %v2911 = vrot.slane %v2909, 4
        %v2912 = vrot.slane %v2101, 5
        %v2913 = vsel %vm1320, %v2911, %v2912
        %v2914 = vrot.slane %v2818, 5
        %v2915 = vrot.slane %v2914, 4
        %v2916 = vrot.slane %v2103, 5
        %v2917 = vsel %vm1320, %v2915, %v2916
        %v2918 = vrot.slane %v2916, 4
        %v2919 = vrot.slane %v2104, 5
        %v2920 = vsel %vm1320, %v2918, %v2919
        %v2921 = vrot.slane %v2819, 5
        %v2922 = vrot.slane %v2921, 4
        %v2923 = vrot.slane %v2106, 5
        %v2924 = vsel %vm1320, %v2922, %v2923
        %v2925 = vrot.slane %v2923, 4
        %v2926 = vrot.slane %v2107, 5
        %v2927 = vsel %vm1320, %v2925, %v2926
        %v2928 = vrot.slane %v2820, 5
        %v2929 = vrot.slane %v2928, 4
        %v2930 = vrot.slane %v2109, 5
        %v2931 = vsel %vm1320, %v2929, %v2930
        %v2932 = vrot.slane %v2930, 4
        %v2933 = vrot.slane %v2110, 5
        %v2934 = vsel %vm1320, %v2932, %v2933
        %v2935 = vrot.slane %v2821, 5
        %v2936 = vrot.slane %v2935, 4
        %v2937 = vrot.slane %v2112, 5
        %v2938 = vsel %vm1320, %v2936, %v2937
        %v2939 = vrot.slane %v2937, 4
        %v2940 = vrot.slane %v2113, 5
        %v2941 = vsel %vm1320, %v2939, %v2940
        %v2942 = vrot.slane %v2822, 5
        %v2943 = vrot.slane %v2942, 4
        %v2944 = vrot.slane %v2115, 5
        %v2945 = vsel %vm1320, %v2943, %v2944
        %v2946 = vrot.slane %v2944, 4
        %v2947 = vrot.slane %v2116, 5
        %v2948 = vsel %vm1320, %v2946, %v2947
        %v2949 = vrot.slane %v2823, 5
        %v2950 = vrot.slane %v2949, 4
        %v2951 = vrot.slane %v2118, 5
        %v2952 = vsel %vm1320, %v2950, %v2951
        %v2953 = vrot.slane %v2951, 4
        %v2954 = vrot.slane %v2119, 5
        %v2955 = vsel %vm1320, %v2953, %v2954
        %v2956 = vrot.slane %v2824, 5
        %v2957 = vrot.slane %v2956, 4
        %v2958 = vrot.slane %v2121, 5
        %v2959 = vsel %vm1320, %v2957, %v2958
        %v2960 = vrot.slane %v2958, 4
        %v2961 = vrot.slane %v2122, 5
        %v2962 = vsel %vm1320, %v2960, %v2961
        %v2963 = vrot.slane %v2825, 5
        %v2964 = vrot.slane %v2963, 4
        %v2965 = vrot.slane %v2124, 5
        %v2966 = vsel %vm1320, %v2964, %v2965
        %v2967 = vrot.slane %v2965, 4
        %v2968 = vrot.slane %v2125, 5
        %v2969 = vsel %vm1320, %v2967, %v2968
        %v2970 = vrot.slane %v2826, 5
        %v2971 = vrot.slane %v2970, 4
        %v2972 = vrot.slane %v2127, 5
        %v2973 = vsel %vm1320, %v2971, %v2972
        %v2974 = vrot.slane %v2972, 4
        %v2975 = vrot.slane %v2128, 5
        %v2976 = vsel %vm1320, %v2974, %v2975
        %v2977 = vrot.slane %v2827, 5
        %v2978 = vrot.slane %v2977, 4
        %v2979 = vrot.slane %v2130, 5
        %v2980 = vsel %vm1320, %v2978, %v2979
        %v2981 = vrot.slane %v2979, 4
        %v2982 = vrot.slane %v2131, 5
        %v2983 = vsel %vm1320, %v2981, %v2982
        %v2984 = vrot.slane %v2828, 5
        %v2985 = vrot.slane %v2984, 4
        %v2986 = vrot.slane %v2133, 5
        %v2987 = vsel %vm1320, %v2985, %v2986
        %v2988 = vrot.slane %v2986, 4
        %v2989 = vrot.slane %v2134, 5
        %v2990 = vsel %vm1320, %v2988, %v2989
        %v2991 = vunpack.c.l.b16 %v2882
        %v2992 = vunpack.c.l.b16 %v2885
        %v2993 = vunpack.c.l.b16 %v2889
        %v2994 = vunpack.c.l.b16 %v2892
        %v2995 = vunpack.c.l.b16 %v2896
        %v2996 = vunpack.c.l.b16 %v2899
        %v2997 = vunpack.c.l.b16 %v2903
        %v2998 = vunpack.c.l.b16 %v2906
        %v2999 = vunpack.c.l.b16 %v2910
        %v3000 = vunpack.c.l.b16 %v2913
        %v3001 = vunpack.c.l.b16 %v2917
        %v3002 = vunpack.c.l.b16 %v2920
        %v3003 = vunpack.c.l.b16 %v2924
        %v3004 = vunpack.c.l.b16 %v2927
        %v3005 = vunpack.c.l.b16 %v2931
        %v3006 = vunpack.c.l.b16 %v2934
        %v3007 = vunpack.c.l.b16 %v2938
        %v3008 = vunpack.c.l.b16 %v2941
        %v3009 = vunpack.c.l.b16 %v2945
        %v3010 = vunpack.c.l.b16 %v2948
        %v3011 = vunpack.c.l.b16 %v2952
        %v3012 = vunpack.c.l.b16 %v2955
        %v3013 = vunpack.c.l.b16 %v2959
        %v3014 = vunpack.c.l.b16 %v2962
        %v3015 = vunpack.c.l.b16 %v2966
        %v3016 = vunpack.c.l.b16 %v2969
        %v3017 = vunpack.c.l.b16 %v2973
        %v3018 = vunpack.c.l.b16 %v2976
        %v3019 = vunpack.c.l.b16 %v2980
        %v3020 = vunpack.c.l.b16 %v2983
        %v3021 = vunpack.c.l.b16 %v2987
        %v3022 = vunpack.c.l.b16 %v2990
        %v3023 = vpack.c.b16 %v2992, %v2991
        %v3024 = vpack.c.b16 %v2994, %v2993
        %v3025 = vpack.c.b16 %v2996, %v2995
        %v3026 = vpack.c.b16 %v2998, %v2997
        %v3027 = vpack.c.b16 %v3000, %v2999
        %v3028 = vpack.c.b16 %v3002, %v3001
        %v3029 = vpack.c.b16 %v3004, %v3003
        %v3030 = vpack.c.b16 %v3006, %v3005
        %v3031 = vpack.c.b16 %v3008, %v3007
        %v3032 = vpack.c.b16 %v3010, %v3009
        %v3033 = vpack.c.b16 %v3012, %v3011
        %v3034 = vpack.c.b16 %v3014, %v3013
        %v3035 = vpack.c.b16 %v3016, %v3015
        %v3036 = vpack.c.b16 %v3018, %v3017
        %v3037 = vpack.c.b16 %v3020, %v3019
        %v3038 = vpack.c.b16 %v3022, %v3021
        %v3040 = vsel %vm762, %v3023, 0
        %v3043 = vsel %vm762, %v3024, 0
        %v3046 = vsel %vm762, %v3025, 0
        %v3049 = vsel %vm762, %v3026, 0
        %v3052 = vsel %vm762, %v3027, 0
        %v3055 = vsel %vm762, %v3028, 0
        %v3058 = vsel %vm762, %v3029, 0
        %v3061 = vsel %vm762, %v3030, 0
        %v3064 = vsel %vm762, %v3031, 0
        %v3067 = vsel %vm762, %v3032, 0
        %v3070 = vsel %vm762, %v3033, 0
        %v3073 = vsel %vm762, %v3034, 0
        %v3076 = vsel %vm762, %v3035, 0
        %v3079 = vsel %vm762, %v3036, 0
        %v3082 = vsel %vm762, %v3037, 0
        %v3085 = vsel %vm762, %v3038, 0
        %v3088 = vsel %vm811, %v2830, 0
        %3090 = vmatprep.subr.bf16.mxu0 0
        %3091 = vmatpush1.bf16.msra.mxu0 %v3088
        %3092 = vmatprep.subr.bf16.mxu0 0
        %3093 = vmatpush1.bf16.msra.mxu0 0
        %3094 = vmatprep.subr.bf16.mxu0 0
        %3095 = vmatpush1.bf16.msra.mxu0 0
        %3096 = vmatprep.subr.bf16.mxu0 0
        %3097 = vmatpush1.bf16.msra.mxu0 0
        %3098 = vmatprep.subr.bf16.mxu0 0
        %3099 = vmatpush1.bf16.msra.mxu0 0
        %3100 = vmatprep.subr.bf16.mxu0 0
        %3101 = vmatpush1.bf16.msra.mxu0 0
        %3102 = vmatprep.subr.bf16.mxu0 0
        %3103 = vmatpush1.bf16.msra.mxu0 0
        %3104 = vmatprep.subr.bf16.mxu0 0
        %3105 = vmatpush1.bf16.msra.mxu0 0
        %3106 = vmatprep.subr.bf16.mxu0 0
        %3107 = vmatpush1.bf16.msra.mxu0 0
        %3108 = vmatprep.subr.bf16.mxu0 0
        %3109 = vmatpush1.bf16.msra.mxu0 0
        %3110 = vmatprep.subr.bf16.mxu0 0
        %3111 = vmatpush1.bf16.msra.mxu0 0
        %3112 = vmatprep.subr.bf16.mxu0 0
        %3113 = vmatpush1.bf16.msra.mxu0 0
        %3114 = vmatprep.subr.bf16.mxu0 0
        %3115 = vmatpush1.bf16.msra.mxu0 0
        %3116 = vmatprep.subr.bf16.mxu0 0
        %3117 = vmatpush1.bf16.msra.mxu0 0
        %3118 = vmatprep.subr.bf16.mxu0 0
        %3119 = vmatpush1.bf16.msra.mxu0 0
        %3120 = vmatprep.subr.bf16.mxu0 0
        %3121 = vmatpush1.bf16.msra.mxu0 0
        %3122 = vmatprep.mubr.bf16.mxu0 0
        %3123 = vmatmul.mubr.bf16.gmra.mrb[0].mxu0 %v3040
        %v3124 = vpop.f32.mrb[0].mxu0
        %v3125 = vadd.f32 0.0, %v3124
        %v3126 = vpop.f32.mrb[0].mxu0
        %v3127 = vpop.f32.mrb[0].mxu0
        %v3128 = vadd.f32 0.0, %v3127
        %v3129 = vpop.f32.mrb[0].mxu0
        %3130 = vmatprep.mubr.bf16.mxu0 0
        %3131 = vmatmul.mubr.bf16.gmra.mrb[0].mxu0 %v3043
        %v3132 = vpop.f32.mrb[0].mxu0
        %v3133 = vadd.f32 0.0, %v3132
        %v3134 = vpop.f32.mrb[0].mxu0
        %v3135 = vpop.f32.mrb[0].mxu0
        %v3136 = vadd.f32 0.0, %v3135
        %v3137 = vpop.f32.mrb[0].mxu0
        %3138 = vmatprep.mubr.bf16.mxu0 0
        %3139 = vmatmul.mubr.bf16.gmra.mrb[0].mxu0 %v3046
        %v3140 = vpop.f32.mrb[0].mxu0
        %v3141 = vadd.f32 0.0, %v3140
        %v3142 = vpop.f32.mrb[0].mxu0
        %v3143 = vpop.f32.mrb[0].mxu0
        %v3144 = vadd.f32 0.0, %v3143
        %v3145 = vpop.f32.mrb[0].mxu0
        %3146 = vmatprep.mubr.bf16.mxu0 0
        %3147 = vmatmul.mubr.bf16.gmra.mrb[0].mxu0 %v3049
        %v3148 = vpop.f32.mrb[0].mxu0
        %v3149 = vadd.f32 0.0, %v3148
        %v3150 = vpop.f32.mrb[0].mxu0
        %v3151 = vpop.f32.mrb[0].mxu0
        %v3152 = vadd.f32 0.0, %v3151
        %v3153 = vpop.f32.mrb[0].mxu0
        %3154 = vmatprep.mubr.bf16.mxu0 0
        %3155 = vmatmul.mubr.bf16.gmra.mrb[0].mxu0 %v3052
        %v3156 = vpop.f32.mrb[0].mxu0
        %v3157 = vadd.f32 0.0, %v3156
        %v3158 = vpop.f32.mrb[0].mxu0
        %v3159 = vpop.f32.mrb[0].mxu0
        %v3160 = vadd.f32 0.0, %v3159
        %v3161 = vpop.f32.mrb[0].mxu0
        %3162 = vmatprep.mubr.bf16.mxu0 0
        %3163 = vmatmul.mubr.bf16.gmra.mrb[0].mxu0 %v3055
        %v3164 = vpop.f32.mrb[0].mxu0
        %v3165 = vadd.f32 0.0, %v3164
        %v3166 = vpop.f32.mrb[0].mxu0
        %v3167 = vpop.f32.mrb[0].mxu0
        %v3168 = vadd.f32 0.0, %v3167
        %v3169 = vpop.f32.mrb[0].mxu0
        %3170 = vmatprep.mubr.bf16.mxu0 0
        %3171 = vmatmul.mubr.bf16.gmra.mrb[0].mxu0 %v3058
        %v3172 = vpop.f32.mrb[0].mxu0
        %v3173 = vadd.f32 0.0, %v3172
        %v3174 = vpop.f32.mrb[0].mxu0
        %v3175 = vpop.f32.mrb[0].mxu0
        %v3176 = vadd.f32 0.0, %v3175
        %v3177 = vpop.f32.mrb[0].mxu0
        %3178 = vmatprep.mubr.bf16.mxu0 0
        %3179 = vmatmul.mubr.bf16.gmra.mrb[0].mxu0 %v3061
        %v3180 = vpop.f32.mrb[0].mxu0
        %v3181 = vadd.f32 0.0, %v3180
        %v3182 = vpop.f32.mrb[0].mxu0
        %v3183 = vpop.f32.mrb[0].mxu0
        %v3184 = vadd.f32 0.0, %v3183
        %v3185 = vpop.f32.mrb[0].mxu0
        %3186 = vmatprep.mubr.bf16.mxu0 0
        %3187 = vmatmul.mubr.bf16.gmra.mrb[0].mxu0 %v3064
        %v3188 = vpop.f32.mrb[0].mxu0
        %v3189 = vadd.f32 0.0, %v3188
        %v3190 = vpop.f32.mrb[0].mxu0
        %v3191 = vpop.f32.mrb[0].mxu0
        %v3192 = vadd.f32 0.0, %v3191
        %v3193 = vpop.f32.mrb[0].mxu0
        %3194 = vmatprep.mubr.bf16.mxu0 0
        %3195 = vmatmul.mubr.bf16.gmra.mrb[0].mxu0 %v3067
        %v3196 = vpop.f32.mrb[0].mxu0
        %v3197 = vadd.f32 0.0, %v3196
        %v3198 = vpop.f32.mrb[0].mxu0
        %v3199 = vpop.f32.mrb[0].mxu0
        %v3200 = vadd.f32 0.0, %v3199
        %v3201 = vpop.f32.mrb[0].mxu0
        %3202 = vmatprep.mubr.bf16.mxu0 0
        %3203 = vmatmul.mubr.bf16.gmra.mrb[0].mxu0 %v3070
        %v3204 = vpop.f32.mrb[0].mxu0
        %v3205 = vadd.f32 0.0, %v3204
        %v3206 = vpop.f32.mrb[0].mxu0
        %v3207 = vpop.f32.mrb[0].mxu0
        %v3208 = vadd.f32 0.0, %v3207
        %v3209 = vpop.f32.mrb[0].mxu0
        %3210 = vmatprep.mubr.bf16.mxu0 0
        %3211 = vmatmul.mubr.bf16.gmra.mrb[0].mxu0 %v3073
        %v3212 = vpop.f32.mrb[0].mxu0
        %v3213 = vadd.f32 0.0, %v3212
        %v3214 = vpop.f32.mrb[0].mxu0
        %v3215 = vpop.f32.mrb[0].mxu0
        %v3216 = vadd.f32 0.0, %v3215
        %v3217 = vpop.f32.mrb[0].mxu0
        %3218 = vmatprep.mubr.bf16.mxu0 0
        %3219 = vmatmul.mubr.bf16.gmra.mrb[0].mxu0 %v3076
        %v3220 = vpop.f32.mrb[0].mxu0
        %v3221 = vadd.f32 0.0, %v3220
        %v3222 = vpop.f32.mrb[0].mxu0
        %v3223 = vpop.f32.mrb[0].mxu0
        %v3224 = vadd.f32 0.0, %v3223
        %v3225 = vpop.f32.mrb[0].mxu0
        %3226 = vmatprep.mubr.bf16.mxu0 0
        %3227 = vmatmul.mubr.bf16.gmra.mrb[0].mxu0 %v3079
        %v3228 = vpop.f32.mrb[0].mxu0
        %v3229 = vadd.f32 0.0, %v3228
        %v3230 = vpop.f32.mrb[0].mxu0
        %v3231 = vpop.f32.mrb[0].mxu0
        %v3232 = vadd.f32 0.0, %v3231
        %v3233 = vpop.f32.mrb[0].mxu0
        %3234 = vmatprep.mubr.bf16.mxu0 0
        %3235 = vmatmul.mubr.bf16.gmra.mrb[0].mxu0 %v3082
        %v3236 = vpop.f32.mrb[0].mxu0
        %v3237 = vadd.f32 0.0, %v3236
        %v3238 = vpop.f32.mrb[0].mxu0
        %v3239 = vpop.f32.mrb[0].mxu0
        %v3240 = vadd.f32 0.0, %v3239
        %v3241 = vpop.f32.mrb[0].mxu0
        %3242 = vmatprep.mubr.bf16.mxu0 0
        %3243 = vmatmul.mubr.bf16.gmra.mrb[0].mxu0 %v3085
        %v3244 = vpop.f32.mrb[0].mxu0
        %v3245 = vadd.f32 0.0, %v3244
        %v3246 = vpop.f32.mrb[0].mxu0
        %v3247 = vpop.f32.mrb[0].mxu0
        %v3248 = vadd.f32 0.0, %v3247
        %v3249 = vpop.f32.mrb[0].mxu0
        %3250 = vdwg.mxu0
        %v3251 = vadd.f32 %v2781, %v3125
        %v3252 = vadd.f32 %v2782, %v3128
        %v3253 = vadd.f32 %v2783, %v3133
        %v3254 = vadd.f32 %v2784, %v3136
        %v3255 = vadd.f32 %v2785, %v3141
        %v3256 = vadd.f32 %v2786, %v3144
        %v3257 = vadd.f32 %v2787, %v3149
        %v3258 = vadd.f32 %v2788, %v3152
        %v3259 = vadd.f32 %v2789, %v3157
        %v3260 = vadd.f32 %v2790, %v3160
        %v3261 = vadd.f32 %v2791, %v3165
        %v3262 = vadd.f32 %v2792, %v3168
        %v3263 = vadd.f32 %v2793, %v3173
        %v3264 = vadd.f32 %v2794, %v3176
        %v3265 = vadd.f32 %v2795, %v3181
        %v3266 = vadd.f32 %v2796, %v3184
        %v3267 = vadd.f32 %v2797, %v3189
        %v3268 = vadd.f32 %v2798, %v3192
        %v3269 = vadd.f32 %v2799, %v3197
        %v3270 = vadd.f32 %v2800, %v3200
        %v3271 = vadd.f32 %v2801, %v3205
        %v3272 = vadd.f32 %v2802, %v3208
        %v3273 = vadd.f32 %v2803, %v3213
        %v3274 = vadd.f32 %v2804, %v3216
        %v3275 = vadd.f32 %v2805, %v3221
        %v3276 = vadd.f32 %v2806, %v3224
        %v3277 = vadd.f32 %v2807, %v3229
        %v3278 = vadd.f32 %v2808, %v3232
        %v3279 = vadd.f32 %v2809, %v3237
        %v3280 = vadd.f32 %v2810, %v3240
        %v3281 = vadd.f32 %v2811, %v3245
        %v3282 = vadd.f32 %v2812, %v3248
        %s3283 = sadd.s32 %s272, 2
        %s3284 = smul.u32 %s3283, 3
        %s3285 = smul.addr %s3284, 4
        %s3286 = scalar_lea.vmem %s233, %s3285 [#allocation2]
        %v3287 = vld [vmem:[%s3286] sm:$0xf]
        %v3288 = vld [vmem:[%s3286 + $0x4] sm:$0xf]
        %v3289 = vld [vmem:[%s3286 + $0xc] sm:$0xf]
        %v3290 = vld [vmem:[%s3286 + $0x10] sm:$0xf]
        %v3291 = vld [vmem:[%s3286 + $0x18] sm:$0xf]
        %v3292 = vld [vmem:[%s3286 + $0x1c] sm:$0xf]
        %v3293 = vld [vmem:[%s3286 + $0x24] sm:$0xf]
        %v3294 = vld [vmem:[%s3286 + $0x28] sm:$0xf]
        %v3295 = vld [vmem:[%s3286 + $0x30] sm:$0xf]
        %v3296 = vld [vmem:[%s3286 + $0x34] sm:$0xf]
        %v3297 = vld [vmem:[%s3286 + $0x3c] sm:$0xf]
        %v3298 = vld [vmem:[%s3286 + $0x40] sm:$0xf]
        %v3299 = vld [vmem:[%s3286 + $0x48] sm:$0xf]
        %v3300 = vld [vmem:[%s3286 + $0x4c] sm:$0xf]
        %v3301 = vld [vmem:[%s3286 + $0x54] sm:$0xf]
        %v3302 = vld [vmem:[%s3286 + $0x58] sm:$0xf]
        %v3303 = vld [vmem:[%s3286 + $0x60] sm:$0xf]
        %v3304 = vld [vmem:[%s3286 + $0x64] sm:$0xf]
        %v3305 = vld [vmem:[%s3286 + $0x6c] sm:$0xf]
        %v3306 = vld [vmem:[%s3286 + $0x70] sm:$0xf]
        %v3307 = vld [vmem:[%s3286 + $0x78] sm:$0xf]
        %v3308 = vld [vmem:[%s3286 + $0x7c] sm:$0xf]
        %v3309 = vld [vmem:[%s3286 + $0x84] sm:$0xf]
        %v3310 = vld [vmem:[%s3286 + $0x88] sm:$0xf]
        %v3311 = vld [vmem:[%s3286 + $0x90] sm:$0xf]
        %v3312 = vld [vmem:[%s3286 + $0x94] sm:$0xf]
        %v3313 = vld [vmem:[%s3286 + $0x9c] sm:$0xf]
        %v3314 = vld [vmem:[%s3286 + $0xa0] sm:$0xf]
        %v3315 = vld [vmem:[%s3286 + $0xa8] sm:$0xf]
        %v3316 = vld [vmem:[%s3286 + $0xac] sm:$0xf]
        %v3317 = vld [vmem:[%s3286 + $0xb4] sm:$0xf]
        %v3318 = vld [vmem:[%s3286 + $0xb8] sm:$0xf]
        %s3319 = scalar_lea.vmem [#allocation5], 12
        %v3320 = vld [vmem:[%s3319] sm:$0x3]
        %v3353 = vunpack.c.l.b16 %v3287
        %v3354 = vunpack.c.l.b16 %v3288
        %v3355 = vunpack.c.l.b16 %v3289
        %v3356 = vunpack.c.l.b16 %v3290
        %v3357 = vunpack.c.l.b16 %v3291
        %v3358 = vunpack.c.l.b16 %v3292
        %v3359 = vunpack.c.l.b16 %v3293
        %v3360 = vunpack.c.l.b16 %v3294
        %v3361 = vunpack.c.l.b16 %v3295
        %v3362 = vunpack.c.l.b16 %v3296
        %v3363 = vunpack.c.l.b16 %v3297
        %v3364 = vunpack.c.l.b16 %v3298
        %v3365 = vunpack.c.l.b16 %v3299
        %v3366 = vunpack.c.l.b16 %v3300
        %v3367 = vunpack.c.l.b16 %v3301
        %v3368 = vunpack.c.l.b16 %v3302
        %v3369 = vunpack.c.l.b16 %v3303
        %v3370 = vunpack.c.l.b16 %v3304
        %v3371 = vunpack.c.l.b16 %v3305
        %v3372 = vunpack.c.l.b16 %v3306
        %v3373 = vunpack.c.l.b16 %v3307
        %v3374 = vunpack.c.l.b16 %v3308
        %v3375 = vunpack.c.l.b16 %v3309
        %v3376 = vunpack.c.l.b16 %v3310
        %v3377 = vunpack.c.l.b16 %v3311
        %v3378 = vunpack.c.l.b16 %v3312
        %v3379 = vunpack.c.l.b16 %v3313
        %v3380 = vunpack.c.l.b16 %v3314
        %v3381 = vunpack.c.l.b16 %v3315
        %v3382 = vunpack.c.l.b16 %v3316
        %v3383 = vunpack.c.l.b16 %v3317
        %v3384 = vunpack.c.l.b16 %v3318
        %v3385 = vpack.c.b16 %v3354, %v3353
        %v3386 = vpack.c.b16 %v3356, %v3355
        %v3387 = vpack.c.b16 %v3358, %v3357
        %v3388 = vpack.c.b16 %v3360, %v3359
        %v3389 = vpack.c.b16 %v3362, %v3361
        %v3390 = vpack.c.b16 %v3364, %v3363
        %v3391 = vpack.c.b16 %v3366, %v3365
        %v3392 = vpack.c.b16 %v3368, %v3367
        %v3393 = vpack.c.b16 %v3370, %v3369
        %v3394 = vpack.c.b16 %v3372, %v3371
        %v3395 = vpack.c.b16 %v3374, %v3373
        %v3396 = vpack.c.b16 %v3376, %v3375
        %v3397 = vpack.c.b16 %v3378, %v3377
        %v3398 = vpack.c.b16 %v3380, %v3379
        %v3399 = vpack.c.b16 %v3382, %v3381
        %v3400 = vpack.c.b16 %v3384, %v3383
        %v3402 = vsel %vm762, %v3385, 0
        %v3405 = vsel %vm762, %v3386, 0
        %v3408 = vsel %vm762, %v3387, 0
        %v3411 = vsel %vm762, %v3388, 0
        %v3414 = vsel %vm762, %v3389, 0
        %v3417 = vsel %vm762, %v3390, 0
        %v3420 = vsel %vm762, %v3391, 0
        %v3423 = vsel %vm762, %v3392, 0
        %v3426 = vsel %vm762, %v3393, 0
        %v3429 = vsel %vm762, %v3394, 0
        %v3432 = vsel %vm762, %v3395, 0
        %v3435 = vsel %vm762, %v3396, 0
        %v3438 = vsel %vm762, %v3397, 0
        %v3441 = vsel %vm762, %v3398, 0
        %v3444 = vsel %vm762, %v3399, 0
        %v3447 = vsel %vm762, %v3400, 0
        %v3450 = vsel %vm811, %v3320, 0
        %3452 = vmatprep.subr.bf16.mxu0 0
        %3453 = vmatpush1.bf16.msra.mxu0 %v3450
        %3454 = vmatprep.subr.bf16.mxu0 0
        %3455 = vmatpush1.bf16.msra.mxu0 0
        %3456 = vmatprep.subr.bf16.mxu0 0
        %3457 = vmatpush1.bf16.msra.mxu0 0
        %3458 = vmatprep.subr.bf16.mxu0 0
        %3459 = vmatpush1.bf16.msra.mxu0 0
        %3460 = vmatprep.subr.bf16.mxu0 0
        %3461 = vmatpush1.bf16.msra.mxu0 0
        %3462 = vmatprep.subr.bf16.mxu0 0
        %3463 = vmatpush1.bf16.msra.mxu0 0
        %3464 = vmatprep.subr.bf16.mxu0 0
        %3465 = vmatpush1.bf16.msra.mxu0 0
        %3466 = vmatprep.subr.bf16.mxu0 0
        %3467 = vmatpush1.bf16.msra.mxu0 0
        %3468 = vmatprep.subr.bf16.mxu0 0
        %3469 = vmatpush1.bf16.msra.mxu0 0
        %3470 = vmatprep.subr.bf16.mxu0 0
        %3471 = vmatpush1.bf16.msra.mxu0 0
        %3472 = vmatprep.subr.bf16.mxu0 0
        %3473 = vmatpush1.bf16.msra.mxu0 0
        %3474 = vmatprep.subr.bf16.mxu0 0
        %3475 = vmatpush1.bf16.msra.mxu0 0
        %3476 = vmatprep.subr.bf16.mxu0 0
        %3477 = vmatpush1.bf16.msra.mxu0 0
        %3478 = vmatprep.subr.bf16.mxu0 0
        %3479 = vmatpush1.bf16.msra.mxu0 0
        %3480 = vmatprep.subr.bf16.mxu0 0
        %3481 = vmatpush1.bf16.msra.mxu0 0
        %3482 = vmatprep.subr.bf16.mxu0 0
        %3483 = vmatpush1.bf16.msra.mxu0 0
        %3484 = vmatprep.mubr.bf16.mxu0 0
        %3485 = vmatmul.mubr.bf16.gmra.mrb[0].mxu0 %v3402
        %v3486 = vpop.f32.mrb[0].mxu0
        %v3487 = vadd.f32 0.0, %v3486
        %v3488 = vpop.f32.mrb[0].mxu0
        %v3489 = vpop.f32.mrb[0].mxu0
        %v3490 = vadd.f32 0.0, %v3489
        %v3491 = vpop.f32.mrb[0].mxu0
        %3492 = vmatprep.mubr.bf16.mxu0 0
        %3493 = vmatmul.mubr.bf16.gmra.mrb[0].mxu0 %v3405
        %v3494 = vpop.f32.mrb[0].mxu0
        %v3495 = vadd.f32 0.0, %v3494
        %v3496 = vpop.f32.mrb[0].mxu0
        %v3497 = vpop.f32.mrb[0].mxu0
        %v3498 = vadd.f32 0.0, %v3497
        %v3499 = vpop.f32.mrb[0].mxu0
        %3500 = vmatprep.mubr.bf16.mxu0 0
        %3501 = vmatmul.mubr.bf16.gmra.mrb[0].mxu0 %v3408
        %v3502 = vpop.f32.mrb[0].mxu0
        %v3503 = vadd.f32 0.0, %v3502
        %v3504 = vpop.f32.mrb[0].mxu0
        %v3505 = vpop.f32.mrb[0].mxu0
        %v3506 = vadd.f32 0.0, %v3505
        %v3507 = vpop.f32.mrb[0].mxu0
        %3508 = vmatprep.mubr.bf16.mxu0 0
        %3509 = vmatmul.mubr.bf16.gmra.mrb[0].mxu0 %v3411
        %v3510 = vpop.f32.mrb[0].mxu0
        %v3511 = vadd.f32 0.0, %v3510
        %v3512 = vpop.f32.mrb[0].mxu0
        %v3513 = vpop.f32.mrb[0].mxu0
        %v3514 = vadd.f32 0.0, %v3513
        %v3515 = vpop.f32.mrb[0].mxu0
        %3516 = vmatprep.mubr.bf16.mxu0 0
        %3517 = vmatmul.mubr.bf16.gmra.mrb[0].mxu0 %v3414
        %v3518 = vpop.f32.mrb[0].mxu0
        %v3519 = vadd.f32 0.0, %v3518
        %v3520 = vpop.f32.mrb[0].mxu0
        %v3521 = vpop.f32.mrb[0].mxu0
        %v3522 = vadd.f32 0.0, %v3521
        %v3523 = vpop.f32.mrb[0].mxu0
        %3524 = vmatprep.mubr.bf16.mxu0 0
        %3525 = vmatmul.mubr.bf16.gmra.mrb[0].mxu0 %v3417
        %v3526 = vpop.f32.mrb[0].mxu0
        %v3527 = vadd.f32 0.0, %v3526
        %v3528 = vpop.f32.mrb[0].mxu0
        %v3529 = vpop.f32.mrb[0].mxu0
        %v3530 = vadd.f32 0.0, %v3529
        %v3531 = vpop.f32.mrb[0].mxu0
        %3532 = vmatprep.mubr.bf16.mxu0 0
        %3533 = vmatmul.mubr.bf16.gmra.mrb[0].mxu0 %v3420
        %v3534 = vpop.f32.mrb[0].mxu0
        %v3535 = vadd.f32 0.0, %v3534
        %v3536 = vpop.f32.mrb[0].mxu0
        %v3537 = vpop.f32.mrb[0].mxu0
        %v3538 = vadd.f32 0.0, %v3537
        %v3539 = vpop.f32.mrb[0].mxu0
        %3540 = vmatprep.mubr.bf16.mxu0 0
        %3541 = vmatmul.mubr.bf16.gmra.mrb[0].mxu0 %v3423
        %v3542 = vpop.f32.mrb[0].mxu0
        %v3543 = vadd.f32 0.0, %v3542
        %v3544 = vpop.f32.mrb[0].mxu0
        %v3545 = vpop.f32.mrb[0].mxu0
        %v3546 = vadd.f32 0.0, %v3545
        %v3547 = vpop.f32.mrb[0].mxu0
        %3548 = vmatprep.mubr.bf16.mxu0 0
        %3549 = vmatmul.mubr.bf16.gmra.mrb[0].mxu0 %v3426
        %v3550 = vpop.f32.mrb[0].mxu0
        %v3551 = vadd.f32 0.0, %v3550
        %v3552 = vpop.f32.mrb[0].mxu0
        %v3553 = vpop.f32.mrb[0].mxu0
        %v3554 = vadd.f32 0.0, %v3553
        %v3555 = vpop.f32.mrb[0].mxu0
        %3556 = vmatprep.mubr.bf16.mxu0 0
        %3557 = vmatmul.mubr.bf16.gmra.mrb[0].mxu0 %v3429
        %v3558 = vpop.f32.mrb[0].mxu0
        %v3559 = vadd.f32 0.0, %v3558
        %v3560 = vpop.f32.mrb[0].mxu0
        %v3561 = vpop.f32.mrb[0].mxu0
        %v3562 = vadd.f32 0.0, %v3561
        %v3563 = vpop.f32.mrb[0].mxu0
        %3564 = vmatprep.mubr.bf16.mxu0 0
        %3565 = vmatmul.mubr.bf16.gmra.mrb[0].mxu0 %v3432
        %v3566 = vpop.f32.mrb[0].mxu0
        %v3567 = vadd.f32 0.0, %v3566
        %v3568 = vpop.f32.mrb[0].mxu0
        %v3569 = vpop.f32.mrb[0].mxu0
        %v3570 = vadd.f32 0.0, %v3569
        %v3571 = vpop.f32.mrb[0].mxu0
        %3572 = vmatprep.mubr.bf16.mxu0 0
        %3573 = vmatmul.mubr.bf16.gmra.mrb[0].mxu0 %v3435
        %v3574 = vpop.f32.mrb[0].mxu0
        %v3575 = vadd.f32 0.0, %v3574
        %v3576 = vpop.f32.mrb[0].mxu0
        %v3577 = vpop.f32.mrb[0].mxu0
        %v3578 = vadd.f32 0.0, %v3577
        %v3579 = vpop.f32.mrb[0].mxu0
        %3580 = vmatprep.mubr.bf16.mxu0 0
        %3581 = vmatmul.mubr.bf16.gmra.mrb[0].mxu0 %v3438
        %v3582 = vpop.f32.mrb[0].mxu0
        %v3583 = vadd.f32 0.0, %v3582
        %v3584 = vpop.f32.mrb[0].mxu0
        %v3585 = vpop.f32.mrb[0].mxu0
        %v3586 = vadd.f32 0.0, %v3585
        %v3587 = vpop.f32.mrb[0].mxu0
        %3588 = vmatprep.mubr.bf16.mxu0 0
        %3589 = vmatmul.mubr.bf16.gmra.mrb[0].mxu0 %v3441
        %v3590 = vpop.f32.mrb[0].mxu0
        %v3591 = vadd.f32 0.0, %v3590
        %v3592 = vpop.f32.mrb[0].mxu0
        %v3593 = vpop.f32.mrb[0].mxu0
        %v3594 = vadd.f32 0.0, %v3593
        %v3595 = vpop.f32.mrb[0].mxu0
        %3596 = vmatprep.mubr.bf16.mxu0 0
        %3597 = vmatmul.mubr.bf16.gmra.mrb[0].mxu0 %v3444
        %v3598 = vpop.f32.mrb[0].mxu0
        %v3599 = vadd.f32 0.0, %v3598
        %v3600 = vpop.f32.mrb[0].mxu0
        %v3601 = vpop.f32.mrb[0].mxu0
        %v3602 = vadd.f32 0.0, %v3601
        %v3603 = vpop.f32.mrb[0].mxu0
        %3604 = vmatprep.mubr.bf16.mxu0 0
        %3605 = vmatmul.mubr.bf16.gmra.mrb[0].mxu0 %v3447
        %v3606 = vpop.f32.mrb[0].mxu0
        %v3607 = vadd.f32 0.0, %v3606
        %v3608 = vpop.f32.mrb[0].mxu0
        %v3609 = vpop.f32.mrb[0].mxu0
        %v3610 = vadd.f32 0.0, %v3609
        %v3611 = vpop.f32.mrb[0].mxu0
        %3612 = vdwg.mxu0
        %v3613 = vadd.f32 %v3251, %v3487
        %v3614 = vadd.f32 %v3252, %v3490
        %v3615 = vadd.f32 %v3253, %v3495
        %v3616 = vadd.f32 %v3254, %v3498
        %v3617 = vadd.f32 %v3255, %v3503
        %v3618 = vadd.f32 %v3256, %v3506
        %v3619 = vadd.f32 %v3257, %v3511
        %v3620 = vadd.f32 %v3258, %v3514
        %v3621 = vadd.f32 %v3259, %v3519
        %v3622 = vadd.f32 %v3260, %v3522
        %v3623 = vadd.f32 %v3261, %v3527
        %v3624 = vadd.f32 %v3262, %v3530
        %v3625 = vadd.f32 %v3263, %v3535
        %v3626 = vadd.f32 %v3264, %v3538
        %v3627 = vadd.f32 %v3265, %v3543
        %v3628 = vadd.f32 %v3266, %v3546
        %v3629 = vadd.f32 %v3267, %v3551
        %v3630 = vadd.f32 %v3268, %v3554
        %v3631 = vadd.f32 %v3269, %v3559
        %v3632 = vadd.f32 %v3270, %v3562
        %v3633 = vadd.f32 %v3271, %v3567
        %v3634 = vadd.f32 %v3272, %v3570
        %v3635 = vadd.f32 %v3273, %v3575
        %v3636 = vadd.f32 %v3274, %v3578
        %v3637 = vadd.f32 %v3275, %v3583
        %v3638 = vadd.f32 %v3276, %v3586
        %v3639 = vadd.f32 %v3277, %v3591
        %v3640 = vadd.f32 %v3278, %v3594
        %v3641 = vadd.f32 %v3279, %v3599
        %v3642 = vadd.f32 %v3280, %v3602
        %v3643 = vadd.f32 %v3281, %v3607
        %v3644 = vadd.f32 %v3282, %v3610
        %v3645 = vld [vmem:[%s3286] sm:$0xf]
        %v3646 = vld [vmem:[%s3286 + $0x4] sm:$0xf]
        %v3647 = vld [vmem:[%s3286 + $0x8] sm:$0x1]
        %v3648 = vld [vmem:[%s3286 + $0xc] sm:$0xf]
        %v3649 = vld [vmem:[%s3286 + $0x10] sm:$0xf]
        %v3650 = vld [vmem:[%s3286 + $0x14] sm:$0x1]
        %v3651 = vld [vmem:[%s3286 + $0x18] sm:$0xf]
        %v3652 = vld [vmem:[%s3286 + $0x1c] sm:$0xf]
        %v3653 = vld [vmem:[%s3286 + $0x20] sm:$0x1]
        %v3654 = vld [vmem:[%s3286 + $0x24] sm:$0xf]
        %v3655 = vld [vmem:[%s3286 + $0x28] sm:$0xf]
        %v3656 = vld [vmem:[%s3286 + $0x2c] sm:$0x1]
        %v3657 = vld [vmem:[%s3286 + $0x30] sm:$0xf]
        %v3658 = vld [vmem:[%s3286 + $0x34] sm:$0xf]
        %v3659 = vld [vmem:[%s3286 + $0x38] sm:$0x1]
        %v3660 = vld [vmem:[%s3286 + $0x3c] sm:$0xf]
        %v3661 = vld [vmem:[%s3286 + $0x40] sm:$0xf]
        %v3662 = vld [vmem:[%s3286 + $0x44] sm:$0x1]
        %v3663 = vld [vmem:[%s3286 + $0x48] sm:$0xf]
        %v3664 = vld [vmem:[%s3286 + $0x4c] sm:$0xf]
        %v3665 = vld [vmem:[%s3286 + $0x50] sm:$0x1]
        %v3666 = vld [vmem:[%s3286 + $0x54] sm:$0xf]
        %v3667 = vld [vmem:[%s3286 + $0x58] sm:$0xf]
        %v3668 = vld [vmem:[%s3286 + $0x5c] sm:$0x1]
        %v3669 = vld [vmem:[%s3286 + $0x60] sm:$0xf]
        %v3670 = vld [vmem:[%s3286 + $0x64] sm:$0xf]
        %v3671 = vld [vmem:[%s3286 + $0x68] sm:$0x1]
        %v3672 = vld [vmem:[%s3286 + $0x6c] sm:$0xf]
        %v3673 = vld [vmem:[%s3286 + $0x70] sm:$0xf]
        %v3674 = vld [vmem:[%s3286 + $0x74] sm:$0x1]
        %v3675 = vld [vmem:[%s3286 + $0x78] sm:$0xf]
        %v3676 = vld [vmem:[%s3286 + $0x7c] sm:$0xf]
        %v3677 = vld [vmem:[%s3286 + $0x80] sm:$0x1]
        %v3678 = vld [vmem:[%s3286 + $0x84] sm:$0xf]
        %v3679 = vld [vmem:[%s3286 + $0x88] sm:$0xf]
        %v3680 = vld [vmem:[%s3286 + $0x8c] sm:$0x1]
        %v3681 = vld [vmem:[%s3286 + $0x90] sm:$0xf]
        %v3682 = vld [vmem:[%s3286 + $0x94] sm:$0xf]
        %v3683 = vld [vmem:[%s3286 + $0x98] sm:$0x1]
        %v3684 = vld [vmem:[%s3286 + $0x9c] sm:$0xf]
        %v3685 = vld [vmem:[%s3286 + $0xa0] sm:$0xf]
        %v3686 = vld [vmem:[%s3286 + $0xa4] sm:$0x1]
        %v3687 = vld [vmem:[%s3286 + $0xa8] sm:$0xf]
        %v3688 = vld [vmem:[%s3286 + $0xac] sm:$0xf]
        %v3689 = vld [vmem:[%s3286 + $0xb0] sm:$0x1]
        %v3690 = vld [vmem:[%s3286 + $0xb4] sm:$0xf]
        %v3691 = vld [vmem:[%s3286 + $0xb8] sm:$0xf]
        %v3692 = vld [vmem:[%s3286 + $0xbc] sm:$0x1]
        %s3693 = scalar_lea.vmem [#allocation5], 14
        %v3694 = vld [vmem:[%s3693] sm:$0x3]
        %v3696 = vshrl.u32 %v3645, 16
        %v3698 = vrot.slane %v3696, 4
        %v3699 = vshll.u32 %v3645, 16
        %v3701 = vrot.slane %v3699, 5
        %v3702 = vor.u32 %v3698, %v3701
        %v3703 = vrot.slane %v3702, 4
        %v3705 = vshll.u32 %v3646, 16
        %v3707 = vrot.slane %v3705, 5
        %v3708 = vsel %vm329, %v3703, %v3707
        %v3709 = vshrl.u32 %v3646, 16
        %v3711 = vrot.slane %v3709, 4
        %v3712 = vor.u32 %v3711, %v3707
        %v3713 = vrot.slane %v3712, 4
        %v3715 = vshll.u32 %v3647, 16
        %v3717 = vrot.slane %v3715, 5
        %v3718 = vsel %vm329, %v3713, %v3717
        %v3720 = vshrl.u32 %v3648, 16
        %v3722 = vrot.slane %v3720, 4
        %v3723 = vshll.u32 %v3648, 16
        %v3725 = vrot.slane %v3723, 5
        %v3726 = vor.u32 %v3722, %v3725
        %v3727 = vrot.slane %v3726, 4
        %v3729 = vshll.u32 %v3649, 16
        %v3731 = vrot.slane %v3729, 5
        %v3732 = vsel %vm329, %v3727, %v3731
        %v3733 = vshrl.u32 %v3649, 16
        %v3735 = vrot.slane %v3733, 4
        %v3736 = vor.u32 %v3735, %v3731
        %v3737 = vrot.slane %v3736, 4
        %v3739 = vshll.u32 %v3650, 16
        %v3741 = vrot.slane %v3739, 5
        %v3742 = vsel %vm329, %v3737, %v3741
        %v3744 = vshrl.u32 %v3651, 16
        %v3746 = vrot.slane %v3744, 4
        %v3747 = vshll.u32 %v3651, 16
        %v3749 = vrot.slane %v3747, 5
        %v3750 = vor.u32 %v3746, %v3749
        %v3751 = vrot.slane %v3750, 4
        %v3753 = vshll.u32 %v3652, 16
        %v3755 = vrot.slane %v3753, 5
        %v3756 = vsel %vm329, %v3751, %v3755
        %v3757 = vshrl.u32 %v3652, 16
        %v3759 = vrot.slane %v3757, 4
        %v3760 = vor.u32 %v3759, %v3755
        %v3761 = vrot.slane %v3760, 4
        %v3763 = vshll.u32 %v3653, 16
        %v3765 = vrot.slane %v3763, 5
        %v3766 = vsel %vm329, %v3761, %v3765
        %v3768 = vshrl.u32 %v3654, 16
        %v3770 = vrot.slane %v3768, 4
        %v3771 = vshll.u32 %v3654, 16
        %v3773 = vrot.slane %v3771, 5
        %v3774 = vor.u32 %v3770, %v3773
        %v3775 = vrot.slane %v3774, 4
        %v3777 = vshll.u32 %v3655, 16
        %v3779 = vrot.slane %v3777, 5
        %v3780 = vsel %vm329, %v3775, %v3779
        %v3781 = vshrl.u32 %v3655, 16
        %v3783 = vrot.slane %v3781, 4
        %v3784 = vor.u32 %v3783, %v3779
        %v3785 = vrot.slane %v3784, 4
        %v3787 = vshll.u32 %v3656, 16
        %v3789 = vrot.slane %v3787, 5
        %v3790 = vsel %vm329, %v3785, %v3789
        %v3792 = vshrl.u32 %v3657, 16
        %v3794 = vrot.slane %v3792, 4
        %v3795 = vshll.u32 %v3657, 16
        %v3797 = vrot.slane %v3795, 5
        %v3798 = vor.u32 %v3794, %v3797
        %v3799 = vrot.slane %v3798, 4
        %v3801 = vshll.u32 %v3658, 16
        %v3803 = vrot.slane %v3801, 5
        %v3804 = vsel %vm329, %v3799, %v3803
        %v3805 = vshrl.u32 %v3658, 16
        %v3807 = vrot.slane %v3805, 4
        %v3808 = vor.u32 %v3807, %v3803
        %v3809 = vrot.slane %v3808, 4
        %v3811 = vshll.u32 %v3659, 16
        %v3813 = vrot.slane %v3811, 5
        %v3814 = vsel %vm329, %v3809, %v3813
        %v3816 = vshrl.u32 %v3660, 16
        %v3818 = vrot.slane %v3816, 4
        %v3819 = vshll.u32 %v3660, 16
        %v3821 = vrot.slane %v3819, 5
        %v3822 = vor.u32 %v3818, %v3821
        %v3823 = vrot.slane %v3822, 4
        %v3825 = vshll.u32 %v3661, 16
        %v3827 = vrot.slane %v3825, 5
        %v3828 = vsel %vm329, %v3823, %v3827
        %v3829 = vshrl.u32 %v3661, 16
        %v3831 = vrot.slane %v3829, 4
        %v3832 = vor.u32 %v3831, %v3827
        %v3833 = vrot.slane %v3832, 4
        %v3835 = vshll.u32 %v3662, 16
        %v3837 = vrot.slane %v3835, 5
        %v3838 = vsel %vm329, %v3833, %v3837
        %v3840 = vshrl.u32 %v3663, 16
        %v3842 = vrot.slane %v3840, 4
        %v3843 = vshll.u32 %v3663, 16
        %v3845 = vrot.slane %v3843, 5
        %v3846 = vor.u32 %v3842, %v3845
        %v3847 = vrot.slane %v3846, 4
        %v3849 = vshll.u32 %v3664, 16
        %v3851 = vrot.slane %v3849, 5
        %v3852 = vsel %vm329, %v3847, %v3851
        %v3853 = vshrl.u32 %v3664, 16
        %v3855 = vrot.slane %v3853, 4
        %v3856 = vor.u32 %v3855, %v3851
        %v3857 = vrot.slane %v3856, 4
        %v3859 = vshll.u32 %v3665, 16
        %v3861 = vrot.slane %v3859, 5
        %v3862 = vsel %vm329, %v3857, %v3861
        %v3864 = vshrl.u32 %v3666, 16
        %v3866 = vrot.slane %v3864, 4
        %v3867 = vshll.u32 %v3666, 16
        %v3869 = vrot.slane %v3867, 5
        %v3870 = vor.u32 %v3866, %v3869
        %v3871 = vrot.slane %v3870, 4
        %v3873 = vshll.u32 %v3667, 16
        %v3875 = vrot.slane %v3873, 5
        %v3876 = vsel %vm329, %v3871, %v3875
        %v3877 = vshrl.u32 %v3667, 16
        %v3879 = vrot.slane %v3877, 4
        %v3880 = vor.u32 %v3879, %v3875
        %v3881 = vrot.slane %v3880, 4
        %v3883 = vshll.u32 %v3668, 16
        %v3885 = vrot.slane %v3883, 5
        %v3886 = vsel %vm329, %v3881, %v3885
        %v3888 = vshrl.u32 %v3669, 16
        %v3890 = vrot.slane %v3888, 4
        %v3891 = vshll.u32 %v3669, 16
        %v3893 = vrot.slane %v3891, 5
        %v3894 = vor.u32 %v3890, %v3893
        %v3895 = vrot.slane %v3894, 4
        %v3897 = vshll.u32 %v3670, 16
        %v3899 = vrot.slane %v3897, 5
        %v3900 = vsel %vm329, %v3895, %v3899
        %v3901 = vshrl.u32 %v3670, 16
        %v3903 = vrot.slane %v3901, 4
        %v3904 = vor.u32 %v3903, %v3899
        %v3905 = vrot.slane %v3904, 4
        %v3907 = vshll.u32 %v3671, 16
        %v3909 = vrot.slane %v3907, 5
        %v3910 = vsel %vm329, %v3905, %v3909
        %v3912 = vshrl.u32 %v3672, 16
        %v3914 = vrot.slane %v3912, 4
        %v3915 = vshll.u32 %v3672, 16
        %v3917 = vrot.slane %v3915, 5
        %v3918 = vor.u32 %v3914, %v3917
        %v3919 = vrot.slane %v3918, 4
        %v3921 = vshll.u32 %v3673, 16
        %v3923 = vrot.slane %v3921, 5
        %v3924 = vsel %vm329, %v3919, %v3923
        %v3925 = vshrl.u32 %v3673, 16
        %v3927 = vrot.slane %v3925, 4
        %v3928 = vor.u32 %v3927, %v3923
        %v3929 = vrot.slane %v3928, 4
        %v3931 = vshll.u32 %v3674, 16
        %v3933 = vrot.slane %v3931, 5
        %v3934 = vsel %vm329, %v3929, %v3933
        %v3936 = vshrl.u32 %v3675, 16
        %v3938 = vrot.slane %v3936, 4
        %v3939 = vshll.u32 %v3675, 16
        %v3941 = vrot.slane %v3939, 5
        %v3942 = vor.u32 %v3938, %v3941
        %v3943 = vrot.slane %v3942, 4
        %v3945 = vshll.u32 %v3676, 16
        %v3947 = vrot.slane %v3945, 5
        %v3948 = vsel %vm329, %v3943, %v3947
        %v3949 = vshrl.u32 %v3676, 16
        %v3951 = vrot.slane %v3949, 4
        %v3952 = vor.u32 %v3951, %v3947
        %v3953 = vrot.slane %v3952, 4
        %v3955 = vshll.u32 %v3677, 16
        %v3957 = vrot.slane %v3955, 5
        %v3958 = vsel %vm329, %v3953, %v3957
        %v3960 = vshrl.u32 %v3678, 16
        %v3962 = vrot.slane %v3960, 4
        %v3963 = vshll.u32 %v3678, 16
        %v3965 = vrot.slane %v3963, 5
        %v3966 = vor.u32 %v3962, %v3965
        %v3967 = vrot.slane %v3966, 4
        %v3969 = vshll.u32 %v3679, 16
        %v3971 = vrot.slane %v3969, 5
        %v3972 = vsel %vm329, %v3967, %v3971
        %v3973 = vshrl.u32 %v3679, 16
        %v3975 = vrot.slane %v3973, 4
        %v3976 = vor.u32 %v3975, %v3971
        %v3977 = vrot.slane %v3976, 4
        %v3979 = vshll.u32 %v3680, 16
        %v3981 = vrot.slane %v3979, 5
        %v3982 = vsel %vm329, %v3977, %v3981
        %v3984 = vshrl.u32 %v3681, 16
        %v3986 = vrot.slane %v3984, 4
        %v3987 = vshll.u32 %v3681, 16
        %v3989 = vrot.slane %v3987, 5
        %v3990 = vor.u32 %v3986, %v3989
        %v3991 = vrot.slane %v3990, 4
        %v3993 = vshll.u32 %v3682, 16
        %v3995 = vrot.slane %v3993, 5
        %v3996 = vsel %vm329, %v3991, %v3995
        %v3997 = vshrl.u32 %v3682, 16
        %v3999 = vrot.slane %v3997, 4
        %v4000 = vor.u32 %v3999, %v3995
        %v4001 = vrot.slane %v4000, 4
        %v4003 = vshll.u32 %v3683, 16
        %v4005 = vrot.slane %v4003, 5
        %v4006 = vsel %vm329, %v4001, %v4005
        %v4008 = vshrl.u32 %v3684, 16
        %v4010 = vrot.slane %v4008, 4
        %v4011 = vshll.u32 %v3684, 16
        %v4013 = vrot.slane %v4011, 5
        %v4014 = vor.u32 %v4010, %v4013
        %v4015 = vrot.slane %v4014, 4
        %v4017 = vshll.u32 %v3685, 16
        %v4019 = vrot.slane %v4017, 5
        %v4020 = vsel %vm329, %v4015, %v4019
        %v4021 = vshrl.u32 %v3685, 16
        %v4023 = vrot.slane %v4021, 4
        %v4024 = vor.u32 %v4023, %v4019
        %v4025 = vrot.slane %v4024, 4
        %v4027 = vshll.u32 %v3686, 16
        %v4029 = vrot.slane %v4027, 5
        %v4030 = vsel %vm329, %v4025, %v4029
        %v4032 = vshrl.u32 %v3687, 16
        %v4034 = vrot.slane %v4032, 4
        %v4035 = vshll.u32 %v3687, 16
        %v4037 = vrot.slane %v4035, 5
        %v4038 = vor.u32 %v4034, %v4037
        %v4039 = vrot.slane %v4038, 4
        %v4041 = vshll.u32 %v3688, 16
        %v4043 = vrot.slane %v4041, 5
        %v4044 = vsel %vm329, %v4039, %v4043
        %v4045 = vshrl.u32 %v3688, 16
        %v4047 = vrot.slane %v4045, 4
        %v4048 = vor.u32 %v4047, %v4043
        %v4049 = vrot.slane %v4048, 4
        %v4051 = vshll.u32 %v3689, 16
        %v4053 = vrot.slane %v4051, 5
        %v4054 = vsel %vm329, %v4049, %v4053
        %v4056 = vshrl.u32 %v3690, 16
        %v4058 = vrot.slane %v4056, 4
        %v4059 = vshll.u32 %v3690, 16
        %v4061 = vrot.slane %v4059, 5
        %v4062 = vor.u32 %v4058, %v4061
        %v4063 = vrot.slane %v4062, 4
        %v4065 = vshll.u32 %v3691, 16
        %v4067 = vrot.slane %v4065, 5
        %v4068 = vsel %vm329, %v4063, %v4067
        %v4069 = vshrl.u32 %v3691, 16
        %v4071 = vrot.slane %v4069, 4
        %v4072 = vor.u32 %v4071, %v4067
        %v4073 = vrot.slane %v4072, 4
        %v4075 = vshll.u32 %v3692, 16
        %v4077 = vrot.slane %v4075, 5
        %v4078 = vsel %vm329, %v4073, %v4077
        %v4079 = vunpack.c.l.b16 %v3708
        %v4080 = vunpack.c.l.b16 %v3718
        %v4081 = vunpack.c.l.b16 %v3732
        %v4082 = vunpack.c.l.b16 %v3742
        %v4083 = vunpack.c.l.b16 %v3756
        %v4084 = vunpack.c.l.b16 %v3766
        %v4085 = vunpack.c.l.b16 %v3780
        %v4086 = vunpack.c.l.b16 %v3790
        %v4087 = vunpack.c.l.b16 %v3804
        %v4088 = vunpack.c.l.b16 %v3814
        %v4089 = vunpack.c.l.b16 %v3828
        %v4090 = vunpack.c.l.b16 %v3838
        %v4091 = vunpack.c.l.b16 %v3852
        %v4092 = vunpack.c.l.b16 %v3862
        %v4093 = vunpack.c.l.b16 %v3876
        %v4094 = vunpack.c.l.b16 %v3886
        %v4095 = vunpack.c.l.b16 %v3900
        %v4096 = vunpack.c.l.b16 %v3910
        %v4097 = vunpack.c.l.b16 %v3924
        %v4098 = vunpack.c.l.b16 %v3934
        %v4099 = vunpack.c.l.b16 %v3948
        %v4100 = vunpack.c.l.b16 %v3958
        %v4101 = vunpack.c.l.b16 %v3972
        %v4102 = vunpack.c.l.b16 %v3982
        %v4103 = vunpack.c.l.b16 %v3996
        %v4104 = vunpack.c.l.b16 %v4006
        %v4105 = vunpack.c.l.b16 %v4020
        %v4106 = vunpack.c.l.b16 %v4030
        %v4107 = vunpack.c.l.b16 %v4044
        %v4108 = vunpack.c.l.b16 %v4054
        %v4109 = vunpack.c.l.b16 %v4068
        %v4110 = vunpack.c.l.b16 %v4078
        %v4111 = vpack.c.b16 %v4080, %v4079
        %v4112 = vpack.c.b16 %v4082, %v4081
        %v4113 = vpack.c.b16 %v4084, %v4083
        %v4114 = vpack.c.b16 %v4086, %v4085
        %v4115 = vpack.c.b16 %v4088, %v4087
        %v4116 = vpack.c.b16 %v4090, %v4089
        %v4117 = vpack.c.b16 %v4092, %v4091
        %v4118 = vpack.c.b16 %v4094, %v4093
        %v4119 = vpack.c.b16 %v4096, %v4095
        %v4120 = vpack.c.b16 %v4098, %v4097
        %v4121 = vpack.c.b16 %v4100, %v4099
        %v4122 = vpack.c.b16 %v4102, %v4101
        %v4123 = vpack.c.b16 %v4104, %v4103
        %v4124 = vpack.c.b16 %v4106, %v4105
        %v4125 = vpack.c.b16 %v4108, %v4107
        %v4126 = vpack.c.b16 %v4110, %v4109
        %v4128 = vsel %vm762, %v4111, 0
        %v4131 = vsel %vm762, %v4112, 0
        %v4134 = vsel %vm762, %v4113, 0
        %v4137 = vsel %vm762, %v4114, 0
        %v4140 = vsel %vm762, %v4115, 0
        %v4143 = vsel %vm762, %v4116, 0
        %v4146 = vsel %vm762, %v4117, 0
        %v4149 = vsel %vm762, %v4118, 0
        %v4152 = vsel %vm762, %v4119, 0
        %v4155 = vsel %vm762, %v4120, 0
        %v4158 = vsel %vm762, %v4121, 0
        %v4161 = vsel %vm762, %v4122, 0
        %v4164 = vsel %vm762, %v4123, 0
        %v4167 = vsel %vm762, %v4124, 0
        %v4170 = vsel %vm762, %v4125, 0
        %v4173 = vsel %vm762, %v4126, 0
        %v4176 = vsel %vm811, %v3694, 0
        %4178 = vmatprep.subr.bf16.mxu0 0
        %4179 = vmatpush1.bf16.msra.mxu0 %v4176
        %4180 = vmatprep.subr.bf16.mxu0 0
        %4181 = vmatpush1.bf16.msra.mxu0 0
        %4182 = vmatprep.subr.bf16.mxu0 0
        %4183 = vmatpush1.bf16.msra.mxu0 0
        %4184 = vmatprep.subr.bf16.mxu0 0
        %4185 = vmatpush1.bf16.msra.mxu0 0
        %4186 = vmatprep.subr.bf16.mxu0 0
        %4187 = vmatpush1.bf16.msra.mxu0 0
        %4188 = vmatprep.subr.bf16.mxu0 0
        %4189 = vmatpush1.bf16.msra.mxu0 0
        %4190 = vmatprep.subr.bf16.mxu0 0
        %4191 = vmatpush1.bf16.msra.mxu0 0
        %4192 = vmatprep.subr.bf16.mxu0 0
        %4193 = vmatpush1.bf16.msra.mxu0 0
        %4194 = vmatprep.subr.bf16.mxu0 0
        %4195 = vmatpush1.bf16.msra.mxu0 0
        %4196 = vmatprep.subr.bf16.mxu0 0
        %4197 = vmatpush1.bf16.msra.mxu0 0
        %4198 = vmatprep.subr.bf16.mxu0 0
        %4199 = vmatpush1.bf16.msra.mxu0 0
        %4200 = vmatprep.subr.bf16.mxu0 0
        %4201 = vmatpush1.bf16.msra.mxu0 0
        %4202 = vmatprep.subr.bf16.mxu0 0
        %4203 = vmatpush1.bf16.msra.mxu0 0
        %4204 = vmatprep.subr.bf16.mxu0 0
        %4205 = vmatpush1.bf16.msra.mxu0 0
        %4206 = vmatprep.subr.bf16.mxu0 0
        %4207 = vmatpush1.bf16.msra.mxu0 0
        %4208 = vmatprep.subr.bf16.mxu0 0
        %4209 = vmatpush1.bf16.msra.mxu0 0
        %4210 = vmatprep.mubr.bf16.mxu0 0
        %4211 = vmatmul.mubr.bf16.gmra.mrb[0].mxu0 %v4128
        %v4212 = vpop.f32.mrb[0].mxu0
        %v4213 = vadd.f32 0.0, %v4212
        %v4214 = vpop.f32.mrb[0].mxu0
        %v4215 = vpop.f32.mrb[0].mxu0
        %v4216 = vadd.f32 0.0, %v4215
        %v4217 = vpop.f32.mrb[0].mxu0
        %4218 = vmatprep.mubr.bf16.mxu0 0
        %4219 = vmatmul.mubr.bf16.gmra.mrb[0].mxu0 %v4131
        %v4220 = vpop.f32.mrb[0].mxu0
        %v4221 = vadd.f32 0.0, %v4220
        %v4222 = vpop.f32.mrb[0].mxu0
        %v4223 = vpop.f32.mrb[0].mxu0
        %v4224 = vadd.f32 0.0, %v4223
        %v4225 = vpop.f32.mrb[0].mxu0
        %4226 = vmatprep.mubr.bf16.mxu0 0
        %4227 = vmatmul.mubr.bf16.gmra.mrb[0].mxu0 %v4134
        %v4228 = vpop.f32.mrb[0].mxu0
        %v4229 = vadd.f32 0.0, %v4228
        %v4230 = vpop.f32.mrb[0].mxu0
        %v4231 = vpop.f32.mrb[0].mxu0
        %v4232 = vadd.f32 0.0, %v4231
        %v4233 = vpop.f32.mrb[0].mxu0
        %4234 = vmatprep.mubr.bf16.mxu0 0
        %4235 = vmatmul.mubr.bf16.gmra.mrb[0].mxu0 %v4137
        %v4236 = vpop.f32.mrb[0].mxu0
        %v4237 = vadd.f32 0.0, %v4236
        %v4238 = vpop.f32.mrb[0].mxu0
        %v4239 = vpop.f32.mrb[0].mxu0
        %v4240 = vadd.f32 0.0, %v4239
        %v4241 = vpop.f32.mrb[0].mxu0
        %4242 = vmatprep.mubr.bf16.mxu0 0
        %4243 = vmatmul.mubr.bf16.gmra.mrb[0].mxu0 %v4140
        %v4244 = vpop.f32.mrb[0].mxu0
        %v4245 = vadd.f32 0.0, %v4244
        %v4246 = vpop.f32.mrb[0].mxu0
        %v4247 = vpop.f32.mrb[0].mxu0
        %v4248 = vadd.f32 0.0, %v4247
        %v4249 = vpop.f32.mrb[0].mxu0
        %4250 = vmatprep.mubr.bf16.mxu0 0
        %4251 = vmatmul.mubr.bf16.gmra.mrb[0].mxu0 %v4143
        %v4252 = vpop.f32.mrb[0].mxu0
        %v4253 = vadd.f32 0.0, %v4252
        %v4254 = vpop.f32.mrb[0].mxu0
        %v4255 = vpop.f32.mrb[0].mxu0
        %v4256 = vadd.f32 0.0, %v4255
        %v4257 = vpop.f32.mrb[0].mxu0
        %4258 = vmatprep.mubr.bf16.mxu0 0
        %4259 = vmatmul.mubr.bf16.gmra.mrb[0].mxu0 %v4146
        %v4260 = vpop.f32.mrb[0].mxu0
        %v4261 = vadd.f32 0.0, %v4260
        %v4262 = vpop.f32.mrb[0].mxu0
        %v4263 = vpop.f32.mrb[0].mxu0
        %v4264 = vadd.f32 0.0, %v4263
        %v4265 = vpop.f32.mrb[0].mxu0
        %4266 = vmatprep.mubr.bf16.mxu0 0
        %4267 = vmatmul.mubr.bf16.gmra.mrb[0].mxu0 %v4149
        %v4268 = vpop.f32.mrb[0].mxu0
        %v4269 = vadd.f32 0.0, %v4268
        %v4270 = vpop.f32.mrb[0].mxu0
        %v4271 = vpop.f32.mrb[0].mxu0
        %v4272 = vadd.f32 0.0, %v4271
        %v4273 = vpop.f32.mrb[0].mxu0
        %4274 = vmatprep.mubr.bf16.mxu0 0
        %4275 = vmatmul.mubr.bf16.gmra.mrb[0].mxu0 %v4152
        %v4276 = vpop.f32.mrb[0].mxu0
        %v4277 = vadd.f32 0.0, %v4276
        %v4278 = vpop.f32.mrb[0].mxu0
        %v4279 = vpop.f32.mrb[0].mxu0
        %v4280 = vadd.f32 0.0, %v4279
        %v4281 = vpop.f32.mrb[0].mxu0
        %4282 = vmatprep.mubr.bf16.mxu0 0
        %4283 = vmatmul.mubr.bf16.gmra.mrb[0].mxu0 %v4155
        %v4284 = vpop.f32.mrb[0].mxu0
        %v4285 = vadd.f32 0.0, %v4284
        %v4286 = vpop.f32.mrb[0].mxu0
        %v4287 = vpop.f32.mrb[0].mxu0
        %v4288 = vadd.f32 0.0, %v4287
        %v4289 = vpop.f32.mrb[0].mxu0
        %4290 = vmatprep.mubr.bf16.mxu0 0
        %4291 = vmatmul.mubr.bf16.gmra.mrb[0].mxu0 %v4158
        %v4292 = vpop.f32.mrb[0].mxu0
        %v4293 = vadd.f32 0.0, %v4292
        %v4294 = vpop.f32.mrb[0].mxu0
        %v4295 = vpop.f32.mrb[0].mxu0
        %v4296 = vadd.f32 0.0, %v4295
        %v4297 = vpop.f32.mrb[0].mxu0
        %4298 = vmatprep.mubr.bf16.mxu0 0
        %4299 = vmatmul.mubr.bf16.gmra.mrb[0].mxu0 %v4161
        %v4300 = vpop.f32.mrb[0].mxu0
        %v4301 = vadd.f32 0.0, %v4300
        %v4302 = vpop.f32.mrb[0].mxu0
        %v4303 = vpop.f32.mrb[0].mxu0
        %v4304 = vadd.f32 0.0, %v4303
        %v4305 = vpop.f32.mrb[0].mxu0
        %4306 = vmatprep.mubr.bf16.mxu0 0
        %4307 = vmatmul.mubr.bf16.gmra.mrb[0].mxu0 %v4164
        %v4308 = vpop.f32.mrb[0].mxu0
        %v4309 = vadd.f32 0.0, %v4308
        %v4310 = vpop.f32.mrb[0].mxu0
        %v4311 = vpop.f32.mrb[0].mxu0
        %v4312 = vadd.f32 0.0, %v4311
        %v4313 = vpop.f32.mrb[0].mxu0
        %4314 = vmatprep.mubr.bf16.mxu0 0
        %4315 = vmatmul.mubr.bf16.gmra.mrb[0].mxu0 %v4167
        %v4316 = vpop.f32.mrb[0].mxu0
        %v4317 = vadd.f32 0.0, %v4316
        %v4318 = vpop.f32.mrb[0].mxu0
        %v4319 = vpop.f32.mrb[0].mxu0
        %v4320 = vadd.f32 0.0, %v4319
        %v4321 = vpop.f32.mrb[0].mxu0
        %4322 = vmatprep.mubr.bf16.mxu0 0
        %4323 = vmatmul.mubr.bf16.gmra.mrb[0].mxu0 %v4170
        %v4324 = vpop.f32.mrb[0].mxu0
        %v4325 = vadd.f32 0.0, %v4324
        %v4326 = vpop.f32.mrb[0].mxu0
        %v4327 = vpop.f32.mrb[0].mxu0
        %v4328 = vadd.f32 0.0, %v4327
        %v4329 = vpop.f32.mrb[0].mxu0
        %4330 = vmatprep.mubr.bf16.mxu0 0
        %4331 = vmatmul.mubr.bf16.gmra.mrb[0].mxu0 %v4173
        %v4332 = vpop.f32.mrb[0].mxu0
        %v4333 = vadd.f32 0.0, %v4332
        %v4334 = vpop.f32.mrb[0].mxu0
        %v4335 = vpop.f32.mrb[0].mxu0
        %v4336 = vadd.f32 0.0, %v4335
        %v4337 = vpop.f32.mrb[0].mxu0
        %4338 = vdwg.mxu0
        %v4339 = vadd.f32 %v3613, %v4213
        %v4340 = vadd.f32 %v3614, %v4216
        %v4341 = vadd.f32 %v3615, %v4221
        %v4342 = vadd.f32 %v3616, %v4224
        %v4343 = vadd.f32 %v3617, %v4229
        %v4344 = vadd.f32 %v3618, %v4232
        %v4345 = vadd.f32 %v3619, %v4237
        %v4346 = vadd.f32 %v3620, %v4240
        %v4347 = vadd.f32 %v3621, %v4245
        %v4348 = vadd.f32 %v3622, %v4248
        %v4349 = vadd.f32 %v3623, %v4253
        %v4350 = vadd.f32 %v3624, %v4256
        %v4351 = vadd.f32 %v3625, %v4261
        %v4352 = vadd.f32 %v3626, %v4264
        %v4353 = vadd.f32 %v3627, %v4269
        %v4354 = vadd.f32 %v3628, %v4272
        %v4355 = vadd.f32 %v3629, %v4277
        %v4356 = vadd.f32 %v3630, %v4280
        %v4357 = vadd.f32 %v3631, %v4285
        %v4358 = vadd.f32 %v3632, %v4288
        %v4359 = vadd.f32 %v3633, %v4293
        %v4360 = vadd.f32 %v3634, %v4296
        %v4361 = vadd.f32 %v3635, %v4301
        %v4362 = vadd.f32 %v3636, %v4304
        %v4363 = vadd.f32 %v3637, %v4309
        %v4364 = vadd.f32 %v3638, %v4312
        %v4365 = vadd.f32 %v3639, %v4317
        %v4366 = vadd.f32 %v3640, %v4320
        %v4367 = vadd.f32 %v3641, %v4325
        %v4368 = vadd.f32 %v3642, %v4328
        %v4369 = vadd.f32 %v3643, %v4333
        %v4370 = vadd.f32 %v3644, %v4336
        %v4371 = vld [vmem:[%s3286] sm:$0xe]
        %v4372 = vld [vmem:[%s3286 + $0xc] sm:$0xe]
        %v4373 = vld [vmem:[%s3286 + $0x18] sm:$0xe]
        %v4374 = vld [vmem:[%s3286 + $0x24] sm:$0xe]
        %v4375 = vld [vmem:[%s3286 + $0x30] sm:$0xe]
        %v4376 = vld [vmem:[%s3286 + $0x3c] sm:$0xe]
        %v4377 = vld [vmem:[%s3286 + $0x48] sm:$0xe]
        %v4378 = vld [vmem:[%s3286 + $0x54] sm:$0xe]
        %v4379 = vld [vmem:[%s3286 + $0x60] sm:$0xe]
        %v4380 = vld [vmem:[%s3286 + $0x6c] sm:$0xe]
        %v4381 = vld [vmem:[%s3286 + $0x78] sm:$0xe]
        %v4382 = vld [vmem:[%s3286 + $0x84] sm:$0xe]
        %v4383 = vld [vmem:[%s3286 + $0x90] sm:$0xe]
        %v4384 = vld [vmem:[%s3286 + $0x9c] sm:$0xe]
        %v4385 = vld [vmem:[%s3286 + $0xa8] sm:$0xe]
        %v4386 = vld [vmem:[%s3286 + $0xb4] sm:$0xe]
        %s4387 = scalar_lea.vmem [#allocation5], 16
        %v4388 = vld [vmem:[%s4387] sm:$0x3]
        %v4437 = vrot.slane %v4371, 5
        %v4438 = vrot.slane %v4437, 4
        %v4439 = vrot.slane %v3646, 5
        %v4440 = vsel %vm1320, %v4438, %v4439
        %v4441 = vrot.slane %v4439, 4
        %v4442 = vrot.slane %v3647, 5
        %v4443 = vsel %vm1320, %v4441, %v4442
        %v4444 = vrot.slane %v4372, 5
        %v4445 = vrot.slane %v4444, 4
        %v4446 = vrot.slane %v3649, 5
        %v4447 = vsel %vm1320, %v4445, %v4446
        %v4448 = vrot.slane %v4446, 4
        %v4449 = vrot.slane %v3650, 5
        %v4450 = vsel %vm1320, %v4448, %v4449
        %v4451 = vrot.slane %v4373, 5
        %v4452 = vrot.slane %v4451, 4
        %v4453 = vrot.slane %v3652, 5
        %v4454 = vsel %vm1320, %v4452, %v4453
        %v4455 = vrot.slane %v4453, 4
        %v4456 = vrot.slane %v3653, 5
        %v4457 = vsel %vm1320, %v4455, %v4456
        %v4458 = vrot.slane %v4374, 5
        %v4459 = vrot.slane %v4458, 4
        %v4460 = vrot.slane %v3655, 5
        %v4461 = vsel %vm1320, %v4459, %v4460
        %v4462 = vrot.slane %v4460, 4
        %v4463 = vrot.slane %v3656, 5
        %v4464 = vsel %vm1320, %v4462, %v4463
        %v4465 = vrot.slane %v4375, 5
        %v4466 = vrot.slane %v4465, 4
        %v4467 = vrot.slane %v3658, 5
        %v4468 = vsel %vm1320, %v4466, %v4467
        %v4469 = vrot.slane %v4467, 4
        %v4470 = vrot.slane %v3659, 5
        %v4471 = vsel %vm1320, %v4469, %v4470
        %v4472 = vrot.slane %v4376, 5
        %v4473 = vrot.slane %v4472, 4
        %v4474 = vrot.slane %v3661, 5
        %v4475 = vsel %vm1320, %v4473, %v4474
        %v4476 = vrot.slane %v4474, 4
        %v4477 = vrot.slane %v3662, 5
        %v4478 = vsel %vm1320, %v4476, %v4477
        %v4479 = vrot.slane %v4377, 5
        %v4480 = vrot.slane %v4479, 4
        %v4481 = vrot.slane %v3664, 5
        %v4482 = vsel %vm1320, %v4480, %v4481
        %v4483 = vrot.slane %v4481, 4
        %v4484 = vrot.slane %v3665, 5
        %v4485 = vsel %vm1320, %v4483, %v4484
        %v4486 = vrot.slane %v4378, 5
        %v4487 = vrot.slane %v4486, 4
        %v4488 = vrot.slane %v3667, 5
        %v4489 = vsel %vm1320, %v4487, %v4488
        %v4490 = vrot.slane %v4488, 4
        %v4491 = vrot.slane %v3668, 5
        %v4492 = vsel %vm1320, %v4490, %v4491
        %v4493 = vrot.slane %v4379, 5
        %v4494 = vrot.slane %v4493, 4
        %v4495 = vrot.slane %v3670, 5
        %v4496 = vsel %vm1320, %v4494, %v4495
        %v4497 = vrot.slane %v4495, 4
        %v4498 = vrot.slane %v3671, 5
        %v4499 = vsel %vm1320, %v4497, %v4498
        %v4500 = vrot.slane %v4380, 5
        %v4501 = vrot.slane %v4500, 4
        %v4502 = vrot.slane %v3673, 5
        %v4503 = vsel %vm1320, %v4501, %v4502
        %v4504 = vrot.slane %v4502, 4
        %v4505 = vrot.slane %v3674, 5
        %v4506 = vsel %vm1320, %v4504, %v4505
        %v4507 = vrot.slane %v4381, 5
        %v4508 = vrot.slane %v4507, 4
        %v4509 = vrot.slane %v3676, 5
        %v4510 = vsel %vm1320, %v4508, %v4509
        %v4511 = vrot.slane %v4509, 4
        %v4512 = vrot.slane %v3677, 5
        %v4513 = vsel %vm1320, %v4511, %v4512
        %v4514 = vrot.slane %v4382, 5
        %v4515 = vrot.slane %v4514, 4
        %v4516 = vrot.slane %v3679, 5
        %v4517 = vsel %vm1320, %v4515, %v4516
        %v4518 = vrot.slane %v4516, 4
        %v4519 = vrot.slane %v3680, 5
        %v4520 = vsel %vm1320, %v4518, %v4519
        %v4521 = vrot.slane %v4383, 5
        %v4522 = vrot.slane %v4521, 4
        %v4523 = vrot.slane %v3682, 5
        %v4524 = vsel %vm1320, %v4522, %v4523
        %v4525 = vrot.slane %v4523, 4
        %v4526 = vrot.slane %v3683, 5
        %v4527 = vsel %vm1320, %v4525, %v4526
        %v4528 = vrot.slane %v4384, 5
        %v4529 = vrot.slane %v4528, 4
        %v4530 = vrot.slane %v3685, 5
        %v4531 = vsel %vm1320, %v4529, %v4530
        %v4532 = vrot.slane %v4530, 4
        %v4533 = vrot.slane %v3686, 5
        %v4534 = vsel %vm1320, %v4532, %v4533
        %v4535 = vrot.slane %v4385, 5
        %v4536 = vrot.slane %v4535, 4
        %v4537 = vrot.slane %v3688, 5
        %v4538 = vsel %vm1320, %v4536, %v4537
        %v4539 = vrot.slane %v4537, 4
        %v4540 = vrot.slane %v3689, 5
        %v4541 = vsel %vm1320, %v4539, %v4540
        %v4542 = vrot.slane %v4386, 5
        %v4543 = vrot.slane %v4542, 4
        %v4544 = vrot.slane %v3691, 5
        %v4545 = vsel %vm1320, %v4543, %v4544
        %v4546 = vrot.slane %v4544, 4
        %v4547 = vrot.slane %v3692, 5
        %v4548 = vsel %vm1320, %v4546, %v4547
        %v4549 = vunpack.c.l.b16 %v4440
        %v4550 = vunpack.c.l.b16 %v4443
        %v4551 = vunpack.c.l.b16 %v4447
        %v4552 = vunpack.c.l.b16 %v4450
        %v4553 = vunpack.c.l.b16 %v4454
        %v4554 = vunpack.c.l.b16 %v4457
        %v4555 = vunpack.c.l.b16 %v4461
        %v4556 = vunpack.c.l.b16 %v4464
        %v4557 = vunpack.c.l.b16 %v4468
        %v4558 = vunpack.c.l.b16 %v4471
        %v4559 = vunpack.c.l.b16 %v4475
        %v4560 = vunpack.c.l.b16 %v4478
        %v4561 = vunpack.c.l.b16 %v4482
        %v4562 = vunpack.c.l.b16 %v4485
        %v4563 = vunpack.c.l.b16 %v4489
        %v4564 = vunpack.c.l.b16 %v4492
        %v4565 = vunpack.c.l.b16 %v4496
        %v4566 = vunpack.c.l.b16 %v4499
        %v4567 = vunpack.c.l.b16 %v4503
        %v4568 = vunpack.c.l.b16 %v4506
        %v4569 = vunpack.c.l.b16 %v4510
        %v4570 = vunpack.c.l.b16 %v4513
        %v4571 = vunpack.c.l.b16 %v4517
        %v4572 = vunpack.c.l.b16 %v4520
        %v4573 = vunpack.c.l.b16 %v4524
        %v4574 = vunpack.c.l.b16 %v4527
        %v4575 = vunpack.c.l.b16 %v4531
        %v4576 = vunpack.c.l.b16 %v4534
        %v4577 = vunpack.c.l.b16 %v4538
        %v4578 = vunpack.c.l.b16 %v4541
        %v4579 = vunpack.c.l.b16 %v4545
        %v4580 = vunpack.c.l.b16 %v4548
        %v4581 = vpack.c.b16 %v4550, %v4549
        %v4582 = vpack.c.b16 %v4552, %v4551
        %v4583 = vpack.c.b16 %v4554, %v4553
        %v4584 = vpack.c.b16 %v4556, %v4555
        %v4585 = vpack.c.b16 %v4558, %v4557
        %v4586 = vpack.c.b16 %v4560, %v4559
        %v4587 = vpack.c.b16 %v4562, %v4561
        %v4588 = vpack.c.b16 %v4564, %v4563
        %v4589 = vpack.c.b16 %v4566, %v4565
        %v4590 = vpack.c.b16 %v4568, %v4567
        %v4591 = vpack.c.b16 %v4570, %v4569
        %v4592 = vpack.c.b16 %v4572, %v4571
        %v4593 = vpack.c.b16 %v4574, %v4573
        %v4594 = vpack.c.b16 %v4576, %v4575
        %v4595 = vpack.c.b16 %v4578, %v4577
        %v4596 = vpack.c.b16 %v4580, %v4579
        %v4598 = vsel %vm762, %v4581, 0
        %v4601 = vsel %vm762, %v4582, 0
        %v4604 = vsel %vm762, %v4583, 0
        %v4607 = vsel %vm762, %v4584, 0
        %v4610 = vsel %vm762, %v4585, 0
        %v4613 = vsel %vm762, %v4586, 0
        %v4616 = vsel %vm762, %v4587, 0
        %v4619 = vsel %vm762, %v4588, 0
        %v4622 = vsel %vm762, %v4589, 0
        %v4625 = vsel %vm762, %v4590, 0
        %v4628 = vsel %vm762, %v4591, 0
        %v4631 = vsel %vm762, %v4592, 0
        %v4634 = vsel %vm762, %v4593, 0
        %v4637 = vsel %vm762, %v4594, 0
        %v4640 = vsel %vm762, %v4595, 0
        %v4643 = vsel %vm762, %v4596, 0
        %v4646 = vsel %vm811, %v4388, 0
        %4648 = vmatprep.subr.bf16.mxu0 0
        %4649 = vmatpush1.bf16.msra.mxu0 %v4646
        %4650 = vmatprep.subr.bf16.mxu0 0
        %4651 = vmatpush1.bf16.msra.mxu0 0
        %4652 = vmatprep.subr.bf16.mxu0 0
        %4653 = vmatpush1.bf16.msra.mxu0 0
        %4654 = vmatprep.subr.bf16.mxu0 0
        %4655 = vmatpush1.bf16.msra.mxu0 0
        %4656 = vmatprep.subr.bf16.mxu0 0
        %4657 = vmatpush1.bf16.msra.mxu0 0
        %4658 = vmatprep.subr.bf16.mxu0 0
        %4659 = vmatpush1.bf16.msra.mxu0 0
        %4660 = vmatprep.subr.bf16.mxu0 0
        %4661 = vmatpush1.bf16.msra.mxu0 0
        %4662 = vmatprep.subr.bf16.mxu0 0
        %4663 = vmatpush1.bf16.msra.mxu0 0
        %4664 = vmatprep.subr.bf16.mxu0 0
        %4665 = vmatpush1.bf16.msra.mxu0 0
        %4666 = vmatprep.subr.bf16.mxu0 0
        %4667 = vmatpush1.bf16.msra.mxu0 0
        %4668 = vmatprep.subr.bf16.mxu0 0
        %4669 = vmatpush1.bf16.msra.mxu0 0
        %4670 = vmatprep.subr.bf16.mxu0 0
        %4671 = vmatpush1.bf16.msra.mxu0 0
        %4672 = vmatprep.subr.bf16.mxu0 0
        %4673 = vmatpush1.bf16.msra.mxu0 0
        %4674 = vmatprep.subr.bf16.mxu0 0
        %4675 = vmatpush1.bf16.msra.mxu0 0
        %4676 = vmatprep.subr.bf16.mxu0 0
        %4677 = vmatpush1.bf16.msra.mxu0 0
        %4678 = vmatprep.subr.bf16.mxu0 0
        %4679 = vmatpush1.bf16.msra.mxu0 0
        %4680 = vmatprep.mubr.bf16.mxu0 0
        %4681 = vmatmul.mubr.bf16.gmra.mrb[0].mxu0 %v4598
        %v4682 = vpop.f32.mrb[0].mxu0
        %v4683 = vadd.f32 0.0, %v4682
        %v4684 = vpop.f32.mrb[0].mxu0
        %v4685 = vpop.f32.mrb[0].mxu0
        %v4686 = vadd.f32 0.0, %v4685
        %v4687 = vpop.f32.mrb[0].mxu0
        %4688 = vmatprep.mubr.bf16.mxu0 0
        %4689 = vmatmul.mubr.bf16.gmra.mrb[0].mxu0 %v4601
        %v4690 = vpop.f32.mrb[0].mxu0
        %v4691 = vadd.f32 0.0, %v4690
        %v4692 = vpop.f32.mrb[0].mxu0
        %v4693 = vpop.f32.mrb[0].mxu0
        %v4694 = vadd.f32 0.0, %v4693
        %v4695 = vpop.f32.mrb[0].mxu0
        %4696 = vmatprep.mubr.bf16.mxu0 0
        %4697 = vmatmul.mubr.bf16.gmra.mrb[0].mxu0 %v4604
        %v4698 = vpop.f32.mrb[0].mxu0
        %v4699 = vadd.f32 0.0, %v4698
        %v4700 = vpop.f32.mrb[0].mxu0
        %v4701 = vpop.f32.mrb[0].mxu0
        %v4702 = vadd.f32 0.0, %v4701
        %v4703 = vpop.f32.mrb[0].mxu0
        %4704 = vmatprep.mubr.bf16.mxu0 0
        %4705 = vmatmul.mubr.bf16.gmra.mrb[0].mxu0 %v4607
        %v4706 = vpop.f32.mrb[0].mxu0
        %v4707 = vadd.f32 0.0, %v4706
        %v4708 = vpop.f32.mrb[0].mxu0
        %v4709 = vpop.f32.mrb[0].mxu0
        %v4710 = vadd.f32 0.0, %v4709
        %v4711 = vpop.f32.mrb[0].mxu0
        %4712 = vmatprep.mubr.bf16.mxu0 0
        %4713 = vmatmul.mubr.bf16.gmra.mrb[0].mxu0 %v4610
        %v4714 = vpop.f32.mrb[0].mxu0
        %v4715 = vadd.f32 0.0, %v4714
        %v4716 = vpop.f32.mrb[0].mxu0
        %v4717 = vpop.f32.mrb[0].mxu0
        %v4718 = vadd.f32 0.0, %v4717
        %v4719 = vpop.f32.mrb[0].mxu0
        %4720 = vmatprep.mubr.bf16.mxu0 0
        %4721 = vmatmul.mubr.bf16.gmra.mrb[0].mxu0 %v4613
        %v4722 = vpop.f32.mrb[0].mxu0
        %v4723 = vadd.f32 0.0, %v4722
        %v4724 = vpop.f32.mrb[0].mxu0
        %v4725 = vpop.f32.mrb[0].mxu0
        %v4726 = vadd.f32 0.0, %v4725
        %v4727 = vpop.f32.mrb[0].mxu0
        %4728 = vmatprep.mubr.bf16.mxu0 0
        %4729 = vmatmul.mubr.bf16.gmra.mrb[0].mxu0 %v4616
        %v4730 = vpop.f32.mrb[0].mxu0
        %v4731 = vadd.f32 0.0, %v4730
        %v4732 = vpop.f32.mrb[0].mxu0
        %v4733 = vpop.f32.mrb[0].mxu0
        %v4734 = vadd.f32 0.0, %v4733
        %v4735 = vpop.f32.mrb[0].mxu0
        %4736 = vmatprep.mubr.bf16.mxu0 0
        %4737 = vmatmul.mubr.bf16.gmra.mrb[0].mxu0 %v4619
        %v4738 = vpop.f32.mrb[0].mxu0
        %v4739 = vadd.f32 0.0, %v4738
        %v4740 = vpop.f32.mrb[0].mxu0
        %v4741 = vpop.f32.mrb[0].mxu0
        %v4742 = vadd.f32 0.0, %v4741
        %v4743 = vpop.f32.mrb[0].mxu0
        %4744 = vmatprep.mubr.bf16.mxu0 0
        %4745 = vmatmul.mubr.bf16.gmra.mrb[0].mxu0 %v4622
        %v4746 = vpop.f32.mrb[0].mxu0
        %v4747 = vadd.f32 0.0, %v4746
        %v4748 = vpop.f32.mrb[0].mxu0
        %v4749 = vpop.f32.mrb[0].mxu0
        %v4750 = vadd.f32 0.0, %v4749
        %v4751 = vpop.f32.mrb[0].mxu0
        %4752 = vmatprep.mubr.bf16.mxu0 0
        %4753 = vmatmul.mubr.bf16.gmra.mrb[0].mxu0 %v4625
        %v4754 = vpop.f32.mrb[0].mxu0
        %v4755 = vadd.f32 0.0, %v4754
        %v4756 = vpop.f32.mrb[0].mxu0
        %v4757 = vpop.f32.mrb[0].mxu0
        %v4758 = vadd.f32 0.0, %v4757
        %v4759 = vpop.f32.mrb[0].mxu0
        %4760 = vmatprep.mubr.bf16.mxu0 0
        %4761 = vmatmul.mubr.bf16.gmra.mrb[0].mxu0 %v4628
        %v4762 = vpop.f32.mrb[0].mxu0
        %v4763 = vadd.f32 0.0, %v4762
        %v4764 = vpop.f32.mrb[0].mxu0
        %v4765 = vpop.f32.mrb[0].mxu0
        %v4766 = vadd.f32 0.0, %v4765
        %v4767 = vpop.f32.mrb[0].mxu0
        %4768 = vmatprep.mubr.bf16.mxu0 0
        %4769 = vmatmul.mubr.bf16.gmra.mrb[0].mxu0 %v4631
        %v4770 = vpop.f32.mrb[0].mxu0
        %v4771 = vadd.f32 0.0, %v4770
        %v4772 = vpop.f32.mrb[0].mxu0
        %v4773 = vpop.f32.mrb[0].mxu0
        %v4774 = vadd.f32 0.0, %v4773
        %v4775 = vpop.f32.mrb[0].mxu0
        %4776 = vmatprep.mubr.bf16.mxu0 0
        %4777 = vmatmul.mubr.bf16.gmra.mrb[0].mxu0 %v4634
        %v4778 = vpop.f32.mrb[0].mxu0
        %v4779 = vadd.f32 0.0, %v4778
        %v4780 = vpop.f32.mrb[0].mxu0
        %v4781 = vpop.f32.mrb[0].mxu0
        %v4782 = vadd.f32 0.0, %v4781
        %v4783 = vpop.f32.mrb[0].mxu0
        %4784 = vmatprep.mubr.bf16.mxu0 0
        %4785 = vmatmul.mubr.bf16.gmra.mrb[0].mxu0 %v4637
        %v4786 = vpop.f32.mrb[0].mxu0
        %v4787 = vadd.f32 0.0, %v4786
        %v4788 = vpop.f32.mrb[0].mxu0
        %v4789 = vpop.f32.mrb[0].mxu0
        %v4790 = vadd.f32 0.0, %v4789
        %v4791 = vpop.f32.mrb[0].mxu0
        %4792 = vmatprep.mubr.bf16.mxu0 0
        %4793 = vmatmul.mubr.bf16.gmra.mrb[0].mxu0 %v4640
        %v4794 = vpop.f32.mrb[0].mxu0
        %v4795 = vadd.f32 0.0, %v4794
        %v4796 = vpop.f32.mrb[0].mxu0
        %v4797 = vpop.f32.mrb[0].mxu0
        %v4798 = vadd.f32 0.0, %v4797
        %v4799 = vpop.f32.mrb[0].mxu0
        %4800 = vmatprep.mubr.bf16.mxu0 0
        %4801 = vmatmul.mubr.bf16.gmra.mrb[0].mxu0 %v4643
        %v4802 = vpop.f32.mrb[0].mxu0
        %v4803 = vadd.f32 0.0, %v4802
        %v4804 = vpop.f32.mrb[0].mxu0
        %v4805 = vpop.f32.mrb[0].mxu0
        %v4806 = vadd.f32 0.0, %v4805
        %v4807 = vpop.f32.mrb[0].mxu0
        %4808 = vdwg.mxu0
        %v4809 = vadd.f32 %v4339, %v4683
        %v4810 = vadd.f32 %v4340, %v4686
        %v4811 = vadd.f32 %v4341, %v4691
        %v4812 = vadd.f32 %v4342, %v4694
        %v4813 = vadd.f32 %v4343, %v4699
        %v4814 = vadd.f32 %v4344, %v4702
        %v4815 = vadd.f32 %v4345, %v4707
        %v4816 = vadd.f32 %v4346, %v4710
        %v4817 = vadd.f32 %v4347, %v4715
        %v4818 = vadd.f32 %v4348, %v4718
        %v4819 = vadd.f32 %v4349, %v4723
        %v4820 = vadd.f32 %v4350, %v4726
        %v4821 = vadd.f32 %v4351, %v4731
        %v4822 = vadd.f32 %v4352, %v4734
        %v4823 = vadd.f32 %v4353, %v4739
        %v4824 = vadd.f32 %v4354, %v4742
        %v4825 = vadd.f32 %v4355, %v4747
        %v4826 = vadd.f32 %v4356, %v4750
        %v4827 = vadd.f32 %v4357, %v4755
        %v4828 = vadd.f32 %v4358, %v4758
        %v4829 = vadd.f32 %v4359, %v4763
        %v4830 = vadd.f32 %v4360, %v4766
        %v4831 = vadd.f32 %v4361, %v4771
        %v4832 = vadd.f32 %v4362, %v4774
        %v4833 = vadd.f32 %v4363, %v4779
        %v4834 = vadd.f32 %v4364, %v4782
        %v4835 = vadd.f32 %v4365, %v4787
        %v4836 = vadd.f32 %v4366, %v4790
        %v4837 = vadd.f32 %v4367, %v4795
        %v4838 = vadd.f32 %v4368, %v4798
        %v4839 = vadd.f32 %v4369, %v4803
        %v4840 = vadd.f32 %v4370, %v4806
        %v4841 = vld [vmem:[#allocation7] sm:$0x1]
        %v4843 = vlaneseq
        %v4844 = vshrl.u32 %v4843, 7
        %v4845 = vsub.s32 0, %v4844
        %v4846 = vrot.slane %v4841, %v4845
        %v4848 = vmul.f32 %v4809, %v4846
        %v4849 = vmul.f32 %v4810, %v4846
        %v4850 = vmul.f32 %v4811, %v4846
        %v4851 = vmul.f32 %v4812, %v4846
        %v4852 = vmul.f32 %v4813, %v4846
        %v4853 = vmul.f32 %v4814, %v4846
        %v4854 = vmul.f32 %v4815, %v4846
        %v4855 = vmul.f32 %v4816, %v4846
        %v4856 = vmul.f32 %v4817, %v4846
        %v4857 = vmul.f32 %v4818, %v4846
        %v4858 = vmul.f32 %v4819, %v4846
        %v4859 = vmul.f32 %v4820, %v4846
        %v4860 = vmul.f32 %v4821, %v4846
        %v4861 = vmul.f32 %v4822, %v4846
        %v4862 = vmul.f32 %v4823, %v4846
        %v4863 = vmul.f32 %v4824, %v4846
        %v4864 = vmul.f32 %v4825, %v4846
        %v4865 = vmul.f32 %v4826, %v4846
        %v4866 = vmul.f32 %v4827, %v4846
        %v4867 = vmul.f32 %v4828, %v4846
        %v4868 = vmul.f32 %v4829, %v4846
        %v4869 = vmul.f32 %v4830, %v4846
        %v4870 = vmul.f32 %v4831, %v4846
        %v4871 = vmul.f32 %v4832, %v4846
        %v4872 = vmul.f32 %v4833, %v4846
        %v4873 = vmul.f32 %v4834, %v4846
        %v4874 = vmul.f32 %v4835, %v4846
        %v4875 = vmul.f32 %v4836, %v4846
        %v4876 = vmul.f32 %v4837, %v4846
        %v4877 = vmul.f32 %v4838, %v4846
        %v4878 = vmul.f32 %v4839, %v4846
        %v4879 = vmul.f32 %v4840, %v4846
        %v4880 = vld [vmem:[#allocation8] sm:$0x1]
        %v4882 = vlaneseq
        %v4883 = vshrl.u32 %v4882, 7
        %v4884 = vsub.s32 0, %v4883
        %v4885 = vrot.slane %v4880, %v4884
        %v4887 = vadd.f32 %v4848, %v4885
        %v4888 = vadd.f32 %v4849, %v4885
        %v4889 = vadd.f32 %v4850, %v4885
        %v4890 = vadd.f32 %v4851, %v4885
        %v4891 = vadd.f32 %v4852, %v4885
        %v4892 = vadd.f32 %v4853, %v4885
        %v4893 = vadd.f32 %v4854, %v4885
        %v4894 = vadd.f32 %v4855, %v4885
        %v4895 = vadd.f32 %v4856, %v4885
        %v4896 = vadd.f32 %v4857, %v4885
        %v4897 = vadd.f32 %v4858, %v4885
        %v4898 = vadd.f32 %v4859, %v4885
        %v4899 = vadd.f32 %v4860, %v4885
        %v4900 = vadd.f32 %v4861, %v4885
        %v4901 = vadd.f32 %v4862, %v4885
        %v4902 = vadd.f32 %v4863, %v4885
        %v4903 = vadd.f32 %v4864, %v4885
        %v4904 = vadd.f32 %v4865, %v4885
        %v4905 = vadd.f32 %v4866, %v4885
        %v4906 = vadd.f32 %v4867, %v4885
        %v4907 = vadd.f32 %v4868, %v4885
        %v4908 = vadd.f32 %v4869, %v4885
        %v4909 = vadd.f32 %v4870, %v4885
        %v4910 = vadd.f32 %v4871, %v4885
        %v4911 = vadd.f32 %v4872, %v4885
        %v4912 = vadd.f32 %v4873, %v4885
        %v4913 = vadd.f32 %v4874, %v4885
        %v4914 = vadd.f32 %v4875, %v4885
        %v4915 = vadd.f32 %v4876, %v4885
        %v4916 = vadd.f32 %v4877, %v4885
        %v4917 = vadd.f32 %v4878, %v4885
        %v4918 = vadd.f32 %v4879, %v4885
        %v4919 = vmax.f32 %v4887, 0.0
        %v4920 = vmax.f32 %v4888, 0.0
        %v4921 = vmax.f32 %v4889, 0.0
        %v4922 = vmax.f32 %v4890, 0.0
        %v4923 = vmax.f32 %v4891, 0.0
        %v4924 = vmax.f32 %v4892, 0.0
        %v4925 = vmax.f32 %v4893, 0.0
        %v4926 = vmax.f32 %v4894, 0.0
        %v4927 = vmax.f32 %v4895, 0.0
        %v4928 = vmax.f32 %v4896, 0.0
        %v4929 = vmax.f32 %v4897, 0.0
        %v4930 = vmax.f32 %v4898, 0.0
        %v4931 = vmax.f32 %v4899, 0.0
        %v4932 = vmax.f32 %v4900, 0.0
        %v4933 = vmax.f32 %v4901, 0.0
        %v4934 = vmax.f32 %v4902, 0.0
        %v4935 = vmax.f32 %v4903, 0.0
        %v4936 = vmax.f32 %v4904, 0.0
        %v4937 = vmax.f32 %v4905, 0.0
        %v4938 = vmax.f32 %v4906, 0.0
        %v4939 = vmax.f32 %v4907, 0.0
        %v4940 = vmax.f32 %v4908, 0.0
        %v4941 = vmax.f32 %v4909, 0.0
        %v4942 = vmax.f32 %v4910, 0.0
        %v4943 = vmax.f32 %v4911, 0.0
        %v4944 = vmax.f32 %v4912, 0.0
        %v4945 = vmax.f32 %v4913, 0.0
        %v4946 = vmax.f32 %v4914, 0.0
        %v4947 = vmax.f32 %v4915, 0.0
        %v4948 = vmax.f32 %v4916, 0.0
        %v4949 = vmax.f32 %v4917, 0.0
        %v4950 = vmax.f32 %v4918, 0.0
        %v4951 = vcombine.low %v4919, %v4923
        %v4952 = vcombine.high %v4919, %v4923
        %v4954 = vunpack.c.l.s4 1983009808
        %v4955 = vunpack.c.0.s8 %v4954
        %v4956 = vlaneseq
        %v4957 = vshrl.u32 %v4956, 7
        %v4958 = vsub.s32 %v4955, %v4957
        %v4959 = vrot.slane %v4951, %v4958
        %v4961 = vunpack.c.l.s4 1983009808
        %v4962 = vunpack.c.0.s8 %v4961
        %v4963 = vlaneseq
        %v4964 = vshrl.u32 %v4963, 7
        %v4965 = vsub.s32 %v4962, %v4964
        %v4966 = vrot.slane %v4952, %v4965
        %v4967 = vcombine.low %v4921, %v4925
        %v4968 = vcombine.high %v4921, %v4925
        %v4970 = vunpack.c.l.s4 1983009808
        %v4971 = vunpack.c.0.s8 %v4970
        %v4972 = vlaneseq
        %v4973 = vshrl.u32 %v4972, 7
        %v4974 = vsub.s32 %v4971, %v4973
        %v4975 = vrot.slane %v4967, %v4974
        %v4977 = vunpack.c.l.s4 1983009808
        %v4978 = vunpack.c.0.s8 %v4977
        %v4979 = vlaneseq
        %v4980 = vshrl.u32 %v4979, 7
        %v4981 = vsub.s32 %v4978, %v4980
        %v4982 = vrot.slane %v4968, %v4981
        %v4983 = vcombine.low %v4927, %v4931
        %v4984 = vcombine.high %v4927, %v4931
        %v4986 = vunpack.c.l.s4 1983009808
        %v4987 = vunpack.c.0.s8 %v4986
        %v4988 = vlaneseq
        %v4989 = vshrl.u32 %v4988, 7
        %v4990 = vsub.s32 %v4987, %v4989
        %v4991 = vrot.slane %v4983, %v4990
        %v4993 = vunpack.c.l.s4 1983009808
        %v4994 = vunpack.c.0.s8 %v4993
        %v4995 = vlaneseq
        %v4996 = vshrl.u32 %v4995, 7
        %v4997 = vsub.s32 %v4994, %v4996
        %v4998 = vrot.slane %v4984, %v4997
        %v4999 = vcombine.low %v4929, %v4933
        %v5000 = vcombine.high %v4929, %v4933
        %v5002 = vunpack.c.l.s4 1983009808
        %v5003 = vunpack.c.0.s8 %v5002
        %v5004 = vlaneseq
        %v5005 = vshrl.u32 %v5004, 7
        %v5006 = vsub.s32 %v5003, %v5005
        %v5007 = vrot.slane %v4999, %v5006
        %v5009 = vunpack.c.l.s4 1983009808
        %v5010 = vunpack.c.0.s8 %v5009
        %v5011 = vlaneseq
        %v5012 = vshrl.u32 %v5011, 7
        %v5013 = vsub.s32 %v5010, %v5012
        %v5014 = vrot.slane %v5000, %v5013
        %v5015 = vcombine.low %v4959, %v4975
        %v5016 = vcombine.high %v4959, %v4975
        %v5018 = vunpack.c.l.s4 1934713408
        %v5019 = vunpack.c.0.s8 %v5018
        %v5020 = vlaneseq
        %v5021 = vshrl.u32 %v5020, 7
        %v5022 = vsub.s32 %v5019, %v5021
        %v5023 = vrot.slane %v5015, %v5022
        %v5025 = vunpack.c.l.s4 1934713408
        %v5026 = vunpack.c.0.s8 %v5025
        %v5027 = vlaneseq
        %v5028 = vshrl.u32 %v5027, 7
        %v5029 = vsub.s32 %v5026, %v5028
        %v5030 = vrot.slane %v5016, %v5029
        %v5031 = vcombine.low %v4966, %v4982
        %v5032 = vcombine.high %v4966, %v4982
        %v5034 = vunpack.c.l.s4 1934713408
        %v5035 = vunpack.c.0.s8 %v5034
        %v5036 = vlaneseq
        %v5037 = vshrl.u32 %v5036, 7
        %v5038 = vsub.s32 %v5035, %v5037
        %v5039 = vrot.slane %v5031, %v5038
        %v5041 = vunpack.c.l.s4 1934713408
        %v5042 = vunpack.c.0.s8 %v5041
        %v5043 = vlaneseq
        %v5044 = vshrl.u32 %v5043, 7
        %v5045 = vsub.s32 %v5042, %v5044
        %v5046 = vrot.slane %v5032, %v5045
        %v5047 = vcombine.low %v4991, %v5007
        %v5048 = vcombine.high %v4991, %v5007
        %v5050 = vunpack.c.l.s4 1934713408
        %v5051 = vunpack.c.0.s8 %v5050
        %v5052 = vlaneseq
        %v5053 = vshrl.u32 %v5052, 7
        %v5054 = vsub.s32 %v5051, %v5053
        %v5055 = vrot.slane %v5047, %v5054
        %v5057 = vunpack.c.l.s4 1934713408
        %v5058 = vunpack.c.0.s8 %v5057
        %v5059 = vlaneseq
        %v5060 = vshrl.u32 %v5059, 7
        %v5061 = vsub.s32 %v5058, %v5060
        %v5062 = vrot.slane %v5048, %v5061
        %v5063 = vcombine.low %v4998, %v5014
        %v5064 = vcombine.high %v4998, %v5014
        %v5066 = vunpack.c.l.s4 1934713408
        %v5067 = vunpack.c.0.s8 %v5066
        %v5068 = vlaneseq
        %v5069 = vshrl.u32 %v5068, 7
        %v5070 = vsub.s32 %v5067, %v5069
        %v5071 = vrot.slane %v5063, %v5070
        %v5073 = vunpack.c.l.s4 1934713408
        %v5074 = vunpack.c.0.s8 %v5073
        %v5075 = vlaneseq
        %v5076 = vshrl.u32 %v5075, 7
        %v5077 = vsub.s32 %v5074, %v5076
        %v5078 = vrot.slane %v5064, %v5077
        %v5079 = vcombine.low %v5023, %v5055
        %v5080 = vcombine.high %v5023, %v5055
        %v5081 = vcombine.low %v5030, %v5062
        %v5082 = vcombine.high %v5030, %v5062
        %v5083 = vcombine.low %v5039, %v5071
        %v5084 = vcombine.high %v5039, %v5071
        %v5085 = vcombine.low %v5046, %v5078
        %v5086 = vcombine.high %v5046, %v5078
        %v5087 = vcombine.low %v4935, %v4939
        %v5088 = vcombine.high %v4935, %v4939
        %v5090 = vunpack.c.l.s4 1983009808
        %v5091 = vunpack.c.0.s8 %v5090
        %v5092 = vlaneseq
        %v5093 = vshrl.u32 %v5092, 7
        %v5094 = vsub.s32 %v5091, %v5093
        %v5095 = vrot.slane %v5087, %v5094
        %v5097 = vunpack.c.l.s4 1983009808
        %v5098 = vunpack.c.0.s8 %v5097
        %v5099 = vlaneseq
        %v5100 = vshrl.u32 %v5099, 7
        %v5101 = vsub.s32 %v5098, %v5100
        %v5102 = vrot.slane %v5088, %v5101
        %v5103 = vcombine.low %v4937, %v4941
        %v5104 = vcombine.high %v4937, %v4941
        %v5106 = vunpack.c.l.s4 1983009808
        %v5107 = vunpack.c.0.s8 %v5106
        %v5108 = vlaneseq
        %v5109 = vshrl.u32 %v5108, 7
        %v5110 = vsub.s32 %v5107, %v5109
        %v5111 = vrot.slane %v5103, %v5110
        %v5113 = vunpack.c.l.s4 1983009808
        %v5114 = vunpack.c.0.s8 %v5113
        %v5115 = vlaneseq
        %v5116 = vshrl.u32 %v5115, 7
        %v5117 = vsub.s32 %v5114, %v5116
        %v5118 = vrot.slane %v5104, %v5117
        %v5119 = vcombine.low %v4943, %v4947
        %v5120 = vcombine.high %v4943, %v4947
        %v5122 = vunpack.c.l.s4 1983009808
        %v5123 = vunpack.c.0.s8 %v5122
        %v5124 = vlaneseq
        %v5125 = vshrl.u32 %v5124, 7
        %v5126 = vsub.s32 %v5123, %v5125
        %v5127 = vrot.slane %v5119, %v5126
        %v5129 = vunpack.c.l.s4 1983009808
        %v5130 = vunpack.c.0.s8 %v5129
        %v5131 = vlaneseq
        %v5132 = vshrl.u32 %v5131, 7
        %v5133 = vsub.s32 %v5130, %v5132
        %v5134 = vrot.slane %v5120, %v5133
        %v5135 = vcombine.low %v4945, %v4949
        %v5136 = vcombine.high %v4945, %v4949
        %v5138 = vunpack.c.l.s4 1983009808
        %v5139 = vunpack.c.0.s8 %v5138
        %v5140 = vlaneseq
        %v5141 = vshrl.u32 %v5140, 7
        %v5142 = vsub.s32 %v5139, %v5141
        %v5143 = vrot.slane %v5135, %v5142
        %v5145 = vunpack.c.l.s4 1983009808
        %v5146 = vunpack.c.0.s8 %v5145
        %v5147 = vlaneseq
        %v5148 = vshrl.u32 %v5147, 7
        %v5149 = vsub.s32 %v5146, %v5148
        %v5150 = vrot.slane %v5136, %v5149
        %v5151 = vcombine.low %v5095, %v5111
        %v5152 = vcombine.high %v5095, %v5111
        %v5154 = vunpack.c.l.s4 1934713408
        %v5155 = vunpack.c.0.s8 %v5154
        %v5156 = vlaneseq
        %v5157 = vshrl.u32 %v5156, 7
        %v5158 = vsub.s32 %v5155, %v5157
        %v5159 = vrot.slane %v5151, %v5158
        %v5161 = vunpack.c.l.s4 1934713408
        %v5162 = vunpack.c.0.s8 %v5161
        %v5163 = vlaneseq
        %v5164 = vshrl.u32 %v5163, 7
        %v5165 = vsub.s32 %v5162, %v5164
        %v5166 = vrot.slane %v5152, %v5165
        %v5167 = vcombine.low %v5102, %v5118
        %v5168 = vcombine.high %v5102, %v5118
        %v5170 = vunpack.c.l.s4 1934713408
        %v5171 = vunpack.c.0.s8 %v5170
        %v5172 = vlaneseq
        %v5173 = vshrl.u32 %v5172, 7
        %v5174 = vsub.s32 %v5171, %v5173
        %v5175 = vrot.slane %v5167, %v5174
        %v5177 = vunpack.c.l.s4 1934713408
        %v5178 = vunpack.c.0.s8 %v5177
        %v5179 = vlaneseq
        %v5180 = vshrl.u32 %v5179, 7
        %v5181 = vsub.s32 %v5178, %v5180
        %v5182 = vrot.slane %v5168, %v5181
        %v5183 = vcombine.low %v5127, %v5143
        %v5184 = vcombine.high %v5127, %v5143
        %v5186 = vunpack.c.l.s4 1934713408
        %v5187 = vunpack.c.0.s8 %v5186
        %v5188 = vlaneseq
        %v5189 = vshrl.u32 %v5188, 7
        %v5190 = vsub.s32 %v5187, %v5189
        %v5191 = vrot.slane %v5183, %v5190
        %v5193 = vunpack.c.l.s4 1934713408
        %v5194 = vunpack.c.0.s8 %v5193
        %v5195 = vlaneseq
        %v5196 = vshrl.u32 %v5195, 7
        %v5197 = vsub.s32 %v5194, %v5196
        %v5198 = vrot.slane %v5184, %v5197
        %v5199 = vcombine.low %v5134, %v5150
        %v5200 = vcombine.high %v5134, %v5150
        %v5202 = vunpack.c.l.s4 1934713408
        %v5203 = vunpack.c.0.s8 %v5202
        %v5204 = vlaneseq
        %v5205 = vshrl.u32 %v5204, 7
        %v5206 = vsub.s32 %v5203, %v5205
        %v5207 = vrot.slane %v5199, %v5206
        %v5209 = vunpack.c.l.s4 1934713408
        %v5210 = vunpack.c.0.s8 %v5209
        %v5211 = vlaneseq
        %v5212 = vshrl.u32 %v5211, 7
        %v5213 = vsub.s32 %v5210, %v5212
        %v5214 = vrot.slane %v5200, %v5213
        %v5215 = vcombine.low %v5159, %v5191
        %v5216 = vcombine.high %v5159, %v5191
        %v5217 = vcombine.low %v5166, %v5198
        %v5218 = vcombine.high %v5166, %v5198
        %v5219 = vcombine.low %v5175, %v5207
        %v5220 = vcombine.high %v5175, %v5207
        %v5221 = vcombine.low %v5182, %v5214
        %v5222 = vcombine.high %v5182, %v5214
        %v5223 = vcombine.low %v4920, %v4924
        %v5224 = vcombine.high %v4920, %v4924
        %v5226 = vunpack.c.l.s4 1983009808
        %v5227 = vunpack.c.0.s8 %v5226
        %v5228 = vlaneseq
        %v5229 = vshrl.u32 %v5228, 7
        %v5230 = vsub.s32 %v5227, %v5229
        %v5231 = vrot.slane %v5223, %v5230
        %v5233 = vunpack.c.l.s4 1983009808
        %v5234 = vunpack.c.0.s8 %v5233
        %v5235 = vlaneseq
        %v5236 = vshrl.u32 %v5235, 7
        %v5237 = vsub.s32 %v5234, %v5236
        %v5238 = vrot.slane %v5224, %v5237
        %v5239 = vcombine.low %v4922, %v4926
        %v5240 = vcombine.high %v4922, %v4926
        %v5242 = vunpack.c.l.s4 1983009808
        %v5243 = vunpack.c.0.s8 %v5242
        %v5244 = vlaneseq
        %v5245 = vshrl.u32 %v5244, 7
        %v5246 = vsub.s32 %v5243, %v5245
        %v5247 = vrot.slane %v5239, %v5246
        %v5249 = vunpack.c.l.s4 1983009808
        %v5250 = vunpack.c.0.s8 %v5249
        %v5251 = vlaneseq
        %v5252 = vshrl.u32 %v5251, 7
        %v5253 = vsub.s32 %v5250, %v5252
        %v5254 = vrot.slane %v5240, %v5253
        %v5255 = vcombine.low %v4928, %v4932
        %v5256 = vcombine.high %v4928, %v4932
        %v5258 = vunpack.c.l.s4 1983009808
        %v5259 = vunpack.c.0.s8 %v5258
        %v5260 = vlaneseq
        %v5261 = vshrl.u32 %v5260, 7
        %v5262 = vsub.s32 %v5259, %v5261
        %v5263 = vrot.slane %v5255, %v5262
        %v5265 = vunpack.c.l.s4 1983009808
        %v5266 = vunpack.c.0.s8 %v5265
        %v5267 = vlaneseq
        %v5268 = vshrl.u32 %v5267, 7
        %v5269 = vsub.s32 %v5266, %v5268
        %v5270 = vrot.slane %v5256, %v5269
        %v5271 = vcombine.low %v4930, %v4934
        %v5272 = vcombine.high %v4930, %v4934
        %v5274 = vunpack.c.l.s4 1983009808
        %v5275 = vunpack.c.0.s8 %v5274
        %v5276 = vlaneseq
        %v5277 = vshrl.u32 %v5276, 7
        %v5278 = vsub.s32 %v5275, %v5277
        %v5279 = vrot.slane %v5271, %v5278
        %v5281 = vunpack.c.l.s4 1983009808
        %v5282 = vunpack.c.0.s8 %v5281
        %v5283 = vlaneseq
        %v5284 = vshrl.u32 %v5283, 7
        %v5285 = vsub.s32 %v5282, %v5284
        %v5286 = vrot.slane %v5272, %v5285
        %v5287 = vcombine.low %v5231, %v5247
        %v5288 = vcombine.high %v5231, %v5247
        %v5290 = vunpack.c.l.s4 1934713408
        %v5291 = vunpack.c.0.s8 %v5290
        %v5292 = vlaneseq
        %v5293 = vshrl.u32 %v5292, 7
        %v5294 = vsub.s32 %v5291, %v5293
        %v5295 = vrot.slane %v5287, %v5294
        %v5297 = vunpack.c.l.s4 1934713408
        %v5298 = vunpack.c.0.s8 %v5297
        %v5299 = vlaneseq
        %v5300 = vshrl.u32 %v5299, 7
        %v5301 = vsub.s32 %v5298, %v5300
        %v5302 = vrot.slane %v5288, %v5301
        %v5303 = vcombine.low %v5238, %v5254
        %v5304 = vcombine.high %v5238, %v5254
        %v5306 = vunpack.c.l.s4 1934713408
        %v5307 = vunpack.c.0.s8 %v5306
        %v5308 = vlaneseq
        %v5309 = vshrl.u32 %v5308, 7
        %v5310 = vsub.s32 %v5307, %v5309
        %v5311 = vrot.slane %v5303, %v5310
        %v5313 = vunpack.c.l.s4 1934713408
        %v5314 = vunpack.c.0.s8 %v5313
        %v5315 = vlaneseq
        %v5316 = vshrl.u32 %v5315, 7
        %v5317 = vsub.s32 %v5314, %v5316
        %v5318 = vrot.slane %v5304, %v5317
        %v5319 = vcombine.low %v5263, %v5279
        %v5320 = vcombine.high %v5263, %v5279
        %v5322 = vunpack.c.l.s4 1934713408
        %v5323 = vunpack.c.0.s8 %v5322
        %v5324 = vlaneseq
        %v5325 = vshrl.u32 %v5324, 7
        %v5326 = vsub.s32 %v5323, %v5325
        %v5327 = vrot.slane %v5319, %v5326
        %v5329 = vunpack.c.l.s4 1934713408
        %v5330 = vunpack.c.0.s8 %v5329
        %v5331 = vlaneseq
        %v5332 = vshrl.u32 %v5331, 7
        %v5333 = vsub.s32 %v5330, %v5332
        %v5334 = vrot.slane %v5320, %v5333
        %v5335 = vcombine.low %v5270, %v5286
        %v5336 = vcombine.high %v5270, %v5286
        %v5338 = vunpack.c.l.s4 1934713408
        %v5339 = vunpack.c.0.s8 %v5338
        %v5340 = vlaneseq
        %v5341 = vshrl.u32 %v5340, 7
        %v5342 = vsub.s32 %v5339, %v5341
        %v5343 = vrot.slane %v5335, %v5342
        %v5345 = vunpack.c.l.s4 1934713408
        %v5346 = vunpack.c.0.s8 %v5345
        %v5347 = vlaneseq
        %v5348 = vshrl.u32 %v5347, 7
        %v5349 = vsub.s32 %v5346, %v5348
        %v5350 = vrot.slane %v5336, %v5349
        %v5351 = vcombine.low %v5295, %v5327
        %v5352 = vcombine.high %v5295, %v5327
        %v5353 = vcombine.low %v5302, %v5334
        %v5354 = vcombine.high %v5302, %v5334
        %v5355 = vcombine.low %v5311, %v5343
        %v5356 = vcombine.high %v5311, %v5343
        %v5357 = vcombine.low %v5318, %v5350
        %v5358 = vcombine.high %v5318, %v5350
        %v5359 = vcombine.low %v4936, %v4940
        %v5360 = vcombine.high %v4936, %v4940
        %v5362 = vunpack.c.l.s4 1983009808
        %v5363 = vunpack.c.0.s8 %v5362
        %v5364 = vlaneseq
        %v5365 = vshrl.u32 %v5364, 7
        %v5366 = vsub.s32 %v5363, %v5365
        %v5367 = vrot.slane %v5359, %v5366
        %v5369 = vunpack.c.l.s4 1983009808
        %v5370 = vunpack.c.0.s8 %v5369
        %v5371 = vlaneseq
        %v5372 = vshrl.u32 %v5371, 7
        %v5373 = vsub.s32 %v5370, %v5372
        %v5374 = vrot.slane %v5360, %v5373
        %v5375 = vcombine.low %v4938, %v4942
        %v5376 = vcombine.high %v4938, %v4942
        %v5378 = vunpack.c.l.s4 1983009808
        %v5379 = vunpack.c.0.s8 %v5378
        %v5380 = vlaneseq
        %v5381 = vshrl.u32 %v5380, 7
        %v5382 = vsub.s32 %v5379, %v5381
        %v5383 = vrot.slane %v5375, %v5382
        %v5385 = vunpack.c.l.s4 1983009808
        %v5386 = vunpack.c.0.s8 %v5385
        %v5387 = vlaneseq
        %v5388 = vshrl.u32 %v5387, 7
        %v5389 = vsub.s32 %v5386, %v5388
        %v5390 = vrot.slane %v5376, %v5389
        %v5391 = vcombine.low %v4944, %v4948
        %v5392 = vcombine.high %v4944, %v4948
        %v5394 = vunpack.c.l.s4 1983009808
        %v5395 = vunpack.c.0.s8 %v5394
        %v5396 = vlaneseq
        %v5397 = vshrl.u32 %v5396, 7
        %v5398 = vsub.s32 %v5395, %v5397
        %v5399 = vrot.slane %v5391, %v5398
        %v5401 = vunpack.c.l.s4 1983009808
        %v5402 = vunpack.c.0.s8 %v5401
        %v5403 = vlaneseq
        %v5404 = vshrl.u32 %v5403, 7
        %v5405 = vsub.s32 %v5402, %v5404
        %v5406 = vrot.slane %v5392, %v5405
        %v5407 = vcombine.low %v4946, %v4950
        %v5408 = vcombine.high %v4946, %v4950
        %v5410 = vunpack.c.l.s4 1983009808
        %v5411 = vunpack.c.0.s8 %v5410
        %v5412 = vlaneseq
        %v5413 = vshrl.u32 %v5412, 7
        %v5414 = vsub.s32 %v5411, %v5413
        %v5415 = vrot.slane %v5407, %v5414
        %v5417 = vunpack.c.l.s4 1983009808
        %v5418 = vunpack.c.0.s8 %v5417
        %v5419 = vlaneseq
        %v5420 = vshrl.u32 %v5419, 7
        %v5421 = vsub.s32 %v5418, %v5420
        %v5422 = vrot.slane %v5408, %v5421
        %v5423 = vcombine.low %v5367, %v5383
        %v5424 = vcombine.high %v5367, %v5383
        %v5426 = vunpack.c.l.s4 1934713408
        %v5427 = vunpack.c.0.s8 %v5426
        %v5428 = vlaneseq
        %v5429 = vshrl.u32 %v5428, 7
        %v5430 = vsub.s32 %v5427, %v5429
        %v5431 = vrot.slane %v5423, %v5430
        %v5433 = vunpack.c.l.s4 1934713408
        %v5434 = vunpack.c.0.s8 %v5433
        %v5435 = vlaneseq
        %v5436 = vshrl.u32 %v5435, 7
        %v5437 = vsub.s32 %v5434, %v5436
        %v5438 = vrot.slane %v5424, %v5437
        %v5439 = vcombine.low %v5374, %v5390
        %v5440 = vcombine.high %v5374, %v5390
        %v5442 = vunpack.c.l.s4 1934713408
        %v5443 = vunpack.c.0.s8 %v5442
        %v5444 = vlaneseq
        %v5445 = vshrl.u32 %v5444, 7
        %v5446 = vsub.s32 %v5443, %v5445
        %v5447 = vrot.slane %v5439, %v5446
        %v5449 = vunpack.c.l.s4 1934713408
        %v5450 = vunpack.c.0.s8 %v5449
        %v5451 = vlaneseq
        %v5452 = vshrl.u32 %v5451, 7
        %v5453 = vsub.s32 %v5450, %v5452
        %v5454 = vrot.slane %v5440, %v5453
        %v5455 = vcombine.low %v5399, %v5415
        %v5456 = vcombine.high %v5399, %v5415
        %v5458 = vunpack.c.l.s4 1934713408
        %v5459 = vunpack.c.0.s8 %v5458
        %v5460 = vlaneseq
        %v5461 = vshrl.u32 %v5460, 7
        %v5462 = vsub.s32 %v5459, %v5461
        %v5463 = vrot.slane %v5455, %v5462
        %v5465 = vunpack.c.l.s4 1934713408
        %v5466 = vunpack.c.0.s8 %v5465
        %v5467 = vlaneseq
        %v5468 = vshrl.u32 %v5467, 7
        %v5469 = vsub.s32 %v5466, %v5468
        %v5470 = vrot.slane %v5456, %v5469
        %v5471 = vcombine.low %v5406, %v5422
        %v5472 = vcombine.high %v5406, %v5422
        %v5474 = vunpack.c.l.s4 1934713408
        %v5475 = vunpack.c.0.s8 %v5474
        %v5476 = vlaneseq
        %v5477 = vshrl.u32 %v5476, 7
        %v5478 = vsub.s32 %v5475, %v5477
        %v5479 = vrot.slane %v5471, %v5478
        %v5481 = vunpack.c.l.s4 1934713408
        %v5482 = vunpack.c.0.s8 %v5481
        %v5483 = vlaneseq
        %v5484 = vshrl.u32 %v5483, 7
        %v5485 = vsub.s32 %v5482, %v5484
        %v5486 = vrot.slane %v5472, %v5485
        %v5487 = vcombine.low %v5431, %v5463
        %v5488 = vcombine.high %v5431, %v5463
        %v5489 = vcombine.low %v5438, %v5470
        %v5490 = vcombine.high %v5438, %v5470
        %v5491 = vcombine.low %v5447, %v5479
        %v5492 = vcombine.high %v5447, %v5479
        %v5493 = vcombine.low %v5454, %v5486
        %v5494 = vcombine.high %v5454, %v5486
        %5497 = vrot.lane.b32.xlu0 %v5080, 8
        %v5498 = vpop.permute.xlu0 %5497
        %5499 = vrot.lane.b32.xlu0 %v5216, 8
        %v5500 = vpop.permute.xlu0 %5499
        %5505 = vrot.lane.b32.xlu0 %v5081, 16
        %v5506 = vpop.permute.xlu0 %5505
        %5507 = vrot.lane.b32.xlu0 %v5217, 16
        %v5508 = vpop.permute.xlu0 %5507
        %5513 = vrot.lane.b32.xlu0 %v5082, 24
        %v5514 = vpop.permute.xlu0 %5513
        %5515 = vrot.lane.b32.xlu0 %v5218, 24
        %v5516 = vpop.permute.xlu0 %5515
        %5521 = vrot.lane.b32.xlu0 %v5083, 32
        %v5522 = vpop.permute.xlu0 %5521
        %5523 = vrot.lane.b32.xlu0 %v5219, 32
        %v5524 = vpop.permute.xlu0 %5523
        %5529 = vrot.lane.b32.xlu0 %v5084, 40
        %v5530 = vpop.permute.xlu0 %5529
        %5531 = vrot.lane.b32.xlu0 %v5220, 40
        %v5532 = vpop.permute.xlu0 %5531
        %5537 = vrot.lane.b32.xlu0 %v5085, 48
        %v5538 = vpop.permute.xlu0 %5537
        %5539 = vrot.lane.b32.xlu0 %v5221, 48
        %v5540 = vpop.permute.xlu0 %5539
        %5545 = vrot.lane.b32.xlu0 %v5086, 56
        %v5546 = vpop.permute.xlu0 %5545
        %5547 = vrot.lane.b32.xlu0 %v5222, 56
        %v5548 = vpop.permute.xlu0 %5547
        %5553 = vrot.lane.b32.xlu0 %v5351, 64
        %v5554 = vpop.permute.xlu0 %5553
        %5555 = vrot.lane.b32.xlu0 %v5487, 64
        %v5556 = vpop.permute.xlu0 %5555
        %5561 = vrot.lane.b32.xlu0 %v5352, 72
        %v5562 = vpop.permute.xlu0 %5561
        %5563 = vrot.lane.b32.xlu0 %v5488, 72
        %v5564 = vpop.permute.xlu0 %5563
        %5569 = vrot.lane.b32.xlu0 %v5353, 80
        %v5570 = vpop.permute.xlu0 %5569
        %5571 = vrot.lane.b32.xlu0 %v5489, 80
        %v5572 = vpop.permute.xlu0 %5571
        %5577 = vrot.lane.b32.xlu0 %v5354, 88
        %v5578 = vpop.permute.xlu0 %5577
        %5579 = vrot.lane.b32.xlu0 %v5490, 88
        %v5580 = vpop.permute.xlu0 %5579
        %5585 = vrot.lane.b32.xlu0 %v5355, 96
        %v5586 = vpop.permute.xlu0 %5585
        %5587 = vrot.lane.b32.xlu0 %v5491, 96
        %v5588 = vpop.permute.xlu0 %5587
        %5593 = vrot.lane.b32.xlu0 %v5356, 104
        %v5594 = vpop.permute.xlu0 %5593
        %5595 = vrot.lane.b32.xlu0 %v5492, 104
        %v5596 = vpop.permute.xlu0 %5595
        %5601 = vrot.lane.b32.xlu0 %v5357, 112
        %v5602 = vpop.permute.xlu0 %5601
        %5603 = vrot.lane.b32.xlu0 %v5493, 112
        %v5604 = vpop.permute.xlu0 %5603
        %5609 = vrot.lane.b32.xlu0 %v5358, 120
        %v5610 = vpop.permute.xlu0 %5609
        %5611 = vrot.lane.b32.xlu0 %v5494, 120
        %v5612 = vpop.permute.xlu0 %5611
        %vm5615 = vcmask 64512
        %v5616 = vsel %vm5615, %v5079, %v5498
        %v5617 = vsel %vm5615, %v5215, %v5500
        %vm5618 = vcmask 130048
        %v5619 = vsel %vm5618, %v5616, %v5506
        %v5620 = vsel %vm5618, %v5617, %v5508
        %vm5621 = vcmask 195584
        %v5622 = vsel %vm5621, %v5619, %v5514
        %v5623 = vsel %vm5621, %v5620, %v5516
        %vm5624 = vcmask 261120
        %v5625 = vsel %vm5624, %v5622, %v5522
        %v5626 = vsel %vm5624, %v5623, %v5524
        %vm5627 = vcmask 326656
        %v5628 = vsel %vm5627, %v5625, %v5530
        %v5629 = vsel %vm5627, %v5626, %v5532
        %vm5630 = vcmask 392192
        %v5631 = vsel %vm5630, %v5628, %v5538
        %v5632 = vsel %vm5630, %v5629, %v5540
        %vm5633 = vcmask 457728
        %v5634 = vsel %vm5633, %v5631, %v5546
        %v5635 = vsel %vm5633, %v5632, %v5548
        %vm5636 = vcmask 523264
        %v5637 = vsel %vm5636, %v5634, %v5554
        %v5638 = vsel %vm5636, %v5635, %v5556
        %vm5639 = vcmask 588800
        %v5640 = vsel %vm5639, %v5637, %v5562
        %v5641 = vsel %vm5639, %v5638, %v5564
        %vm5642 = vcmask 654336
        %v5643 = vsel %vm5642, %v5640, %v5570
        %v5644 = vsel %vm5642, %v5641, %v5572
        %vm5645 = vcmask 719872
        %v5646 = vsel %vm5645, %v5643, %v5578
        %v5647 = vsel %vm5645, %v5644, %v5580
        %vm5648 = vcmask 785408
        %v5649 = vsel %vm5648, %v5646, %v5586
        %v5650 = vsel %vm5648, %v5647, %v5588
        %vm5651 = vcmask 850944
        %v5652 = vsel %vm5651, %v5649, %v5594
        %v5653 = vsel %vm5651, %v5650, %v5596
        %vm5654 = vcmask 916480
        %v5655 = vsel %vm5654, %v5652, %v5602
        %v5656 = vsel %vm5654, %v5653, %v5604
        %vm5657 = vcmask 982016
        %v5658 = vsel %vm5657, %v5655, %v5610
        %v5659 = vsel %vm5657, %v5656, %v5612
        %5660 = vst [vmem:[%s269] sm:$0xff] %v5658
        %5661 = vst [vmem:[%s269 + $0x8] sm:$0xff] %v5659
        %s5662 = sand.u32 %s134, 1
        %s5663 = scalar_lea.sflag [#allocation4], %s5662
        %s5664 = sand.u32 %s134, 1
        %s5665 = smul.addr %s5664, 16
        %s5666 = scalar_lea.vmem [#allocation10], %s5665
        // Predicated region
        $region53: #{tpu_custom_call.1} parent=35 // pred_check
          %p5667 = pneg %p144
        $region54: #{tpu_custom_call.1} parent=35 // pred_check_branch
          %5669 = sbr.rel (%p5667) target = $region56
        $region55: #{tpu_custom_call.1} parent=35 // pred_region
          %s5670 = smul.u32 2, %s28
          %s5672 = ssub.s32 256, 256
          %5673 = vsyncadd %s5663, %s5672
          %s5674 = smul.addr %s27, 2
          %s5675 = sadd.s32 %s5670, %s5674
          %s5676 = smul.addr %s5675, 128
          %s5677 = scalar_lea.hbm %s4, %s5676
          %s5678 = sshll.u32 %s5666, 4
          %s5679 = int_to_ptr.vmem [resolvable:$true] %s5678
          %5684 = dma.vmem_to_hbm [thread:$0]  %s5679, 256, %s5677, %s5663, 128, 128, 8
        $region56: #{tpu_custom_call.1} parent=35 // pred_fallthru
          _
      $region36: #{tpu_custom_call.1} parent=5 // pred_fallthru
        _
      %p5685 = scmp.le.s32.totalorder 2, %s18
      // Predicated region
      $region57: #{tpu_custom_call.1} parent=5 // pred_check
        %p5686 = pneg %p5685
      $region58: #{tpu_custom_call.1} parent=5 // pred_check_branch
        %5688 = sbr.rel (%p5686) target = $region60
      $region59: #{tpu_custom_call.1} parent=5 // pred_region
        %s5689 = ssub.s32 %s18, 2
        // Predicated region
        $region61: #{tpu_custom_call.1} parent=59 // pred_check
          %p5690 = pneg %p150
        $region62: #{tpu_custom_call.1} parent=59 // pred_check_branch
          %5692 = sbr.rel (%p5690) target = $region64
        $region63: #{tpu_custom_call.1} parent=59 // pred_region
          %s5693 = sand.u32 %s135, 1
          %s5694 = scalar_lea.sflag [#allocation4], %s5693
          %s5695 = sand.u32 %s135, 1
          %s5696 = smul.addr %s5695, 16
          %s5697 = scalar_lea.vmem [#allocation10], %s5696
          %5698 = dma.done %s5694, 256
        $region64: #{tpu_custom_call.1} parent=59 // pred_fallthru
          _
      $region60: #{tpu_custom_call.1} parent=5 // pred_fallthru
        _
    $region6: #{tpu_custom_call.1} parent=1 // loop_footer
      %s22 = sadd.s32 1, %s18
    $region7: #{tpu_custom_call.1} parent=1 // loop_footer_branch
      %17 = sbr.rel target = $region3
    $region8: #{tpu_custom_call.1} parent=1 // loop_exit
      _
    %5699 = vsyncpa [#allocation3], 1
    %s5700 = scalar_lea.sflag [#allocation3], 1
    %5701 = vsyncpa %s5700, 1
    %5702 = vsyncpa [#allocation6], 1
    %5703 = vsyncpa [#allocation9], 1
    %5704 = vsyncpa [#allocation4], 1
    %s5705 = scalar_lea.sflag [#allocation4], 1
    %5706 = vsyncpa %s5705, 1

// kernel: tpu_custom_call.1
$region0: #{tpu_custom_call.1}
  #allocation0 [shape = 'u32[]', space=smem, size = 0x4, offset = 0x4, fixed_abs, tag = 'smem constant byte address 0x4 - core index']
  #allocation1 [shape = 'u32[144,128]{1,0:T(1,128)}', space=vmem, size = 0x12000, scoped, tag = 'internal scratch']
  %s0 = inlined_call_operand.hbm [shape: bf16[2,18,18,4], index: 0, kind: input, shape index: {}]
  %s1 = inlined_call_operand.hbm [shape: bf16[3,3,4,8], index: 1, kind: input, shape index: {}]
  %s2 = inlined_call_operand.hbm [shape: f32[1,1,8], index: 2, kind: input, shape index: {}]
  %s3 = inlined_call_operand.hbm [shape: f32[1,1,8], index: 3, kind: input, shape index: {}]
  %s4 = inlined_call_operand.hbm [shape: f32[2,16,16,8], index: 4, kind: output, shape index: {}]
  %s5 = sld [smem:[#allocation0]]
  $region65: #{tpu_custom_call.1} parent=0
    _
  %s7 = ssub.s32 1, %s5
  %s8 = scalar_select 0, %s7, %s5
  $region1: #{tpu_custom_call.1} parent=0
    #allocation2 [shape = 'u8[221184]{0}', space=vmem, size = 0x36000, scoped, tag = 'input window, operand 0']
    #allocation3 [shape = 's32[2]{0}', space=sflag, size = 0x8, scoped, tag = 'scoped memory for tpu_custom_call.1']
    #allocation4 [shape = 's32[2]{0}', space=sflag, size = 0x8, scoped, tag = 'scoped memory for tpu_custom_call.1']
    #allocation5 [shape = 'u8[9216]{0}', space=vmem, size = 0x2400, scoped, tag = 'input window, operand 1, single buffered']
    #allocation6 [shape = 's32[1]{0}', space=sflag, size = 0x4, scoped, tag = 'scoped memory for tpu_custom_call.1']
    #allocation7 [shape = 'u8[512]{0}', space=vmem, size = 0x400, scoped, tag = 'input window, operand 2, single buffered']
    #allocation8 [shape = 'u8[512]{0}', space=vmem, size = 0x400, scoped, tag = 'input window, operand 3, single buffered']
    #allocation9 [shape = 's32[1]{0}', space=sflag, size = 0x4, scoped, tag = 'scoped memory for tpu_custom_call.1']
    #allocation10 [shape = 'u8[262144]{0}', space=vmem, size = 0x40000, scoped, tag = 'output window, operand 0']
    %9 = vsyncpa [#allocation3], 0
    %s10 = scalar_lea.sflag [#allocation3], 1
    %11 = vsyncpa %s10, 0
    %12 = vsyncpa [#allocation6], 0
    %13 = vsyncpa [#allocation9], 0
    %14 = vsyncpa [#allocation4], 0
    %s15 = scalar_lea.sflag [#allocation4], 1
    %16 = vsyncpa %s15, 0
    loop: start=0, step=1, limit=4
    $region2: #{tpu_custom_call.1} parent=1 // loop_pre_header
      _
    $region3: #{tpu_custom_call.1} parent=1 // loop_header
      %s18 = sphi 0, %s22
      %p19 = scmp.ge.s32.totalorder %s18, 4
      %s25 = sphi 0, %s37
      %s26 = sphi 0, %s33
      %s27 = sphi 0, %s25
      %s28 = sphi 0, %s26
      %s29 = sphi 0, %s27
      %s30 = sphi 0, %s28
      %s40 = sphi 0, %s42
      %s43 = sphi 0, %s40
      %s44 = sphi 0, %s43
      %s60 = sphi 0, %s44
      %s64 = sphi 0, %s64
      %s66 = sphi 0, %s64
      %s67 = sphi 0, %s66
      %s81 = sphi 0, %s67
      %s85 = sphi 0, %s85
      %s87 = sphi 0, %s85
      %s88 = sphi 0, %s87
      %s102 = sphi 0, %s88
      %s106 = sphi 0, %s106
      %s108 = sphi 0, %s106
      %s109 = sphi 0, %s108
      %s123 = sphi 0, %s109
      %s131 = sphi 0, %s133
      %s134 = sphi 0, %s131
      %s135 = sphi 0, %s134
      %s151 = sphi 0, %s135
    $region4: #{tpu_custom_call.1} parent=1 // loop_header_branch
      %21 = sbr.rel (%p19) target = $region8
    $region5: #{tpu_custom_call.1} parent=1 // loop_body
      %s23 = ssub.s32 %s18, 1
      %s24 = ssub.s32 %s18, 2
      %s31 = sadd.s32 1, %s26
      %p32 = scmp.ge.s32.totalorder %s31, 1
      %s33 = scalar_select %p32, 0, %s31
      %s34 = sadd.s32 1, %s25
      %s35 = scalar_select %p32, %s34, %s25
      %p36 = scmp.ge.s32.totalorder %s35, 2
      %s37 = scalar_select %p36, 0, %s35
      %s38 = ssub.s32 %s25, %s37
      %p39 = scmp.eq.s32.totalorder %s38, 0
      %s41 = sadd.s32 %s40, 1
      %s42 = scalar_select %p39, %s40, %s41
      %p45 = pneg %p39
      %p46 = scmp.eq.s32.totalorder %s18, 1
      %p47 = por %p45, %p46
      %p48 = scmp.ne.s32.totalorder %s40, %s43
      %p49 = scmp.eq.s32.totalorder %s18, 0
      %p50 = por %p48, %p49
      %p51 = scmp.ne.s32.totalorder %s40, %s43
      %p52 = scmp.eq.s32.totalorder %s23, 1
      %p53 = por %p51, %p52
      %p54 = scmp.ne.s32.totalorder %s43, %s44
      %p55 = scmp.eq.s32.totalorder %s23, 0
      %p56 = por %p54, %p55
      %p57 = scmp.ne.s32.totalorder %s43, %s44
      %p58 = scmp.eq.s32.totalorder %s24, 1
      %p59 = por %p57, %p58
      %p61 = scmp.ne.s32.totalorder %s44, %s60
      %p62 = scmp.eq.s32.totalorder %s24, 0
      %p63 = por %p61, %p62
      %s65 = sadd.s32 %s64, 1
      %p68 = scmp.eq.s32.totalorder %s18, 1
      %p69 = scmp.ne.s32.totalorder %s64, %s66
      %p70 = scmp.eq.s32.totalorder %s18, 0
      %p71 = por %p69, %p70
      %p72 = scmp.ne.s32.totalorder %s64, %s66
      %p73 = scmp.eq.s32.totalorder %s23, 1
      %p74 = por %p72, %p73
      %p75 = scmp.ne.s32.totalorder %s66, %s67
      %p76 = scmp.eq.s32.totalorder %s23, 0
      %p77 = por %p75, %p76
      %p78 = scmp.ne.s32.totalorder %s66, %s67
      %p79 = scmp.eq.s32.totalorder %s24, 1
      %p80 = por %p78, %p79
      %p82 = scmp.ne.s32.totalorder %s67, %s81
      %p83 = scmp.eq.s32.totalorder %s24, 0
      %p84 = por %p82, %p83
      %s86 = sadd.s32 %s85, 1
      %p89 = scmp.eq.s32.totalorder %s18, 1
      %p90 = scmp.ne.s32.totalorder %s85, %s87
      %p91 = scmp.eq.s32.totalorder %s18, 0
      %p92 = por %p90, %p91
      %p93 = scmp.ne.s32.totalorder %s85, %s87
      %p94 = scmp.eq.s32.totalorder %s23, 1
      %p95 = por %p93, %p94
      %p96 = scmp.ne.s32.totalorder %s87, %s88
      %p97 = scmp.eq.s32.totalorder %s23, 0
      %p98 = por %p96, %p97
      %p99 = scmp.ne.s32.totalorder %s87, %s88
      %p100 = scmp.eq.s32.totalorder %s24, 1
      %p101 = por %p99, %p100
      %p103 = scmp.ne.s32.totalorder %s88, %s102
      %p104 = scmp.eq.s32.totalorder %s24, 0
      %p105 = por %p103, %p104
      %s107 = sadd.s32 %s106, 1
      %p110 = scmp.eq.s32.totalorder %s18, 1
      %p111 = scmp.ne.s32.totalorder %s106, %s108
      %p112 = scmp.eq.s32.totalorder %s18, 0
      %p113 = por %p111, %p112
      %p114 = scmp.ne.s32.totalorder %s106, %s108
      %p115 = scmp.eq.s32.totalorder %s23, 1
      %p116 = por %p114, %p115
      %p117 = scmp.ne.s32.totalorder %s108, %s109
      %p118 = scmp.eq.s32.totalorder %s23, 0
      %p119 = por %p117, %p118
      %p120 = scmp.ne.s32.totalorder %s108, %s109
      %p121 = scmp.eq.s32.totalorder %s24, 1
      %p122 = por %p120, %p121
      %p124 = scmp.ne.s32.totalorder %s109, %s123
      %p125 = scmp.eq.s32.totalorder %s24, 0
      %p126 = por %p124, %p125
      %s127 = ssub.s32 %s25, %s37
      %s128 = ssub.s32 %s26, %s33
      %s129 = sor.u32 %s127, %s128
      %p130 = scmp.eq.s32.totalorder %s129, 0
      %s132 = sadd.s32 %s131, 1
      %s133 = scalar_select %p130, %s131, %s132
      %p136 = pneg %p130
      %p137 = scmp.eq.s32.totalorder %s18, 1
      %p138 = por %p136, %p137
      %p139 = scmp.ne.s32.totalorder %s131, %s134
      %p140 = scmp.eq.s32.totalorder %s18, 0
      %p141 = por %p139, %p140
      %p142 = scmp.ne.s32.totalorder %s131, %s134
      %p143 = scmp.eq.s32.totalorder %s23, 1
      %p144 = por %p142, %p143
      %p145 = scmp.ne.s32.totalorder %s134, %s135
      %p146 = scmp.eq.s32.totalorder %s23, 0
      %p147 = por %p145, %p146
      %p148 = scmp.ne.s32.totalorder %s134, %s135
      %p149 = scmp.eq.s32.totalorder %s24, 1
      %p150 = por %p148, %p149
      %p152 = scmp.ne.s32.totalorder %s135, %s151
      %p153 = scmp.eq.s32.totalorder %s24, 0
      %p154 = por %p152, %p153
      %p155 = scmp.le.s32.totalorder 1, %s18
      %p156 = scmp.lt.s32.totalorder %s18, 3
      %p157 = pnand %p155, %p156
      %p158 = pneg %p157
      // Predicated region
      $region9: #{tpu_custom_call.1} parent=5 // pred_check
        _
      $region10: #{tpu_custom_call.1} parent=5 // pred_check_branch
        %160 = sbr.rel (%p157) target = $region12
      $region11: #{tpu_custom_call.1} parent=5 // pred_region
        %s161 = ssub.s32 %s18, 1
        // Predicated region
        $region13: #{tpu_custom_call.1} parent=11 // pred_check
          %p162 = pneg %p77
        $region14: #{tpu_custom_call.1} parent=11 // pred_check_branch
          %164 = sbr.rel (%p162) target = $region16
        $region15: #{tpu_custom_call.1} parent=11 // pred_region
          %s166 = ssub.s32 288, 288
          %167 = vsyncadd [#allocation6], %s166
          %s168 = sshll.u32 [#allocation5], 4
          %s169 = int_to_ptr.vmem [resolvable:$true] %s168
          %174 = dma.hbm_to_vmem [thread:$0]  %s1, 288, %s169, [#allocation6], 32, 32, 2
        $region16: #{tpu_custom_call.1} parent=11 // pred_fallthru
          _
        // Predicated region
        $region17: #{tpu_custom_call.1} parent=11 // pred_check
          %p175 = pneg %p98
        $region18: #{tpu_custom_call.1} parent=11 // pred_check_branch
          %177 = sbr.rel (%p175) target = $region20
        $region19: #{tpu_custom_call.1} parent=11 // pred_region
          %s179 = ssub.s32 16, 16
          %180 = vsyncadd [#allocation6], %s179
          %s182 = sshll.u32 [#allocation7], 4
          %s183 = int_to_ptr.vmem [resolvable:$true] %s182
          %185 = dma.hbm_to_vmem [thread:$0]  %s2, 16, %s183, [#allocation6]
        $region20: #{tpu_custom_call.1} parent=11 // pred_fallthru
          _
        // Predicated region
        $region21: #{tpu_custom_call.1} parent=11 // pred_check
          %p186 = pneg %p119
        $region22: #{tpu_custom_call.1} parent=11 // pred_check_branch
          %188 = sbr.rel (%p186) target = $region24
        $region23: #{tpu_custom_call.1} parent=11 // pred_region
          %s190 = ssub.s32 16, 16
          %191 = vsyncadd [#allocation9], %s190
          %s193 = sshll.u32 [#allocation8], 4
          %s194 = int_to_ptr.vmem [resolvable:$true] %s193
          %196 = dma.hbm_to_vmem [thread:$0]  %s3, 16, %s194, [#allocation9]
        $region24: #{tpu_custom_call.1} parent=11 // pred_fallthru
          _
      $region12: #{tpu_custom_call.1} parent=5 // pred_fallthru
        _
      %p197 = scmp.lt.s32.totalorder %s18, 2
      // Predicated region
      $region25: #{tpu_custom_call.1} parent=5 // pred_check
        %p198 = pneg %p197
      $region26: #{tpu_custom_call.1} parent=5 // pred_check_branch
        %200 = sbr.rel (%p198) target = $region28
      $region27: #{tpu_custom_call.1} parent=5 // pred_region
        // Predicated region
        $region29: #{tpu_custom_call.1} parent=27 // pred_check
          %p201 = pneg %p50
        $region30: #{tpu_custom_call.1} parent=27 // pred_check_branch
          %203 = sbr.rel (%p201) target = $region32
        $region31: #{tpu_custom_call.1} parent=27 // pred_region
          %s204 = sand.u32 %s40, 1
          %s205 = scalar_lea.sflag [#allocation3], %s204
          %s206 = sand.u32 %s40, 1
          %s207 = smul.addr %s206, 216
          %s208 = scalar_lea.vmem [#allocation2], %s207
          %s210 = ssub.s32 3456, 3456
          %211 = vsyncadd %s205, %s210
          %s212 = smul.addr %s25, 54
          %s213 = smul.addr %s212, 64
          %s214 = scalar_lea.hbm %s0, %s213
          %s215 = sshll.u32 %s208, 4
          %s216 = int_to_ptr.vmem [resolvable:$true] %s215
          %221 = dma.hbm_to_vmem [thread:$0]  %s214, 3456, %s216, %s205, 64, 64, 4
        $region32: #{tpu_custom_call.1} parent=27 // pred_fallthru
          _
      $region28: #{tpu_custom_call.1} parent=5 // pred_fallthru
        _
      %p222 = scmp.le.s32.totalorder 1, %s18
      %p223 = scmp.lt.s32.totalorder %s18, 3
      %p224 = pnand %p222, %p223
      %p225 = pneg %p224
      // Predicated region
      $region33: #{tpu_custom_call.1} parent=5 // pred_check
        _
      $region34: #{tpu_custom_call.1} parent=5 // pred_check_branch
        %227 = sbr.rel (%p224) target = $region36
      $region35: #{tpu_custom_call.1} parent=5 // pred_region
        %s228 = ssub.s32 %s18, 1
        %s229 = sand.u32 %s43, 1
        %s230 = scalar_lea.sflag [#allocation3], %s229
        %s231 = sand.u32 %s43, 1
        %s232 = smul.addr %s231, 216
        %s233 = scalar_lea.vmem [#allocation2], %s232
        // Predicated region
        $region37: #{tpu_custom_call.1} parent=35 // pred_check
          %p234 = pneg %p56
        $region38: #{tpu_custom_call.1} parent=35 // pred_check_branch
          %236 = sbr.rel (%p234) target = $region40
        $region39: #{tpu_custom_call.1} parent=35 // pred_region
          %237 = dma.done %s230, 3456
        $region40: #{tpu_custom_call.1} parent=35 // pred_fallthru
          _
        // Predicated region
        $region41: #{tpu_custom_call.1} parent=35 // pred_check
          %p238 = pneg %p77
        $region42: #{tpu_custom_call.1} parent=35 // pred_check_branch
          %240 = sbr.rel (%p238) target = $region44
        $region43: #{tpu_custom_call.1} parent=35 // pred_region
          %241 = dma.done [#allocation6], 288
        $region44: #{tpu_custom_call.1} parent=35 // pred_fallthru
          _
        // Predicated region
        $region45: #{tpu_custom_call.1} parent=35 // pred_check
          %p242 = pneg %p98
        $region46: #{tpu_custom_call.1} parent=35 // pred_check_branch
          %244 = sbr.rel (%p242) target = $region48
        $region47: #{tpu_custom_call.1} parent=35 // pred_region
          %245 = dma.done [#allocation6], 16
        $region48: #{tpu_custom_call.1} parent=35 // pred_fallthru
          _
        // Predicated region
        $region49: #{tpu_custom_call.1} parent=35 // pred_check
          %p246 = pneg %p119
        $region50: #{tpu_custom_call.1} parent=35 // pred_check_branch
          %248 = sbr.rel (%p246) target = $region52
        $region51: #{tpu_custom_call.1} parent=35 // pred_region
          %249 = dma.done [#allocation9], 16
        $region52: #{tpu_custom_call.1} parent=35 // pred_fallthru
          _
        %s250 = sand.u32 %s43, 1
        %s251 = scalar_lea.sflag [#allocation3], %s250
        %s252 = sand.u32 %s43, 1
        %s253 = smul.addr %s252, 216
        %s254 = scalar_lea.vmem [#allocation2], %s253
        %p255 = pneg %p56
        %p256 = pneg %p53
        %p257 = pneg %p77
        %p258 = pneg %p74
        %p259 = pneg %p98
        %p260 = pneg %p95
        %p261 = pneg %p119
        %p262 = pneg %p116
        %p263 = pneg %p147
        %p264 = pneg %p144
        %s265 = sand.u32 %s134, 1
        %s266 = scalar_lea.sflag [#allocation4], %s265
        %s267 = sand.u32 %s134, 1
        %s268 = smul.addr %s267, 256
        %s269 = scalar_lea.vmem [#allocation10], %s268
        %s270 = smul.u32 16, %s28
        %s272 = smul.u32 %s28, 16
        %s273 = smul.u32 %s272, 3
        %s274 = smul.addr %s273, 4
        %s275 = scalar_lea.vmem %s233, %s274 [#allocation2]
        %v276 = vld [vmem:[%s275] sm:$0xf]
        %v277 = vld [vmem:[%s275 + $0x4] sm:$0xf]
        %v278 = vld [vmem:[%s275 + $0xc] sm:$0xf]
        %v279 = vld [vmem:[%s275 + $0x10] sm:$0xf]
        %v280 = vld [vmem:[%s275 + $0x18] sm:$0xf]
        %v281 = vld [vmem:[%s275 + $0x1c] sm:$0xf]
        %v282 = vld [vmem:[%s275 + $0x24] sm:$0xf]
        %v283 = vld [vmem:[%s275 + $0x28] sm:$0xf]
        %v284 = vld [vmem:[%s275 + $0x30] sm:$0xf]
        %v285 = vld [vmem:[%s275 + $0x34] sm:$0xf]
        %v286 = vld [vmem:[%s275 + $0x3c] sm:$0xf]
        %v287 = vld [vmem:[%s275 + $0x40] sm:$0xf]
        %v288 = vld [vmem:[%s275 + $0x48] sm:$0xf]
        %v289 = vld [vmem:[%s275 + $0x4c] sm:$0xf]
        %v290 = vld [vmem:[%s275 + $0x54] sm:$0xf]
        %v291 = vld [vmem:[%s275 + $0x58] sm:$0xf]
        %v292 = vld [vmem:[%s275 + $0x60] sm:$0xf]
        %v293 = vld [vmem:[%s275 + $0x64] sm:$0xf]
        %v294 = vld [vmem:[%s275 + $0x6c] sm:$0xf]
        %v295 = vld [vmem:[%s275 + $0x70] sm:$0xf]
        %v296 = vld [vmem:[%s275 + $0x78] sm:$0xf]
        %v297 = vld [vmem:[%s275 + $0x7c] sm:$0xf]
        %v298 = vld [vmem:[%s275 + $0x84] sm:$0xf]
        %v299 = vld [vmem:[%s275 + $0x88] sm:$0xf]
        %v300 = vld [vmem:[%s275 + $0x90] sm:$0xf]
        %v301 = vld [vmem:[%s275 + $0x94] sm:$0xf]
        %v302 = vld [vmem:[%s275 + $0x9c] sm:$0xf]
        %v303 = vld [vmem:[%s275 + $0xa0] sm:$0xf]
        %v304 = vld [vmem:[%s275 + $0xa8] sm:$0xf]
        %v305 = vld [vmem:[%s275 + $0xac] sm:$0xf]
        %v306 = vld [vmem:[%s275 + $0xb4] sm:$0xf]
        %v307 = vld [vmem:[%s275 + $0xb8] sm:$0xf]
        %v308 = vld [vmem:[#allocation5] sm:$0x3]
        %v309 = vld [vmem:[%s275 + $0x8] sm:$0x1]
        %v310 = vld [vmem:[%s275 + $0x14] sm:$0x1]
        %v311 = vld [vmem:[%s275 + $0x20] sm:$0x1]
        %v312 = vld [vmem:[%s275 + $0x2c] sm:$0x1]
        %v313 = vld [vmem:[%s275 + $0x38] sm:$0x1]
        %v314 = vld [vmem:[%s275 + $0x44] sm:$0x1]
        %v315 = vld [vmem:[%s275 + $0x50] sm:$0x1]
        %v316 = vld [vmem:[%s275 + $0x5c] sm:$0x1]
        %v317 = vld [vmem:[%s275 + $0x68] sm:$0x1]
        %v318 = vld [vmem:[%s275 + $0x74] sm:$0x1]
        %v319 = vld [vmem:[%s275 + $0x80] sm:$0x1]
        %v320 = vld [vmem:[%s275 + $0x8c] sm:$0x1]
        %v321 = vld [vmem:[%s275 + $0x98] sm:$0x1]
        %v322 = vld [vmem:[%s275 + $0xa4] sm:$0x1]
        %v323 = vld [vmem:[%s275 + $0xb0] sm:$0x1]
        %v324 = vld [vmem:[%s275 + $0xbc] sm:$0x1]
        %s325 = scalar_lea.vmem [#allocation5], 2
        %v326 = vld [vmem:[%s325] sm:$0x3]
        %vm327 = vsmask.f32 3328
        %vm328 = vsmask.f32 7440
        %vm329 = vmor %vm327, %vm328
        %v331 = vshrl.u32 %v276, 16
        %v333 = vrot.slane %v331, 4
        %v334 = vshll.u32 %v276, 16
        %v336 = vrot.slane %v334, 5
        %v337 = vor.u32 %v333, %v336
        %v338 = vrot.slane %v337, 4
        %v340 = vshll.u32 %v277, 16
        %v342 = vrot.slane %v340, 5
        %v343 = vsel %vm329, %v338, %v342
        %v344 = vshrl.u32 %v277, 16
        %v346 = vrot.slane %v344, 4
        %v347 = vor.u32 %v346, %v342
        %v348 = vrot.slane %v347, 4
        %v350 = vshll.u32 %v309, 16
        %v352 = vrot.slane %v350, 5
        %v353 = vsel %vm329, %v348, %v352
        %v355 = vshrl.u32 %v278, 16
        %v357 = vrot.slane %v355, 4
        %v358 = vshll.u32 %v278, 16
        %v360 = vrot.slane %v358, 5
        %v361 = vor.u32 %v357, %v360
        %v362 = vrot.slane %v361, 4
        %v364 = vshll.u32 %v279, 16
        %v366 = vrot.slane %v364, 5
        %v367 = vsel %vm329, %v362, %v366
        %v368 = vshrl.u32 %v279, 16
        %v370 = vrot.slane %v368, 4
        %v371 = vor.u32 %v370, %v366
        %v372 = vrot.slane %v371, 4
        %v374 = vshll.u32 %v310, 16
        %v376 = vrot.slane %v374, 5
        %v377 = vsel %vm329, %v372, %v376
        %v379 = vshrl.u32 %v280, 16
        %v381 = vrot.slane %v379, 4
        %v382 = vshll.u32 %v280, 16
        %v384 = vrot.slane %v382, 5
        %v385 = vor.u32 %v381, %v384
        %v386 = vrot.slane %v385, 4
        %v388 = vshll.u32 %v281, 16
        %v390 = vrot.slane %v388, 5
        %v391 = vsel %vm329, %v386, %v390
        %v392 = vshrl.u32 %v281, 16
        %v394 = vrot.slane %v392, 4
        %v395 = vor.u32 %v394, %v390
        %v396 = vrot.slane %v395, 4
        %v398 = vshll.u32 %v311, 16
        %v400 = vrot.slane %v398, 5
        %v401 = vsel %vm329, %v396, %v400
        %v403 = vshrl.u32 %v282, 16
        %v405 = vrot.slane %v403, 4
        %v406 = vshll.u32 %v282, 16
        %v408 = vrot.slane %v406, 5
        %v409 = vor.u32 %v405, %v408
        %v410 = vrot.slane %v409, 4
        %v412 = vshll.u32 %v283, 16
        %v414 = vrot.slane %v412, 5
        %v415 = vsel %vm329, %v410, %v414
        %v416 = vshrl.u32 %v283, 16
        %v418 = vrot.slane %v416, 4
        %v419 = vor.u32 %v418, %v414
        %v420 = vrot.slane %v419, 4
        %v422 = vshll.u32 %v312, 16
        %v424 = vrot.slane %v422, 5
        %v425 = vsel %vm329, %v420, %v424
        %v427 = vshrl.u32 %v284, 16
        %v429 = vrot.slane %v427, 4
        %v430 = vshll.u32 %v284, 16
        %v432 = vrot.slane %v430, 5
        %v433 = vor.u32 %v429, %v432
        %v434 = vrot.slane %v433, 4
        %v436 = vshll.u32 %v285, 16
        %v438 = vrot.slane %v436, 5
        %v439 = vsel %vm329, %v434, %v438
        %v440 = vshrl.u32 %v285, 16
        %v442 = vrot.slane %v440, 4
        %v443 = vor.u32 %v442, %v438
        %v444 = vrot.slane %v443, 4
        %v446 = vshll.u32 %v313, 16
        %v448 = vrot.slane %v446, 5
        %v449 = vsel %vm329, %v444, %v448
        %v451 = vshrl.u32 %v286, 16
        %v453 = vrot.slane %v451, 4
        %v454 = vshll.u32 %v286, 16
        %v456 = vrot.slane %v454, 5
        %v457 = vor.u32 %v453, %v456
        %v458 = vrot.slane %v457, 4
        %v460 = vshll.u32 %v287, 16
        %v462 = vrot.slane %v460, 5
        %v463 = vsel %vm329, %v458, %v462
        %v464 = vshrl.u32 %v287, 16
        %v466 = vrot.slane %v464, 4
        %v467 = vor.u32 %v466, %v462
        %v468 = vrot.slane %v467, 4
        %v470 = vshll.u32 %v314, 16
        %v472 = vrot.slane %v470, 5
        %v473 = vsel %vm329, %v468, %v472
        %v475 = vshrl.u32 %v288, 16
        %v477 = vrot.slane %v475, 4
        %v478 = vshll.u32 %v288, 16
        %v480 = vrot.slane %v478, 5
        %v481 = vor.u32 %v477, %v480
        %v482 = vrot.slane %v481, 4
        %v484 = vshll.u32 %v289, 16
        %v486 = vrot.slane %v484, 5
        %v487 = vsel %vm329, %v482, %v486
        %v488 = vshrl.u32 %v289, 16
        %v490 = vrot.slane %v488, 4
        %v491 = vor.u32 %v490, %v486
        %v492 = vrot.slane %v491, 4
        %v494 = vshll.u32 %v315, 16
        %v496 = vrot.slane %v494, 5
        %v497 = vsel %vm329, %v492, %v496
        %v499 = vshrl.u32 %v290, 16
        %v501 = vrot.slane %v499, 4
        %v502 = vshll.u32 %v290, 16
        %v504 = vrot.slane %v502, 5
        %v505 = vor.u32 %v501, %v504
        %v506 = vrot.slane %v505, 4
        %v508 = vshll.u32 %v291, 16
        %v510 = vrot.slane %v508, 5
        %v511 = vsel %vm329, %v506, %v510
        %v512 = vshrl.u32 %v291, 16
        %v514 = vrot.slane %v512, 4
        %v515 = vor.u32 %v514, %v510
        %v516 = vrot.slane %v515, 4
        %v518 = vshll.u32 %v316, 16
        %v520 = vrot.slane %v518, 5
        %v521 = vsel %vm329, %v516, %v520
        %v523 = vshrl.u32 %v292, 16
        %v525 = vrot.slane %v523, 4
        %v526 = vshll.u32 %v292, 16
        %v528 = vrot.slane %v526, 5
        %v529 = vor.u32 %v525, %v528
        %v530 = vrot.slane %v529, 4
        %v532 = vshll.u32 %v293, 16
        %v534 = vrot.slane %v532, 5
        %v535 = vsel %vm329, %v530, %v534
        %v536 = vshrl.u32 %v293, 16
        %v538 = vrot.slane %v536, 4
        %v539 = vor.u32 %v538, %v534
        %v540 = vrot.slane %v539, 4
        %v542 = vshll.u32 %v317, 16
        %v544 = vrot.slane %v542, 5
        %v545 = vsel %vm329, %v540, %v544
        %v547 = vshrl.u32 %v294, 16
        %v549 = vrot.slane %v547, 4
        %v550 = vshll.u32 %v294, 16
        %v552 = vrot.slane %v550, 5
        %v553 = vor.u32 %v549, %v552
        %v554 = vrot.slane %v553, 4
        %v556 = vshll.u32 %v295, 16
        %v558 = vrot.slane %v556, 5
        %v559 = vsel %vm329, %v554, %v558
        %v560 = vshrl.u32 %v295, 16
        %v562 = vrot.slane %v560, 4
        %v563 = vor.u32 %v562, %v558
        %v564 = vrot.slane %v563, 4
        %v566 = vshll.u32 %v318, 16
        %v568 = vrot.slane %v566, 5
        %v569 = vsel %vm329, %v564, %v568
        %v571 = vshrl.u32 %v296, 16
        %v573 = vrot.slane %v571, 4
        %v574 = vshll.u32 %v296, 16
        %v576 = vrot.slane %v574, 5
        %v577 = vor.u32 %v573, %v576
        %v578 = vrot.slane %v577, 4
        %v580 = vshll.u32 %v297, 16
        %v582 = vrot.slane %v580, 5
        %v583 = vsel %vm329, %v578, %v582
        %v584 = vshrl.u32 %v297, 16
        %v586 = vrot.slane %v584, 4
        %v587 = vor.u32 %v586, %v582
        %v588 = vrot.slane %v587, 4
        %v590 = vshll.u32 %v319, 16
        %v592 = vrot.slane %v590, 5
        %v593 = vsel %vm329, %v588, %v592
        %v595 = vshrl.u32 %v298, 16
        %v597 = vrot.slane %v595, 4
        %v598 = vshll.u32 %v298, 16
        %v600 = vrot.slane %v598, 5
        %v601 = vor.u32 %v597, %v600
        %v602 = vrot.slane %v601, 4
        %v604 = vshll.u32 %v299, 16
        %v606 = vrot.slane %v604, 5
        %v607 = vsel %vm329, %v602, %v606
        %v608 = vshrl.u32 %v299, 16
        %v610 = vrot.slane %v608, 4
        %v611 = vor.u32 %v610, %v606
        %v612 = vrot.slane %v611, 4
        %v614 = vshll.u32 %v320, 16
        %v616 = vrot.slane %v614, 5
        %v617 = vsel %vm329, %v612, %v616
        %v619 = vshrl.u32 %v300, 16
        %v621 = vrot.slane %v619, 4
        %v622 = vshll.u32 %v300, 16
        %v624 = vrot.slane %v622, 5
        %v625 = vor.u32 %v621, %v624
        %v626 = vrot.slane %v625, 4
        %v628 = vshll.u32 %v301, 16
        %v630 = vrot.slane %v628, 5
        %v631 = vsel %vm329, %v626, %v630
        %v632 = vshrl.u32 %v301, 16
        %v634 = vrot.slane %v632, 4
        %v635 = vor.u32 %v634, %v630
        %v636 = vrot.slane %v635, 4
        %v638 = vshll.u32 %v321, 16
        %v640 = vrot.slane %v638, 5
        %v641 = vsel %vm329, %v636, %v640
        %v643 = vshrl.u32 %v302, 16
        %v645 = vrot.slane %v643, 4
        %v646 = vshll.u32 %v302, 16
        %v648 = vrot.slane %v646, 5
        %v649 = vor.u32 %v645, %v648
        %v650 = vrot.slane %v649, 4
        %v652 = vshll.u32 %v303, 16
        %v654 = vrot.slane %v652, 5
        %v655 = vsel %vm329, %v650, %v654
        %v656 = vshrl.u32 %v303, 16
        %v658 = vrot.slane %v656, 4
        %v659 = vor.u32 %v658, %v654
        %v660 = vrot.slane %v659, 4
        %v662 = vshll.u32 %v322, 16
        %v664 = vrot.slane %v662, 5
        %v665 = vsel %vm329, %v660, %v664
        %v667 = vshrl.u32 %v304, 16
        %v669 = vrot.slane %v667, 4
        %v670 = vshll.u32 %v304, 16
        %v672 = vrot.slane %v670, 5
        %v673 = vor.u32 %v669, %v672
        %v674 = vrot.slane %v673, 4
        %v676 = vshll.u32 %v305, 16
        %v678 = vrot.slane %v676, 5
        %v679 = vsel %vm329, %v674, %v678
        %v680 = vshrl.u32 %v305, 16
        %v682 = vrot.slane %v680, 4
        %v683 = vor.u32 %v682, %v678
        %v684 = vrot.slane %v683, 4
        %v686 = vshll.u32 %v323, 16
        %v688 = vrot.slane %v686, 5
        %v689 = vsel %vm329, %v684, %v688
        %v691 = vshrl.u32 %v306, 16
        %v693 = vrot.slane %v691, 4
        %v694 = vshll.u32 %v306, 16
        %v696 = vrot.slane %v694, 5
        %v697 = vor.u32 %v693, %v696
        %v698 = vrot.slane %v697, 4
        %v700 = vshll.u32 %v307, 16
        %v702 = vrot.slane %v700, 5
        %v703 = vsel %vm329, %v698, %v702
        %v704 = vshrl.u32 %v307, 16
        %v706 = vrot.slane %v704, 4
        %v707 = vor.u32 %v706, %v702
        %v708 = vrot.slane %v707, 4
        %v710 = vshll.u32 %v324, 16
        %v712 = vrot.slane %v710, 5
        %v713 = vsel %vm329, %v708, %v712
        %v714 = vunpack.c.l.b16 %v343
        %v715 = vunpack.c.l.b16 %v353
        %v716 = vunpack.c.l.b16 %v367
        %v717 = vunpack.c.l.b16 %v377
        %v718 = vunpack.c.l.b16 %v391
        %v719 = vunpack.c.l.b16 %v401
        %v720 = vunpack.c.l.b16 %v415
        %v721 = vunpack.c.l.b16 %v425
        %v722 = vunpack.c.l.b16 %v439
        %v723 = vunpack.c.l.b16 %v449
        %v724 = vunpack.c.l.b16 %v463
        %v725 = vunpack.c.l.b16 %v473
        %v726 = vunpack.c.l.b16 %v487
        %v727 = vunpack.c.l.b16 %v497
        %v728 = vunpack.c.l.b16 %v511
        %v729 = vunpack.c.l.b16 %v521
        %v730 = vunpack.c.l.b16 %v535
        %v731 = vunpack.c.l.b16 %v545
        %v732 = vunpack.c.l.b16 %v559
        %v733 = vunpack.c.l.b16 %v569
        %v734 = vunpack.c.l.b16 %v583
        %v735 = vunpack.c.l.b16 %v593
        %v736 = vunpack.c.l.b16 %v607
        %v737 = vunpack.c.l.b16 %v617
        %v738 = vunpack.c.l.b16 %v631
        %v739 = vunpack.c.l.b16 %v641
        %v740 = vunpack.c.l.b16 %v655
        %v741 = vunpack.c.l.b16 %v665
        %v742 = vunpack.c.l.b16 %v679
        %v743 = vunpack.c.l.b16 %v689
        %v744 = vunpack.c.l.b16 %v703
        %v745 = vunpack.c.l.b16 %v713
        %v746 = vpack.c.b16 %v715, %v714
        %v747 = vpack.c.b16 %v717, %v716
        %v748 = vpack.c.b16 %v719, %v718
        %v749 = vpack.c.b16 %v721, %v720
        %v750 = vpack.c.b16 %v723, %v722
        %v751 = vpack.c.b16 %v725, %v724
        %v752 = vpack.c.b16 %v727, %v726
        %v753 = vpack.c.b16 %v729, %v728
        %v754 = vpack.c.b16 %v731, %v730
        %v755 = vpack.c.b16 %v733, %v732
        %v756 = vpack.c.b16 %v735, %v734
        %v757 = vpack.c.b16 %v737, %v736
        %v758 = vpack.c.b16 %v739, %v738
        %v759 = vpack.c.b16 %v741, %v740
        %v760 = vpack.c.b16 %v743, %v742
        %v761 = vpack.c.b16 %v745, %v744
        %vm762 = vcmask 31744
        %v764 = vsel %vm762, %v746, 0
        %v767 = vsel %vm762, %v747, 0
        %v770 = vsel %vm762, %v748, 0
        %v773 = vsel %vm762, %v749, 0
        %v776 = vsel %vm762, %v750, 0
        %v779 = vsel %vm762, %v751, 0
        %v782 = vsel %vm762, %v752, 0
        %v785 = vsel %vm762, %v753, 0
        %v788 = vsel %vm762, %v754, 0
        %v791 = vsel %vm762, %v755, 0
        %v794 = vsel %vm762, %v756, 0
        %v797 = vsel %vm762, %v757, 0
        %v800 = vsel %vm762, %v758, 0
        %v803 = vsel %vm762, %v759, 0
        %v806 = vsel %vm762, %v760, 0
        %v809 = vsel %vm762, %v761, 0
        %vm811 = vcmask 1041408
        %v813 = vsel %vm811, %v326, 0
        %815 = vmatprep.subr.bf16.mxu0 0
        %816 = vmatpush1.bf16.msra.mxu0 %v813
        %817 = vmatprep.subr.bf16.mxu0 0
        %818 = vmatpush1.bf16.msra.mxu0 0
        %819 = vmatprep.subr.bf16.mxu0 0
        %820 = vmatpush1.bf16.msra.mxu0 0
        %821 = vmatprep.subr.bf16.mxu0 0
        %822 = vmatpush1.bf16.msra.mxu0 0
        %823 = vmatprep.subr.bf16.mxu0 0
        %824 = vmatpush1.bf16.msra.mxu0 0
        %825 = vmatprep.subr.bf16.mxu0 0
        %826 = vmatpush1.bf16.msra.mxu0 0
        %827 = vmatprep.subr.bf16.mxu0 0
        %828 = vmatpush1.bf16.msra.mxu0 0
        %829 = vmatprep.subr.bf16.mxu0 0
        %830 = vmatpush1.bf16.msra.mxu0 0
        %831 = vmatprep.subr.bf16.mxu0 0
        %832 = vmatpush1.bf16.msra.mxu0 0
        %833 = vmatprep.subr.bf16.mxu0 0
        %834 = vmatpush1.bf16.msra.mxu0 0
        %835 = vmatprep.subr.bf16.mxu0 0
        %836 = vmatpush1.bf16.msra.mxu0 0
        %837 = vmatprep.subr.bf16.mxu0 0
        %838 = vmatpush1.bf16.msra.mxu0 0
        %839 = vmatprep.subr.bf16.mxu0 0
        %840 = vmatpush1.bf16.msra.mxu0 0
        %841 = vmatprep.subr.bf16.mxu0 0
        %842 = vmatpush1.bf16.msra.mxu0 0
        %843 = vmatprep.subr.bf16.mxu0 0
        %844 = vmatpush1.bf16.msra.mxu0 0
        %845 = vmatprep.subr.bf16.mxu0 0
        %846 = vmatpush1.bf16.msra.mxu0 0
        %847 = vmatprep.mubr.bf16.mxu0 0
        %848 = vmatmul.mubr.bf16.gmra.mrb[0].mxu0 %v764
        %v849 = vpop.f32.mrb[0].mxu0
        %v850 = vadd.f32 0.0, %v849
        %v851 = vpop.f32.mrb[0].mxu0
        %v852 = vpop.f32.mrb[0].mxu0
        %v853 = vadd.f32 0.0, %v852
        %v854 = vpop.f32.mrb[0].mxu0
        %855 = vmatprep.mubr.bf16.mxu0 0
        %856 = vmatmul.mubr.bf16.gmra.mrb[0].mxu0 %v767
        %v857 = vpop.f32.mrb[0].mxu0
        %v858 = vadd.f32 0.0, %v857
        %v859 = vpop.f32.mrb[0].mxu0
        %v860 = vpop.f32.mrb[0].mxu0
        %v861 = vadd.f32 0.0, %v860
        %v862 = vpop.f32.mrb[0].mxu0
        %863 = vmatprep.mubr.bf16.mxu0 0
        %864 = vmatmul.mubr.bf16.gmra.mrb[0].mxu0 %v770
        %v865 = vpop.f32.mrb[0].mxu0
        %v866 = vadd.f32 0.0, %v865
        %v867 = vpop.f32.mrb[0].mxu0
        %v868 = vpop.f32.mrb[0].mxu0
        %v869 = vadd.f32 0.0, %v868
        %v870 = vpop.f32.mrb[0].mxu0
        %871 = vmatprep.mubr.bf16.mxu0 0
        %872 = vmatmul.mubr.bf16.gmra.mrb[0].mxu0 %v773
        %v873 = vpop.f32.mrb[0].mxu0
        %v874 = vadd.f32 0.0, %v873
        %v875 = vpop.f32.mrb[0].mxu0
        %v876 = vpop.f32.mrb[0].mxu0
        %v877 = vadd.f32 0.0, %v876
        %v878 = vpop.f32.mrb[0].mxu0
        %879 = vmatprep.mubr.bf16.mxu0 0
        %880 = vmatmul.mubr.bf16.gmra.mrb[0].mxu0 %v776
        %v881 = vpop.f32.mrb[0].mxu0
        %v882 = vadd.f32 0.0, %v881
        %v883 = vpop.f32.mrb[0].mxu0
        %v884 = vpop.f32.mrb[0].mxu0
        %v885 = vadd.f32 0.0, %v884
        %v886 = vpop.f32.mrb[0].mxu0
        %887 = vmatprep.mubr.bf16.mxu0 0
        %888 = vmatmul.mubr.bf16.gmra.mrb[0].mxu0 %v779
        %v889 = vpop.f32.mrb[0].mxu0
        %v890 = vadd.f32 0.0, %v889
        %v891 = vpop.f32.mrb[0].mxu0
        %v892 = vpop.f32.mrb[0].mxu0
        %v893 = vadd.f32 0.0, %v892
        %v894 = vpop.f32.mrb[0].mxu0
        %895 = vmatprep.mubr.bf16.mxu0 0
        %896 = vmatmul.mubr.bf16.gmra.mrb[0].mxu0 %v782
        %v897 = vpop.f32.mrb[0].mxu0
        %v898 = vadd.f32 0.0, %v897
        %v899 = vpop.f32.mrb[0].mxu0
        %v900 = vpop.f32.mrb[0].mxu0
        %v901 = vadd.f32 0.0, %v900
        %v902 = vpop.f32.mrb[0].mxu0
        %903 = vmatprep.mubr.bf16.mxu0 0
        %904 = vmatmul.mubr.bf16.gmra.mrb[0].mxu0 %v785
        %v905 = vpop.f32.mrb[0].mxu0
        %v906 = vadd.f32 0.0, %v905
        %v907 = vpop.f32.mrb[0].mxu0
        %v908 = vpop.f32.mrb[0].mxu0
        %v909 = vadd.f32 0.0, %v908
        %v910 = vpop.f32.mrb[0].mxu0
        %911 = vmatprep.mubr.bf16.mxu0 0
        %912 = vmatmul.mubr.bf16.gmra.mrb[0].mxu0 %v788
        %v913 = vpop.f32.mrb[0].mxu0
        %v914 = vadd.f32 0.0, %v913
        %v915 = vpop.f32.mrb[0].mxu0
        %v916 = vpop.f32.mrb[0].mxu0
        %v917 = vadd.f32 0.0, %v916
        %v918 = vpop.f32.mrb[0].mxu0
        %919 = vmatprep.mubr.bf16.mxu0 0
        %920 = vmatmul.mubr.bf16.gmra.mrb[0].mxu0 %v791
        %v921 = vpop.f32.mrb[0].mxu0
        %v922 = vadd.f32 0.0, %v921
        %v923 = vpop.f32.mrb[0].mxu0
        %v924 = vpop.f32.mrb[0].mxu0
        %v925 = vadd.f32 0.0, %v924
        %v926 = vpop.f32.mrb[0].mxu0
        %927 = vmatprep.mubr.bf16.mxu0 0
        %928 = vmatmul.mubr.bf16.gmra.mrb[0].mxu0 %v794
        %v929 = vpop.f32.mrb[0].mxu0
        %v930 = vadd.f32 0.0, %v929
        %v931 = vpop.f32.mrb[0].mxu0
        %v932 = vpop.f32.mrb[0].mxu0
        %v933 = vadd.f32 0.0, %v932
        %v934 = vpop.f32.mrb[0].mxu0
        %935 = vmatprep.mubr.bf16.mxu0 0
        %936 = vmatmul.mubr.bf16.gmra.mrb[0].mxu0 %v797
        %v937 = vpop.f32.mrb[0].mxu0
        %v938 = vadd.f32 0.0, %v937
        %v939 = vpop.f32.mrb[0].mxu0
        %v940 = vpop.f32.mrb[0].mxu0
        %v941 = vadd.f32 0.0, %v940
        %v942 = vpop.f32.mrb[0].mxu0
        %943 = vmatprep.mubr.bf16.mxu0 0
        %944 = vmatmul.mubr.bf16.gmra.mrb[0].mxu0 %v800
        %v945 = vpop.f32.mrb[0].mxu0
        %v946 = vadd.f32 0.0, %v945
        %v947 = vpop.f32.mrb[0].mxu0
        %v948 = vpop.f32.mrb[0].mxu0
        %v949 = vadd.f32 0.0, %v948
        %v950 = vpop.f32.mrb[0].mxu0
        %951 = vmatprep.mubr.bf16.mxu0 0
        %952 = vmatmul.mubr.bf16.gmra.mrb[0].mxu0 %v803
        %v953 = vpop.f32.mrb[0].mxu0
        %v954 = vadd.f32 0.0, %v953
        %v955 = vpop.f32.mrb[0].mxu0
        %v956 = vpop.f32.mrb[0].mxu0
        %v957 = vadd.f32 0.0, %v956
        %v958 = vpop.f32.mrb[0].mxu0
        %959 = vmatprep.mubr.bf16.mxu0 0
        %960 = vmatmul.mubr.bf16.gmra.mrb[0].mxu0 %v806
        %v961 = vpop.f32.mrb[0].mxu0
        %v962 = vadd.f32 0.0, %v961
        %v963 = vpop.f32.mrb[0].mxu0
        %v964 = vpop.f32.mrb[0].mxu0
        %v965 = vadd.f32 0.0, %v964
        %v966 = vpop.f32.mrb[0].mxu0
        %967 = vmatprep.mubr.bf16.mxu0 0
        %968 = vmatmul.mubr.bf16.gmra.mrb[0].mxu0 %v809
        %v969 = vpop.f32.mrb[0].mxu0
        %v970 = vadd.f32 0.0, %v969
        %v971 = vpop.f32.mrb[0].mxu0
        %v972 = vpop.f32.mrb[0].mxu0
        %v973 = vadd.f32 0.0, %v972
        %v974 = vpop.f32.mrb[0].mxu0
        %975 = vdwg.mxu0
        %v1008 = vunpack.c.l.b16 %v276
        %v1009 = vunpack.c.l.b16 %v277
        %v1010 = vunpack.c.l.b16 %v278
        %v1011 = vunpack.c.l.b16 %v279
        %v1012 = vunpack.c.l.b16 %v280
        %v1013 = vunpack.c.l.b16 %v281
        %v1014 = vunpack.c.l.b16 %v282
        %v1015 = vunpack.c.l.b16 %v283
        %v1016 = vunpack.c.l.b16 %v284
        %v1017 = vunpack.c.l.b16 %v285
        %v1018 = vunpack.c.l.b16 %v286
        %v1019 = vunpack.c.l.b16 %v287
        %v1020 = vunpack.c.l.b16 %v288
        %v1021 = vunpack.c.l.b16 %v289
        %v1022 = vunpack.c.l.b16 %v290
        %v1023 = vunpack.c.l.b16 %v291
        %v1024 = vunpack.c.l.b16 %v292
        %v1025 = vunpack.c.l.b16 %v293
        %v1026 = vunpack.c.l.b16 %v294
        %v1027 = vunpack.c.l.b16 %v295
        %v1028 = vunpack.c.l.b16 %v296
        %v1029 = vunpack.c.l.b16 %v297
        %v1030 = vunpack.c.l.b16 %v298
        %v1031 = vunpack.c.l.b16 %v299
        %v1032 = vunpack.c.l.b16 %v300
        %v1033 = vunpack.c.l.b16 %v301
        %v1034 = vunpack.c.l.b16 %v302
        %v1035 = vunpack.c.l.b16 %v303
        %v1036 = vunpack.c.l.b16 %v304
        %v1037 = vunpack.c.l.b16 %v305
        %v1038 = vunpack.c.l.b16 %v306
        %v1039 = vunpack.c.l.b16 %v307
        %v1040 = vpack.c.b16 %v1009, %v1008
        %v1041 = vpack.c.b16 %v1011, %v1010
        %v1042 = vpack.c.b16 %v1013, %v1012
        %v1043 = vpack.c.b16 %v1015, %v1014
        %v1044 = vpack.c.b16 %v1017, %v1016
        %v1045 = vpack.c.b16 %v1019, %v1018
        %v1046 = vpack.c.b16 %v1021, %v1020
        %v1047 = vpack.c.b16 %v1023, %v1022
        %v1048 = vpack.c.b16 %v1025, %v1024
        %v1049 = vpack.c.b16 %v1027, %v1026
        %v1050 = vpack.c.b16 %v1029, %v1028
        %v1051 = vpack.c.b16 %v1031, %v1030
        %v1052 = vpack.c.b16 %v1033, %v1032
        %v1053 = vpack.c.b16 %v1035, %v1034
        %v1054 = vpack.c.b16 %v1037, %v1036
        %v1055 = vpack.c.b16 %v1039, %v1038
        %v1057 = vsel %vm762, %v1040, 0
        %v1060 = vsel %vm762, %v1041, 0
        %v1063 = vsel %vm762, %v1042, 0
        %v1066 = vsel %vm762, %v1043, 0
        %v1069 = vsel %vm762, %v1044, 0
        %v1072 = vsel %vm762, %v1045, 0
        %v1075 = vsel %vm762, %v1046, 0
        %v1078 = vsel %vm762, %v1047, 0
        %v1081 = vsel %vm762, %v1048, 0
        %v1084 = vsel %vm762, %v1049, 0
        %v1087 = vsel %vm762, %v1050, 0
        %v1090 = vsel %vm762, %v1051, 0
        %v1093 = vsel %vm762, %v1052, 0
        %v1096 = vsel %vm762, %v1053, 0
        %v1099 = vsel %vm762, %v1054, 0
        %v1102 = vsel %vm762, %v1055, 0
        %v1105 = vsel %vm811, %v308, 0
        %1107 = vmatprep.subr.bf16.mxu0 0
        %1108 = vmatpush1.bf16.msra.mxu0 %v1105
        %1109 = vmatprep.subr.bf16.mxu0 0
        %1110 = vmatpush1.bf16.msra.mxu0 0
        %1111 = vmatprep.subr.bf16.mxu0 0
        %1112 = vmatpush1.bf16.msra.mxu0 0
        %1113 = vmatprep.subr.bf16.mxu0 0
        %1114 = vmatpush1.bf16.msra.mxu0 0
        %1115 = vmatprep.subr.bf16.mxu0 0
        %1116 = vmatpush1.bf16.msra.mxu0 0
        %1117 = vmatprep.subr.bf16.mxu0 0
        %1118 = vmatpush1.bf16.msra.mxu0 0
        %1119 = vmatprep.subr.bf16.mxu0 0
        %1120 = vmatpush1.bf16.msra.mxu0 0
        %1121 = vmatprep.subr.bf16.mxu0 0
        %1122 = vmatpush1.bf16.msra.mxu0 0
        %1123 = vmatprep.subr.bf16.mxu0 0
        %1124 = vmatpush1.bf16.msra.mxu0 0
        %1125 = vmatprep.subr.bf16.mxu0 0
        %1126 = vmatpush1.bf16.msra.mxu0 0
        %1127 = vmatprep.subr.bf16.mxu0 0
        %1128 = vmatpush1.bf16.msra.mxu0 0
        %1129 = vmatprep.subr.bf16.mxu0 0
        %1130 = vmatpush1.bf16.msra.mxu0 0
        %1131 = vmatprep.subr.bf16.mxu0 0
        %1132 = vmatpush1.bf16.msra.mxu0 0
        %1133 = vmatprep.subr.bf16.mxu0 0
        %1134 = vmatpush1.bf16.msra.mxu0 0
        %1135 = vmatprep.subr.bf16.mxu0 0
        %1136 = vmatpush1.bf16.msra.mxu0 0
        %1137 = vmatprep.subr.bf16.mxu0 0
        %1138 = vmatpush1.bf16.msra.mxu0 0
        %1139 = vmatprep.mubr.bf16.mxu0 0
        %1140 = vmatmul.mubr.bf16.gmra.mrb[0].mxu0 %v1057
        %v1141 = vpop.f32.mrb[0].mxu0
        %v1142 = vadd.f32 %v850, %v1141
        %v1143 = vpop.f32.mrb[0].mxu0
        %v1144 = vpop.f32.mrb[0].mxu0
        %v1145 = vadd.f32 %v853, %v1144
        %v1146 = vpop.f32.mrb[0].mxu0
        %1147 = vmatprep.mubr.bf16.mxu0 0
        %1148 = vmatmul.mubr.bf16.gmra.mrb[0].mxu0 %v1060
        %v1149 = vpop.f32.mrb[0].mxu0
        %v1150 = vadd.f32 %v858, %v1149
        %v1151 = vpop.f32.mrb[0].mxu0
        %v1152 = vpop.f32.mrb[0].mxu0
        %v1153 = vadd.f32 %v861, %v1152
        %v1154 = vpop.f32.mrb[0].mxu0
        %1155 = vmatprep.mubr.bf16.mxu0 0
        %1156 = vmatmul.mubr.bf16.gmra.mrb[0].mxu0 %v1063
        %v1157 = vpop.f32.mrb[0].mxu0
        %v1158 = vadd.f32 %v866, %v1157
        %v1159 = vpop.f32.mrb[0].mxu0
        %v1160 = vpop.f32.mrb[0].mxu0
        %v1161 = vadd.f32 %v869, %v1160
        %v1162 = vpop.f32.mrb[0].mxu0
        %1163 = vmatprep.mubr.bf16.mxu0 0
        %1164 = vmatmul.mubr.bf16.gmra.mrb[0].mxu0 %v1066
        %v1165 = vpop.f32.mrb[0].mxu0
        %v1166 = vadd.f32 %v874, %v1165
        %v1167 = vpop.f32.mrb[0].mxu0
        %v1168 = vpop.f32.mrb[0].mxu0
        %v1169 = vadd.f32 %v877, %v1168
        %v1170 = vpop.f32.mrb[0].mxu0
        %1171 = vmatprep.mubr.bf16.mxu0 0
        %1172 = vmatmul.mubr.bf16.gmra.mrb[0].mxu0 %v1069
        %v1173 = vpop.f32.mrb[0].mxu0
        %v1174 = vadd.f32 %v882, %v1173
        %v1175 = vpop.f32.mrb[0].mxu0
        %v1176 = vpop.f32.mrb[0].mxu0
        %v1177 = vadd.f32 %v885, %v1176
        %v1178 = vpop.f32.mrb[0].mxu0
        %1179 = vmatprep.mubr.bf16.mxu0 0
        %1180 = vmatmul.mubr.bf16.gmra.mrb[0].mxu0 %v1072
        %v1181 = vpop.f32.mrb[0].mxu0
        %v1182 = vadd.f32 %v890, %v1181
        %v1183 = vpop.f32.mrb[0].mxu0
        %v1184 = vpop.f32.mrb[0].mxu0
        %v1185 = vadd.f32 %v893, %v1184
        %v1186 = vpop.f32.mrb[0].mxu0
        %1187 = vmatprep.mubr.bf16.mxu0 0
        %1188 = vmatmul.mubr.bf16.gmra.mrb[0].mxu0 %v1075
        %v1189 = vpop.f32.mrb[0].mxu0
        %v1190 = vadd.f32 %v898, %v1189
        %v1191 = vpop.f32.mrb[0].mxu0
        %v1192 = vpop.f32.mrb[0].mxu0
        %v1193 = vadd.f32 %v901, %v1192
        %v1194 = vpop.f32.mrb[0].mxu0
        %1195 = vmatprep.mubr.bf16.mxu0 0
        %1196 = vmatmul.mubr.bf16.gmra.mrb[0].mxu0 %v1078
        %v1197 = vpop.f32.mrb[0].mxu0
        %v1198 = vadd.f32 %v906, %v1197
        %v1199 = vpop.f32.mrb[0].mxu0
        %v1200 = vpop.f32.mrb[0].mxu0
        %v1201 = vadd.f32 %v909, %v1200
        %v1202 = vpop.f32.mrb[0].mxu0
        %1203 = vmatprep.mubr.bf16.mxu0 0
        %1204 = vmatmul.mubr.bf16.gmra.mrb[0].mxu0 %v1081
        %v1205 = vpop.f32.mrb[0].mxu0
        %v1206 = vadd.f32 %v914, %v1205
        %v1207 = vpop.f32.mrb[0].mxu0
        %v1208 = vpop.f32.mrb[0].mxu0
        %v1209 = vadd.f32 %v917, %v1208
        %v1210 = vpop.f32.mrb[0].mxu0
        %1211 = vmatprep.mubr.bf16.mxu0 0
        %1212 = vmatmul.mubr.bf16.gmra.mrb[0].mxu0 %v1084
        %v1213 = vpop.f32.mrb[0].mxu0
        %v1214 = vadd.f32 %v922, %v1213
        %v1215 = vpop.f32.mrb[0].mxu0
        %v1216 = vpop.f32.mrb[0].mxu0
        %v1217 = vadd.f32 %v925, %v1216
        %v1218 = vpop.f32.mrb[0].mxu0
        %1219 = vmatprep.mubr.bf16.mxu0 0
        %1220 = vmatmul.mubr.bf16.gmra.mrb[0].mxu0 %v1087
        %v1221 = vpop.f32.mrb[0].mxu0
        %v1222 = vadd.f32 %v930, %v1221
        %v1223 = vpop.f32.mrb[0].mxu0
        %v1224 = vpop.f32.mrb[0].mxu0
        %v1225 = vadd.f32 %v933, %v1224
        %v1226 = vpop.f32.mrb[0].mxu0
        %1227 = vmatprep.mubr.bf16.mxu0 0
        %1228 = vmatmul.mubr.bf16.gmra.mrb[0].mxu0 %v1090
        %v1229 = vpop.f32.mrb[0].mxu0
        %v1230 = vadd.f32 %v938, %v1229
        %v1231 = vpop.f32.mrb[0].mxu0
        %v1232 = vpop.f32.mrb[0].mxu0
        %v1233 = vadd.f32 %v941, %v1232
        %v1234 = vpop.f32.mrb[0].mxu0
        %1235 = vmatprep.mubr.bf16.mxu0 0
        %1236 = vmatmul.mubr.bf16.gmra.mrb[0].mxu0 %v1093
        %v1237 = vpop.f32.mrb[0].mxu0
        %v1238 = vadd.f32 %v946, %v1237
        %v1239 = vpop.f32.mrb[0].mxu0
        %v1240 = vpop.f32.mrb[0].mxu0
        %v1241 = vadd.f32 %v949, %v1240
        %v1242 = vpop.f32.mrb[0].mxu0
        %1243 = vmatprep.mubr.bf16.mxu0 0
        %1244 = vmatmul.mubr.bf16.gmra.mrb[0].mxu0 %v1096
        %v1245 = vpop.f32.mrb[0].mxu0
        %v1246 = vadd.f32 %v954, %v1245
        %v1247 = vpop.f32.mrb[0].mxu0
        %v1248 = vpop.f32.mrb[0].mxu0
        %v1249 = vadd.f32 %v957, %v1248
        %v1250 = vpop.f32.mrb[0].mxu0
        %1251 = vmatprep.mubr.bf16.mxu0 0
        %1252 = vmatmul.mubr.bf16.gmra.mrb[0].mxu0 %v1099
        %v1253 = vpop.f32.mrb[0].mxu0
        %v1254 = vadd.f32 %v962, %v1253
        %v1255 = vpop.f32.mrb[0].mxu0
        %v1256 = vpop.f32.mrb[0].mxu0
        %v1257 = vadd.f32 %v965, %v1256
        %v1258 = vpop.f32.mrb[0].mxu0
        %1259 = vmatprep.mubr.bf16.mxu0 0
        %1260 = vmatmul.mubr.bf16.gmra.mrb[0].mxu0 %v1102
        %v1261 = vpop.f32.mrb[0].mxu0
        %v1262 = vadd.f32 %v970, %v1261
        %v1263 = vpop.f32.mrb[0].mxu0
        %v1264 = vpop.f32.mrb[0].mxu0
        %v1265 = vadd.f32 %v973, %v1264
        %v1266 = vpop.f32.mrb[0].mxu0
        %1267 = vdwg.mxu0
        %v1268 = vld [vmem:[%s275] sm:$0xe]
        %v1269 = vld [vmem:[%s275 + $0xc] sm:$0xe]
        %v1270 = vld [vmem:[%s275 + $0x18] sm:$0xe]
        %v1271 = vld [vmem:[%s275 + $0x24] sm:$0xe]
        %v1272 = vld [vmem:[%s275 + $0x30] sm:$0xe]
        %v1273 = vld [vmem:[%s275 + $0x3c] sm:$0xe]
        %v1274 = vld [vmem:[%s275 + $0x48] sm:$0xe]
        %v1275 = vld [vmem:[%s275 + $0x54] sm:$0xe]
        %v1276 = vld [vmem:[%s275 + $0x60] sm:$0xe]
        %v1277 = vld [vmem:[%s275 + $0x6c] sm:$0xe]
        %v1278 = vld [vmem:[%s275 + $0x78] sm:$0xe]
        %v1279 = vld [vmem:[%s275 + $0x84] sm:$0xe]
        %v1280 = vld [vmem:[%s275 + $0x90] sm:$0xe]
        %v1281 = vld [vmem:[%s275 + $0x9c] sm:$0xe]
        %v1282 = vld [vmem:[%s275 + $0xa8] sm:$0xe]
        %v1283 = vld [vmem:[%s275 + $0xb4] sm:$0xe]
        %s1284 = scalar_lea.vmem [#allocation5], 4
        %v1285 = vld [vmem:[%s1284] sm:$0x3]
        %vm1318 = vcmask 1042432
        %vm1319 = vcmask 1046532
        %vm1320 = vmor %vm1318, %vm1319
        %v1321 = vrot.slane %v1268, 5
        %v1322 = vrot.slane %v1321, 4
        %v1323 = vrot.slane %v277, 5
        %v1324 = vsel %vm1320, %v1322, %v1323
        %v1325 = vrot.slane %v1323, 4
        %v1326 = vrot.slane %v309, 5
        %v1327 = vsel %vm1320, %v1325, %v1326
        %v1328 = vrot.slane %v1269, 5
        %v1329 = vrot.slane %v1328, 4
        %v1330 = vrot.slane %v279, 5
        %v1331 = vsel %vm1320, %v1329, %v1330
        %v1332 = vrot.slane %v1330, 4
        %v1333 = vrot.slane %v310, 5
        %v1334 = vsel %vm1320, %v1332, %v1333
        %v1335 = vrot.slane %v1270, 5
        %v1336 = vrot.slane %v1335, 4
        %v1337 = vrot.slane %v281, 5
        %v1338 = vsel %vm1320, %v1336, %v1337
        %v1339 = vrot.slane %v1337, 4
        %v1340 = vrot.slane %v311, 5
        %v1341 = vsel %vm1320, %v1339, %v1340
        %v1342 = vrot.slane %v1271, 5
        %v1343 = vrot.slane %v1342, 4
        %v1344 = vrot.slane %v283, 5
        %v1345 = vsel %vm1320, %v1343, %v1344
        %v1346 = vrot.slane %v1344, 4
        %v1347 = vrot.slane %v312, 5
        %v1348 = vsel %vm1320, %v1346, %v1347
        %v1349 = vrot.slane %v1272, 5
        %v1350 = vrot.slane %v1349, 4
        %v1351 = vrot.slane %v285, 5
        %v1352 = vsel %vm1320, %v1350, %v1351
        %v1353 = vrot.slane %v1351, 4
        %v1354 = vrot.slane %v313, 5
        %v1355 = vsel %vm1320, %v1353, %v1354
        %v1356 = vrot.slane %v1273, 5
        %v1357 = vrot.slane %v1356, 4
        %v1358 = vrot.slane %v287, 5
        %v1359 = vsel %vm1320, %v1357, %v1358
        %v1360 = vrot.slane %v1358, 4
        %v1361 = vrot.slane %v314, 5
        %v1362 = vsel %vm1320, %v1360, %v1361
        %v1363 = vrot.slane %v1274, 5
        %v1364 = vrot.slane %v1363, 4
        %v1365 = vrot.slane %v289, 5
        %v1366 = vsel %vm1320, %v1364, %v1365
        %v1367 = vrot.slane %v1365, 4
        %v1368 = vrot.slane %v315, 5
        %v1369 = vsel %vm1320, %v1367, %v1368
        %v1370 = vrot.slane %v1275, 5
        %v1371 = vrot.slane %v1370, 4
        %v1372 = vrot.slane %v291, 5
        %v1373 = vsel %vm1320, %v1371, %v1372
        %v1374 = vrot.slane %v1372, 4
        %v1375 = vrot.slane %v316, 5
        %v1376 = vsel %vm1320, %v1374, %v1375
        %v1377 = vrot.slane %v1276, 5
        %v1378 = vrot.slane %v1377, 4
        %v1379 = vrot.slane %v293, 5
        %v1380 = vsel %vm1320, %v1378, %v1379
        %v1381 = vrot.slane %v1379, 4
        %v1382 = vrot.slane %v317, 5
        %v1383 = vsel %vm1320, %v1381, %v1382
        %v1384 = vrot.slane %v1277, 5
        %v1385 = vrot.slane %v1384, 4
        %v1386 = vrot.slane %v295, 5
        %v1387 = vsel %vm1320, %v1385, %v1386
        %v1388 = vrot.slane %v1386, 4
        %v1389 = vrot.slane %v318, 5
        %v1390 = vsel %vm1320, %v1388, %v1389
        %v1391 = vrot.slane %v1278, 5
        %v1392 = vrot.slane %v1391, 4
        %v1393 = vrot.slane %v297, 5
        %v1394 = vsel %vm1320, %v1392, %v1393
        %v1395 = vrot.slane %v1393, 4
        %v1396 = vrot.slane %v319, 5
        %v1397 = vsel %vm1320, %v1395, %v1396
        %v1398 = vrot.slane %v1279, 5
        %v1399 = vrot.slane %v1398, 4
        %v1400 = vrot.slane %v299, 5
        %v1401 = vsel %vm1320, %v1399, %v1400
        %v1402 = vrot.slane %v1400, 4
        %v1403 = vrot.slane %v320, 5
        %v1404 = vsel %vm1320, %v1402, %v1403
        %v1405 = vrot.slane %v1280, 5
        %v1406 = vrot.slane %v1405, 4
        %v1407 = vrot.slane %v301, 5
        %v1408 = vsel %vm1320, %v1406, %v1407
        %v1409 = vrot.slane %v1407, 4
        %v1410 = vrot.slane %v321, 5
        %v1411 = vsel %vm1320, %v1409, %v1410
        %v1412 = vrot.slane %v1281, 5
        %v1413 = vrot.slane %v1412, 4
        %v1414 = vrot.slane %v303, 5
        %v1415 = vsel %vm1320, %v1413, %v1414
        %v1416 = vrot.slane %v1414, 4
        %v1417 = vrot.slane %v322, 5
        %v1418 = vsel %vm1320, %v1416, %v1417
        %v1419 = vrot.slane %v1282, 5
        %v1420 = vrot.slane %v1419, 4
        %v1421 = vrot.slane %v305, 5
        %v1422 = vsel %vm1320, %v1420, %v1421
        %v1423 = vrot.slane %v1421, 4
        %v1424 = vrot.slane %v323, 5
        %v1425 = vsel %vm1320, %v1423, %v1424
        %v1426 = vrot.slane %v1283, 5
        %v1427 = vrot.slane %v1426, 4
        %v1428 = vrot.slane %v307, 5
        %v1429 = vsel %vm1320, %v1427, %v1428
        %v1430 = vrot.slane %v1428, 4
        %v1431 = vrot.slane %v324, 5
        %v1432 = vsel %vm1320, %v1430, %v1431
        %v1433 = vunpack.c.l.b16 %v1324
        %v1434 = vunpack.c.l.b16 %v1327
        %v1435 = vunpack.c.l.b16 %v1331
        %v1436 = vunpack.c.l.b16 %v1334
        %v1437 = vunpack.c.l.b16 %v1338
        %v1438 = vunpack.c.l.b16 %v1341
        %v1439 = vunpack.c.l.b16 %v1345
        %v1440 = vunpack.c.l.b16 %v1348
        %v1441 = vunpack.c.l.b16 %v1352
        %v1442 = vunpack.c.l.b16 %v1355
        %v1443 = vunpack.c.l.b16 %v1359
        %v1444 = vunpack.c.l.b16 %v1362
        %v1445 = vunpack.c.l.b16 %v1366
        %v1446 = vunpack.c.l.b16 %v1369
        %v1447 = vunpack.c.l.b16 %v1373
        %v1448 = vunpack.c.l.b16 %v1376
        %v1449 = vunpack.c.l.b16 %v1380
        %v1450 = vunpack.c.l.b16 %v1383
        %v1451 = vunpack.c.l.b16 %v1387
        %v1452 = vunpack.c.l.b16 %v1390
        %v1453 = vunpack.c.l.b16 %v1394
        %v1454 = vunpack.c.l.b16 %v1397
        %v1455 = vunpack.c.l.b16 %v1401
        %v1456 = vunpack.c.l.b16 %v1404
        %v1457 = vunpack.c.l.b16 %v1408
        %v1458 = vunpack.c.l.b16 %v1411
        %v1459 = vunpack.c.l.b16 %v1415
        %v1460 = vunpack.c.l.b16 %v1418
        %v1461 = vunpack.c.l.b16 %v1422
        %v1462 = vunpack.c.l.b16 %v1425
        %v1463 = vunpack.c.l.b16 %v1429
        %v1464 = vunpack.c.l.b16 %v1432
        %v1465 = vpack.c.b16 %v1434, %v1433
        %v1466 = vpack.c.b16 %v1436, %v1435
        %v1467 = vpack.c.b16 %v1438, %v1437
        %v1468 = vpack.c.b16 %v1440, %v1439
        %v1469 = vpack.c.b16 %v1442, %v1441
        %v1470 = vpack.c.b16 %v1444, %v1443
        %v1471 = vpack.c.b16 %v1446, %v1445
        %v1472 = vpack.c.b16 %v1448, %v1447
        %v1473 = vpack.c.b16 %v1450, %v1449
        %v1474 = vpack.c.b16 %v1452, %v1451
        %v1475 = vpack.c.b16 %v1454, %v1453
        %v1476 = vpack.c.b16 %v1456, %v1455
        %v1477 = vpack.c.b16 %v1458, %v1457
        %v1478 = vpack.c.b16 %v1460, %v1459
        %v1479 = vpack.c.b16 %v1462, %v1461
        %v1480 = vpack.c.b16 %v1464, %v1463
        %v1482 = vsel %vm762, %v1465, 0
        %v1485 = vsel %vm762, %v1466, 0
        %v1488 = vsel %vm762, %v1467, 0
        %v1491 = vsel %vm762, %v1468, 0
        %v1494 = vsel %vm762, %v1469, 0
        %v1497 = vsel %vm762, %v1470, 0
        %v1500 = vsel %vm762, %v1471, 0
        %v1503 = vsel %vm762, %v1472, 0
        %v1506 = vsel %vm762, %v1473, 0
        %v1509 = vsel %vm762, %v1474, 0
        %v1512 = vsel %vm762, %v1475, 0
        %v1515 = vsel %vm762, %v1476, 0
        %v1518 = vsel %vm762, %v1477, 0
        %v1521 = vsel %vm762, %v1478, 0
        %v1524 = vsel %vm762, %v1479, 0
        %v1527 = vsel %vm762, %v1480, 0
        %v1530 = vsel %vm811, %v1285, 0
        %1532 = vmatprep.subr.bf16.mxu0 0
        %1533 = vmatpush1.bf16.msra.mxu0 %v1530
        %1534 = vmatprep.subr.bf16.mxu0 0
        %1535 = vmatpush1.bf16.msra.mxu0 0
        %1536 = vmatprep.subr.bf16.mxu0 0
        %1537 = vmatpush1.bf16.msra.mxu0 0
        %1538 = vmatprep.subr.bf16.mxu0 0
        %1539 = vmatpush1.bf16.msra.mxu0 0
        %1540 = vmatprep.subr.bf16.mxu0 0
        %1541 = vmatpush1.bf16.msra.mxu0 0
        %1542 = vmatprep.subr.bf16.mxu0 0
        %1543 = vmatpush1.bf16.msra.mxu0 0
        %1544 = vmatprep.subr.bf16.mxu0 0
        %1545 = vmatpush1.bf16.msra.mxu0 0
        %1546 = vmatprep.subr.bf16.mxu0 0
        %1547 = vmatpush1.bf16.msra.mxu0 0
        %1548 = vmatprep.subr.bf16.mxu0 0
        %1549 = vmatpush1.bf16.msra.mxu0 0
        %1550 = vmatprep.subr.bf16.mxu0 0
        %1551 = vmatpush1.bf16.msra.mxu0 0
        %1552 = vmatprep.subr.bf16.mxu0 0
        %1553 = vmatpush1.bf16.msra.mxu0 0
        %1554 = vmatprep.subr.bf16.mxu0 0
        %1555 = vmatpush1.bf16.msra.mxu0 0
        %1556 = vmatprep.subr.bf16.mxu0 0
        %1557 = vmatpush1.bf16.msra.mxu0 0
        %1558 = vmatprep.subr.bf16.mxu0 0
        %1559 = vmatpush1.bf16.msra.mxu0 0
        %1560 = vmatprep.subr.bf16.mxu0 0
        %1561 = vmatpush1.bf16.msra.mxu0 0
        %1562 = vmatprep.subr.bf16.mxu0 0
        %1563 = vmatpush1.bf16.msra.mxu0 0
        %1564 = vmatprep.mubr.bf16.mxu0 0
        %1565 = vmatmul.mubr.bf16.gmra.mrb[0].mxu0 %v1482
        %v1566 = vpop.f32.mrb[0].mxu0
        %v1567 = vadd.f32 0.0, %v1566
        %v1568 = vpop.f32.mrb[0].mxu0
        %v1569 = vpop.f32.mrb[0].mxu0
        %v1570 = vadd.f32 0.0, %v1569
        %v1571 = vpop.f32.mrb[0].mxu0
        %1572 = vmatprep.mubr.bf16.mxu0 0
        %1573 = vmatmul.mubr.bf16.gmra.mrb[0].mxu0 %v1485
        %v1574 = vpop.f32.mrb[0].mxu0
        %v1575 = vadd.f32 0.0, %v1574
        %v1576 = vpop.f32.mrb[0].mxu0
        %v1577 = vpop.f32.mrb[0].mxu0
        %v1578 = vadd.f32 0.0, %v1577
        %v1579 = vpop.f32.mrb[0].mxu0
        %1580 = vmatprep.mubr.bf16.mxu0 0
        %1581 = vmatmul.mubr.bf16.gmra.mrb[0].mxu0 %v1488
        %v1582 = vpop.f32.mrb[0].mxu0
        %v1583 = vadd.f32 0.0, %v1582
        %v1584 = vpop.f32.mrb[0].mxu0
        %v1585 = vpop.f32.mrb[0].mxu0
        %v1586 = vadd.f32 0.0, %v1585
        %v1587 = vpop.f32.mrb[0].mxu0
        %1588 = vmatprep.mubr.bf16.mxu0 0
        %1589 = vmatmul.mubr.bf16.gmra.mrb[0].mxu0 %v1491
        %v1590 = vpop.f32.mrb[0].mxu0
        %v1591 = vadd.f32 0.0, %v1590
        %v1592 = vpop.f32.mrb[0].mxu0
        %v1593 = vpop.f32.mrb[0].mxu0
        %v1594 = vadd.f32 0.0, %v1593
        %v1595 = vpop.f32.mrb[0].mxu0
        %1596 = vmatprep.mubr.bf16.mxu0 0
        %1597 = vmatmul.mubr.bf16.gmra.mrb[0].mxu0 %v1494
        %v1598 = vpop.f32.mrb[0].mxu0
        %v1599 = vadd.f32 0.0, %v1598
        %v1600 = vpop.f32.mrb[0].mxu0
        %v1601 = vpop.f32.mrb[0].mxu0
        %v1602 = vadd.f32 0.0, %v1601
        %v1603 = vpop.f32.mrb[0].mxu0
        %1604 = vmatprep.mubr.bf16.mxu0 0
        %1605 = vmatmul.mubr.bf16.gmra.mrb[0].mxu0 %v1497
        %v1606 = vpop.f32.mrb[0].mxu0
        %v1607 = vadd.f32 0.0, %v1606
        %v1608 = vpop.f32.mrb[0].mxu0
        %v1609 = vpop.f32.mrb[0].mxu0
        %v1610 = vadd.f32 0.0, %v1609
        %v1611 = vpop.f32.mrb[0].mxu0
        %1612 = vmatprep.mubr.bf16.mxu0 0
        %1613 = vmatmul.mubr.bf16.gmra.mrb[0].mxu0 %v1500
        %v1614 = vpop.f32.mrb[0].mxu0
        %v1615 = vadd.f32 0.0, %v1614
        %v1616 = vpop.f32.mrb[0].mxu0
        %v1617 = vpop.f32.mrb[0].mxu0
        %v1618 = vadd.f32 0.0, %v1617
        %v1619 = vpop.f32.mrb[0].mxu0
        %1620 = vmatprep.mubr.bf16.mxu0 0
        %1621 = vmatmul.mubr.bf16.gmra.mrb[0].mxu0 %v1503
        %v1622 = vpop.f32.mrb[0].mxu0
        %v1623 = vadd.f32 0.0, %v1622
        %v1624 = vpop.f32.mrb[0].mxu0
        %v1625 = vpop.f32.mrb[0].mxu0
        %v1626 = vadd.f32 0.0, %v1625
        %v1627 = vpop.f32.mrb[0].mxu0
        %1628 = vmatprep.mubr.bf16.mxu0 0
        %1629 = vmatmul.mubr.bf16.gmra.mrb[0].mxu0 %v1506
        %v1630 = vpop.f32.mrb[0].mxu0
        %v1631 = vadd.f32 0.0, %v1630
        %v1632 = vpop.f32.mrb[0].mxu0
        %v1633 = vpop.f32.mrb[0].mxu0
        %v1634 = vadd.f32 0.0, %v1633
        %v1635 = vpop.f32.mrb[0].mxu0
        %1636 = vmatprep.mubr.bf16.mxu0 0
        %1637 = vmatmul.mubr.bf16.gmra.mrb[0].mxu0 %v1509
        %v1638 = vpop.f32.mrb[0].mxu0
        %v1639 = vadd.f32 0.0, %v1638
        %v1640 = vpop.f32.mrb[0].mxu0
        %v1641 = vpop.f32.mrb[0].mxu0
        %v1642 = vadd.f32 0.0, %v1641
        %v1643 = vpop.f32.mrb[0].mxu0
        %1644 = vmatprep.mubr.bf16.mxu0 0
        %1645 = vmatmul.mubr.bf16.gmra.mrb[0].mxu0 %v1512
        %v1646 = vpop.f32.mrb[0].mxu0
        %v1647 = vadd.f32 0.0, %v1646
        %v1648 = vpop.f32.mrb[0].mxu0
        %v1649 = vpop.f32.mrb[0].mxu0
        %v1650 = vadd.f32 0.0, %v1649
        %v1651 = vpop.f32.mrb[0].mxu0
        %1652 = vmatprep.mubr.bf16.mxu0 0
        %1653 = vmatmul.mubr.bf16.gmra.mrb[0].mxu0 %v1515
        %v1654 = vpop.f32.mrb[0].mxu0
        %v1655 = vadd.f32 0.0, %v1654
        %v1656 = vpop.f32.mrb[0].mxu0
        %v1657 = vpop.f32.mrb[0].mxu0
        %v1658 = vadd.f32 0.0, %v1657
        %v1659 = vpop.f32.mrb[0].mxu0
        %1660 = vmatprep.mubr.bf16.mxu0 0
        %1661 = vmatmul.mubr.bf16.gmra.mrb[0].mxu0 %v1518
        %v1662 = vpop.f32.mrb[0].mxu0
        %v1663 = vadd.f32 0.0, %v1662
        %v1664 = vpop.f32.mrb[0].mxu0
        %v1665 = vpop.f32.mrb[0].mxu0
        %v1666 = vadd.f32 0.0, %v1665
        %v1667 = vpop.f32.mrb[0].mxu0
        %1668 = vmatprep.mubr.bf16.mxu0 0
        %1669 = vmatmul.mubr.bf16.gmra.mrb[0].mxu0 %v1521
        %v1670 = vpop.f32.mrb[0].mxu0
        %v1671 = vadd.f32 0.0, %v1670
        %v1672 = vpop.f32.mrb[0].mxu0
        %v1673 = vpop.f32.mrb[0].mxu0
        %v1674 = vadd.f32 0.0, %v1673
        %v1675 = vpop.f32.mrb[0].mxu0
        %1676 = vmatprep.mubr.bf16.mxu0 0
        %1677 = vmatmul.mubr.bf16.gmra.mrb[0].mxu0 %v1524
        %v1678 = vpop.f32.mrb[0].mxu0
        %v1679 = vadd.f32 0.0, %v1678
        %v1680 = vpop.f32.mrb[0].mxu0
        %v1681 = vpop.f32.mrb[0].mxu0
        %v1682 = vadd.f32 0.0, %v1681
        %v1683 = vpop.f32.mrb[0].mxu0
        %1684 = vmatprep.mubr.bf16.mxu0 0
        %1685 = vmatmul.mubr.bf16.gmra.mrb[0].mxu0 %v1527
        %v1686 = vpop.f32.mrb[0].mxu0
        %v1687 = vadd.f32 0.0, %v1686
        %v1688 = vpop.f32.mrb[0].mxu0
        %v1689 = vpop.f32.mrb[0].mxu0
        %v1690 = vadd.f32 0.0, %v1689
        %v1691 = vpop.f32.mrb[0].mxu0
        %1692 = vdwg.mxu0
        %v1693 = vadd.f32 %v1142, %v1567
        %v1694 = vadd.f32 %v1145, %v1570
        %v1695 = vadd.f32 %v1150, %v1575
        %v1696 = vadd.f32 %v1153, %v1578
        %v1697 = vadd.f32 %v1158, %v1583
        %v1698 = vadd.f32 %v1161, %v1586
        %v1699 = vadd.f32 %v1166, %v1591
        %v1700 = vadd.f32 %v1169, %v1594
        %v1701 = vadd.f32 %v1174, %v1599
        %v1702 = vadd.f32 %v1177, %v1602
        %v1703 = vadd.f32 %v1182, %v1607
        %v1704 = vadd.f32 %v1185, %v1610
        %v1705 = vadd.f32 %v1190, %v1615
        %v1706 = vadd.f32 %v1193, %v1618
        %v1707 = vadd.f32 %v1198, %v1623
        %v1708 = vadd.f32 %v1201, %v1626
        %v1709 = vadd.f32 %v1206, %v1631
        %v1710 = vadd.f32 %v1209, %v1634
        %v1711 = vadd.f32 %v1214, %v1639
        %v1712 = vadd.f32 %v1217, %v1642
        %v1713 = vadd.f32 %v1222, %v1647
        %v1714 = vadd.f32 %v1225, %v1650
        %v1715 = vadd.f32 %v1230, %v1655
        %v1716 = vadd.f32 %v1233, %v1658
        %v1717 = vadd.f32 %v1238, %v1663
        %v1718 = vadd.f32 %v1241, %v1666
        %v1719 = vadd.f32 %v1246, %v1671
        %v1720 = vadd.f32 %v1249, %v1674
        %v1721 = vadd.f32 %v1254, %v1679
        %v1722 = vadd.f32 %v1257, %v1682
        %v1723 = vadd.f32 %v1262, %v1687
        %v1724 = vadd.f32 %v1265, %v1690
        %s1725 = sadd.s32 %s272, 1
        %s1726 = smul.u32 %s1725, 3
        %s1727 = smul.addr %s1726, 4
        %s1728 = scalar_lea.vmem %s233, %s1727 [#allocation2]
        %v1729 = vld [vmem:[%s1728] sm:$0xf]
        %v1730 = vld [vmem:[%s1728 + $0x4] sm:$0xf]
        %v1731 = vld [vmem:[%s1728 + $0xc] sm:$0xf]
        %v1732 = vld [vmem:[%s1728 + $0x10] sm:$0xf]
        %v1733 = vld [vmem:[%s1728 + $0x18] sm:$0xf]
        %v1734 = vld [vmem:[%s1728 + $0x1c] sm:$0xf]
        %v1735 = vld [vmem:[%s1728 + $0x24] sm:$0xf]
        %v1736 = vld [vmem:[%s1728 + $0x28] sm:$0xf]
        %v1737 = vld [vmem:[%s1728 + $0x30] sm:$0xf]
        %v1738 = vld [vmem:[%s1728 + $0x34] sm:$0xf]
        %v1739 = vld [vmem:[%s1728 + $0x3c] sm:$0xf]
        %v1740 = vld [vmem:[%s1728 + $0x40] sm:$0xf]
        %v1741 = vld [vmem:[%s1728 + $0x48] sm:$0xf]
        %v1742 = vld [vmem:[%s1728 + $0x4c] sm:$0xf]
        %v1743 = vld [vmem:[%s1728 + $0x54] sm:$0xf]
        %v1744 = vld [vmem:[%s1728 + $0x58] sm:$0xf]
        %v1745 = vld [vmem:[%s1728 + $0x60] sm:$0xf]
        %v1746 = vld [vmem:[%s1728 + $0x64] sm:$0xf]
        %v1747 = vld [vmem:[%s1728 + $0x6c] sm:$0xf]
        %v1748 = vld [vmem:[%s1728 + $0x70] sm:$0xf]
        %v1749 = vld [vmem:[%s1728 + $0x78] sm:$0xf]
        %v1750 = vld [vmem:[%s1728 + $0x7c] sm:$0xf]
        %v1751 = vld [vmem:[%s1728 + $0x84] sm:$0xf]
        %v1752 = vld [vmem:[%s1728 + $0x88] sm:$0xf]
        %v1753 = vld [vmem:[%s1728 + $0x90] sm:$0xf]
        %v1754 = vld [vmem:[%s1728 + $0x94] sm:$0xf]
        %v1755 = vld [vmem:[%s1728 + $0x9c] sm:$0xf]
        %v1756 = vld [vmem:[%s1728 + $0xa0] sm:$0xf]
        %v1757 = vld [vmem:[%s1728 + $0xa8] sm:$0xf]
        %v1758 = vld [vmem:[%s1728 + $0xac] sm:$0xf]
        %v1759 = vld [vmem:[%s1728 + $0xb4] sm:$0xf]
        %v1760 = vld [vmem:[%s1728 + $0xb8] sm:$0xf]
        %s1761 = scalar_lea.vmem [#allocation5], 6
        %v1762 = vld [vmem:[%s1761] sm:$0x3]
        %v1795 = vunpack.c.l.b16 %v1729
        %v1796 = vunpack.c.l.b16 %v1730
        %v1797 = vunpack.c.l.b16 %v1731
        %v1798 = vunpack.c.l.b16 %v1732
        %v1799 = vunpack.c.l.b16 %v1733
        %v1800 = vunpack.c.l.b16 %v1734
        %v1801 = vunpack.c.l.b16 %v1735
        %v1802 = vunpack.c.l.b16 %v1736
        %v1803 = vunpack.c.l.b16 %v1737
        %v1804 = vunpack.c.l.b16 %v1738
        %v1805 = vunpack.c.l.b16 %v1739
        %v1806 = vunpack.c.l.b16 %v1740
        %v1807 = vunpack.c.l.b16 %v1741
        %v1808 = vunpack.c.l.b16 %v1742
        %v1809 = vunpack.c.l.b16 %v1743
        %v1810 = vunpack.c.l.b16 %v1744
        %v1811 = vunpack.c.l.b16 %v1745
        %v1812 = vunpack.c.l.b16 %v1746
        %v1813 = vunpack.c.l.b16 %v1747
        %v1814 = vunpack.c.l.b16 %v1748
        %v1815 = vunpack.c.l.b16 %v1749
        %v1816 = vunpack.c.l.b16 %v1750
        %v1817 = vunpack.c.l.b16 %v1751
        %v1818 = vunpack.c.l.b16 %v1752
        %v1819 = vunpack.c.l.b16 %v1753
        %v1820 = vunpack.c.l.b16 %v1754
        %v1821 = vunpack.c.l.b16 %v1755
        %v1822 = vunpack.c.l.b16 %v1756
        %v1823 = vunpack.c.l.b16 %v1757
        %v1824 = vunpack.c.l.b16 %v1758
        %v1825 = vunpack.c.l.b16 %v1759
        %v1826 = vunpack.c.l.b16 %v1760
        %v1827 = vpack.c.b16 %v1796, %v1795
        %v1828 = vpack.c.b16 %v1798, %v1797
        %v1829 = vpack.c.b16 %v1800, %v1799
        %v1830 = vpack.c.b16 %v1802, %v1801
        %v1831 = vpack.c.b16 %v1804, %v1803
        %v1832 = vpack.c.b16 %v1806, %v1805
        %v1833 = vpack.c.b16 %v1808, %v1807
        %v1834 = vpack.c.b16 %v1810, %v1809
        %v1835 = vpack.c.b16 %v1812, %v1811
        %v1836 = vpack.c.b16 %v1814, %v1813
        %v1837 = vpack.c.b16 %v1816, %v1815
        %v1838 = vpack.c.b16 %v1818, %v1817
        %v1839 = vpack.c.b16 %v1820, %v1819
        %v1840 = vpack.c.b16 %v1822, %v1821
        %v1841 = vpack.c.b16 %v1824, %v1823
        %v1842 = vpack.c.b16 %v1826, %v1825
        %v1844 = vsel %vm762, %v1827, 0
        %v1847 = vsel %vm762, %v1828, 0
        %v1850 = vsel %vm762, %v1829, 0
        %v1853 = vsel %vm762, %v1830, 0
        %v1856 = vsel %vm762, %v1831, 0
        %v1859 = vsel %vm762, %v1832, 0
        %v1862 = vsel %vm762, %v1833, 0
        %v1865 = vsel %vm762, %v1834, 0
        %v1868 = vsel %vm762, %v1835, 0
        %v1871 = vsel %vm762, %v1836, 0
        %v1874 = vsel %vm762, %v1837, 0
        %v1877 = vsel %vm762, %v1838, 0
        %v1880 = vsel %vm762, %v1839, 0
        %v1883 = vsel %vm762, %v1840, 0
        %v1886 = vsel %vm762, %v1841, 0
        %v1889 = vsel %vm762, %v1842, 0
        %v1892 = vsel %vm811, %v1762, 0
        %1894 = vmatprep.subr.bf16.mxu0 0
        %1895 = vmatpush1.bf16.msra.mxu0 %v1892
        %1896 = vmatprep.subr.bf16.mxu0 0
        %1897 = vmatpush1.bf16.msra.mxu0 0
        %1898 = vmatprep.subr.bf16.mxu0 0
        %1899 = vmatpush1.bf16.msra.mxu0 0
        %1900 = vmatprep.subr.bf16.mxu0 0
        %1901 = vmatpush1.bf16.msra.mxu0 0
        %1902 = vmatprep.subr.bf16.mxu0 0
        %1903 = vmatpush1.bf16.msra.mxu0 0
        %1904 = vmatprep.subr.bf16.mxu0 0
        %1905 = vmatpush1.bf16.msra.mxu0 0
        %1906 = vmatprep.subr.bf16.mxu0 0
        %1907 = vmatpush1.bf16.msra.mxu0 0
        %1908 = vmatprep.subr.bf16.mxu0 0
        %1909 = vmatpush1.bf16.msra.mxu0 0
        %1910 = vmatprep.subr.bf16.mxu0 0
        %1911 = vmatpush1.bf16.msra.mxu0 0
        %1912 = vmatprep.subr.bf16.mxu0 0
        %1913 = vmatpush1.bf16.msra.mxu0 0
        %1914 = vmatprep.subr.bf16.mxu0 0
        %1915 = vmatpush1.bf16.msra.mxu0 0
        %1916 = vmatprep.subr.bf16.mxu0 0
        %1917 = vmatpush1.bf16.msra.mxu0 0
        %1918 = vmatprep.subr.bf16.mxu0 0
        %1919 = vmatpush1.bf16.msra.mxu0 0
        %1920 = vmatprep.subr.bf16.mxu0 0
        %1921 = vmatpush1.bf16.msra.mxu0 0
        %1922 = vmatprep.subr.bf16.mxu0 0
        %1923 = vmatpush1.bf16.msra.mxu0 0
        %1924 = vmatprep.subr.bf16.mxu0 0
        %1925 = vmatpush1.bf16.msra.mxu0 0
        %1926 = vmatprep.mubr.bf16.mxu0 0
        %1927 = vmatmul.mubr.bf16.gmra.mrb[0].mxu0 %v1844
        %v1928 = vpop.f32.mrb[0].mxu0
        %v1929 = vadd.f32 0.0, %v1928
        %v1930 = vpop.f32.mrb[0].mxu0
        %v1931 = vpop.f32.mrb[0].mxu0
        %v1932 = vadd.f32 0.0, %v1931
        %v1933 = vpop.f32.mrb[0].mxu0
        %1934 = vmatprep.mubr.bf16.mxu0 0
        %1935 = vmatmul.mubr.bf16.gmra.mrb[0].mxu0 %v1847
        %v1936 = vpop.f32.mrb[0].mxu0
        %v1937 = vadd.f32 0.0, %v1936
        %v1938 = vpop.f32.mrb[0].mxu0
        %v1939 = vpop.f32.mrb[0].mxu0
        %v1940 = vadd.f32 0.0, %v1939
        %v1941 = vpop.f32.mrb[0].mxu0
        %1942 = vmatprep.mubr.bf16.mxu0 0
        %1943 = vmatmul.mubr.bf16.gmra.mrb[0].mxu0 %v1850
        %v1944 = vpop.f32.mrb[0].mxu0
        %v1945 = vadd.f32 0.0, %v1944
        %v1946 = vpop.f32.mrb[0].mxu0
        %v1947 = vpop.f32.mrb[0].mxu0
        %v1948 = vadd.f32 0.0, %v1947
        %v1949 = vpop.f32.mrb[0].mxu0
        %1950 = vmatprep.mubr.bf16.mxu0 0
        %1951 = vmatmul.mubr.bf16.gmra.mrb[0].mxu0 %v1853
        %v1952 = vpop.f32.mrb[0].mxu0
        %v1953 = vadd.f32 0.0, %v1952
        %v1954 = vpop.f32.mrb[0].mxu0
        %v1955 = vpop.f32.mrb[0].mxu0
        %v1956 = vadd.f32 0.0, %v1955
        %v1957 = vpop.f32.mrb[0].mxu0
        %1958 = vmatprep.mubr.bf16.mxu0 0
        %1959 = vmatmul.mubr.bf16.gmra.mrb[0].mxu0 %v1856
        %v1960 = vpop.f32.mrb[0].mxu0
        %v1961 = vadd.f32 0.0, %v1960
        %v1962 = vpop.f32.mrb[0].mxu0
        %v1963 = vpop.f32.mrb[0].mxu0
        %v1964 = vadd.f32 0.0, %v1963
        %v1965 = vpop.f32.mrb[0].mxu0
        %1966 = vmatprep.mubr.bf16.mxu0 0
        %1967 = vmatmul.mubr.bf16.gmra.mrb[0].mxu0 %v1859
        %v1968 = vpop.f32.mrb[0].mxu0
        %v1969 = vadd.f32 0.0, %v1968
        %v1970 = vpop.f32.mrb[0].mxu0
        %v1971 = vpop.f32.mrb[0].mxu0
        %v1972 = vadd.f32 0.0, %v1971
        %v1973 = vpop.f32.mrb[0].mxu0
        %1974 = vmatprep.mubr.bf16.mxu0 0
        %1975 = vmatmul.mubr.bf16.gmra.mrb[0].mxu0 %v1862
        %v1976 = vpop.f32.mrb[0].mxu0
        %v1977 = vadd.f32 0.0, %v1976
        %v1978 = vpop.f32.mrb[0].mxu0
        %v1979 = vpop.f32.mrb[0].mxu0
        %v1980 = vadd.f32 0.0, %v1979
        %v1981 = vpop.f32.mrb[0].mxu0
        %1982 = vmatprep.mubr.bf16.mxu0 0
        %1983 = vmatmul.mubr.bf16.gmra.mrb[0].mxu0 %v1865
        %v1984 = vpop.f32.mrb[0].mxu0
        %v1985 = vadd.f32 0.0, %v1984
        %v1986 = vpop.f32.mrb[0].mxu0
        %v1987 = vpop.f32.mrb[0].mxu0
        %v1988 = vadd.f32 0.0, %v1987
        %v1989 = vpop.f32.mrb[0].mxu0
        %1990 = vmatprep.mubr.bf16.mxu0 0
        %1991 = vmatmul.mubr.bf16.gmra.mrb[0].mxu0 %v1868
        %v1992 = vpop.f32.mrb[0].mxu0
        %v1993 = vadd.f32 0.0, %v1992
        %v1994 = vpop.f32.mrb[0].mxu0
        %v1995 = vpop.f32.mrb[0].mxu0
        %v1996 = vadd.f32 0.0, %v1995
        %v1997 = vpop.f32.mrb[0].mxu0
        %1998 = vmatprep.mubr.bf16.mxu0 0
        %1999 = vmatmul.mubr.bf16.gmra.mrb[0].mxu0 %v1871
        %v2000 = vpop.f32.mrb[0].mxu0
        %v2001 = vadd.f32 0.0, %v2000
        %v2002 = vpop.f32.mrb[0].mxu0
        %v2003 = vpop.f32.mrb[0].mxu0
        %v2004 = vadd.f32 0.0, %v2003
        %v2005 = vpop.f32.mrb[0].mxu0
        %2006 = vmatprep.mubr.bf16.mxu0 0
        %2007 = vmatmul.mubr.bf16.gmra.mrb[0].mxu0 %v1874
        %v2008 = vpop.f32.mrb[0].mxu0
        %v2009 = vadd.f32 0.0, %v2008
        %v2010 = vpop.f32.mrb[0].mxu0
        %v2011 = vpop.f32.mrb[0].mxu0
        %v2012 = vadd.f32 0.0, %v2011
        %v2013 = vpop.f32.mrb[0].mxu0
        %2014 = vmatprep.mubr.bf16.mxu0 0
        %2015 = vmatmul.mubr.bf16.gmra.mrb[0].mxu0 %v1877
        %v2016 = vpop.f32.mrb[0].mxu0
        %v2017 = vadd.f32 0.0, %v2016
        %v2018 = vpop.f32.mrb[0].mxu0
        %v2019 = vpop.f32.mrb[0].mxu0
        %v2020 = vadd.f32 0.0, %v2019
        %v2021 = vpop.f32.mrb[0].mxu0
        %2022 = vmatprep.mubr.bf16.mxu0 0
        %2023 = vmatmul.mubr.bf16.gmra.mrb[0].mxu0 %v1880
        %v2024 = vpop.f32.mrb[0].mxu0
        %v2025 = vadd.f32 0.0, %v2024
        %v2026 = vpop.f32.mrb[0].mxu0
        %v2027 = vpop.f32.mrb[0].mxu0
        %v2028 = vadd.f32 0.0, %v2027
        %v2029 = vpop.f32.mrb[0].mxu0
        %2030 = vmatprep.mubr.bf16.mxu0 0
        %2031 = vmatmul.mubr.bf16.gmra.mrb[0].mxu0 %v1883
        %v2032 = vpop.f32.mrb[0].mxu0
        %v2033 = vadd.f32 0.0, %v2032
        %v2034 = vpop.f32.mrb[0].mxu0
        %v2035 = vpop.f32.mrb[0].mxu0
        %v2036 = vadd.f32 0.0, %v2035
        %v2037 = vpop.f32.mrb[0].mxu0
        %2038 = vmatprep.mubr.bf16.mxu0 0
        %2039 = vmatmul.mubr.bf16.gmra.mrb[0].mxu0 %v1886
        %v2040 = vpop.f32.mrb[0].mxu0
        %v2041 = vadd.f32 0.0, %v2040
        %v2042 = vpop.f32.mrb[0].mxu0
        %v2043 = vpop.f32.mrb[0].mxu0
        %v2044 = vadd.f32 0.0, %v2043
        %v2045 = vpop.f32.mrb[0].mxu0
        %2046 = vmatprep.mubr.bf16.mxu0 0
        %2047 = vmatmul.mubr.bf16.gmra.mrb[0].mxu0 %v1889
        %v2048 = vpop.f32.mrb[0].mxu0
        %v2049 = vadd.f32 0.0, %v2048
        %v2050 = vpop.f32.mrb[0].mxu0
        %v2051 = vpop.f32.mrb[0].mxu0
        %v2052 = vadd.f32 0.0, %v2051
        %v2053 = vpop.f32.mrb[0].mxu0
        %2054 = vdwg.mxu0
        %v2055 = vadd.f32 %v1693, %v1929
        %v2056 = vadd.f32 %v1694, %v1932
        %v2057 = vadd.f32 %v1695, %v1937
        %v2058 = vadd.f32 %v1696, %v1940
        %v2059 = vadd.f32 %v1697, %v1945
        %v2060 = vadd.f32 %v1698, %v1948
        %v2061 = vadd.f32 %v1699, %v1953
        %v2062 = vadd.f32 %v1700, %v1956
        %v2063 = vadd.f32 %v1701, %v1961
        %v2064 = vadd.f32 %v1702, %v1964
        %v2065 = vadd.f32 %v1703, %v1969
        %v2066 = vadd.f32 %v1704, %v1972
        %v2067 = vadd.f32 %v1705, %v1977
        %v2068 = vadd.f32 %v1706, %v1980
        %v2069 = vadd.f32 %v1707, %v1985
        %v2070 = vadd.f32 %v1708, %v1988
        %v2071 = vadd.f32 %v1709, %v1993
        %v2072 = vadd.f32 %v1710, %v1996
        %v2073 = vadd.f32 %v1711, %v2001
        %v2074 = vadd.f32 %v1712, %v2004
        %v2075 = vadd.f32 %v1713, %v2009
        %v2076 = vadd.f32 %v1714, %v2012
        %v2077 = vadd.f32 %v1715, %v2017
        %v2078 = vadd.f32 %v1716, %v2020
        %v2079 = vadd.f32 %v1717, %v2025
        %v2080 = vadd.f32 %v1718, %v2028
        %v2081 = vadd.f32 %v1719, %v2033
        %v2082 = vadd.f32 %v1720, %v2036
        %v2083 = vadd.f32 %v1721, %v2041
        %v2084 = vadd.f32 %v1722, %v2044
        %v2085 = vadd.f32 %v1723, %v2049
        %v2086 = vadd.f32 %v1724, %v2052
        %v2087 = vld [vmem:[%s1728] sm:$0xf]
        %v2088 = vld [vmem:[%s1728 + $0x4] sm:$0xf]
        %v2089 = vld [vmem:[%s1728 + $0x8] sm:$0x1]
        %v2090 = vld [vmem:[%s1728 + $0xc] sm:$0xf]
        %v2091 = vld [vmem:[%s1728 + $0x10] sm:$0xf]
        %v2092 = vld [vmem:[%s1728 + $0x14] sm:$0x1]
        %v2093 = vld [vmem:[%s1728 + $0x18] sm:$0xf]
        %v2094 = vld [vmem:[%s1728 + $0x1c] sm:$0xf]
        %v2095 = vld [vmem:[%s1728 + $0x20] sm:$0x1]
        %v2096 = vld [vmem:[%s1728 + $0x24] sm:$0xf]
        %v2097 = vld [vmem:[%s1728 + $0x28] sm:$0xf]
        %v2098 = vld [vmem:[%s1728 + $0x2c] sm:$0x1]
        %v2099 = vld [vmem:[%s1728 + $0x30] sm:$0xf]
        %v2100 = vld [vmem:[%s1728 + $0x34] sm:$0xf]
        %v2101 = vld [vmem:[%s1728 + $0x38] sm:$0x1]
        %v2102 = vld [vmem:[%s1728 + $0x3c] sm:$0xf]
        %v2103 = vld [vmem:[%s1728 + $0x40] sm:$0xf]
        %v2104 = vld [vmem:[%s1728 + $0x44] sm:$0x1]
        %v2105 = vld [vmem:[%s1728 + $0x48] sm:$0xf]
        %v2106 = vld [vmem:[%s1728 + $0x4c] sm:$0xf]
        %v2107 = vld [vmem:[%s1728 + $0x50] sm:$0x1]
        %v2108 = vld [vmem:[%s1728 + $0x54] sm:$0xf]
        %v2109 = vld [vmem:[%s1728 + $0x58] sm:$0xf]
        %v2110 = vld [vmem:[%s1728 + $0x5c] sm:$0x1]
        %v2111 = vld [vmem:[%s1728 + $0x60] sm:$0xf]
        %v2112 = vld [vmem:[%s1728 + $0x64] sm:$0xf]
        %v2113 = vld [vmem:[%s1728 + $0x68] sm:$0x1]
        %v2114 = vld [vmem:[%s1728 + $0x6c] sm:$0xf]
        %v2115 = vld [vmem:[%s1728 + $0x70] sm:$0xf]
        %v2116 = vld [vmem:[%s1728 + $0x74] sm:$0x1]
        %v2117 = vld [vmem:[%s1728 + $0x78] sm:$0xf]
        %v2118 = vld [vmem:[%s1728 + $0x7c] sm:$0xf]
        %v2119 = vld [vmem:[%s1728 + $0x80] sm:$0x1]
        %v2120 = vld [vmem:[%s1728 + $0x84] sm:$0xf]
        %v2121 = vld [vmem:[%s1728 + $0x88] sm:$0xf]
        %v2122 = vld [vmem:[%s1728 + $0x8c] sm:$0x1]
        %v2123 = vld [vmem:[%s1728 + $0x90] sm:$0xf]
        %v2124 = vld [vmem:[%s1728 + $0x94] sm:$0xf]
        %v2125 = vld [vmem:[%s1728 + $0x98] sm:$0x1]
        %v2126 = vld [vmem:[%s1728 + $0x9c] sm:$0xf]
        %v2127 = vld [vmem:[%s1728 + $0xa0] sm:$0xf]
        %v2128 = vld [vmem:[%s1728 + $0xa4] sm:$0x1]
        %v2129 = vld [vmem:[%s1728 + $0xa8] sm:$0xf]
        %v2130 = vld [vmem:[%s1728 + $0xac] sm:$0xf]
        %v2131 = vld [vmem:[%s1728 + $0xb0] sm:$0x1]
        %v2132 = vld [vmem:[%s1728 + $0xb4] sm:$0xf]
        %v2133 = vld [vmem:[%s1728 + $0xb8] sm:$0xf]
        %v2134 = vld [vmem:[%s1728 + $0xbc] sm:$0x1]
        %s2135 = scalar_lea.vmem [#allocation5], 8
        %v2136 = vld [vmem:[%s2135] sm:$0x3]
        %v2138 = vshrl.u32 %v2087, 16
        %v2140 = vrot.slane %v2138, 4
        %v2141 = vshll.u32 %v2087, 16
        %v2143 = vrot.slane %v2141, 5
        %v2144 = vor.u32 %v2140, %v2143
        %v2145 = vrot.slane %v2144, 4
        %v2147 = vshll.u32 %v2088, 16
        %v2149 = vrot.slane %v2147, 5
        %v2150 = vsel %vm329, %v2145, %v2149
        %v2151 = vshrl.u32 %v2088, 16
        %v2153 = vrot.slane %v2151, 4
        %v2154 = vor.u32 %v2153, %v2149
        %v2155 = vrot.slane %v2154, 4
        %v2157 = vshll.u32 %v2089, 16
        %v2159 = vrot.slane %v2157, 5
        %v2160 = vsel %vm329, %v2155, %v2159
        %v2162 = vshrl.u32 %v2090, 16
        %v2164 = vrot.slane %v2162, 4
        %v2165 = vshll.u32 %v2090, 16
        %v2167 = vrot.slane %v2165, 5
        %v2168 = vor.u32 %v2164, %v2167
        %v2169 = vrot.slane %v2168, 4
        %v2171 = vshll.u32 %v2091, 16
        %v2173 = vrot.slane %v2171, 5
        %v2174 = vsel %vm329, %v2169, %v2173
        %v2175 = vshrl.u32 %v2091, 16
        %v2177 = vrot.slane %v2175, 4
        %v2178 = vor.u32 %v2177, %v2173
        %v2179 = vrot.slane %v2178, 4
        %v2181 = vshll.u32 %v2092, 16
        %v2183 = vrot.slane %v2181, 5
        %v2184 = vsel %vm329, %v2179, %v2183
        %v2186 = vshrl.u32 %v2093, 16
        %v2188 = vrot.slane %v2186, 4
        %v2189 = vshll.u32 %v2093, 16
        %v2191 = vrot.slane %v2189, 5
        %v2192 = vor.u32 %v2188, %v2191
        %v2193 = vrot.slane %v2192, 4
        %v2195 = vshll.u32 %v2094, 16
        %v2197 = vrot.slane %v2195, 5
        %v2198 = vsel %vm329, %v2193, %v2197
        %v2199 = vshrl.u32 %v2094, 16
        %v2201 = vrot.slane %v2199, 4
        %v2202 = vor.u32 %v2201, %v2197
        %v2203 = vrot.slane %v2202, 4
        %v2205 = vshll.u32 %v2095, 16
        %v2207 = vrot.slane %v2205, 5
        %v2208 = vsel %vm329, %v2203, %v2207
        %v2210 = vshrl.u32 %v2096, 16
        %v2212 = vrot.slane %v2210, 4
        %v2213 = vshll.u32 %v2096, 16
        %v2215 = vrot.slane %v2213, 5
        %v2216 = vor.u32 %v2212, %v2215
        %v2217 = vrot.slane %v2216, 4
        %v2219 = vshll.u32 %v2097, 16
        %v2221 = vrot.slane %v2219, 5
        %v2222 = vsel %vm329, %v2217, %v2221
        %v2223 = vshrl.u32 %v2097, 16
        %v2225 = vrot.slane %v2223, 4
        %v2226 = vor.u32 %v2225, %v2221
        %v2227 = vrot.slane %v2226, 4
        %v2229 = vshll.u32 %v2098, 16
        %v2231 = vrot.slane %v2229, 5
        %v2232 = vsel %vm329, %v2227, %v2231
        %v2234 = vshrl.u32 %v2099, 16
        %v2236 = vrot.slane %v2234, 4
        %v2237 = vshll.u32 %v2099, 16
        %v2239 = vrot.slane %v2237, 5
        %v2240 = vor.u32 %v2236, %v2239
        %v2241 = vrot.slane %v2240, 4
        %v2243 = vshll.u32 %v2100, 16
        %v2245 = vrot.slane %v2243, 5
        %v2246 = vsel %vm329, %v2241, %v2245
        %v2247 = vshrl.u32 %v2100, 16
        %v2249 = vrot.slane %v2247, 4
        %v2250 = vor.u32 %v2249, %v2245
        %v2251 = vrot.slane %v2250, 4
        %v2253 = vshll.u32 %v2101, 16
        %v2255 = vrot.slane %v2253, 5
        %v2256 = vsel %vm329, %v2251, %v2255
        %v2258 = vshrl.u32 %v2102, 16
        %v2260 = vrot.slane %v2258, 4
        %v2261 = vshll.u32 %v2102, 16
        %v2263 = vrot.slane %v2261, 5
        %v2264 = vor.u32 %v2260, %v2263
        %v2265 = vrot.slane %v2264, 4
        %v2267 = vshll.u32 %v2103, 16
        %v2269 = vrot.slane %v2267, 5
        %v2270 = vsel %vm329, %v2265, %v2269
        %v2271 = vshrl.u32 %v2103, 16
        %v2273 = vrot.slane %v2271, 4
        %v2274 = vor.u32 %v2273, %v2269
        %v2275 = vrot.slane %v2274, 4
        %v2277 = vshll.u32 %v2104, 16
        %v2279 = vrot.slane %v2277, 5
        %v2280 = vsel %vm329, %v2275, %v2279
        %v2282 = vshrl.u32 %v2105, 16
        %v2284 = vrot.slane %v2282, 4
        %v2285 = vshll.u32 %v2105, 16
        %v2287 = vrot.slane %v2285, 5
        %v2288 = vor.u32 %v2284, %v2287
        %v2289 = vrot.slane %v2288, 4
        %v2291 = vshll.u32 %v2106, 16
        %v2293 = vrot.slane %v2291, 5
        %v2294 = vsel %vm329, %v2289, %v2293
        %v2295 = vshrl.u32 %v2106, 16
        %v2297 = vrot.slane %v2295, 4
        %v2298 = vor.u32 %v2297, %v2293
        %v2299 = vrot.slane %v2298, 4
        %v2301 = vshll.u32 %v2107, 16
        %v2303 = vrot.slane %v2301, 5
        %v2304 = vsel %vm329, %v2299, %v2303
        %v2306 = vshrl.u32 %v2108, 16
        %v2308 = vrot.slane %v2306, 4
        %v2309 = vshll.u32 %v2108, 16
        %v2311 = vrot.slane %v2309, 5
        %v2312 = vor.u32 %v2308, %v2311
        %v2313 = vrot.slane %v2312, 4
        %v2315 = vshll.u32 %v2109, 16
        %v2317 = vrot.slane %v2315, 5
        %v2318 = vsel %vm329, %v2313, %v2317
        %v2319 = vshrl.u32 %v2109, 16
        %v2321 = vrot.slane %v2319, 4
        %v2322 = vor.u32 %v2321, %v2317
        %v2323 = vrot.slane %v2322, 4
        %v2325 = vshll.u32 %v2110, 16
        %v2327 = vrot.slane %v2325, 5
        %v2328 = vsel %vm329, %v2323, %v2327
        %v2330 = vshrl.u32 %v2111, 16
        %v2332 = vrot.slane %v2330, 4
        %v2333 = vshll.u32 %v2111, 16
        %v2335 = vrot.slane %v2333, 5
        %v2336 = vor.u32 %v2332, %v2335
        %v2337 = vrot.slane %v2336, 4
        %v2339 = vshll.u32 %v2112, 16
        %v2341 = vrot.slane %v2339, 5
        %v2342 = vsel %vm329, %v2337, %v2341
        %v2343 = vshrl.u32 %v2112, 16
        %v2345 = vrot.slane %v2343, 4
        %v2346 = vor.u32 %v2345, %v2341
        %v2347 = vrot.slane %v2346, 4
        %v2349 = vshll.u32 %v2113, 16
        %v2351 = vrot.slane %v2349, 5
        %v2352 = vsel %vm329, %v2347, %v2351
        %v2354 = vshrl.u32 %v2114, 16
        %v2356 = vrot.slane %v2354, 4
        %v2357 = vshll.u32 %v2114, 16
        %v2359 = vrot.slane %v2357, 5
        %v2360 = vor.u32 %v2356, %v2359
        %v2361 = vrot.slane %v2360, 4
        %v2363 = vshll.u32 %v2115, 16
        %v2365 = vrot.slane %v2363, 5
        %v2366 = vsel %vm329, %v2361, %v2365
        %v2367 = vshrl.u32 %v2115, 16
        %v2369 = vrot.slane %v2367, 4
        %v2370 = vor.u32 %v2369, %v2365
        %v2371 = vrot.slane %v2370, 4
        %v2373 = vshll.u32 %v2116, 16
        %v2375 = vrot.slane %v2373, 5
        %v2376 = vsel %vm329, %v2371, %v2375
        %v2378 = vshrl.u32 %v2117, 16
        %v2380 = vrot.slane %v2378, 4
        %v2381 = vshll.u32 %v2117, 16
        %v2383 = vrot.slane %v2381, 5
        %v2384 = vor.u32 %v2380, %v2383
        %v2385 = vrot.slane %v2384, 4
        %v2387 = vshll.u32 %v2118, 16
        %v2389 = vrot.slane %v2387, 5
        %v2390 = vsel %vm329, %v2385, %v2389
        %v2391 = vshrl.u32 %v2118, 16
        %v2393 = vrot.slane %v2391, 4
        %v2394 = vor.u32 %v2393, %v2389
        %v2395 = vrot.slane %v2394, 4
        %v2397 = vshll.u32 %v2119, 16
        %v2399 = vrot.slane %v2397, 5
        %v2400 = vsel %vm329, %v2395, %v2399
        %v2402 = vshrl.u32 %v2120, 16
        %v2404 = vrot.slane %v2402, 4
        %v2405 = vshll.u32 %v2120, 16
        %v2407 = vrot.slane %v2405, 5
        %v2408 = vor.u32 %v2404, %v2407
        %v2409 = vrot.slane %v2408, 4
        %v2411 = vshll.u32 %v2121, 16
        %v2413 = vrot.slane %v2411, 5
        %v2414 = vsel %vm329, %v2409, %v2413
        %v2415 = vshrl.u32 %v2121, 16
        %v2417 = vrot.slane %v2415, 4
        %v2418 = vor.u32 %v2417, %v2413
        %v2419 = vrot.slane %v2418, 4
        %v2421 = vshll.u32 %v2122, 16
        %v2423 = vrot.slane %v2421, 5
        %v2424 = vsel %vm329, %v2419, %v2423
        %v2426 = vshrl.u32 %v2123, 16
        %v2428 = vrot.slane %v2426, 4
        %v2429 = vshll.u32 %v2123, 16
        %v2431 = vrot.slane %v2429, 5
        %v2432 = vor.u32 %v2428, %v2431
        %v2433 = vrot.slane %v2432, 4
        %v2435 = vshll.u32 %v2124, 16
        %v2437 = vrot.slane %v2435, 5
        %v2438 = vsel %vm329, %v2433, %v2437
        %v2439 = vshrl.u32 %v2124, 16
        %v2441 = vrot.slane %v2439, 4
        %v2442 = vor.u32 %v2441, %v2437
        %v2443 = vrot.slane %v2442, 4
        %v2445 = vshll.u32 %v2125, 16
        %v2447 = vrot.slane %v2445, 5
        %v2448 = vsel %vm329, %v2443, %v2447
        %v2450 = vshrl.u32 %v2126, 16
        %v2452 = vrot.slane %v2450, 4
        %v2453 = vshll.u32 %v2126, 16
        %v2455 = vrot.slane %v2453, 5
        %v2456 = vor.u32 %v2452, %v2455
        %v2457 = vrot.slane %v2456, 4
        %v2459 = vshll.u32 %v2127, 16
        %v2461 = vrot.slane %v2459, 5
        %v2462 = vsel %vm329, %v2457, %v2461
        %v2463 = vshrl.u32 %v2127, 16
        %v2465 = vrot.slane %v2463, 4
        %v2466 = vor.u32 %v2465, %v2461
        %v2467 = vrot.slane %v2466, 4
        %v2469 = vshll.u32 %v2128, 16
        %v2471 = vrot.slane %v2469, 5
        %v2472 = vsel %vm329, %v2467, %v2471
        %v2474 = vshrl.u32 %v2129, 16
        %v2476 = vrot.slane %v2474, 4
        %v2477 = vshll.u32 %v2129, 16
        %v2479 = vrot.slane %v2477, 5
        %v2480 = vor.u32 %v2476, %v2479
        %v2481 = vrot.slane %v2480, 4
        %v2483 = vshll.u32 %v2130, 16
        %v2485 = vrot.slane %v2483, 5
        %v2486 = vsel %vm329, %v2481, %v2485
        %v2487 = vshrl.u32 %v2130, 16
        %v2489 = vrot.slane %v2487, 4
        %v2490 = vor.u32 %v2489, %v2485
        %v2491 = vrot.slane %v2490, 4
        %v2493 = vshll.u32 %v2131, 16
        %v2495 = vrot.slane %v2493, 5
        %v2496 = vsel %vm329, %v2491, %v2495
        %v2498 = vshrl.u32 %v2132, 16
        %v2500 = vrot.slane %v2498, 4
        %v2501 = vshll.u32 %v2132, 16
        %v2503 = vrot.slane %v2501, 5
        %v2504 = vor.u32 %v2500, %v2503
        %v2505 = vrot.slane %v2504, 4
        %v2507 = vshll.u32 %v2133, 16
        %v2509 = vrot.slane %v2507, 5
        %v2510 = vsel %vm329, %v2505, %v2509
        %v2511 = vshrl.u32 %v2133, 16
        %v2513 = vrot.slane %v2511, 4
        %v2514 = vor.u32 %v2513, %v2509
        %v2515 = vrot.slane %v2514, 4
        %v2517 = vshll.u32 %v2134, 16
        %v2519 = vrot.slane %v2517, 5
        %v2520 = vsel %vm329, %v2515, %v2519
        %v2521 = vunpack.c.l.b16 %v2150
        %v2522 = vunpack.c.l.b16 %v2160
        %v2523 = vunpack.c.l.b16 %v2174
        %v2524 = vunpack.c.l.b16 %v2184
        %v2525 = vunpack.c.l.b16 %v2198
        %v2526 = vunpack.c.l.b16 %v2208
        %v2527 = vunpack.c.l.b16 %v2222
        %v2528 = vunpack.c.l.b16 %v2232
        %v2529 = vunpack.c.l.b16 %v2246
        %v2530 = vunpack.c.l.b16 %v2256
        %v2531 = vunpack.c.l.b16 %v2270
        %v2532 = vunpack.c.l.b16 %v2280
        %v2533 = vunpack.c.l.b16 %v2294
        %v2534 = vunpack.c.l.b16 %v2304
        %v2535 = vunpack.c.l.b16 %v2318
        %v2536 = vunpack.c.l.b16 %v2328
        %v2537 = vunpack.c.l.b16 %v2342
        %v2538 = vunpack.c.l.b16 %v2352
        %v2539 = vunpack.c.l.b16 %v2366
        %v2540 = vunpack.c.l.b16 %v2376
        %v2541 = vunpack.c.l.b16 %v2390
        %v2542 = vunpack.c.l.b16 %v2400
        %v2543 = vunpack.c.l.b16 %v2414
        %v2544 = vunpack.c.l.b16 %v2424
        %v2545 = vunpack.c.l.b16 %v2438
        %v2546 = vunpack.c.l.b16 %v2448
        %v2547 = vunpack.c.l.b16 %v2462
        %v2548 = vunpack.c.l.b16 %v2472
        %v2549 = vunpack.c.l.b16 %v2486
        %v2550 = vunpack.c.l.b16 %v2496
        %v2551 = vunpack.c.l.b16 %v2510
        %v2552 = vunpack.c.l.b16 %v2520
        %v2553 = vpack.c.b16 %v2522, %v2521
        %v2554 = vpack.c.b16 %v2524, %v2523
        %v2555 = vpack.c.b16 %v2526, %v2525
        %v2556 = vpack.c.b16 %v2528, %v2527
        %v2557 = vpack.c.b16 %v2530, %v2529
        %v2558 = vpack.c.b16 %v2532, %v2531
        %v2559 = vpack.c.b16 %v2534, %v2533
        %v2560 = vpack.c.b16 %v2536, %v2535
        %v2561 = vpack.c.b16 %v2538, %v2537
        %v2562 = vpack.c.b16 %v2540, %v2539
        %v2563 = vpack.c.b16 %v2542, %v2541
        %v2564 = vpack.c.b16 %v2544, %v2543
        %v2565 = vpack.c.b16 %v2546, %v2545
        %v2566 = vpack.c.b16 %v2548, %v2547
        %v2567 = vpack.c.b16 %v2550, %v2549
        %v2568 = vpack.c.b16 %v2552, %v2551
        %v2570 = vsel %vm762, %v2553, 0
        %v2573 = vsel %vm762, %v2554, 0
        %v2576 = vsel %vm762, %v2555, 0
        %v2579 = vsel %vm762, %v2556, 0
        %v2582 = vsel %vm762, %v2557, 0
        %v2585 = vsel %vm762, %v2558, 0
        %v2588 = vsel %vm762, %v2559, 0
        %v2591 = vsel %vm762, %v2560, 0
        %v2594 = vsel %vm762, %v2561, 0
        %v2597 = vsel %vm762, %v2562, 0
        %v2600 = vsel %vm762, %v2563, 0
        %v2603 = vsel %vm762, %v2564, 0
        %v2606 = vsel %vm762, %v2565, 0
        %v2609 = vsel %vm762, %v2566, 0
        %v2612 = vsel %vm762, %v2567, 0
        %v2615 = vsel %vm762, %v2568, 0
        %v2618 = vsel %vm811, %v2136, 0
        %2620 = vmatprep.subr.bf16.mxu0 0
        %2621 = vmatpush1.bf16.msra.mxu0 %v2618
        %2622 = vmatprep.subr.bf16.mxu0 0
        %2623 = vmatpush1.bf16.msra.mxu0 0
        %2624 = vmatprep.subr.bf16.mxu0 0
        %2625 = vmatpush1.bf16.msra.mxu0 0
        %2626 = vmatprep.subr.bf16.mxu0 0
        %2627 = vmatpush1.bf16.msra.mxu0 0
        %2628 = vmatprep.subr.bf16.mxu0 0
        %2629 = vmatpush1.bf16.msra.mxu0 0
        %2630 = vmatprep.subr.bf16.mxu0 0
        %2631 = vmatpush1.bf16.msra.mxu0 0
        %2632 = vmatprep.subr.bf16.mxu0 0
        %2633 = vmatpush1.bf16.msra.mxu0 0
        %2634 = vmatprep.subr.bf16.mxu0 0
        %2635 = vmatpush1.bf16.msra.mxu0 0
        %2636 = vmatprep.subr.bf16.mxu0 0
        %2637 = vmatpush1.bf16.msra.mxu0 0
        %2638 = vmatprep.subr.bf16.mxu0 0
        %2639 = vmatpush1.bf16.msra.mxu0 0
        %2640 = vmatprep.subr.bf16.mxu0 0
        %2641 = vmatpush1.bf16.msra.mxu0 0
        %2642 = vmatprep.subr.bf16.mxu0 0
        %2643 = vmatpush1.bf16.msra.mxu0 0
        %2644 = vmatprep.subr.bf16.mxu0 0
        %2645 = vmatpush1.bf16.msra.mxu0 0
        %2646 = vmatprep.subr.bf16.mxu0 0
        %2647 = vmatpush1.bf16.msra.mxu0 0
        %2648 = vmatprep.subr.bf16.mxu0 0
        %2649 = vmatpush1.bf16.msra.mxu0 0
        %2650 = vmatprep.subr.bf16.mxu0 0
        %2651 = vmatpush1.bf16.msra.mxu0 0
        %2652 = vmatprep.mubr.bf16.mxu0 0
        %2653 = vmatmul.mubr.bf16.gmra.mrb[0].mxu0 %v2570
        %v2654 = vpop.f32.mrb[0].mxu0
        %v2655 = vadd.f32 0.0, %v2654
        %v2656 = vpop.f32.mrb[0].mxu0
        %v2657 = vpop.f32.mrb[0].mxu0
        %v2658 = vadd.f32 0.0, %v2657
        %v2659 = vpop.f32.mrb[0].mxu0
        %2660 = vmatprep.mubr.bf16.mxu0 0
        %2661 = vmatmul.mubr.bf16.gmra.mrb[0].mxu0 %v2573
        %v2662 = vpop.f32.mrb[0].mxu0
        %v2663 = vadd.f32 0.0, %v2662
        %v2664 = vpop.f32.mrb[0].mxu0
        %v2665 = vpop.f32.mrb[0].mxu0
        %v2666 = vadd.f32 0.0, %v2665
        %v2667 = vpop.f32.mrb[0].mxu0
        %2668 = vmatprep.mubr.bf16.mxu0 0
        %2669 = vmatmul.mubr.bf16.gmra.mrb[0].mxu0 %v2576
        %v2670 = vpop.f32.mrb[0].mxu0
        %v2671 = vadd.f32 0.0, %v2670
        %v2672 = vpop.f32.mrb[0].mxu0
        %v2673 = vpop.f32.mrb[0].mxu0
        %v2674 = vadd.f32 0.0, %v2673
        %v2675 = vpop.f32.mrb[0].mxu0
        %2676 = vmatprep.mubr.bf16.mxu0 0
        %2677 = vmatmul.mubr.bf16.gmra.mrb[0].mxu0 %v2579
        %v2678 = vpop.f32.mrb[0].mxu0
        %v2679 = vadd.f32 0.0, %v2678
        %v2680 = vpop.f32.mrb[0].mxu0
        %v2681 = vpop.f32.mrb[0].mxu0
        %v2682 = vadd.f32 0.0, %v2681
        %v2683 = vpop.f32.mrb[0].mxu0
        %2684 = vmatprep.mubr.bf16.mxu0 0
        %2685 = vmatmul.mubr.bf16.gmra.mrb[0].mxu0 %v2582
        %v2686 = vpop.f32.mrb[0].mxu0
        %v2687 = vadd.f32 0.0, %v2686
        %v2688 = vpop.f32.mrb[0].mxu0
        %v2689 = vpop.f32.mrb[0].mxu0
        %v2690 = vadd.f32 0.0, %v2689
        %v2691 = vpop.f32.mrb[0].mxu0
        %2692 = vmatprep.mubr.bf16.mxu0 0
        %2693 = vmatmul.mubr.bf16.gmra.mrb[0].mxu0 %v2585
        %v2694 = vpop.f32.mrb[0].mxu0
        %v2695 = vadd.f32 0.0, %v2694
        %v2696 = vpop.f32.mrb[0].mxu0
        %v2697 = vpop.f32.mrb[0].mxu0
        %v2698 = vadd.f32 0.0, %v2697
        %v2699 = vpop.f32.mrb[0].mxu0
        %2700 = vmatprep.mubr.bf16.mxu0 0
        %2701 = vmatmul.mubr.bf16.gmra.mrb[0].mxu0 %v2588
        %v2702 = vpop.f32.mrb[0].mxu0
        %v2703 = vadd.f32 0.0, %v2702
        %v2704 = vpop.f32.mrb[0].mxu0
        %v2705 = vpop.f32.mrb[0].mxu0
        %v2706 = vadd.f32 0.0, %v2705
        %v2707 = vpop.f32.mrb[0].mxu0
        %2708 = vmatprep.mubr.bf16.mxu0 0
        %2709 = vmatmul.mubr.bf16.gmra.mrb[0].mxu0 %v2591
        %v2710 = vpop.f32.mrb[0].mxu0
        %v2711 = vadd.f32 0.0, %v2710
        %v2712 = vpop.f32.mrb[0].mxu0
        %v2713 = vpop.f32.mrb[0].mxu0
        %v2714 = vadd.f32 0.0, %v2713
        %v2715 = vpop.f32.mrb[0].mxu0
        %2716 = vmatprep.mubr.bf16.mxu0 0
        %2717 = vmatmul.mubr.bf16.gmra.mrb[0].mxu0 %v2594
        %v2718 = vpop.f32.mrb[0].mxu0
        %v2719 = vadd.f32 0.0, %v2718
        %v2720 = vpop.f32.mrb[0].mxu0
        %v2721 = vpop.f32.mrb[0].mxu0
        %v2722 = vadd.f32 0.0, %v2721
        %v2723 = vpop.f32.mrb[0].mxu0
        %2724 = vmatprep.mubr.bf16.mxu0 0
        %2725 = vmatmul.mubr.bf16.gmra.mrb[0].mxu0 %v2597
        %v2726 = vpop.f32.mrb[0].mxu0
        %v2727 = vadd.f32 0.0, %v2726
        %v2728 = vpop.f32.mrb[0].mxu0
        %v2729 = vpop.f32.mrb[0].mxu0
        %v2730 = vadd.f32 0.0, %v2729
        %v2731 = vpop.f32.mrb[0].mxu0
        %2732 = vmatprep.mubr.bf16.mxu0 0
        %2733 = vmatmul.mubr.bf16.gmra.mrb[0].mxu0 %v2600
        %v2734 = vpop.f32.mrb[0].mxu0
        %v2735 = vadd.f32 0.0, %v2734
        %v2736 = vpop.f32.mrb[0].mxu0
        %v2737 = vpop.f32.mrb[0].mxu0
        %v2738 = vadd.f32 0.0, %v2737
        %v2739 = vpop.f32.mrb[0].mxu0
        %2740 = vmatprep.mubr.bf16.mxu0 0
        %2741 = vmatmul.mubr.bf16.gmra.mrb[0].mxu0 %v2603
        %v2742 = vpop.f32.mrb[0].mxu0
        %v2743 = vadd.f32 0.0, %v2742
        %v2744 = vpop.f32.mrb[0].mxu0
        %v2745 = vpop.f32.mrb[0].mxu0
        %v2746 = vadd.f32 0.0, %v2745
        %v2747 = vpop.f32.mrb[0].mxu0
        %2748 = vmatprep.mubr.bf16.mxu0 0
        %2749 = vmatmul.mubr.bf16.gmra.mrb[0].mxu0 %v2606
        %v2750 = vpop.f32.mrb[0].mxu0
        %v2751 = vadd.f32 0.0, %v2750
        %v2752 = vpop.f32.mrb[0].mxu0
        %v2753 = vpop.f32.mrb[0].mxu0
        %v2754 = vadd.f32 0.0, %v2753
        %v2755 = vpop.f32.mrb[0].mxu0
        %2756 = vmatprep.mubr.bf16.mxu0 0
        %2757 = vmatmul.mubr.bf16.gmra.mrb[0].mxu0 %v2609
        %v2758 = vpop.f32.mrb[0].mxu0
        %v2759 = vadd.f32 0.0, %v2758
        %v2760 = vpop.f32.mrb[0].mxu0
        %v2761 = vpop.f32.mrb[0].mxu0
        %v2762 = vadd.f32 0.0, %v2761
        %v2763 = vpop.f32.mrb[0].mxu0
        %2764 = vmatprep.mubr.bf16.mxu0 0
        %2765 = vmatmul.mubr.bf16.gmra.mrb[0].mxu0 %v2612
        %v2766 = vpop.f32.mrb[0].mxu0
        %v2767 = vadd.f32 0.0, %v2766
        %v2768 = vpop.f32.mrb[0].mxu0
        %v2769 = vpop.f32.mrb[0].mxu0
        %v2770 = vadd.f32 0.0, %v2769
        %v2771 = vpop.f32.mrb[0].mxu0
        %2772 = vmatprep.mubr.bf16.mxu0 0
        %2773 = vmatmul.mubr.bf16.gmra.mrb[0].mxu0 %v2615
        %v2774 = vpop.f32.mrb[0].mxu0
        %v2775 = vadd.f32 0.0, %v2774
        %v2776 = vpop.f32.mrb[0].mxu0
        %v2777 = vpop.f32.mrb[0].mxu0
        %v2778 = vadd.f32 0.0, %v2777
        %v2779 = vpop.f32.mrb[0].mxu0
        %2780 = vdwg.mxu0
        %v2781 = vadd.f32 %v2055, %v2655
        %v2782 = vadd.f32 %v2056, %v2658
        %v2783 = vadd.f32 %v2057, %v2663
        %v2784 = vadd.f32 %v2058, %v2666
        %v2785 = vadd.f32 %v2059, %v2671
        %v2786 = vadd.f32 %v2060, %v2674
        %v2787 = vadd.f32 %v2061, %v2679
        %v2788 = vadd.f32 %v2062, %v2682
        %v2789 = vadd.f32 %v2063, %v2687
        %v2790 = vadd.f32 %v2064, %v2690
        %v2791 = vadd.f32 %v2065, %v2695
        %v2792 = vadd.f32 %v2066, %v2698
        %v2793 = vadd.f32 %v2067, %v2703
        %v2794 = vadd.f32 %v2068, %v2706
        %v2795 = vadd.f32 %v2069, %v2711
        %v2796 = vadd.f32 %v2070, %v2714
        %v2797 = vadd.f32 %v2071, %v2719
        %v2798 = vadd.f32 %v2072, %v2722
        %v2799 = vadd.f32 %v2073, %v2727
        %v2800 = vadd.f32 %v2074, %v2730
        %v2801 = vadd.f32 %v2075, %v2735
        %v2802 = vadd.f32 %v2076, %v2738
        %v2803 = vadd.f32 %v2077, %v2743
        %v2804 = vadd.f32 %v2078, %v2746
        %v2805 = vadd.f32 %v2079, %v2751
        %v2806 = vadd.f32 %v2080, %v2754
        %v2807 = vadd.f32 %v2081, %v2759
        %v2808 = vadd.f32 %v2082, %v2762
        %v2809 = vadd.f32 %v2083, %v2767
        %v2810 = vadd.f32 %v2084, %v2770
        %v2811 = vadd.f32 %v2085, %v2775
        %v2812 = vadd.f32 %v2086, %v2778
        %v2813 = vld [vmem:[%s1728] sm:$0xe]
        %v2814 = vld [vmem:[%s1728 + $0xc] sm:$0xe]
        %v2815 = vld [vmem:[%s1728 + $0x18] sm:$0xe]
        %v2816 = vld [vmem:[%s1728 + $0x24] sm:$0xe]
        %v2817 = vld [vmem:[%s1728 + $0x30] sm:$0xe]
        %v2818 = vld [vmem:[%s1728 + $0x3c] sm:$0xe]
        %v2819 = vld [vmem:[%s1728 + $0x48] sm:$0xe]
        %v2820 = vld [vmem:[%s1728 + $0x54] sm:$0xe]
        %v2821 = vld [vmem:[%s1728 + $0x60] sm:$0xe]
        %v2822 = vld [vmem:[%s1728 + $0x6c] sm:$0xe]
        %v2823 = vld [vmem:[%s1728 + $0x78] sm:$0xe]
        %v2824 = vld [vmem:[%s1728 + $0x84] sm:$0xe]
        %v2825 = vld [vmem:[%s1728 + $0x90] sm:$0xe]
        %v2826 = vld [vmem:[%s1728 + $0x9c] sm:$0xe]
        %v2827 = vld [vmem:[%s1728 + $0xa8] sm:$0xe]
        %v2828 = vld [vmem:[%s1728 + $0xb4] sm:$0xe]
        %s2829 = scalar_lea.vmem [#allocation5], 10
        %v2830 = vld [vmem:[%s2829] sm:$0x3]
        %v2879 = vrot.slane %v2813, 5
        %v2880 = vrot.slane %v2879, 4
        %v2881 = vrot.slane %v2088, 5
        %v2882 = vsel %vm1320, %v2880, %v2881
        %v2883 = vrot.slane %v2881, 4
        %v2884 = vrot.slane %v2089, 5
        %v2885 = vsel %vm1320, %v2883, %v2884
        %v2886 = vrot.slane %v2814, 5
        %v2887 = vrot.slane %v2886, 4
        %v2888 = vrot.slane %v2091, 5
        %v2889 = vsel %vm1320, %v2887, %v2888
        %v2890 = vrot.slane %v2888, 4
        %v2891 = vrot.slane %v2092, 5
        %v2892 = vsel %vm1320, %v2890, %v2891
        %v2893 = vrot.slane %v2815, 5
        %v2894 = vrot.slane %v2893, 4
        %v2895 = vrot.slane %v2094, 5
        %v2896 = vsel %vm1320, %v2894, %v2895
        %v2897 = vrot.slane %v2895, 4
        %v2898 = vrot.slane %v2095, 5
        %v2899 = vsel %vm1320, %v2897, %v2898
        %v2900 = vrot.slane %v2816, 5
        %v2901 = vrot.slane %v2900, 4
        %v2902 = vrot.slane %v2097, 5
        %v2903 = vsel %vm1320, %v2901, %v2902
        %v2904 = vrot.slane %v2902, 4
        %v2905 = vrot.slane %v2098, 5
        %v2906 = vsel %vm1320, %v2904, %v2905
        %v2907 = vrot.slane %v2817, 5
        %v2908 = vrot.slane %v2907, 4
        %v2909 = vrot.slane %v2100, 5
        %v2910 = vsel %vm1320, %v2908, %v2909
        %v2911 = vrot.slane %v2909, 4
        %v2912 = vrot.slane %v2101, 5
        %v2913 = vsel %vm1320, %v2911, %v2912
        %v2914 = vrot.slane %v2818, 5
        %v2915 = vrot.slane %v2914, 4
        %v2916 = vrot.slane %v2103, 5
        %v2917 = vsel %vm1320, %v2915, %v2916
        %v2918 = vrot.slane %v2916, 4
        %v2919 = vrot.slane %v2104, 5
        %v2920 = vsel %vm1320, %v2918, %v2919
        %v2921 = vrot.slane %v2819, 5
        %v2922 = vrot.slane %v2921, 4
        %v2923 = vrot.slane %v2106, 5
        %v2924 = vsel %vm1320, %v2922, %v2923
        %v2925 = vrot.slane %v2923, 4
        %v2926 = vrot.slane %v2107, 5
        %v2927 = vsel %vm1320, %v2925, %v2926
        %v2928 = vrot.slane %v2820, 5
        %v2929 = vrot.slane %v2928, 4
        %v2930 = vrot.slane %v2109, 5
        %v2931 = vsel %vm1320, %v2929, %v2930
        %v2932 = vrot.slane %v2930, 4
        %v2933 = vrot.slane %v2110, 5
        %v2934 = vsel %vm1320, %v2932, %v2933
        %v2935 = vrot.slane %v2821, 5
        %v2936 = vrot.slane %v2935, 4
        %v2937 = vrot.slane %v2112, 5
        %v2938 = vsel %vm1320, %v2936, %v2937
        %v2939 = vrot.slane %v2937, 4
        %v2940 = vrot.slane %v2113, 5
        %v2941 = vsel %vm1320, %v2939, %v2940
        %v2942 = vrot.slane %v2822, 5
        %v2943 = vrot.slane %v2942, 4
        %v2944 = vrot.slane %v2115, 5
        %v2945 = vsel %vm1320, %v2943, %v2944
        %v2946 = vrot.slane %v2944, 4
        %v2947 = vrot.slane %v2116, 5
        %v2948 = vsel %vm1320, %v2946, %v2947
        %v2949 = vrot.slane %v2823, 5
        %v2950 = vrot.slane %v2949, 4
        %v2951 = vrot.slane %v2118, 5
        %v2952 = vsel %vm1320, %v2950, %v2951
        %v2953 = vrot.slane %v2951, 4
        %v2954 = vrot.slane %v2119, 5
        %v2955 = vsel %vm1320, %v2953, %v2954
        %v2956 = vrot.slane %v2824, 5
        %v2957 = vrot.slane %v2956, 4
        %v2958 = vrot.slane %v2121, 5
        %v2959 = vsel %vm1320, %v2957, %v2958
        %v2960 = vrot.slane %v2958, 4
        %v2961 = vrot.slane %v2122, 5
        %v2962 = vsel %vm1320, %v2960, %v2961
        %v2963 = vrot.slane %v2825, 5
        %v2964 = vrot.slane %v2963, 4
        %v2965 = vrot.slane %v2124, 5
        %v2966 = vsel %vm1320, %v2964, %v2965
        %v2967 = vrot.slane %v2965, 4
        %v2968 = vrot.slane %v2125, 5
        %v2969 = vsel %vm1320, %v2967, %v2968
        %v2970 = vrot.slane %v2826, 5
        %v2971 = vrot.slane %v2970, 4
        %v2972 = vrot.slane %v2127, 5
        %v2973 = vsel %vm1320, %v2971, %v2972
        %v2974 = vrot.slane %v2972, 4
        %v2975 = vrot.slane %v2128, 5
        %v2976 = vsel %vm1320, %v2974, %v2975
        %v2977 = vrot.slane %v2827, 5
        %v2978 = vrot.slane %v2977, 4
        %v2979 = vrot.slane %v2130, 5
        %v2980 = vsel %vm1320, %v2978, %v2979
        %v2981 = vrot.slane %v2979, 4
        %v2982 = vrot.slane %v2131, 5
        %v2983 = vsel %vm1320, %v2981, %v2982
        %v2984 = vrot.slane %v2828, 5
        %v2985 = vrot.slane %v2984, 4
        %v2986 = vrot.slane %v2133, 5
        %v2987 = vsel %vm1320, %v2985, %v2986
        %v2988 = vrot.slane %v2986, 4
        %v2989 = vrot.slane %v2134, 5
        %v2990 = vsel %vm1320, %v2988, %v2989
        %v2991 = vunpack.c.l.b16 %v2882
        %v2992 = vunpack.c.l.b16 %v2885
        %v2993 = vunpack.c.l.b16 %v2889
        %v2994 = vunpack.c.l.b16 %v2892
        %v2995 = vunpack.c.l.b16 %v2896
        %v2996 = vunpack.c.l.b16 %v2899
        %v2997 = vunpack.c.l.b16 %v2903
        %v2998 = vunpack.c.l.b16 %v2906
        %v2999 = vunpack.c.l.b16 %v2910
        %v3000 = vunpack.c.l.b16 %v2913
        %v3001 = vunpack.c.l.b16 %v2917
        %v3002 = vunpack.c.l.b16 %v2920
        %v3003 = vunpack.c.l.b16 %v2924
        %v3004 = vunpack.c.l.b16 %v2927
        %v3005 = vunpack.c.l.b16 %v2931
        %v3006 = vunpack.c.l.b16 %v2934
        %v3007 = vunpack.c.l.b16 %v2938
        %v3008 = vunpack.c.l.b16 %v2941
        %v3009 = vunpack.c.l.b16 %v2945
        %v3010 = vunpack.c.l.b16 %v2948
        %v3011 = vunpack.c.l.b16 %v2952
        %v3012 = vunpack.c.l.b16 %v2955
        %v3013 = vunpack.c.l.b16 %v2959
        %v3014 = vunpack.c.l.b16 %v2962
        %v3015 = vunpack.c.l.b16 %v2966
        %v3016 = vunpack.c.l.b16 %v2969
        %v3017 = vunpack.c.l.b16 %v2973
        %v3018 = vunpack.c.l.b16 %v2976
        %v3019 = vunpack.c.l.b16 %v2980
        %v3020 = vunpack.c.l.b16 %v2983
        %v3021 = vunpack.c.l.b16 %v2987
        %v3022 = vunpack.c.l.b16 %v2990
        %v3023 = vpack.c.b16 %v2992, %v2991
        %v3024 = vpack.c.b16 %v2994, %v2993
        %v3025 = vpack.c.b16 %v2996, %v2995
        %v3026 = vpack.c.b16 %v2998, %v2997
        %v3027 = vpack.c.b16 %v3000, %v2999
        %v3028 = vpack.c.b16 %v3002, %v3001
        %v3029 = vpack.c.b16 %v3004, %v3003
        %v3030 = vpack.c.b16 %v3006, %v3005
        %v3031 = vpack.c.b16 %v3008, %v3007
        %v3032 = vpack.c.b16 %v3010, %v3009
        %v3033 = vpack.c.b16 %v3012, %v3011
        %v3034 = vpack.c.b16 %v3014, %v3013
        %v3035 = vpack.c.b16 %v3016, %v3015
        %v3036 = vpack.c.b16 %v3018, %v3017
        %v3037 = vpack.c.b16 %v3020, %v3019
        %v3038 = vpack.c.b16 %v3022, %v3021
        %v3040 = vsel %vm762, %v3023, 0
        %v3043 = vsel %vm762, %v3024, 0
        %v3046 = vsel %vm762, %v3025, 0
        %v3049 = vsel %vm762, %v3026, 0
        %v3052 = vsel %vm762, %v3027, 0
        %v3055 = vsel %vm762, %v3028, 0
        %v3058 = vsel %vm762, %v3029, 0
        %v3061 = vsel %vm762, %v3030, 0
        %v3064 = vsel %vm762, %v3031, 0
        %v3067 = vsel %vm762, %v3032, 0
        %v3070 = vsel %vm762, %v3033, 0
        %v3073 = vsel %vm762, %v3034, 0
        %v3076 = vsel %vm762, %v3035, 0
        %v3079 = vsel %vm762, %v3036, 0
        %v3082 = vsel %vm762, %v3037, 0
        %v3085 = vsel %vm762, %v3038, 0
        %v3088 = vsel %vm811, %v2830, 0
        %3090 = vmatprep.subr.bf16.mxu0 0
        %3091 = vmatpush1.bf16.msra.mxu0 %v3088
        %3092 = vmatprep.subr.bf16.mxu0 0
        %3093 = vmatpush1.bf16.msra.mxu0 0
        %3094 = vmatprep.subr.bf16.mxu0 0
        %3095 = vmatpush1.bf16.msra.mxu0 0
        %3096 = vmatprep.subr.bf16.mxu0 0
        %3097 = vmatpush1.bf16.msra.mxu0 0
        %3098 = vmatprep.subr.bf16.mxu0 0
        %3099 = vmatpush1.bf16.msra.mxu0 0
        %3100 = vmatprep.subr.bf16.mxu0 0
        %3101 = vmatpush1.bf16.msra.mxu0 0
        %3102 = vmatprep.subr.bf16.mxu0 0
        %3103 = vmatpush1.bf16.msra.mxu0 0
        %3104 = vmatprep.subr.bf16.mxu0 0
        %3105 = vmatpush1.bf16.msra.mxu0 0
        %3106 = vmatprep.subr.bf16.mxu0 0
        %3107 = vmatpush1.bf16.msra.mxu0 0
        %3108 = vmatprep.subr.bf16.mxu0 0
        %3109 = vmatpush1.bf16.msra.mxu0 0
        %3110 = vmatprep.subr.bf16.mxu0 0
        %3111 = vmatpush1.bf16.msra.mxu0 0
        %3112 = vmatprep.subr.bf16.mxu0 0
        %3113 = vmatpush1.bf16.msra.mxu0 0
        %3114 = vmatprep.subr.bf16.mxu0 0
        %3115 = vmatpush1.bf16.msra.mxu0 0
        %3116 = vmatprep.subr.bf16.mxu0 0
        %3117 = vmatpush1.bf16.msra.mxu0 0
        %3118 = vmatprep.subr.bf16.mxu0 0
        %3119 = vmatpush1.bf16.msra.mxu0 0
        %3120 = vmatprep.subr.bf16.mxu0 0
        %3121 = vmatpush1.bf16.msra.mxu0 0
        %3122 = vmatprep.mubr.bf16.mxu0 0
        %3123 = vmatmul.mubr.bf16.gmra.mrb[0].mxu0 %v3040
        %v3124 = vpop.f32.mrb[0].mxu0
        %v3125 = vadd.f32 0.0, %v3124
        %v3126 = vpop.f32.mrb[0].mxu0
        %v3127 = vpop.f32.mrb[0].mxu0
        %v3128 = vadd.f32 0.0, %v3127
        %v3129 = vpop.f32.mrb[0].mxu0
        %3130 = vmatprep.mubr.bf16.mxu0 0
        %3131 = vmatmul.mubr.bf16.gmra.mrb[0].mxu0 %v3043
        %v3132 = vpop.f32.mrb[0].mxu0
        %v3133 = vadd.f32 0.0, %v3132
        %v3134 = vpop.f32.mrb[0].mxu0
        %v3135 = vpop.f32.mrb[0].mxu0
        %v3136 = vadd.f32 0.0, %v3135
        %v3137 = vpop.f32.mrb[0].mxu0
        %3138 = vmatprep.mubr.bf16.mxu0 0
        %3139 = vmatmul.mubr.bf16.gmra.mrb[0].mxu0 %v3046
        %v3140 = vpop.f32.mrb[0].mxu0
        %v3141 = vadd.f32 0.0, %v3140
        %v3142 = vpop.f32.mrb[0].mxu0
        %v3143 = vpop.f32.mrb[0].mxu0
        %v3144 = vadd.f32 0.0, %v3143
        %v3145 = vpop.f32.mrb[0].mxu0
        %3146 = vmatprep.mubr.bf16.mxu0 0
        %3147 = vmatmul.mubr.bf16.gmra.mrb[0].mxu0 %v3049
        %v3148 = vpop.f32.mrb[0].mxu0
        %v3149 = vadd.f32 0.0, %v3148
        %v3150 = vpop.f32.mrb[0].mxu0
        %v3151 = vpop.f32.mrb[0].mxu0
        %v3152 = vadd.f32 0.0, %v3151
        %v3153 = vpop.f32.mrb[0].mxu0
        %3154 = vmatprep.mubr.bf16.mxu0 0
        %3155 = vmatmul.mubr.bf16.gmra.mrb[0].mxu0 %v3052
        %v3156 = vpop.f32.mrb[0].mxu0
        %v3157 = vadd.f32 0.0, %v3156
        %v3158 = vpop.f32.mrb[0].mxu0
        %v3159 = vpop.f32.mrb[0].mxu0
        %v3160 = vadd.f32 0.0, %v3159
        %v3161 = vpop.f32.mrb[0].mxu0
        %3162 = vmatprep.mubr.bf16.mxu0 0
        %3163 = vmatmul.mubr.bf16.gmra.mrb[0].mxu0 %v3055
        %v3164 = vpop.f32.mrb[0].mxu0
        %v3165 = vadd.f32 0.0, %v3164
        %v3166 = vpop.f32.mrb[0].mxu0
        %v3167 = vpop.f32.mrb[0].mxu0
        %v3168 = vadd.f32 0.0, %v3167
        %v3169 = vpop.f32.mrb[0].mxu0
        %3170 = vmatprep.mubr.bf16.mxu0 0
        %3171 = vmatmul.mubr.bf16.gmra.mrb[0].mxu0 %v3058
        %v3172 = vpop.f32.mrb[0].mxu0
        %v3173 = vadd.f32 0.0, %v3172
        %v3174 = vpop.f32.mrb[0].mxu0
        %v3175 = vpop.f32.mrb[0].mxu0
        %v3176 = vadd.f32 0.0, %v3175
        %v3177 = vpop.f32.mrb[0].mxu0
        %3178 = vmatprep.mubr.bf16.mxu0 0
        %3179 = vmatmul.mubr.bf16.gmra.mrb[0].mxu0 %v3061
        %v3180 = vpop.f32.mrb[0].mxu0
        %v3181 = vadd.f32 0.0, %v3180
        %v3182 = vpop.f32.mrb[0].mxu0
        %v3183 = vpop.f32.mrb[0].mxu0
        %v3184 = vadd.f32 0.0, %v3183
        %v3185 = vpop.f32.mrb[0].mxu0
        %3186 = vmatprep.mubr.bf16.mxu0 0
        %3187 = vmatmul.mubr.bf16.gmra.mrb[0].mxu0 %v3064
        %v3188 = vpop.f32.mrb[0].mxu0
        %v3189 = vadd.f32 0.0, %v3188
        %v3190 = vpop.f32.mrb[0].mxu0
        %v3191 = vpop.f32.mrb[0].mxu0
        %v3192 = vadd.f32 0.0, %v3191
        %v3193 = vpop.f32.mrb[0].mxu0
        %3194 = vmatprep.mubr.bf16.mxu0 0
        %3195 = vmatmul.mubr.bf16.gmra.mrb[0].mxu0 %v3067
        %v3196 = vpop.f32.mrb[0].mxu0
        %v3197 = vadd.f32 0.0, %v3196
        %v3198 = vpop.f32.mrb[0].mxu0
        %v3199 = vpop.f32.mrb[0].mxu0
        %v3200 = vadd.f32 0.0, %v3199
        %v3201 = vpop.f32.mrb[0].mxu0
        %3202 = vmatprep.mubr.bf16.mxu0 0
        %3203 = vmatmul.mubr.bf16.gmra.mrb[0].mxu0 %v3070
        %v3204 = vpop.f32.mrb[0].mxu0
        %v3205 = vadd.f32 0.0, %v3204
        %v3206 = vpop.f32.mrb[0].mxu0
        %v3207 = vpop.f32.mrb[0].mxu0
        %v3208 = vadd.f32 0.0, %v3207
        %v3209 = vpop.f32.mrb[0].mxu0
        %3210 = vmatprep.mubr.bf16.mxu0 0
        %3211 = vmatmul.mubr.bf16.gmra.mrb[0].mxu0 %v3073
        %v3212 = vpop.f32.mrb[0].mxu0
        %v3213 = vadd.f32 0.0, %v3212
        %v3214 = vpop.f32.mrb[0].mxu0
        %v3215 = vpop.f32.mrb[0].mxu0
        %v3216 = vadd.f32 0.0, %v3215
        %v3217 = vpop.f32.mrb[0].mxu0
        %3218 = vmatprep.mubr.bf16.mxu0 0
        %3219 = vmatmul.mubr.bf16.gmra.mrb[0].mxu0 %v3076
        %v3220 = vpop.f32.mrb[0].mxu0
        %v3221 = vadd.f32 0.0, %v3220
        %v3222 = vpop.f32.mrb[0].mxu0
        %v3223 = vpop.f32.mrb[0].mxu0
        %v3224 = vadd.f32 0.0, %v3223
        %v3225 = vpop.f32.mrb[0].mxu0
        %3226 = vmatprep.mubr.bf16.mxu0 0
        %3227 = vmatmul.mubr.bf16.gmra.mrb[0].mxu0 %v3079
        %v3228 = vpop.f32.mrb[0].mxu0
        %v3229 = vadd.f32 0.0, %v3228
        %v3230 = vpop.f32.mrb[0].mxu0
        %v3231 = vpop.f32.mrb[0].mxu0
        %v3232 = vadd.f32 0.0, %v3231
        %v3233 = vpop.f32.mrb[0].mxu0
        %3234 = vmatprep.mubr.bf16.mxu0 0
        %3235 = vmatmul.mubr.bf16.gmra.mrb[0].mxu0 %v3082
        %v3236 = vpop.f32.mrb[0].mxu0
        %v3237 = vadd.f32 0.0, %v3236
        %v3238 = vpop.f32.mrb[0].mxu0
        %v3239 = vpop.f32.mrb[0].mxu0
        %v3240 = vadd.f32 0.0, %v3239
        %v3241 = vpop.f32.mrb[0].mxu0
        %3242 = vmatprep.mubr.bf16.mxu0 0
        %3243 = vmatmul.mubr.bf16.gmra.mrb[0].mxu0 %v3085
        %v3244 = vpop.f32.mrb[0].mxu0
        %v3245 = vadd.f32 0.0, %v3244
        %v3246 = vpop.f32.mrb[0].mxu0
        %v3247 = vpop.f32.mrb[0].mxu0
        %v3248 = vadd.f32 0.0, %v3247
        %v3249 = vpop.f32.mrb[0].mxu0
        %3250 = vdwg.mxu0
        %v3251 = vadd.f32 %v2781, %v3125
        %v3252 = vadd.f32 %v2782, %v3128
        %v3253 = vadd.f32 %v2783, %v3133
        %v3254 = vadd.f32 %v2784, %v3136
        %v3255 = vadd.f32 %v2785, %v3141
        %v3256 = vadd.f32 %v2786, %v3144
        %v3257 = vadd.f32 %v2787, %v3149
        %v3258 = vadd.f32 %v2788, %v3152
        %v3259 = vadd.f32 %v2789, %v3157
        %v3260 = vadd.f32 %v2790, %v3160
        %v3261 = vadd.f32 %v2791, %v3165
        %v3262 = vadd.f32 %v2792, %v3168
        %v3263 = vadd.f32 %v2793, %v3173
        %v3264 = vadd.f32 %v2794, %v3176
        %v3265 = vadd.f32 %v2795, %v3181
        %v3266 = vadd.f32 %v2796, %v3184
        %v3267 = vadd.f32 %v2797, %v3189
        %v3268 = vadd.f32 %v2798, %v3192
        %v3269 = vadd.f32 %v2799, %v3197
        %v3270 = vadd.f32 %v2800, %v3200
        %v3271 = vadd.f32 %v2801, %v3205
        %v3272 = vadd.f32 %v2802, %v3208
        %v3273 = vadd.f32 %v2803, %v3213
        %v3274 = vadd.f32 %v2804, %v3216
        %v3275 = vadd.f32 %v2805, %v3221
        %v3276 = vadd.f32 %v2806, %v3224
        %v3277 = vadd.f32 %v2807, %v3229
        %v3278 = vadd.f32 %v2808, %v3232
        %v3279 = vadd.f32 %v2809, %v3237
        %v3280 = vadd.f32 %v2810, %v3240
        %v3281 = vadd.f32 %v2811, %v3245
        %v3282 = vadd.f32 %v2812, %v3248
        %s3283 = sadd.s32 %s272, 2
        %s3284 = smul.u32 %s3283, 3
        %s3285 = smul.addr %s3284, 4
        %s3286 = scalar_lea.vmem %s233, %s3285 [#allocation2]
        %v3287 = vld [vmem:[%s3286] sm:$0xf]
        %v3288 = vld [vmem:[%s3286 + $0x4] sm:$0xf]
        %v3289 = vld [vmem:[%s3286 + $0xc] sm:$0xf]
        %v3290 = vld [vmem:[%s3286 + $0x10] sm:$0xf]
        %v3291 = vld [vmem:[%s3286 + $0x18] sm:$0xf]
        %v3292 = vld [vmem:[%s3286 + $0x1c] sm:$0xf]
        %v3293 = vld [vmem:[%s3286 + $0x24] sm:$0xf]
        %v3294 = vld [vmem:[%s3286 + $0x28] sm:$0xf]
        %v3295 = vld [vmem:[%s3286 + $0x30] sm:$0xf]
        %v3296 = vld [vmem:[%s3286 + $0x34] sm:$0xf]
        %v3297 = vld [vmem:[%s3286 + $0x3c] sm:$0xf]
        %v3298 = vld [vmem:[%s3286 + $0x40] sm:$0xf]
        %v3299 = vld [vmem:[%s3286 + $0x48] sm:$0xf]
        %v3300 = vld [vmem:[%s3286 + $0x4c] sm:$0xf]
        %v3301 = vld [vmem:[%s3286 + $0x54] sm:$0xf]
        %v3302 = vld [vmem:[%s3286 + $0x58] sm:$0xf]
        %v3303 = vld [vmem:[%s3286 + $0x60] sm:$0xf]
        %v3304 = vld [vmem:[%s3286 + $0x64] sm:$0xf]
        %v3305 = vld [vmem:[%s3286 + $0x6c] sm:$0xf]
        %v3306 = vld [vmem:[%s3286 + $0x70] sm:$0xf]
        %v3307 = vld [vmem:[%s3286 + $0x78] sm:$0xf]
        %v3308 = vld [vmem:[%s3286 + $0x7c] sm:$0xf]
        %v3309 = vld [vmem:[%s3286 + $0x84] sm:$0xf]
        %v3310 = vld [vmem:[%s3286 + $0x88] sm:$0xf]
        %v3311 = vld [vmem:[%s3286 + $0x90] sm:$0xf]
        %v3312 = vld [vmem:[%s3286 + $0x94] sm:$0xf]
        %v3313 = vld [vmem:[%s3286 + $0x9c] sm:$0xf]
        %v3314 = vld [vmem:[%s3286 + $0xa0] sm:$0xf]
        %v3315 = vld [vmem:[%s3286 + $0xa8] sm:$0xf]
        %v3316 = vld [vmem:[%s3286 + $0xac] sm:$0xf]
        %v3317 = vld [vmem:[%s3286 + $0xb4] sm:$0xf]
        %v3318 = vld [vmem:[%s3286 + $0xb8] sm:$0xf]
        %s3319 = scalar_lea.vmem [#allocation5], 12
        %v3320 = vld [vmem:[%s3319] sm:$0x3]
        %v3353 = vunpack.c.l.b16 %v3287
        %v3354 = vunpack.c.l.b16 %v3288
        %v3355 = vunpack.c.l.b16 %v3289
        %v3356 = vunpack.c.l.b16 %v3290
        %v3357 = vunpack.c.l.b16 %v3291
        %v3358 = vunpack.c.l.b16 %v3292
        %v3359 = vunpack.c.l.b16 %v3293
        %v3360 = vunpack.c.l.b16 %v3294
        %v3361 = vunpack.c.l.b16 %v3295
        %v3362 = vunpack.c.l.b16 %v3296
        %v3363 = vunpack.c.l.b16 %v3297
        %v3364 = vunpack.c.l.b16 %v3298
        %v3365 = vunpack.c.l.b16 %v3299
        %v3366 = vunpack.c.l.b16 %v3300
        %v3367 = vunpack.c.l.b16 %v3301
        %v3368 = vunpack.c.l.b16 %v3302
        %v3369 = vunpack.c.l.b16 %v3303
        %v3370 = vunpack.c.l.b16 %v3304
        %v3371 = vunpack.c.l.b16 %v3305
        %v3372 = vunpack.c.l.b16 %v3306
        %v3373 = vunpack.c.l.b16 %v3307
        %v3374 = vunpack.c.l.b16 %v3308
        %v3375 = vunpack.c.l.b16 %v3309
        %v3376 = vunpack.c.l.b16 %v3310
        %v3377 = vunpack.c.l.b16 %v3311
        %v3378 = vunpack.c.l.b16 %v3312
        %v3379 = vunpack.c.l.b16 %v3313
        %v3380 = vunpack.c.l.b16 %v3314
        %v3381 = vunpack.c.l.b16 %v3315
        %v3382 = vunpack.c.l.b16 %v3316
        %v3383 = vunpack.c.l.b16 %v3317
        %v3384 = vunpack.c.l.b16 %v3318
        %v3385 = vpack.c.b16 %v3354, %v3353
        %v3386 = vpack.c.b16 %v3356, %v3355
        %v3387 = vpack.c.b16 %v3358, %v3357
        %v3388 = vpack.c.b16 %v3360, %v3359
        %v3389 = vpack.c.b16 %v3362, %v3361
        %v3390 = vpack.c.b16 %v3364, %v3363
        %v3391 = vpack.c.b16 %v3366, %v3365
        %v3392 = vpack.c.b16 %v3368, %v3367
        %v3393 = vpack.c.b16 %v3370, %v3369
        %v3394 = vpack.c.b16 %v3372, %v3371
        %v3395 = vpack.c.b16 %v3374, %v3373
        %v3396 = vpack.c.b16 %v3376, %v3375
        %v3397 = vpack.c.b16 %v3378, %v3377
        %v3398 = vpack.c.b16 %v3380, %v3379
        %v3399 = vpack.c.b16 %v3382, %v3381
        %v3400 = vpack.c.b16 %v3384, %v3383
        %v3402 = vsel %vm762, %v3385, 0
        %v3405 = vsel %vm762, %v3386, 0
        %v3408 = vsel %vm762, %v3387, 0
        %v3411 = vsel %vm762, %v3388, 0
        %v3414 = vsel %vm762, %v3389, 0
        %v3417 = vsel %vm762, %v3390, 0
        %v3420 = vsel %vm762, %v3391, 0
        %v3423 = vsel %vm762, %v3392, 0
        %v3426 = vsel %vm762, %v3393, 0
        %v3429 = vsel %vm762, %v3394, 0
        %v3432 = vsel %vm762, %v3395, 0
        %v3435 = vsel %vm762, %v3396, 0
        %v3438 = vsel %vm762, %v3397, 0
        %v3441 = vsel %vm762, %v3398, 0
        %v3444 = vsel %vm762, %v3399, 0
        %v3447 = vsel %vm762, %v3400, 0
        %v3450 = vsel %vm811, %v3320, 0
        %3452 = vmatprep.subr.bf16.mxu0 0
        %3453 = vmatpush1.bf16.msra.mxu0 %v3450
        %3454 = vmatprep.subr.bf16.mxu0 0
        %3455 = vmatpush1.bf16.msra.mxu0 0
        %3456 = vmatprep.subr.bf16.mxu0 0
        %3457 = vmatpush1.bf16.msra.mxu0 0
        %3458 = vmatprep.subr.bf16.mxu0 0
        %3459 = vmatpush1.bf16.msra.mxu0 0
        %3460 = vmatprep.subr.bf16.mxu0 0
        %3461 = vmatpush1.bf16.msra.mxu0 0
        %3462 = vmatprep.subr.bf16.mxu0 0
        %3463 = vmatpush1.bf16.msra.mxu0 0
        %3464 = vmatprep.subr.bf16.mxu0 0
        %3465 = vmatpush1.bf16.msra.mxu0 0
        %3466 = vmatprep.subr.bf16.mxu0 0
        %3467 = vmatpush1.bf16.msra.mxu0 0
        %3468 = vmatprep.subr.bf16.mxu0 0
        %3469 = vmatpush1.bf16.msra.mxu0 0
        %3470 = vmatprep.subr.bf16.mxu0 0
        %3471 = vmatpush1.bf16.msra.mxu0 0
        %3472 = vmatprep.subr.bf16.mxu0 0
        %3473 = vmatpush1.bf16.msra.mxu0 0
        %3474 = vmatprep.subr.bf16.mxu0 0
        %3475 = vmatpush1.bf16.msra.mxu0 0
        %3476 = vmatprep.subr.bf16.mxu0 0
        %3477 = vmatpush1.bf16.msra.mxu0 0
        %3478 = vmatprep.subr.bf16.mxu0 0
        %3479 = vmatpush1.bf16.msra.mxu0 0
        %3480 = vmatprep.subr.bf16.mxu0 0
        %3481 = vmatpush1.bf16.msra.mxu0 0
        %3482 = vmatprep.subr.bf16.mxu0 0
        %3483 = vmatpush1.bf16.msra.mxu0 0
        %3484 = vmatprep.mubr.bf16.mxu0 0
        %3485 = vmatmul.mubr.bf16.gmra.mrb[0].mxu0 %v3402
        %v3486 = vpop.f32.mrb[0].mxu0
        %v3487 = vadd.f32 0.0, %v3486
        %v3488 = vpop.f32.mrb[0].mxu0
        %v3489 = vpop.f32.mrb[0].mxu0
        %v3490 = vadd.f32 0.0, %v3489
        %v3491 = vpop.f32.mrb[0].mxu0
        %3492 = vmatprep.mubr.bf16.mxu0 0
        %3493 = vmatmul.mubr.bf16.gmra.mrb[0].mxu0 %v3405
        %v3494 = vpop.f32.mrb[0].mxu0
        %v3495 = vadd.f32 0.0, %v3494
        %v3496 = vpop.f32.mrb[0].mxu0
        %v3497 = vpop.f32.mrb[0].mxu0
        %v3498 = vadd.f32 0.0, %v3497
        %v3499 = vpop.f32.mrb[0].mxu0
        %3500 = vmatprep.mubr.bf16.mxu0 0
        %3501 = vmatmul.mubr.bf16.gmra.mrb[0].mxu0 %v3408
        %v3502 = vpop.f32.mrb[0].mxu0
        %v3503 = vadd.f32 0.0, %v3502
        %v3504 = vpop.f32.mrb[0].mxu0
        %v3505 = vpop.f32.mrb[0].mxu0
        %v3506 = vadd.f32 0.0, %v3505
        %v3507 = vpop.f32.mrb[0].mxu0
        %3508 = vmatprep.mubr.bf16.mxu0 0
        %3509 = vmatmul.mubr.bf16.gmra.mrb[0].mxu0 %v3411
        %v3510 = vpop.f32.mrb[0].mxu0
        %v3511 = vadd.f32 0.0, %v3510
        %v3512 = vpop.f32.mrb[0].mxu0
        %v3513 = vpop.f32.mrb[0].mxu0
        %v3514 = vadd.f32 0.0, %v3513
        %v3515 = vpop.f32.mrb[0].mxu0
        %3516 = vmatprep.mubr.bf16.mxu0 0
        %3517 = vmatmul.mubr.bf16.gmra.mrb[0].mxu0 %v3414
        %v3518 = vpop.f32.mrb[0].mxu0
        %v3519 = vadd.f32 0.0, %v3518
        %v3520 = vpop.f32.mrb[0].mxu0
        %v3521 = vpop.f32.mrb[0].mxu0
        %v3522 = vadd.f32 0.0, %v3521
        %v3523 = vpop.f32.mrb[0].mxu0
        %3524 = vmatprep.mubr.bf16.mxu0 0
        %3525 = vmatmul.mubr.bf16.gmra.mrb[0].mxu0 %v3417
        %v3526 = vpop.f32.mrb[0].mxu0
        %v3527 = vadd.f32 0.0, %v3526
        %v3528 = vpop.f32.mrb[0].mxu0
        %v3529 = vpop.f32.mrb[0].mxu0
        %v3530 = vadd.f32 0.0, %v3529
        %v3531 = vpop.f32.mrb[0].mxu0
        %3532 = vmatprep.mubr.bf16.mxu0 0
        %3533 = vmatmul.mubr.bf16.gmra.mrb[0].mxu0 %v3420
        %v3534 = vpop.f32.mrb[0].mxu0
        %v3535 = vadd.f32 0.0, %v3534
        %v3536 = vpop.f32.mrb[0].mxu0
        %v3537 = vpop.f32.mrb[0].mxu0
        %v3538 = vadd.f32 0.0, %v3537
        %v3539 = vpop.f32.mrb[0].mxu0
        %3540 = vmatprep.mubr.bf16.mxu0 0
        %3541 = vmatmul.mubr.bf16.gmra.mrb[0].mxu0 %v3423
        %v3542 = vpop.f32.mrb[0].mxu0
        %v3543 = vadd.f32 0.0, %v3542
        %v3544 = vpop.f32.mrb[0].mxu0
        %v3545 = vpop.f32.mrb[0].mxu0
        %v3546 = vadd.f32 0.0, %v3545
        %v3547 = vpop.f32.mrb[0].mxu0
        %3548 = vmatprep.mubr.bf16.mxu0 0
        %3549 = vmatmul.mubr.bf16.gmra.mrb[0].mxu0 %v3426
        %v3550 = vpop.f32.mrb[0].mxu0
        %v3551 = vadd.f32 0.0, %v3550
        %v3552 = vpop.f32.mrb[0].mxu0
        %v3553 = vpop.f32.mrb[0].mxu0
        %v3554 = vadd.f32 0.0, %v3553
        %v3555 = vpop.f32.mrb[0].mxu0
        %3556 = vmatprep.mubr.bf16.mxu0 0
        %3557 = vmatmul.mubr.bf16.gmra.mrb[0].mxu0 %v3429
        %v3558 = vpop.f32.mrb[0].mxu0
        %v3559 = vadd.f32 0.0, %v3558
        %v3560 = vpop.f32.mrb[0].mxu0
        %v3561 = vpop.f32.mrb[0].mxu0
        %v3562 = vadd.f32 0.0, %v3561
        %v3563 = vpop.f32.mrb[0].mxu0
        %3564 = vmatprep.mubr.bf16.mxu0 0
        %3565 = vmatmul.mubr.bf16.gmra.mrb[0].mxu0 %v3432
        %v3566 = vpop.f32.mrb[0].mxu0
        %v3567 = vadd.f32 0.0, %v3566
        %v3568 = vpop.f32.mrb[0].mxu0
        %v3569 = vpop.f32.mrb[0].mxu0
        %v3570 = vadd.f32 0.0, %v3569
        %v3571 = vpop.f32.mrb[0].mxu0
        %3572 = vmatprep.mubr.bf16.mxu0 0
        %3573 = vmatmul.mubr.bf16.gmra.mrb[0].mxu0 %v3435
        %v3574 = vpop.f32.mrb[0].mxu0
        %v3575 = vadd.f32 0.0, %v3574
        %v3576 = vpop.f32.mrb[0].mxu0
        %v3577 = vpop.f32.mrb[0].mxu0
        %v3578 = vadd.f32 0.0, %v3577
        %v3579 = vpop.f32.mrb[0].mxu0
        %3580 = vmatprep.mubr.bf16.mxu0 0
        %3581 = vmatmul.mubr.bf16.gmra.mrb[0].mxu0 %v3438
        %v3582 = vpop.f32.mrb[0].mxu0
        %v3583 = vadd.f32 0.0, %v3582
        %v3584 = vpop.f32.mrb[0].mxu0
        %v3585 = vpop.f32.mrb[0].mxu0
        %v3586 = vadd.f32 0.0, %v3585
        %v3587 = vpop.f32.mrb[0].mxu0
        %3588 = vmatprep.mubr.bf16.mxu0 0
        %3589 = vmatmul.mubr.bf16.gmra.mrb[0].mxu0 %v3441
        %v3590 = vpop.f32.mrb[0].mxu0
        %v3591 = vadd.f32 0.0, %v3590
        %v3592 = vpop.f32.mrb[0].mxu0
        %v3593 = vpop.f32.mrb[0].mxu0
        %v3594 = vadd.f32 0.0, %v3593
        %v3595 = vpop.f32.mrb[0].mxu0
        %3596 = vmatprep.mubr.bf16.mxu0 0
        %3597 = vmatmul.mubr.bf16.gmra.mrb[0].mxu0 %v3444
        %v3598 = vpop.f32.mrb[0].mxu0
        %v3599 = vadd.f32 0.0, %v3598
        %v3600 = vpop.f32.mrb[0].mxu0
        %v3601 = vpop.f32.mrb[0].mxu0
        %v3602 = vadd.f32 0.0, %v3601
        %v3603 = vpop.f32.mrb[0].mxu0
        %3604 = vmatprep.mubr.bf16.mxu0 0
        %3605 = vmatmul.mubr.bf16.gmra.mrb[0].mxu0 %v3447
        %v3606 = vpop.f32.mrb[0].mxu0
        %v3607 = vadd.f32 0.0, %v3606
        %v3608 = vpop.f32.mrb[0].mxu0
        %v3609 = vpop.f32.mrb[0].mxu0
        %v3610 = vadd.f32 0.0, %v3609
        %v3611 = vpop.f32.mrb[0].mxu0
        %3612 = vdwg.mxu0
        %v3613 = vadd.f32 %v3251, %v3487
        %v3614 = vadd.f32 %v3252, %v3490
        %v3615 = vadd.f32 %v3253, %v3495
        %v3616 = vadd.f32 %v3254, %v3498
        %v3617 = vadd.f32 %v3255, %v3503
        %v3618 = vadd.f32 %v3256, %v3506
        %v3619 = vadd.f32 %v3257, %v3511
        %v3620 = vadd.f32 %v3258, %v3514
        %v3621 = vadd.f32 %v3259, %v3519
        %v3622 = vadd.f32 %v3260, %v3522
        %v3623 = vadd.f32 %v3261, %v3527
        %v3624 = vadd.f32 %v3262, %v3530
        %v3625 = vadd.f32 %v3263, %v3535
        %v3626 = vadd.f32 %v3264, %v3538
        %v3627 = vadd.f32 %v3265, %v3543
        %v3628 = vadd.f32 %v3266, %v3546
        %v3629 = vadd.f32 %v3267, %v3551
        %v3630 = vadd.f32 %v3268, %v3554
        %v3631 = vadd.f32 %v3269, %v3559
        %v3632 = vadd.f32 %v3270, %v3562
        %v3633 = vadd.f32 %v3271, %v3567
        %v3634 = vadd.f32 %v3272, %v3570
        %v3635 = vadd.f32 %v3273, %v3575
        %v3636 = vadd.f32 %v3274, %v3578
        %v3637 = vadd.f32 %v3275, %v3583
        %v3638 = vadd.f32 %v3276, %v3586
        %v3639 = vadd.f32 %v3277, %v3591
        %v3640 = vadd.f32 %v3278, %v3594
        %v3641 = vadd.f32 %v3279, %v3599
        %v3642 = vadd.f32 %v3280, %v3602
        %v3643 = vadd.f32 %v3281, %v3607
        %v3644 = vadd.f32 %v3282, %v3610
        %v3645 = vld [vmem:[%s3286] sm:$0xf]
        %v3646 = vld [vmem:[%s3286 + $0x4] sm:$0xf]
        %v3647 = vld [vmem:[%s3286 + $0x8] sm:$0x1]
        %v3648 = vld [vmem:[%s3286 + $0xc] sm:$0xf]
        %v3649 = vld [vmem:[%s3286 + $0x10] sm:$0xf]
        %v3650 = vld [vmem:[%s3286 + $0x14] sm:$0x1]
        %v3651 = vld [vmem:[%s3286 + $0x18] sm:$0xf]
        %v3652 = vld [vmem:[%s3286 + $0x1c] sm:$0xf]
        %v3653 = vld [vmem:[%s3286 + $0x20] sm:$0x1]
        %v3654 = vld [vmem:[%s3286 + $0x24] sm:$0xf]
        %v3655 = vld [vmem:[%s3286 + $0x28] sm:$0xf]
        %v3656 = vld [vmem:[%s3286 + $0x2c] sm:$0x1]
        %v3657 = vld [vmem:[%s3286 + $0x30] sm:$0xf]
        %v3658 = vld [vmem:[%s3286 + $0x34] sm:$0xf]
        %v3659 = vld [vmem:[%s3286 + $0x38] sm:$0x1]
        %v3660 = vld [vmem:[%s3286 + $0x3c] sm:$0xf]
        %v3661 = vld [vmem:[%s3286 + $0x40] sm:$0xf]
        %v3662 = vld [vmem:[%s3286 + $0x44] sm:$0x1]
        %v3663 = vld [vmem:[%s3286 + $0x48] sm:$0xf]
        %v3664 = vld [vmem:[%s3286 + $0x4c] sm:$0xf]
        %v3665 = vld [vmem:[%s3286 + $0x50] sm:$0x1]
        %v3666 = vld [vmem:[%s3286 + $0x54] sm:$0xf]
        %v3667 = vld [vmem:[%s3286 + $0x58] sm:$0xf]
        %v3668 = vld [vmem:[%s3286 + $0x5c] sm:$0x1]
        %v3669 = vld [vmem:[%s3286 + $0x60] sm:$0xf]
        %v3670 = vld [vmem:[%s3286 + $0x64] sm:$0xf]
        %v3671 = vld [vmem:[%s3286 + $0x68] sm:$0x1]
        %v3672 = vld [vmem:[%s3286 + $0x6c] sm:$0xf]
        %v3673 = vld [vmem:[%s3286 + $0x70] sm:$0xf]
        %v3674 = vld [vmem:[%s3286 + $0x74] sm:$0x1]
        %v3675 = vld [vmem:[%s3286 + $0x78] sm:$0xf]
        %v3676 = vld [vmem:[%s3286 + $0x7c] sm:$0xf]
        %v3677 = vld [vmem:[%s3286 + $0x80] sm:$0x1]
        %v3678 = vld [vmem:[%s3286 + $0x84] sm:$0xf]
        %v3679 = vld [vmem:[%s3286 + $0x88] sm:$0xf]
        %v3680 = vld [vmem:[%s3286 + $0x8c] sm:$0x1]
        %v3681 = vld [vmem:[%s3286 + $0x90] sm:$0xf]
        %v3682 = vld [vmem:[%s3286 + $0x94] sm:$0xf]
        %v3683 = vld [vmem:[%s3286 + $0x98] sm:$0x1]
        %v3684 = vld [vmem:[%s3286 + $0x9c] sm:$0xf]
        %v3685 = vld [vmem:[%s3286 + $0xa0] sm:$0xf]
        %v3686 = vld [vmem:[%s3286 + $0xa4] sm:$0x1]
        %v3687 = vld [vmem:[%s3286 + $0xa8] sm:$0xf]
        %v3688 = vld [vmem:[%s3286 + $0xac] sm:$0xf]
        %v3689 = vld [vmem:[%s3286 + $0xb0] sm:$0x1]
        %v3690 = vld [vmem:[%s3286 + $0xb4] sm:$0xf]
        %v3691 = vld [vmem:[%s3286 + $0xb8] sm:$0xf]
        %v3692 = vld [vmem:[%s3286 + $0xbc] sm:$0x1]
        %s3693 = scalar_lea.vmem [#allocation5], 14
        %v3694 = vld [vmem:[%s3693] sm:$0x3]
        %v3696 = vshrl.u32 %v3645, 16
        %v3698 = vrot.slane %v3696, 4
        %v3699 = vshll.u32 %v3645, 16
        %v3701 = vrot.slane %v3699, 5
        %v3702 = vor.u32 %v3698, %v3701
        %v3703 = vrot.slane %v3702, 4
        %v3705 = vshll.u32 %v3646, 16
        %v3707 = vrot.slane %v3705, 5
        %v3708 = vsel %vm329, %v3703, %v3707
        %v3709 = vshrl.u32 %v3646, 16
        %v3711 = vrot.slane %v3709, 4
        %v3712 = vor.u32 %v3711, %v3707
        %v3713 = vrot.slane %v3712, 4
        %v3715 = vshll.u32 %v3647, 16
        %v3717 = vrot.slane %v3715, 5
        %v3718 = vsel %vm329, %v3713, %v3717
        %v3720 = vshrl.u32 %v3648, 16
        %v3722 = vrot.slane %v3720, 4
        %v3723 = vshll.u32 %v3648, 16
        %v3725 = vrot.slane %v3723, 5
        %v3726 = vor.u32 %v3722, %v3725
        %v3727 = vrot.slane %v3726, 4
        %v3729 = vshll.u32 %v3649, 16
        %v3731 = vrot.slane %v3729, 5
        %v3732 = vsel %vm329, %v3727, %v3731
        %v3733 = vshrl.u32 %v3649, 16
        %v3735 = vrot.slane %v3733, 4
        %v3736 = vor.u32 %v3735, %v3731
        %v3737 = vrot.slane %v3736, 4
        %v3739 = vshll.u32 %v3650, 16
        %v3741 = vrot.slane %v3739, 5
        %v3742 = vsel %vm329, %v3737, %v3741
        %v3744 = vshrl.u32 %v3651, 16
        %v3746 = vrot.slane %v3744, 4
        %v3747 = vshll.u32 %v3651, 16
        %v3749 = vrot.slane %v3747, 5
        %v3750 = vor.u32 %v3746, %v3749
        %v3751 = vrot.slane %v3750, 4
        %v3753 = vshll.u32 %v3652, 16
        %v3755 = vrot.slane %v3753, 5
        %v3756 = vsel %vm329, %v3751, %v3755
        %v3757 = vshrl.u32 %v3652, 16
        %v3759 = vrot.slane %v3757, 4
        %v3760 = vor.u32 %v3759, %v3755
        %v3761 = vrot.slane %v3760, 4
        %v3763 = vshll.u32 %v3653, 16
        %v3765 = vrot.slane %v3763, 5
        %v3766 = vsel %vm329, %v3761, %v3765
        %v3768 = vshrl.u32 %v3654, 16
        %v3770 = vrot.slane %v3768, 4
        %v3771 = vshll.u32 %v3654, 16
        %v3773 = vrot.slane %v3771, 5
        %v3774 = vor.u32 %v3770, %v3773
        %v3775 = vrot.slane %v3774, 4
        %v3777 = vshll.u32 %v3655, 16
        %v3779 = vrot.slane %v3777, 5
        %v3780 = vsel %vm329, %v3775, %v3779
        %v3781 = vshrl.u32 %v3655, 16
        %v3783 = vrot.slane %v3781, 4
        %v3784 = vor.u32 %v3783, %v3779
        %v3785 = vrot.slane %v3784, 4
        %v3787 = vshll.u32 %v3656, 16
        %v3789 = vrot.slane %v3787, 5
        %v3790 = vsel %vm329, %v3785, %v3789
        %v3792 = vshrl.u32 %v3657, 16
        %v3794 = vrot.slane %v3792, 4
        %v3795 = vshll.u32 %v3657, 16
        %v3797 = vrot.slane %v3795, 5
        %v3798 = vor.u32 %v3794, %v3797
        %v3799 = vrot.slane %v3798, 4
        %v3801 = vshll.u32 %v3658, 16
        %v3803 = vrot.slane %v3801, 5
        %v3804 = vsel %vm329, %v3799, %v3803
        %v3805 = vshrl.u32 %v3658, 16
        %v3807 = vrot.slane %v3805, 4
        %v3808 = vor.u32 %v3807, %v3803
        %v3809 = vrot.slane %v3808, 4
        %v3811 = vshll.u32 %v3659, 16
        %v3813 = vrot.slane %v3811, 5
        %v3814 = vsel %vm329, %v3809, %v3813
        %v3816 = vshrl.u32 %v3660, 16
        %v3818 = vrot.slane %v3816, 4
        %v3819 = vshll.u32 %v3660, 16
        %v3821 = vrot.slane %v3819, 5
        %v3822 = vor.u32 %v3818, %v3821
        %v3823 = vrot.slane %v3822, 4
        %v3825 = vshll.u32 %v3661, 16
        %v3827 = vrot.slane %v3825, 5
        %v3828 = vsel %vm329, %v3823, %v3827
        %v3829 = vshrl.u32 %v3661, 16
        %v3831 = vrot.slane %v3829, 4
        %v3832 = vor.u32 %v3831, %v3827
        %v3833 = vrot.slane %v3832, 4
        %v3835 = vshll.u32 %v3662, 16
        %v3837 = vrot.slane %v3835, 5
        %v3838 = vsel %vm329, %v3833, %v3837
        %v3840 = vshrl.u32 %v3663, 16
        %v3842 = vrot.slane %v3840, 4
        %v3843 = vshll.u32 %v3663, 16
        %v3845 = vrot.slane %v3843, 5
        %v3846 = vor.u32 %v3842, %v3845
        %v3847 = vrot.slane %v3846, 4
        %v3849 = vshll.u32 %v3664, 16
        %v3851 = vrot.slane %v3849, 5
        %v3852 = vsel %vm329, %v3847, %v3851
        %v3853 = vshrl.u32 %v3664, 16
        %v3855 = vrot.slane %v3853, 4
        %v3856 = vor.u32 %v3855, %v3851
        %v3857 = vrot.slane %v3856, 4
        %v3859 = vshll.u32 %v3665, 16
        %v3861 = vrot.slane %v3859, 5
        %v3862 = vsel %vm329, %v3857, %v3861
        %v3864 = vshrl.u32 %v3666, 16
        %v3866 = vrot.slane %v3864, 4
        %v3867 = vshll.u32 %v3666, 16
        %v3869 = vrot.slane %v3867, 5
        %v3870 = vor.u32 %v3866, %v3869
        %v3871 = vrot.slane %v3870, 4
        %v3873 = vshll.u32 %v3667, 16
        %v3875 = vrot.slane %v3873, 5
        %v3876 = vsel %vm329, %v3871, %v3875
        %v3877 = vshrl.u32 %v3667, 16
        %v3879 = vrot.slane %v3877, 4
        %v3880 = vor.u32 %v3879, %v3875
        %v3881 = vrot.slane %v3880, 4
        %v3883 = vshll.u32 %v3668, 16
        %v3885 = vrot.slane %v3883, 5
        %v3886 = vsel %vm329, %v3881, %v3885
        %v3888 = vshrl.u32 %v3669, 16
        %v3890 = vrot.slane %v3888, 4
        %v3891 = vshll.u32 %v3669, 16
        %v3893 = vrot.slane %v3891, 5
        %v3894 = vor.u32 %v3890, %v3893
        %v3895 = vrot.slane %v3894, 4
        %v3897 = vshll.u32 %v3670, 16
        %v3899 = vrot.slane %v3897, 5
        %v3900 = vsel %vm329, %v3895, %v3899
        %v3901 = vshrl.u32 %v3670, 16
        %v3903 = vrot.slane %v3901, 4
        %v3904 = vor.u32 %v3903, %v3899
        %v3905 = vrot.slane %v3904, 4
        %v3907 = vshll.u32 %v3671, 16
        %v3909 = vrot.slane %v3907, 5
        %v3910 = vsel %vm329, %v3905, %v3909
        %v3912 = vshrl.u32 %v3672, 16
        %v3914 = vrot.slane %v3912, 4
        %v3915 = vshll.u32 %v3672, 16
        %v3917 = vrot.slane %v3915, 5
        %v3918 = vor.u32 %v3914, %v3917
        %v3919 = vrot.slane %v3918, 4
        %v3921 = vshll.u32 %v3673, 16
        %v3923 = vrot.slane %v3921, 5
        %v3924 = vsel %vm329, %v3919, %v3923
        %v3925 = vshrl.u32 %v3673, 16
        %v3927 = vrot.slane %v3925, 4
        %v3928 = vor.u32 %v3927, %v3923
        %v3929 = vrot.slane %v3928, 4
        %v3931 = vshll.u32 %v3674, 16
        %v3933 = vrot.slane %v3931, 5
        %v3934 = vsel %vm329, %v3929, %v3933
        %v3936 = vshrl.u32 %v3675, 16
        %v3938 = vrot.slane %v3936, 4
        %v3939 = vshll.u32 %v3675, 16
        %v3941 = vrot.slane %v3939, 5
        %v3942 = vor.u32 %v3938, %v3941
        %v3943 = vrot.slane %v3942, 4
        %v3945 = vshll.u32 %v3676, 16
        %v3947 = vrot.slane %v3945, 5
        %v3948 = vsel %vm329, %v3943, %v3947
        %v3949 = vshrl.u32 %v3676, 16
        %v3951 = vrot.slane %v3949, 4
        %v3952 = vor.u32 %v3951, %v3947
        %v3953 = vrot.slane %v3952, 4
        %v3955 = vshll.u32 %v3677, 16
        %v3957 = vrot.slane %v3955, 5
        %v3958 = vsel %vm329, %v3953, %v3957
        %v3960 = vshrl.u32 %v3678, 16
        %v3962 = vrot.slane %v3960, 4
        %v3963 = vshll.u32 %v3678, 16
        %v3965 = vrot.slane %v3963, 5
        %v3966 = vor.u32 %v3962, %v3965
        %v3967 = vrot.slane %v3966, 4
        %v3969 = vshll.u32 %v3679, 16
        %v3971 = vrot.slane %v3969, 5
        %v3972 = vsel %vm329, %v3967, %v3971
        %v3973 = vshrl.u32 %v3679, 16
        %v3975 = vrot.slane %v3973, 4
        %v3976 = vor.u32 %v3975, %v3971
        %v3977 = vrot.slane %v3976, 4
        %v3979 = vshll.u32 %v3680, 16
        %v3981 = vrot.slane %v3979, 5
        %v3982 = vsel %vm329, %v3977, %v3981
        %v3984 = vshrl.u32 %v3681, 16
        %v3986 = vrot.slane %v3984, 4
        %v3987 = vshll.u32 %v3681, 16
        %v3989 = vrot.slane %v3987, 5
        %v3990 = vor.u32 %v3986, %v3989
        %v3991 = vrot.slane %v3990, 4
        %v3993 = vshll.u32 %v3682, 16
        %v3995 = vrot.slane %v3993, 5
        %v3996 = vsel %vm329, %v3991, %v3995
        %v3997 = vshrl.u32 %v3682, 16
        %v3999 = vrot.slane %v3997, 4
        %v4000 = vor.u32 %v3999, %v3995
        %v4001 = vrot.slane %v4000, 4
        %v4003 = vshll.u32 %v3683, 16
        %v4005 = vrot.slane %v4003, 5
        %v4006 = vsel %vm329, %v4001, %v4005
        %v4008 = vshrl.u32 %v3684, 16
        %v4010 = vrot.slane %v4008, 4
        %v4011 = vshll.u32 %v3684, 16
        %v4013 = vrot.slane %v4011, 5
        %v4014 = vor.u32 %v4010, %v4013
        %v4015 = vrot.slane %v4014, 4
        %v4017 = vshll.u32 %v3685, 16
        %v4019 = vrot.slane %v4017, 5
        %v4020 = vsel %vm329, %v4015, %v4019
        %v4021 = vshrl.u32 %v3685, 16
        %v4023 = vrot.slane %v4021, 4
        %v4024 = vor.u32 %v4023, %v4019
        %v4025 = vrot.slane %v4024, 4
        %v4027 = vshll.u32 %v3686, 16
        %v4029 = vrot.slane %v4027, 5
        %v4030 = vsel %vm329, %v4025, %v4029
        %v4032 = vshrl.u32 %v3687, 16
        %v4034 = vrot.slane %v4032, 4
        %v4035 = vshll.u32 %v3687, 16
        %v4037 = vrot.slane %v4035, 5
        %v4038 = vor.u32 %v4034, %v4037
        %v4039 = vrot.slane %v4038, 4
        %v4041 = vshll.u32 %v3688, 16
        %v4043 = vrot.slane %v4041, 5
        %v4044 = vsel %vm329, %v4039, %v4043
        %v4045 = vshrl.u32 %v3688, 16
        %v4047 = vrot.slane %v4045, 4
        %v4048 = vor.u32 %v4047, %v4043
        %v4049 = vrot.slane %v4048, 4
        %v4051 = vshll.u32 %v3689, 16
        %v4053 = vrot.slane %v4051, 5
        %v4054 = vsel %vm329, %v4049, %v4053
        %v4056 = vshrl.u32 %v3690, 16
        %v4058 = vrot.slane %v4056, 4
        %v4059 = vshll.u32 %v3690, 16
        %v4061 = vrot.slane %v4059, 5
        %v4062 = vor.u32 %v4058, %v4061
        %v4063 = vrot.slane %v4062, 4
        %v4065 = vshll.u32 %v3691, 16
        %v4067 = vrot.slane %v4065, 5
        %v4068 = vsel %vm329, %v4063, %v4067
        %v4069 = vshrl.u32 %v3691, 16
        %v4071 = vrot.slane %v4069, 4
        %v4072 = vor.u32 %v4071, %v4067
        %v4073 = vrot.slane %v4072, 4
        %v4075 = vshll.u32 %v3692, 16
        %v4077 = vrot.slane %v4075, 5
        %v4078 = vsel %vm329, %v4073, %v4077
        %v4079 = vunpack.c.l.b16 %v3708
        %v4080 = vunpack.c.l.b16 %v3718
        %v4081 = vunpack.c.l.b16 %v3732
        %v4082 = vunpack.c.l.b16 %v3742
        %v4083 = vunpack.c.l.b16 %v3756
        %v4084 = vunpack.c.l.b16 %v3766
        %v4085 = vunpack.c.l.b16 %v3780
        %v4086 = vunpack.c.l.b16 %v3790
        %v4087 = vunpack.c.l.b16 %v3804
        %v4088 = vunpack.c.l.b16 %v3814
        %v4089 = vunpack.c.l.b16 %v3828
        %v4090 = vunpack.c.l.b16 %v3838
        %v4091 = vunpack.c.l.b16 %v3852
        %v4092 = vunpack.c.l.b16 %v3862
        %v4093 = vunpack.c.l.b16 %v3876
        %v4094 = vunpack.c.l.b16 %v3886
        %v4095 = vunpack.c.l.b16 %v3900
        %v4096 = vunpack.c.l.b16 %v3910
        %v4097 = vunpack.c.l.b16 %v3924
        %v4098 = vunpack.c.l.b16 %v3934
        %v4099 = vunpack.c.l.b16 %v3948
        %v4100 = vunpack.c.l.b16 %v3958
        %v4101 = vunpack.c.l.b16 %v3972
        %v4102 = vunpack.c.l.b16 %v3982
        %v4103 = vunpack.c.l.b16 %v3996
        %v4104 = vunpack.c.l.b16 %v4006
        %v4105 = vunpack.c.l.b16 %v4020
        %v4106 = vunpack.c.l.b16 %v4030
        %v4107 = vunpack.c.l.b16 %v4044
        %v4108 = vunpack.c.l.b16 %v4054
        %v4109 = vunpack.c.l.b16 %v4068
        %v4110 = vunpack.c.l.b16 %v4078
        %v4111 = vpack.c.b16 %v4080, %v4079
        %v4112 = vpack.c.b16 %v4082, %v4081
        %v4113 = vpack.c.b16 %v4084, %v4083
        %v4114 = vpack.c.b16 %v4086, %v4085
        %v4115 = vpack.c.b16 %v4088, %v4087
        %v4116 = vpack.c.b16 %v4090, %v4089
        %v4117 = vpack.c.b16 %v4092, %v4091
        %v4118 = vpack.c.b16 %v4094, %v4093
        %v4119 = vpack.c.b16 %v4096, %v4095
        %v4120 = vpack.c.b16 %v4098, %v4097
        %v4121 = vpack.c.b16 %v4100, %v4099
        %v4122 = vpack.c.b16 %v4102, %v4101
        %v4123 = vpack.c.b16 %v4104, %v4103
        %v4124 = vpack.c.b16 %v4106, %v4105
        %v4125 = vpack.c.b16 %v4108, %v4107
        %v4126 = vpack.c.b16 %v4110, %v4109
        %v4128 = vsel %vm762, %v4111, 0
        %v4131 = vsel %vm762, %v4112, 0
        %v4134 = vsel %vm762, %v4113, 0
        %v4137 = vsel %vm762, %v4114, 0
        %v4140 = vsel %vm762, %v4115, 0
        %v4143 = vsel %vm762, %v4116, 0
        %v4146 = vsel %vm762, %v4117, 0
        %v4149 = vsel %vm762, %v4118, 0
        %v4152 = vsel %vm762, %v4119, 0
        %v4155 = vsel %vm762, %v4120, 0
        %v4158 = vsel %vm762, %v4121, 0
        %v4161 = vsel %vm762, %v4122, 0
        %v4164 = vsel %vm762, %v4123, 0
        %v4167 = vsel %vm762, %v4124, 0
        %v4170 = vsel %vm762, %v4125, 0
        %v4173 = vsel %vm762, %v4126, 0
        %v4176 = vsel %vm811, %v3694, 0
        %4178 = vmatprep.subr.bf16.mxu0 0
        %4179 = vmatpush1.bf16.msra.mxu0 %v4176
        %4180 = vmatprep.subr.bf16.mxu0 0
        %4181 = vmatpush1.bf16.msra.mxu0 0
        %4182 = vmatprep.subr.bf16.mxu0 0
        %4183 = vmatpush1.bf16.msra.mxu0 0
        %4184 = vmatprep.subr.bf16.mxu0 0
        %4185 = vmatpush1.bf16.msra.mxu0 0
        %4186 = vmatprep.subr.bf16.mxu0 0
        %4187 = vmatpush1.bf16.msra.mxu0 0
        %4188 = vmatprep.subr.bf16.mxu0 0
        %4189 = vmatpush1.bf16.msra.mxu0 0
        %4190 = vmatprep.subr.bf16.mxu0 0
        %4191 = vmatpush1.bf16.msra.mxu0 0
        %4192 = vmatprep.subr.bf16.mxu0 0
        %4193 = vmatpush1.bf16.msra.mxu0 0
        %4194 = vmatprep.subr.bf16.mxu0 0
        %4195 = vmatpush1.bf16.msra.mxu0 0
        %4196 = vmatprep.subr.bf16.mxu0 0
        %4197 = vmatpush1.bf16.msra.mxu0 0
        %4198 = vmatprep.subr.bf16.mxu0 0
        %4199 = vmatpush1.bf16.msra.mxu0 0
        %4200 = vmatprep.subr.bf16.mxu0 0
        %4201 = vmatpush1.bf16.msra.mxu0 0
        %4202 = vmatprep.subr.bf16.mxu0 0
        %4203 = vmatpush1.bf16.msra.mxu0 0
        %4204 = vmatprep.subr.bf16.mxu0 0
        %4205 = vmatpush1.bf16.msra.mxu0 0
        %4206 = vmatprep.subr.bf16.mxu0 0
        %4207 = vmatpush1.bf16.msra.mxu0 0
        %4208 = vmatprep.subr.bf16.mxu0 0
        %4209 = vmatpush1.bf16.msra.mxu0 0
        %4210 = vmatprep.mubr.bf16.mxu0 0
        %4211 = vmatmul.mubr.bf16.gmra.mrb[0].mxu0 %v4128
        %v4212 = vpop.f32.mrb[0].mxu0
        %v4213 = vadd.f32 0.0, %v4212
        %v4214 = vpop.f32.mrb[0].mxu0
        %v4215 = vpop.f32.mrb[0].mxu0
        %v4216 = vadd.f32 0.0, %v4215
        %v4217 = vpop.f32.mrb[0].mxu0
        %4218 = vmatprep.mubr.bf16.mxu0 0
        %4219 = vmatmul.mubr.bf16.gmra.mrb[0].mxu0 %v4131
        %v4220 = vpop.f32.mrb[0].mxu0
        %v4221 = vadd.f32 0.0, %v4220
        %v4222 = vpop.f32.mrb[0].mxu0
        %v4223 = vpop.f32.mrb[0].mxu0
        %v4224 = vadd.f32 0.0, %v4223
        %v4225 = vpop.f32.mrb[0].mxu0
        %4226 = vmatprep.mubr.bf16.mxu0 0
        %4227 = vmatmul.mubr.bf16.gmra.mrb[0].mxu0 %v4134
        %v4228 = vpop.f32.mrb[0].mxu0
        %v4229 = vadd.f32 0.0, %v4228
        %v4230 = vpop.f32.mrb[0].mxu0
        %v4231 = vpop.f32.mrb[0].mxu0
        %v4232 = vadd.f32 0.0, %v4231
        %v4233 = vpop.f32.mrb[0].mxu0
        %4234 = vmatprep.mubr.bf16.mxu0 0
        %4235 = vmatmul.mubr.bf16.gmra.mrb[0].mxu0 %v4137
        %v4236 = vpop.f32.mrb[0].mxu0
        %v4237 = vadd.f32 0.0, %v4236
        %v4238 = vpop.f32.mrb[0].mxu0
        %v4239 = vpop.f32.mrb[0].mxu0
        %v4240 = vadd.f32 0.0, %v4239
        %v4241 = vpop.f32.mrb[0].mxu0
        %4242 = vmatprep.mubr.bf16.mxu0 0
        %4243 = vmatmul.mubr.bf16.gmra.mrb[0].mxu0 %v4140
        %v4244 = vpop.f32.mrb[0].mxu0
        %v4245 = vadd.f32 0.0, %v4244
        %v4246 = vpop.f32.mrb[0].mxu0
        %v4247 = vpop.f32.mrb[0].mxu0
        %v4248 = vadd.f32 0.0, %v4247
        %v4249 = vpop.f32.mrb[0].mxu0
        %4250 = vmatprep.mubr.bf16.mxu0 0
        %4251 = vmatmul.mubr.bf16.gmra.mrb[0].mxu0 %v4143
        %v4252 = vpop.f32.mrb[0].mxu0
        %v4253 = vadd.f32 0.0, %v4252
        %v4254 = vpop.f32.mrb[0].mxu0
        %v4255 = vpop.f32.mrb[0].mxu0
        %v4256 = vadd.f32 0.0, %v4255
        %v4257 = vpop.f32.mrb[0].mxu0
        %4258 = vmatprep.mubr.bf16.mxu0 0
        %4259 = vmatmul.mubr.bf16.gmra.mrb[0].mxu0 %v4146
        %v4260 = vpop.f32.mrb[0].mxu0
        %v4261 = vadd.f32 0.0, %v4260
        %v4262 = vpop.f32.mrb[0].mxu0
        %v4263 = vpop.f32.mrb[0].mxu0
        %v4264 = vadd.f32 0.0, %v4263
        %v4265 = vpop.f32.mrb[0].mxu0
        %4266 = vmatprep.mubr.bf16.mxu0 0
        %4267 = vmatmul.mubr.bf16.gmra.mrb[0].mxu0 %v4149
        %v4268 = vpop.f32.mrb[0].mxu0
        %v4269 = vadd.f32 0.0, %v4268
        %v4270 = vpop.f32.mrb[0].mxu0
        %v4271 = vpop.f32.mrb[0].mxu0
        %v4272 = vadd.f32 0.0, %v4271
        %v4273 = vpop.f32.mrb[0].mxu0
        %4274 = vmatprep.mubr.bf16.mxu0 0
        %4275 = vmatmul.mubr.bf16.gmra.mrb[0].mxu0 %v4152
        %v4276 = vpop.f32.mrb[0].mxu0
        %v4277 = vadd.f32 0.0, %v4276
        %v4278 = vpop.f32.mrb[0].mxu0
        %v4279 = vpop.f32.mrb[0].mxu0
        %v4280 = vadd.f32 0.0, %v4279
        %v4281 = vpop.f32.mrb[0].mxu0
        %4282 = vmatprep.mubr.bf16.mxu0 0
        %4283 = vmatmul.mubr.bf16.gmra.mrb[0].mxu0 %v4155
        %v4284 = vpop.f32.mrb[0].mxu0
        %v4285 = vadd.f32 0.0, %v4284
        %v4286 = vpop.f32.mrb[0].mxu0
        %v4287 = vpop.f32.mrb[0].mxu0
        %v4288 = vadd.f32 0.0, %v4287
        %v4289 = vpop.f32.mrb[0].mxu0
        %4290 = vmatprep.mubr.bf16.mxu0 0
        %4291 = vmatmul.mubr.bf16.gmra.mrb[0].mxu0 %v4158
        %v4292 = vpop.f32.mrb[0].mxu0
        %v4293 = vadd.f32 0.0, %v4292
        %v4294 = vpop.f32.mrb[0].mxu0
        %v4295 = vpop.f32.mrb[0].mxu0
        %v4296 = vadd.f32 0.0, %v4295
        %v4297 = vpop.f32.mrb[0].mxu0
        %4298 = vmatprep.mubr.bf16.mxu0 0
        %4299 = vmatmul.mubr.bf16.gmra.mrb[0].mxu0 %v4161
        %v4300 = vpop.f32.mrb[0].mxu0
        %v4301 = vadd.f32 0.0, %v4300
        %v4302 = vpop.f32.mrb[0].mxu0
        %v4303 = vpop.f32.mrb[0].mxu0
        %v4304 = vadd.f32 0.0, %v4303
        %v4305 = vpop.f32.mrb[0].mxu0
        %4306 = vmatprep.mubr.bf16.mxu0 0
        %4307 = vmatmul.mubr.bf16.gmra.mrb[0].mxu0 %v4164
        %v4308 = vpop.f32.mrb[0].mxu0
        %v4309 = vadd.f32 0.0, %v4308
        %v4310 = vpop.f32.mrb[0].mxu0
        %v4311 = vpop.f32.mrb[0].mxu0
        %v4312 = vadd.f32 0.0, %v4311
        %v4313 = vpop.f32.mrb[0].mxu0
        %4314 = vmatprep.mubr.bf16.mxu0 0
        %4315 = vmatmul.mubr.bf16.gmra.mrb[0].mxu0 %v4167
        %v4316 = vpop.f32.mrb[0].mxu0
        %v4317 = vadd.f32 0.0, %v4316
        %v4318 = vpop.f32.mrb[0].mxu0
        %v4319 = vpop.f32.mrb[0].mxu0
        %v4320 = vadd.f32 0.0, %v4319
        %v4321 = vpop.f32.mrb[0].mxu0
        %4322 = vmatprep.mubr.bf16.mxu0 0
        %4323 = vmatmul.mubr.bf16.gmra.mrb[0].mxu0 %v4170
        %v4324 = vpop.f32.mrb[0].mxu0
        %v4325 = vadd.f32 0.0, %v4324
        %v4326 = vpop.f32.mrb[0].mxu0
        %v4327 = vpop.f32.mrb[0].mxu0
        %v4328 = vadd.f32 0.0, %v4327
        %v4329 = vpop.f32.mrb[0].mxu0
        %4330 = vmatprep.mubr.bf16.mxu0 0
        %4331 = vmatmul.mubr.bf16.gmra.mrb[0].mxu0 %v4173
        %v4332 = vpop.f32.mrb[0].mxu0
        %v4333 = vadd.f32 0.0, %v4332
        %v4334 = vpop.f32.mrb[0].mxu0
        %v4335 = vpop.f32.mrb[0].mxu0
        %v4336 = vadd.f32 0.0, %v4335
        %v4337 = vpop.f32.mrb[0].mxu0
        %4338 = vdwg.mxu0
        %v4339 = vadd.f32 %v3613, %v4213
        %v4340 = vadd.f32 %v3614, %v4216
        %v4341 = vadd.f32 %v3615, %v4221
        %v4342 = vadd.f32 %v3616, %v4224
        %v4343 = vadd.f32 %v3617, %v4229
        %v4344 = vadd.f32 %v3618, %v4232
        %v4345 = vadd.f32 %v3619, %v4237
        %v4346 = vadd.f32 %v3620, %v4240
        %v4347 = vadd.f32 %v3621, %v4245
        %v4348 = vadd.f32 %v3622, %v4248
        %v4349 = vadd.f32 %v3623, %v4253
        %v4350 = vadd.f32 %v3624, %v4256
        %v4351 = vadd.f32 %v3625, %v4261
        %v4352 = vadd.f32 %v3626, %v4264
        %v4353 = vadd.f32 %v3627, %v4269
        %v4354 = vadd.f32 %v3628, %v4272
        %v4355 = vadd.f32 %v3629, %v4277
        %v4356 = vadd.f32 %v3630, %v4280
        %v4357 = vadd.f32 %v3631, %v4285
        %v4358 = vadd.f32 %v3632, %v4288
        %v4359 = vadd.f32 %v3633, %v4293
        %v4360 = vadd.f32 %v3634, %v4296
        %v4361 = vadd.f32 %v3635, %v4301
        %v4362 = vadd.f32 %v3636, %v4304
        %v4363 = vadd.f32 %v3637, %v4309
        %v4364 = vadd.f32 %v3638, %v4312
        %v4365 = vadd.f32 %v3639, %v4317
        %v4366 = vadd.f32 %v3640, %v4320
        %v4367 = vadd.f32 %v3641, %v4325
        %v4368 = vadd.f32 %v3642, %v4328
        %v4369 = vadd.f32 %v3643, %v4333
        %v4370 = vadd.f32 %v3644, %v4336
        %v4371 = vld [vmem:[%s3286] sm:$0xe]
        %v4372 = vld [vmem:[%s3286 + $0xc] sm:$0xe]
        %v4373 = vld [vmem:[%s3286 + $0x18] sm:$0xe]
        %v4374 = vld [vmem:[%s3286 + $0x24] sm:$0xe]
        %v4375 = vld [vmem:[%s3286 + $0x30] sm:$0xe]
        %v4376 = vld [vmem:[%s3286 + $0x3c] sm:$0xe]
        %v4377 = vld [vmem:[%s3286 + $0x48] sm:$0xe]
        %v4378 = vld [vmem:[%s3286 + $0x54] sm:$0xe]
        %v4379 = vld [vmem:[%s3286 + $0x60] sm:$0xe]
        %v4380 = vld [vmem:[%s3286 + $0x6c] sm:$0xe]
        %v4381 = vld [vmem:[%s3286 + $0x78] sm:$0xe]
        %v4382 = vld [vmem:[%s3286 + $0x84] sm:$0xe]
        %v4383 = vld [vmem:[%s3286 + $0x90] sm:$0xe]
        %v4384 = vld [vmem:[%s3286 + $0x9c] sm:$0xe]
        %v4385 = vld [vmem:[%s3286 + $0xa8] sm:$0xe]
        %v4386 = vld [vmem:[%s3286 + $0xb4] sm:$0xe]
        %s4387 = scalar_lea.vmem [#allocation5], 16
        %v4388 = vld [vmem:[%s4387] sm:$0x3]
        %v4437 = vrot.slane %v4371, 5
        %v4438 = vrot.slane %v4437, 4
        %v4439 = vrot.slane %v3646, 5
        %v4440 = vsel %vm1320, %v4438, %v4439
        %v4441 = vrot.slane %v4439, 4
        %v4442 = vrot.slane %v3647, 5
        %v4443 = vsel %vm1320, %v4441, %v4442
        %v4444 = vrot.slane %v4372, 5
        %v4445 = vrot.slane %v4444, 4
        %v4446 = vrot.slane %v3649, 5
        %v4447 = vsel %vm1320, %v4445, %v4446
        %v4448 = vrot.slane %v4446, 4
        %v4449 = vrot.slane %v3650, 5
        %v4450 = vsel %vm1320, %v4448, %v4449
        %v4451 = vrot.slane %v4373, 5
        %v4452 = vrot.slane %v4451, 4
        %v4453 = vrot.slane %v3652, 5
        %v4454 = vsel %vm1320, %v4452, %v4453
        %v4455 = vrot.slane %v4453, 4
        %v4456 = vrot.slane %v3653, 5
        %v4457 = vsel %vm1320, %v4455, %v4456
        %v4458 = vrot.slane %v4374, 5
        %v4459 = vrot.slane %v4458, 4
        %v4460 = vrot.slane %v3655, 5
        %v4461 = vsel %vm1320, %v4459, %v4460
        %v4462 = vrot.slane %v4460, 4
        %v4463 = vrot.slane %v3656, 5
        %v4464 = vsel %vm1320, %v4462, %v4463
        %v4465 = vrot.slane %v4375, 5
        %v4466 = vrot.slane %v4465, 4
        %v4467 = vrot.slane %v3658, 5
        %v4468 = vsel %vm1320, %v4466, %v4467
        %v4469 = vrot.slane %v4467, 4
        %v4470 = vrot.slane %v3659, 5
        %v4471 = vsel %vm1320, %v4469, %v4470
        %v4472 = vrot.slane %v4376, 5
        %v4473 = vrot.slane %v4472, 4
        %v4474 = vrot.slane %v3661, 5
        %v4475 = vsel %vm1320, %v4473, %v4474
        %v4476 = vrot.slane %v4474, 4
        %v4477 = vrot.slane %v3662, 5
        %v4478 = vsel %vm1320, %v4476, %v4477
        %v4479 = vrot.slane %v4377, 5
        %v4480 = vrot.slane %v4479, 4
        %v4481 = vrot.slane %v3664, 5
        %v4482 = vsel %vm1320, %v4480, %v4481
        %v4483 = vrot.slane %v4481, 4
        %v4484 = vrot.slane %v3665, 5
        %v4485 = vsel %vm1320, %v4483, %v4484
        %v4486 = vrot.slane %v4378, 5
        %v4487 = vrot.slane %v4486, 4
        %v4488 = vrot.slane %v3667, 5
        %v4489 = vsel %vm1320, %v4487, %v4488
        %v4490 = vrot.slane %v4488, 4
        %v4491 = vrot.slane %v3668, 5
        %v4492 = vsel %vm1320, %v4490, %v4491
        %v4493 = vrot.slane %v4379, 5
        %v4494 = vrot.slane %v4493, 4
        %v4495 = vrot.slane %v3670, 5
        %v4496 = vsel %vm1320, %v4494, %v4495
        %v4497 = vrot.slane %v4495, 4
        %v4498 = vrot.slane %v3671, 5
        %v4499 = vsel %vm1320, %v4497, %v4498
        %v4500 = vrot.slane %v4380, 5
        %v4501 = vrot.slane %v4500, 4
        %v4502 = vrot.slane %v3673, 5
        %v4503 = vsel %vm1320, %v4501, %v4502
        %v4504 = vrot.slane %v4502, 4
        %v4505 = vrot.slane %v3674, 5
        %v4506 = vsel %vm1320, %v4504, %v4505
        %v4507 = vrot.slane %v4381, 5
        %v4508 = vrot.slane %v4507, 4
        %v4509 = vrot.slane %v3676, 5
        %v4510 = vsel %vm1320, %v4508, %v4509
        %v4511 = vrot.slane %v4509, 4
        %v4512 = vrot.slane %v3677, 5
        %v4513 = vsel %vm1320, %v4511, %v4512
        %v4514 = vrot.slane %v4382, 5
        %v4515 = vrot.slane %v4514, 4
        %v4516 = vrot.slane %v3679, 5
        %v4517 = vsel %vm1320, %v4515, %v4516
        %v4518 = vrot.slane %v4516, 4
        %v4519 = vrot.slane %v3680, 5
        %v4520 = vsel %vm1320, %v4518, %v4519
        %v4521 = vrot.slane %v4383, 5
        %v4522 = vrot.slane %v4521, 4
        %v4523 = vrot.slane %v3682, 5
        %v4524 = vsel %vm1320, %v4522, %v4523
        %v4525 = vrot.slane %v4523, 4
        %v4526 = vrot.slane %v3683, 5
        %v4527 = vsel %vm1320, %v4525, %v4526
        %v4528 = vrot.slane %v4384, 5
        %v4529 = vrot.slane %v4528, 4
        %v4530 = vrot.slane %v3685, 5
        %v4531 = vsel %vm1320, %v4529, %v4530
        %v4532 = vrot.slane %v4530, 4
        %v4533 = vrot.slane %v3686, 5
        %v4534 = vsel %vm1320, %v4532, %v4533
        %v4535 = vrot.slane %v4385, 5
        %v4536 = vrot.slane %v4535, 4
        %v4537 = vrot.slane %v3688, 5
        %v4538 = vsel %vm1320, %v4536, %v4537
        %v4539 = vrot.slane %v4537, 4
        %v4540 = vrot.slane %v3689, 5
        %v4541 = vsel %vm1320, %v4539, %v4540
        %v4542 = vrot.slane %v4386, 5
        %v4543 = vrot.slane %v4542, 4
        %v4544 = vrot.slane %v3691, 5
        %v4545 = vsel %vm1320, %v4543, %v4544
        %v4546 = vrot.slane %v4544, 4
        %v4547 = vrot.slane %v3692, 5
        %v4548 = vsel %vm1320, %v4546, %v4547
        %v4549 = vunpack.c.l.b16 %v4440
        %v4550 = vunpack.c.l.b16 %v4443
        %v4551 = vunpack.c.l.b16 %v4447
        %v4552 = vunpack.c.l.b16 %v4450
        %v4553 = vunpack.c.l.b16 %v4454
        %v4554 = vunpack.c.l.b16 %v4457
        %v4555 = vunpack.c.l.b16 %v4461
        %v4556 = vunpack.c.l.b16 %v4464
        %v4557 = vunpack.c.l.b16 %v4468
        %v4558 = vunpack.c.l.b16 %v4471
        %v4559 = vunpack.c.l.b16 %v4475
        %v4560 = vunpack.c.l.b16 %v4478
        %v4561 = vunpack.c.l.b16 %v4482
        %v4562 = vunpack.c.l.b16 %v4485
        %v4563 = vunpack.c.l.b16 %v4489
        %v4564 = vunpack.c.l.b16 %v4492
        %v4565 = vunpack.c.l.b16 %v4496
        %v4566 = vunpack.c.l.b16 %v4499
        %v4567 = vunpack.c.l.b16 %v4503
        %v4568 = vunpack.c.l.b16 %v4506
        %v4569 = vunpack.c.l.b16 %v4510
        %v4570 = vunpack.c.l.b16 %v4513
        %v4571 = vunpack.c.l.b16 %v4517
        %v4572 = vunpack.c.l.b16 %v4520
        %v4573 = vunpack.c.l.b16 %v4524
        %v4574 = vunpack.c.l.b16 %v4527
        %v4575 = vunpack.c.l.b16 %v4531
        %v4576 = vunpack.c.l.b16 %v4534
        %v4577 = vunpack.c.l.b16 %v4538
        %v4578 = vunpack.c.l.b16 %v4541
        %v4579 = vunpack.c.l.b16 %v4545
        %v4580 = vunpack.c.l.b16 %v4548
        %v4581 = vpack.c.b16 %v4550, %v4549
        %v4582 = vpack.c.b16 %v4552, %v4551
        %v4583 = vpack.c.b16 %v4554, %v4553
        %v4584 = vpack.c.b16 %v4556, %v4555
        %v4585 = vpack.c.b16 %v4558, %v4557
        %v4586 = vpack.c.b16 %v4560, %v4559
        %v4587 = vpack.c.b16 %v4562, %v4561
        %v4588 = vpack.c.b16 %v4564, %v4563
        %v4589 = vpack.c.b16 %v4566, %v4565
        %v4590 = vpack.c.b16 %v4568, %v4567
        %v4591 = vpack.c.b16 %v4570, %v4569
        %v4592 = vpack.c.b16 %v4572, %v4571
        %v4593 = vpack.c.b16 %v4574, %v4573
        %v4594 = vpack.c.b16 %v4576, %v4575
        %v4595 = vpack.c.b16 %v4578, %v4577
        %v4596 = vpack.c.b16 %v4580, %v4579
        %v4598 = vsel %vm762, %v4581, 0
        %v4601 = vsel %vm762, %v4582, 0
        %v4604 = vsel %vm762, %v4583, 0
        %v4607 = vsel %vm762, %v4584, 0
        %v4610 = vsel %vm762, %v4585, 0
        %v4613 = vsel %vm762, %v4586, 0
        %v4616 = vsel %vm762, %v4587, 0
        %v4619 = vsel %vm762, %v4588, 0
        %v4622 = vsel %vm762, %v4589, 0
        %v4625 = vsel %vm762, %v4590, 0
        %v4628 = vsel %vm762, %v4591, 0
        %v4631 = vsel %vm762, %v4592, 0
        %v4634 = vsel %vm762, %v4593, 0
        %v4637 = vsel %vm762, %v4594, 0
        %v4640 = vsel %vm762, %v4595, 0
        %v4643 = vsel %vm762, %v4596, 0
        %v4646 = vsel %vm811, %v4388, 0
        %4648 = vmatprep.subr.bf16.mxu0 0
        %4649 = vmatpush1.bf16.msra.mxu0 %v4646
        %4650 = vmatprep.subr.bf16.mxu0 0
        %4651 = vmatpush1.bf16.msra.mxu0 0
        %4652 = vmatprep.subr.bf16.mxu0 0
        %4653 = vmatpush1.bf16.msra.mxu0 0
        %4654 = vmatprep.subr.bf16.mxu0 0
        %4655 = vmatpush1.bf16.msra.mxu0 0
        %4656 = vmatprep.subr.bf16.mxu0 0
        %4657 = vmatpush1.bf16.msra.mxu0 0
        %4658 = vmatprep.subr.bf16.mxu0 0
        %4659 = vmatpush1.bf16.msra.mxu0 0
        %4660 = vmatprep.subr.bf16.mxu0 0
        %4661 = vmatpush1.bf16.msra.mxu0 0
        %4662 = vmatprep.subr.bf16.mxu0 0
        %4663 = vmatpush1.bf16.msra.mxu0 0
        %4664 = vmatprep.subr.bf16.mxu0 0
        %4665 = vmatpush1.bf16.msra.mxu0 0
        %4666 = vmatprep.subr.bf16.mxu0 0
        %4667 = vmatpush1.bf16.msra.mxu0 0
        %4668 = vmatprep.subr.bf16.mxu0 0
        %4669 = vmatpush1.bf16.msra.mxu0 0
        %4670 = vmatprep.subr.bf16.mxu0 0
        %4671 = vmatpush1.bf16.msra.mxu0 0
        %4672 = vmatprep.subr.bf16.mxu0 0
        %4673 = vmatpush1.bf16.msra.mxu0 0
        %4674 = vmatprep.subr.bf16.mxu0 0
        %4675 = vmatpush1.bf16.msra.mxu0 0
        %4676 = vmatprep.subr.bf16.mxu0 0
        %4677 = vmatpush1.bf16.msra.mxu0 0
        %4678 = vmatprep.subr.bf16.mxu0 0
        %4679 = vmatpush1.bf16.msra.mxu0 0
        %4680 = vmatprep.mubr.bf16.mxu0 0
        %4681 = vmatmul.mubr.bf16.gmra.mrb[0].mxu0 %v4598
        %v4682 = vpop.f32.mrb[0].mxu0
        %v4683 = vadd.f32 0.0, %v4682
        %v4684 = vpop.f32.mrb[0].mxu0
        %v4685 = vpop.f32.mrb[0].mxu0
        %v4686 = vadd.f32 0.0, %v4685
        %v4687 = vpop.f32.mrb[0].mxu0
        %4688 = vmatprep.mubr.bf16.mxu0 0
        %4689 = vmatmul.mubr.bf16.gmra.mrb[0].mxu0 %v4601
        %v4690 = vpop.f32.mrb[0].mxu0
        %v4691 = vadd.f32 0.0, %v4690
        %v4692 = vpop.f32.mrb[0].mxu0
        %v4693 = vpop.f32.mrb[0].mxu0
        %v4694 = vadd.f32 0.0, %v4693
        %v4695 = vpop.f32.mrb[0].mxu0
        %4696 = vmatprep.mubr.bf16.mxu0 0
        %4697 = vmatmul.mubr.bf16.gmra.mrb[0].mxu0 %v4604
        %v4698 = vpop.f32.mrb[0].mxu0
        %v4699 = vadd.f32 0.0, %v4698
        %v4700 = vpop.f32.mrb[0].mxu0
        %v4701 = vpop.f32.mrb[0].mxu0
        %v4702 = vadd.f32 0.0, %v4701
        %v4703 = vpop.f32.mrb[0].mxu0
        %4704 = vmatprep.mubr.bf16.mxu0 0
        %4705 = vmatmul.mubr.bf16.gmra.mrb[0].mxu0 %v4607
        %v4706 = vpop.f32.mrb[0].mxu0
        %v4707 = vadd.f32 0.0, %v4706
        %v4708 = vpop.f32.mrb[0].mxu0
        %v4709 = vpop.f32.mrb[0].mxu0
        %v4710 = vadd.f32 0.0, %v4709
        %v4711 = vpop.f32.mrb[0].mxu0
        %4712 = vmatprep.mubr.bf16.mxu0 0
        %4713 = vmatmul.mubr.bf16.gmra.mrb[0].mxu0 %v4610
        %v4714 = vpop.f32.mrb[0].mxu0
        %v4715 = vadd.f32 0.0, %v4714
        %v4716 = vpop.f32.mrb[0].mxu0
        %v4717 = vpop.f32.mrb[0].mxu0
        %v4718 = vadd.f32 0.0, %v4717
        %v4719 = vpop.f32.mrb[0].mxu0
        %4720 = vmatprep.mubr.bf16.mxu0 0
        %4721 = vmatmul.mubr.bf16.gmra.mrb[0].mxu0 %v4613
        %v4722 = vpop.f32.mrb[0].mxu0
        %v4723 = vadd.f32 0.0, %v4722
        %v4724 = vpop.f32.mrb[0].mxu0
        %v4725 = vpop.f32.mrb[0].mxu0
        %v4726 = vadd.f32 0.0, %v4725
        %v4727 = vpop.f32.mrb[0].mxu0
        %4728 = vmatprep.mubr.bf16.mxu0 0
        %4729 = vmatmul.mubr.bf16.gmra.mrb[0].mxu0 %v4616
        %v4730 = vpop.f32.mrb[0].mxu0
        %v4731 = vadd.f32 0.0, %v4730
        %v4732 = vpop.f32.mrb[0].mxu0
        %v4733 = vpop.f32.mrb[0].mxu0
        %v4734 = vadd.f32 0.0, %v4733
        %v4735 = vpop.f32.mrb[0].mxu0
        %4736 = vmatprep.mubr.bf16.mxu0 0
        %4737 = vmatmul.mubr.bf16.gmra.mrb[0].mxu0 %v4619
        %v4738 = vpop.f32.mrb[0].mxu0
        %v4739 = vadd.f32 0.0, %v4738
        %v4740 = vpop.f32.mrb[0].mxu0
        %v4741 = vpop.f32.mrb[0].mxu0
        %v4742 = vadd.f32 0.0, %v4741
        %v4743 = vpop.f32.mrb[0].mxu0
        %4744 = vmatprep.mubr.bf16.mxu0 0
        %4745 = vmatmul.mubr.bf16.gmra.mrb[0].mxu0 %v4622
        %v4746 = vpop.f32.mrb[0].mxu0
        %v4747 = vadd.f32 0.0, %v4746
        %v4748 = vpop.f32.mrb[0].mxu0
        %v4749 = vpop.f32.mrb[0].mxu0
        %v4750 = vadd.f32 0.0, %v4749
        %v4751 = vpop.f32.mrb[0].mxu0
        %4752 = vmatprep.mubr.bf16.mxu0 0
        %4753 = vmatmul.mubr.bf16.gmra.mrb[0].mxu0 %v4625
        %v4754 = vpop.f32.mrb[0].mxu0
        %v4755 = vadd.f32 0.0, %v4754
        %v4756 = vpop.f32.mrb[0].mxu0
        %v4757 = vpop.f32.mrb[0].mxu0
        %v4758 = vadd.f32 0.0, %v4757
        %v4759 = vpop.f32.mrb[0].mxu0
        %4760 = vmatprep.mubr.bf16.mxu0 0
        %4761 = vmatmul.mubr.bf16.gmra.mrb[0].mxu0 %v4628
        %v4762 = vpop.f32.mrb[0].mxu0
        %v4763 = vadd.f32 0.0, %v4762
        %v4764 = vpop.f32.mrb[0].mxu0
        %v4765 = vpop.f32.mrb[0].mxu0
        %v4766 = vadd.f32 0.0, %v4765
        %v4767 = vpop.f32.mrb[0].mxu0
        %4768 = vmatprep.mubr.bf16.mxu0 0
        %4769 = vmatmul.mubr.bf16.gmra.mrb[0].mxu0 %v4631
        %v4770 = vpop.f32.mrb[0].mxu0
        %v4771 = vadd.f32 0.0, %v4770
        %v4772 = vpop.f32.mrb[0].mxu0
        %v4773 = vpop.f32.mrb[0].mxu0
        %v4774 = vadd.f32 0.0, %v4773
        %v4775 = vpop.f32.mrb[0].mxu0
        %4776 = vmatprep.mubr.bf16.mxu0 0
        %4777 = vmatmul.mubr.bf16.gmra.mrb[0].mxu0 %v4634
        %v4778 = vpop.f32.mrb[0].mxu0
        %v4779 = vadd.f32 0.0, %v4778
        %v4780 = vpop.f32.mrb[0].mxu0
        %v4781 = vpop.f32.mrb[0].mxu0
        %v4782 = vadd.f32 0.0, %v4781
        %v4783 = vpop.f32.mrb[0].mxu0
        %4784 = vmatprep.mubr.bf16.mxu0 0
        %4785 = vmatmul.mubr.bf16.gmra.mrb[0].mxu0 %v4637
        %v4786 = vpop.f32.mrb[0].mxu0
        %v4787 = vadd.f32 0.0, %v4786
        %v4788 = vpop.f32.mrb[0].mxu0
        %v4789 = vpop.f32.mrb[0].mxu0
        %v4790 = vadd.f32 0.0, %v4789
        %v4791 = vpop.f32.mrb[0].mxu0
        %4792 = vmatprep.mubr.bf16.mxu0 0
        %4793 = vmatmul.mubr.bf16.gmra.mrb[0].mxu0 %v4640
        %v4794 = vpop.f32.mrb[0].mxu0
        %v4795 = vadd.f32 0.0, %v4794
        %v4796 = vpop.f32.mrb[0].mxu0
        %v4797 = vpop.f32.mrb[0].mxu0
        %v4798 = vadd.f32 0.0, %v4797
        %v4799 = vpop.f32.mrb[0].mxu0
        %4800 = vmatprep.mubr.bf16.mxu0 0
        %4801 = vmatmul.mubr.bf16.gmra.mrb[0].mxu0 %v4643
        %v4802 = vpop.f32.mrb[0].mxu0
        %v4803 = vadd.f32 0.0, %v4802
        %v4804 = vpop.f32.mrb[0].mxu0
        %v4805 = vpop.f32.mrb[0].mxu0
        %v4806 = vadd.f32 0.0, %v4805
        %v4807 = vpop.f32.mrb[0].mxu0
        %4808 = vdwg.mxu0
        %v4809 = vadd.f32 %v4339, %v4683
        %v4810 = vadd.f32 %v4340, %v4686
        %v4811 = vadd.f32 %v4341, %v4691
        %v4812 = vadd.f32 %v4342, %v4694
        %v4813 = vadd.f32 %v4343, %v4699
        %v4814 = vadd.f32 %v4344, %v4702
        %v4815 = vadd.f32 %v4345, %v4707
        %v4816 = vadd.f32 %v4346, %v4710
        %v4817 = vadd.f32 %v4347, %v4715
        %v4818 = vadd.f32 %v4348, %v4718
        %v4819 = vadd.f32 %v4349, %v4723
        %v4820 = vadd.f32 %v4350, %v4726
        %v4821 = vadd.f32 %v4351, %v4731
        %v4822 = vadd.f32 %v4352, %v4734
        %v4823 = vadd.f32 %v4353, %v4739
        %v4824 = vadd.f32 %v4354, %v4742
        %v4825 = vadd.f32 %v4355, %v4747
        %v4826 = vadd.f32 %v4356, %v4750
        %v4827 = vadd.f32 %v4357, %v4755
        %v4828 = vadd.f32 %v4358, %v4758
        %v4829 = vadd.f32 %v4359, %v4763
        %v4830 = vadd.f32 %v4360, %v4766
        %v4831 = vadd.f32 %v4361, %v4771
        %v4832 = vadd.f32 %v4362, %v4774
        %v4833 = vadd.f32 %v4363, %v4779
        %v4834 = vadd.f32 %v4364, %v4782
        %v4835 = vadd.f32 %v4365, %v4787
        %v4836 = vadd.f32 %v4366, %v4790
        %v4837 = vadd.f32 %v4367, %v4795
        %v4838 = vadd.f32 %v4368, %v4798
        %v4839 = vadd.f32 %v4369, %v4803
        %v4840 = vadd.f32 %v4370, %v4806
        %v4841 = vld [vmem:[#allocation7] sm:$0x1]
        %v4843 = vlaneseq
        %v4844 = vshrl.u32 %v4843, 7
        %v4845 = vsub.s32 0, %v4844
        %v4846 = vrot.slane %v4841, %v4845
        %v4848 = vmul.f32 %v4809, %v4846
        %v4849 = vmul.f32 %v4810, %v4846
        %v4850 = vmul.f32 %v4811, %v4846
        %v4851 = vmul.f32 %v4812, %v4846
        %v4852 = vmul.f32 %v4813, %v4846
        %v4853 = vmul.f32 %v4814, %v4846
        %v4854 = vmul.f32 %v4815, %v4846
        %v4855 = vmul.f32 %v4816, %v4846
        %v4856 = vmul.f32 %v4817, %v4846
        %v4857 = vmul.f32 %v4818, %v4846
        %v4858 = vmul.f32 %v4819, %v4846
        %v4859 = vmul.f32 %v4820, %v4846
        %v4860 = vmul.f32 %v4821, %v4846
        %v4861 = vmul.f32 %v4822, %v4846
        %v4862 = vmul.f32 %v4823, %v4846
        %v4863 = vmul.f32 %v4824, %v4846
        %v4864 = vmul.f32 %v4825, %v4846
        %v4865 = vmul.f32 %v4826, %v4846
        %v4866 = vmul.f32 %v4827, %v4846
        %v4867 = vmul.f32 %v4828, %v4846
        %v4868 = vmul.f32 %v4829, %v4846
        %v4869 = vmul.f32 %v4830, %v4846
        %v4870 = vmul.f32 %v4831, %v4846
        %v4871 = vmul.f32 %v4832, %v4846
        %v4872 = vmul.f32 %v4833, %v4846
        %v4873 = vmul.f32 %v4834, %v4846
        %v4874 = vmul.f32 %v4835, %v4846
        %v4875 = vmul.f32 %v4836, %v4846
        %v4876 = vmul.f32 %v4837, %v4846
        %v4877 = vmul.f32 %v4838, %v4846
        %v4878 = vmul.f32 %v4839, %v4846
        %v4879 = vmul.f32 %v4840, %v4846
        %v4880 = vld [vmem:[#allocation8] sm:$0x1]
        %v4882 = vlaneseq
        %v4883 = vshrl.u32 %v4882, 7
        %v4884 = vsub.s32 0, %v4883
        %v4885 = vrot.slane %v4880, %v4884
        %v4887 = vadd.f32 %v4848, %v4885
        %v4888 = vadd.f32 %v4849, %v4885
        %v4889 = vadd.f32 %v4850, %v4885
        %v4890 = vadd.f32 %v4851, %v4885
        %v4891 = vadd.f32 %v4852, %v4885
        %v4892 = vadd.f32 %v4853, %v4885
        %v4893 = vadd.f32 %v4854, %v4885
        %v4894 = vadd.f32 %v4855, %v4885
        %v4895 = vadd.f32 %v4856, %v4885
        %v4896 = vadd.f32 %v4857, %v4885
        %v4897 = vadd.f32 %v4858, %v4885
        %v4898 = vadd.f32 %v4859, %v4885
        %v4899 = vadd.f32 %v4860, %v4885
        %v4900 = vadd.f32 %v4861, %v4885
        %v4901 = vadd.f32 %v4862, %v4885
        %v4902 = vadd.f32 %v4863, %v4885
        %v4903 = vadd.f32 %v4864, %v4885
        %v4904 = vadd.f32 %v4865, %v4885
        %v4905 = vadd.f32 %v4866, %v4885
        %v4906 = vadd.f32 %v4867, %v4885
        %v4907 = vadd.f32 %v4868, %v4885
        %v4908 = vadd.f32 %v4869, %v4885
        %v4909 = vadd.f32 %v4870, %v4885
        %v4910 = vadd.f32 %v4871, %v4885
        %v4911 = vadd.f32 %v4872, %v4885
        %v4912 = vadd.f32 %v4873, %v4885
        %v4913 = vadd.f32 %v4874, %v4885
        %v4914 = vadd.f32 %v4875, %v4885
        %v4915 = vadd.f32 %v4876, %v4885
        %v4916 = vadd.f32 %v4877, %v4885
        %v4917 = vadd.f32 %v4878, %v4885
        %v4918 = vadd.f32 %v4879, %v4885
        %v4919 = vmax.f32 %v4887, 0.0
        %v4920 = vmax.f32 %v4888, 0.0
        %v4921 = vmax.f32 %v4889, 0.0
        %v4922 = vmax.f32 %v4890, 0.0
        %v4923 = vmax.f32 %v4891, 0.0
        %v4924 = vmax.f32 %v4892, 0.0
        %v4925 = vmax.f32 %v4893, 0.0
        %v4926 = vmax.f32 %v4894, 0.0
        %v4927 = vmax.f32 %v4895, 0.0
        %v4928 = vmax.f32 %v4896, 0.0
        %v4929 = vmax.f32 %v4897, 0.0
        %v4930 = vmax.f32 %v4898, 0.0
        %v4931 = vmax.f32 %v4899, 0.0
        %v4932 = vmax.f32 %v4900, 0.0
        %v4933 = vmax.f32 %v4901, 0.0
        %v4934 = vmax.f32 %v4902, 0.0
        %v4935 = vmax.f32 %v4903, 0.0
        %v4936 = vmax.f32 %v4904, 0.0
        %v4937 = vmax.f32 %v4905, 0.0
        %v4938 = vmax.f32 %v4906, 0.0
        %v4939 = vmax.f32 %v4907, 0.0
        %v4940 = vmax.f32 %v4908, 0.0
        %v4941 = vmax.f32 %v4909, 0.0
        %v4942 = vmax.f32 %v4910, 0.0
        %v4943 = vmax.f32 %v4911, 0.0
        %v4944 = vmax.f32 %v4912, 0.0
        %v4945 = vmax.f32 %v4913, 0.0
        %v4946 = vmax.f32 %v4914, 0.0
        %v4947 = vmax.f32 %v4915, 0.0
        %v4948 = vmax.f32 %v4916, 0.0
        %v4949 = vmax.f32 %v4917, 0.0
        %v4950 = vmax.f32 %v4918, 0.0
        %vm4951 = vcmask 64512
        %4952 = vst.msk [vmem:[%s269] sm:$0xff] %vm4951, %v4919
        %4953 = vst.msk [vmem:[%s269 + $0x8] sm:$0xff] %vm4951, %v4920
        %4954 = vst.msk [vmem:[%s269 + $0x10] sm:$0xff] %vm4951, %v4921
        %4955 = vst.msk [vmem:[%s269 + $0x18] sm:$0xff] %vm4951, %v4922
        %4956 = vst.msk [vmem:[%s269 + $0x20] sm:$0xff] %vm4951, %v4923
        %4957 = vst.msk [vmem:[%s269 + $0x28] sm:$0xff] %vm4951, %v4924
        %4958 = vst.msk [vmem:[%s269 + $0x30] sm:$0xff] %vm4951, %v4925
        %4959 = vst.msk [vmem:[%s269 + $0x38] sm:$0xff] %vm4951, %v4926
        %4960 = vst.msk [vmem:[%s269 + $0x40] sm:$0xff] %vm4951, %v4927
        %4961 = vst.msk [vmem:[%s269 + $0x48] sm:$0xff] %vm4951, %v4928
        %4962 = vst.msk [vmem:[%s269 + $0x50] sm:$0xff] %vm4951, %v4929
        %4963 = vst.msk [vmem:[%s269 + $0x58] sm:$0xff] %vm4951, %v4930
        %4964 = vst.msk [vmem:[%s269 + $0x60] sm:$0xff] %vm4951, %v4931
        %4965 = vst.msk [vmem:[%s269 + $0x68] sm:$0xff] %vm4951, %v4932
        %4966 = vst.msk [vmem:[%s269 + $0x70] sm:$0xff] %vm4951, %v4933
        %4967 = vst.msk [vmem:[%s269 + $0x78] sm:$0xff] %vm4951, %v4934
        %4968 = vst.msk [vmem:[%s269 + $0x80] sm:$0xff] %vm4951, %v4935
        %4969 = vst.msk [vmem:[%s269 + $0x88] sm:$0xff] %vm4951, %v4936
        %4970 = vst.msk [vmem:[%s269 + $0x90] sm:$0xff] %vm4951, %v4937
        %4971 = vst.msk [vmem:[%s269 + $0x98] sm:$0xff] %vm4951, %v4938
        %4972 = vst.msk [vmem:[%s269 + $0xa0] sm:$0xff] %vm4951, %v4939
        %4973 = vst.msk [vmem:[%s269 + $0xa8] sm:$0xff] %vm4951, %v4940
        %4974 = vst.msk [vmem:[%s269 + $0xb0] sm:$0xff] %vm4951, %v4941
        %4975 = vst.msk [vmem:[%s269 + $0xb8] sm:$0xff] %vm4951, %v4942
        %4976 = vst.msk [vmem:[%s269 + $0xc0] sm:$0xff] %vm4951, %v4943
        %4977 = vst.msk [vmem:[%s269 + $0xc8] sm:$0xff] %vm4951, %v4944
        %4978 = vst.msk [vmem:[%s269 + $0xd0] sm:$0xff] %vm4951, %v4945
        %4979 = vst.msk [vmem:[%s269 + $0xd8] sm:$0xff] %vm4951, %v4946
        %4980 = vst.msk [vmem:[%s269 + $0xe0] sm:$0xff] %vm4951, %v4947
        %4981 = vst.msk [vmem:[%s269 + $0xe8] sm:$0xff] %vm4951, %v4948
        %4982 = vst.msk [vmem:[%s269 + $0xf0] sm:$0xff] %vm4951, %v4949
        %4983 = vst.msk [vmem:[%s269 + $0xf8] sm:$0xff] %vm4951, %v4950
        %s4984 = sand.u32 %s134, 1
        %s4985 = scalar_lea.sflag [#allocation4], %s4984
        %s4986 = sand.u32 %s134, 1
        %s4987 = smul.addr %s4986, 256
        %s4988 = scalar_lea.vmem [#allocation10], %s4987
        // Predicated region
        $region53: #{tpu_custom_call.1} parent=35 // pred_check
          %p4989 = pneg %p144
        $region54: #{tpu_custom_call.1} parent=35 // pred_check_branch
          %4991 = sbr.rel (%p4989) target = $region56
        $region55: #{tpu_custom_call.1} parent=35 // pred_region
          %s4992 = smul.u32 16, %s28
          %s4994 = ssub.s32 4096, 4096
          %4995 = vsyncadd %s4985, %s4994
          %s4996 = smul.addr %s4992, 2
          %s4997 = smul.addr %s27, 32
          %s4998 = sadd.s32 %s4996, %s4997
          %s4999 = smul.addr %s4998, 128
          %s5000 = scalar_lea.hbm %s4, %s4999
          %s5001 = sshll.u32 %s4988, 4
          %s5002 = int_to_ptr.vmem [resolvable:$true] %s5001
          %5007 = dma.vmem_to_hbm [thread:$0]  %s5002, 4096, %s5000, %s4985, 128, 128, 8
        $region56: #{tpu_custom_call.1} parent=35 // pred_fallthru
          _
      $region36: #{tpu_custom_call.1} parent=5 // pred_fallthru
        _
      %p5008 = scmp.le.s32.totalorder 2, %s18
      // Predicated region
      $region57: #{tpu_custom_call.1} parent=5 // pred_check
        %p5009 = pneg %p5008
      $region58: #{tpu_custom_call.1} parent=5 // pred_check_branch
        %5011 = sbr.rel (%p5009) target = $region60
      $region59: #{tpu_custom_call.1} parent=5 // pred_region
        %s5012 = ssub.s32 %s18, 2
        // Predicated region
        $region61: #{tpu_custom_call.1} parent=59 // pred_check
          %p5013 = pneg %p150
        $region62: #{tpu_custom_call.1} parent=59 // pred_check_branch
          %5015 = sbr.rel (%p5013) target = $region64
        $region63: #{tpu_custom_call.1} parent=59 // pred_region
          %s5016 = sand.u32 %s135, 1
          %s5017 = scalar_lea.sflag [#allocation4], %s5016
          %s5018 = sand.u32 %s135, 1
          %s5019 = smul.addr %s5018, 256
          %s5020 = scalar_lea.vmem [#allocation10], %s5019
          %5021 = dma.done %s5017, 4096
        $region64: #{tpu_custom_call.1} parent=59 // pred_fallthru
          _
      $region60: #{tpu_custom_call.1} parent=5 // pred_fallthru
        _
    $region6: #{tpu_custom_call.1} parent=1 // loop_footer
      %s22 = sadd.s32 1, %s18
    $region7: #{tpu_custom_call.1} parent=1 // loop_footer_branch
      %17 = sbr.rel target = $region3
    $region8: #{tpu_custom_call.1} parent=1 // loop_exit
      _
    %5022 = vsyncpa [#allocation3], 1
    %s5023 = scalar_lea.sflag [#allocation3], 1
    %5024 = vsyncpa %s5023, 1
    %5025 = vsyncpa [#allocation6], 1
    %5026 = vsyncpa [#allocation9], 1
    %5027 = vsyncpa [#allocation4], 1
    %s5028 = scalar_lea.sflag [#allocation4], 1
    %5029 = vsyncpa %s5028, 1

</llo_original>
